<compile_context>
chip_gen: v6e
topology: v6e:2x2x1
jax: 0.10.0
libtpu: 0.0.40
codegen_flags: <defaults>
</compile_context>

<pallas_src>
import jax
import jax.numpy as jnp
from jax.experimental import pallas as pl
from jax.experimental.pallas import tpu as pltpu

# ---------------- static geometry (BabyConvNet on 1x16x16 inputs) ----------------
H = W = 16                  # input spatial size
C1, C2 = 64, 128            # conv1 / conv2 output channels
H1, W1 = H // 2, W // 2     # after first 2x2 max-pool  -> 8x8
H2, W2 = H1 // 2, W1 // 2   # after second 2x2 max-pool -> 4x4

ROWS1 = 4 * H1 * W1         # 256 conv1 output rows per image, ordered (py, px, i, j)
K1 = 16                     # conv1 tap count 9, zero-padded to 16 (aligned K for the MXU)

B_IMGS = 8                  # images per grid step (raise to 16-32 on v5e/v6e)
PITCH = 16                  # raster row pitch per pooled-row (>= W1 + 2, multiple of 8)
IMG_STRIDE = 144            # raster rows reserved per image (>= 119 + 17 + 1, mult. of 16)
BASE = 24                   # zero head-margin rows (>= PITCH, multiple of 8)
SPAN = IMG_STRIDE * B_IMGS  # conv2 output rows computed per step (valid + gap rows)
PPROWS = SPAN + 40          # raster scratch rows: reads cover [BASE-16, BASE+16+SPAN)


def _fused_kernel(x9_ref, w1_ref, b1_ref, w2_ref, b2_ref, out_ref, pp_ref):
    B = B_IMGS

    # ---- conv1 (1->64, 3x3, pad=1) + ReLU: one MXU matmul over B*256 pixel rows ----
    act1 = jnp.dot(x9_ref[...], w1_ref[...],               # (B*256,16) @ (16,64)
                   preferred_element_type=jnp.float32)
    act1 = jnp.maximum(act1 + b1_ref[...], 0.0)            # (B*256, 64)

    # ---- MaxPool2d(2): rows ordered (b, py, px, i, j) -> max of 4 parity blocks ----
    a4 = act1.reshape(B, 4, H1 * W1, C1)                   # tile-aligned reshape
    p1 = jnp.maximum(jnp.maximum(a4[:, 0], a4[:, 1]),
                     jnp.maximum(a4[:, 2], a4[:, 3]))      # (B, 64, 64)

    # TODO(synk): nn.Dropout(0.2) is identity at inference time; omitted.

    # ---- scatter pooled1 into a zero-padded, 192-lane raster held in VMEM ----
    # Lane block kw in {0,1,2} holds the raster shifted by (kw-1) rows, so conv2's
    # three kw taps are read as one aligned, lane-concatenated slab per kh.
    # Full memset each step keeps the margins/gaps zero and is megacore-safe
    # (a once-only, program_id==0 init would miss one core's private scratch).
    pp_ref[...] = jnp.zeros((PPROWS, 3 * C1), jnp.float32)
    for b in range(B):
        for i in range(H1):
            blk = p1[b, i * W1:(i + 1) * W1, :]            # (8, 64)
            r = BASE + b * IMG_STRIDE + i * PITCH          # multiple of 8
            pp_ref[r + 1:r + 1 + W1, 0:C1] = blk           # kw = 0 tap block
            pp_ref[r:r + W1, C1:2 * C1] = blk              # kw = 1 tap block (aligned)
            pp_ref[r - 1:r - 1 + W1, 2 * C1:3 * C1] = blk  # kw = 2 tap block

    # ---- conv2 (64->128, 3x3, pad=1) + ReLU: 3 aligned MXU matmuls with K=192 ----
    acc2 = None
    for kh in range(3):
        s0 = BASE + (kh - 1) * PITCH                       # 8 / 24 / 40: 8-row aligned
        d = jnp.dot(pp_ref[s0:s0 + SPAN, :], w2_ref[kh],   # (SPAN,192) @ (192,128)
                    preferred_element_type=jnp.float32)
        acc2 = d if acc2 is None else acc2 + d
    act2 = jnp.maximum(acc2 + b2_ref[...], 0.0)            # (SPAN, 128), lane-dense

    # ---- MaxPool2d(2) + AdaptiveAvgPool2d((1,1)): vectorized epilogue ----
    # Valid conv2 row for image b, pixel (i, j) lives at raster row b*144 + 16i + j.
    a2 = act2.reshape(B, IMG_STRIDE, C2)[:, :H1 * PITCH, :]      # (B, 128, 128)
    a2 = a2.reshape(B, H1 // 2, 2 * PITCH, C2)                   # (B, 4, 32, 128)
    vmax = jnp.maximum(a2[:, :, 0:W1, :],                        # rows i = 2a
                       a2[:, :, PITCH:PITCH + W1, :])            # rows i = 2a + 1
    s = None
    for e in range(W2):                                          # column pairs (j=2e, 2e+1)
        m = jnp.maximum(vmax[:, :, 2 * e, :], vmax[:, :, 2 * e + 1, :])   # (B, 4, 128)
        s = m if s is None else s + m
    out_ref[...] = jnp.sum(s, axis=1) * (1.0 / float(H2 * W2))   # (B, 128) dense store


@jax.jit
def baby_conv_net(x_nchw, params):
    """BabyConvNet forward. x_nchw: (N, 1, 16, 16) float32 -> (N, 128) float32."""
    N = x_nchw.shape[0]
    assert x_nchw.shape[1:] == (1, H, W)
    B = B_IMGS
    G = (N + B - 1) // B
    Np = G * B

    # Host-side glue touches only the raw input: pad batch to a multiple of B,
    # pad spatially + 9 shifted 16x16 views, rows ordered (image, py, px, i, j)
    # so pool1 is a contiguous-block max inside the kernel.
    img = x_nchw[:, 0, :, :]
    if Np != N:
        img = jnp.pad(img, ((0, Np - N), (0, 0), (0, 0)))
    xpad = jnp.pad(img, ((0, 0), (1, 1), (1, 1)))
    taps = jnp.stack([xpad[:, kh:kh + H, kw:kw + W]
                      for kh in range(3) for kw in range(3)], axis=-1)    # (Np,16,16,9)
    taps = taps.reshape(Np, H1, 2, W1, 2, 9).transpose(0, 2, 4, 1, 3, 5)  # (Np,py,px,i,j,t)
    x_taps = taps.reshape(Np * ROWS1, 9)
    x_taps = jnp.pad(x_taps, ((0, 0), (0, K1 - 9)))                       # K padded to 16

    # PyTorch (Cout, Cin, kh, kw) weights -> kernel-friendly layouts (tiny, once per call).
    w1m = jnp.transpose(params["w1"], (2, 3, 1, 0)).reshape(9, C1)        # (9, 64)
    w1m = jnp.pad(w1m, ((0, K1 - 9), (0, 0)))                             # (16, 64)
    # (kh, kw, Cin, Cout) -> (kh, kw*64 + c, Cout): K-block kw matches raster lane block kw.
    w2m = jnp.transpose(params["w2"], (2, 3, 1, 0)).reshape(3, 3 * C1, C2)
    b1m = params["b1"].reshape(1, C1)
    b2m = params["b2"].reshape(1, C2)

    out = pl.pallas_call(
        _fused_kernel,
        out_shape=jax.ShapeDtypeStruct((Np, C2), jnp.float32),
        grid_spec=pltpu.PrefetchScalarGridSpec(
            num_scalar_prefetch=0,
            grid=(G,),                                          # B images per program
            in_specs=[
                pl.BlockSpec((B * ROWS1, K1), lambda n: (n, 0)),   # this step's conv1 taps
                pl.BlockSpec((K1, C1), lambda n: (0, 0)),          # weights stay resident
                pl.BlockSpec((1, C1), lambda n: (0, 0)),
                pl.BlockSpec((3, 3 * C1, C2), lambda n: (0, 0, 0)),
                pl.BlockSpec((1, C2), lambda n: (0, 0)),
            ],
            out_specs=pl.BlockSpec((B, C2), lambda n: (n, 0)),     # dense (8,128) tile
            scratch_shapes=[pltpu.VMEM((PPROWS, 3 * C1), jnp.float32)],
        ),
        compiler_params=pltpu.CompilerParams(
            dimension_semantics=("parallel",),                     # v7x: 2 TCs split steps
        ),
    )(x_taps, w1m, b1m, w2m, b2m)
    return out[:N]


# ---------------- pure-XLA reference (mirror of the PyTorch module, eval mode) ----------------
def _reference(x_nchw, params):
    def conv_relu(x, w, b):
        y = jax.lax.conv_general_dilated(
            x, w, window_strides=(1, 1), padding=((1, 1), (1, 1)),
            dimension_numbers=("NCHW", "OIHW", "NCHW"),
            precision=jax.lax.Precision.HIGHEST)
        return jax.nn.relu(y + b[None, :, None, None])

    def maxpool2(x):
        return jax.lax.reduce_window(x, -jnp.inf, jax.lax.max,
                                     (1, 1, 2, 2), (1, 1, 2, 2), "VALID")

    y = maxpool2(conv_relu(x_nchw, params["w1"], params["b1"]))
    y = maxpool2(conv_relu(y, params["w2"], params["b2"]))
    return jnp.mean(y, axis=(2, 3))          # AdaptiveAvgPool2d((1,1)) + Flatten


def init_params(key):
    k1, k2, k3, k4 = jax.random.split(key, 4)
    # PyTorch Conv2d weight layout: (out_channels, in_channels, kh, kw)
    return {
        "w1": jax.random.normal(k1, (C1, 1, 3, 3), jnp.float32) * 0.1,
        "b1": jax.random.normal(k2, (C1,), jnp.float32) * 0.01,
        "w2": jax.random.normal(k3, (C2, C1, 3, 3), jnp.float32) * 0.05,
        "b2": jax.random.normal(k4, (C2,), jnp.float32) * 0.01,
    }


if __name__ == "__main__":
    key = jax.random.PRNGKey(0)
    kx, kp = jax.random.split(key)
    x = jax.random.normal(kx, (2, 1, H, W), jnp.float32)   # NCHW, in_channels=1
    params = init_params(kp)

    out = jax.block_until_ready(baby_conv_net(x, params))
    assert out.shape == (2, C2) and out.dtype == jnp.float32

    ref = jax.block_until_ready(_reference(x, params))
    err = float(jnp.max(jnp.abs(out - ref)))
    assert err < 5e-3, f"kernel/reference mismatch: max abs err = {err}"

    print("KERNEL_OK")
</pallas_src>

<mosaic_0001>
module attributes {stable_mosaic.version = 11 : i64} {
  func.func @_fused_kernel(%arg0: i32, %arg1: memref<2048x16xf32, #tpu.memory_space<vmem>>, %arg2: memref<16x64xf32, #tpu.memory_space<vmem>>, %arg3: memref<1x64xf32, #tpu.memory_space<vmem>>, %arg4: memref<3x192x128xf32, #tpu.memory_space<vmem>>, %arg5: memref<1x128xf32, #tpu.memory_space<vmem>>, %arg6: memref<8x128xf32, #tpu.memory_space<vmem>>, %arg7: memref<1192x192xf32, #tpu.memory_space<vmem>>) attributes {dimension_semantics = [#tpu.dimension_semantics<parallel>], iteration_bounds = array<i64: 1>, scalar_prefetch = 0 : i64, scratch_operands = 1 : i64, tpu.core_type = #tpu.core_type<tc>, window_params = [{transform_indices = @transform_0, window_bounds = array<i64: 2048, 16>}, {pipeline_mode = #tpu.pipeline_mode<synchronous>, transform_indices = @transform_1, window_bounds = array<i64: 16, 64>}, {pipeline_mode = #tpu.pipeline_mode<synchronous>, transform_indices = @transform_2, window_bounds = array<i64: 1, 64>}, {pipeline_mode = #tpu.pipeline_mode<synchronous>, transform_indices = @transform_3, window_bounds = array<i64: 3, 192, 128>}, {pipeline_mode = #tpu.pipeline_mode<synchronous>, transform_indices = @transform_4, window_bounds = array<i64: 1, 128>}, {transform_indices = @transform_5, window_bounds = array<i64: 8, 128>}]} {
    %c0 = arith.constant 0 : index
    %c0_0 = arith.constant 0 : index
    %0 = vector.load %arg1[%c0, %c0_0] : memref<2048x16xf32, #tpu.memory_space<vmem>>, vector<2048x16xf32>
    %c0_1 = arith.constant 0 : index
    %c0_2 = arith.constant 0 : index
    %1 = vector.load %arg2[%c0_1, %c0_2] : memref<16x64xf32, #tpu.memory_space<vmem>>, vector<16x64xf32>
    %cst = arith.constant dense<0.000000e+00> : vector<2048x64xf32>
    %2 = tpu.matmul %0, %1, %cst {dimension_numbers = #tpu.dot_dimension_numbers<[1], [0], [0], [1], [0, 0, 1, 1], [], []>} : vector<2048x16xf32>, vector<16x64xf32>, vector<2048x64xf32> -> vector<2048x64xf32>
    %c0_3 = arith.constant 0 : index
    %c0_4 = arith.constant 0 : index
    %3 = vector.load %arg3[%c0_3, %c0_4] : memref<1x64xf32, #tpu.memory_space<vmem>>, vector<1x64xf32>
    %4 = vector.broadcast %3 : vector<1x64xf32> to vector<2048x64xf32>
    %5 = arith.addf %2, %4 : vector<2048x64xf32>
    %cst_5 = arith.constant 0.000000e+00 : f32
    %6 = vector.broadcast %cst_5 : f32 to vector<2048x64xf32>
    %7 = arith.maximumf %5, %6 : vector<2048x64xf32>
    %8 = vector.shape_cast %7 : vector<2048x64xf32> to vector<8x4x64x64xf32>
    %9 = vector.extract_strided_slice %8 {offsets = [0, 0, 0, 0], sizes = [8, 1, 64, 64], strides = [1, 1, 1, 1]} : vector<8x4x64x64xf32> to vector<8x1x64x64xf32>
    %10 = vector.shape_cast %9 : vector<8x1x64x64xf32> to vector<8x64x64xf32>
    %11 = vector.extract_strided_slice %8 {offsets = [0, 1, 0, 0], sizes = [8, 1, 64, 64], strides = [1, 1, 1, 1]} : vector<8x4x64x64xf32> to vector<8x1x64x64xf32>
    %12 = vector.shape_cast %11 : vector<8x1x64x64xf32> to vector<8x64x64xf32>
    %13 = arith.maximumf %10, %12 : vector<8x64x64xf32>
    %14 = vector.extract_strided_slice %8 {offsets = [0, 2, 0, 0], sizes = [8, 1, 64, 64], strides = [1, 1, 1, 1]} : vector<8x4x64x64xf32> to vector<8x1x64x64xf32>
    %15 = vector.shape_cast %14 : vector<8x1x64x64xf32> to vector<8x64x64xf32>
    %16 = vector.extract_strided_slice %8 {offsets = [0, 3, 0, 0], sizes = [8, 1, 64, 64], strides = [1, 1, 1, 1]} : vector<8x4x64x64xf32> to vector<8x1x64x64xf32>
    %17 = vector.shape_cast %16 : vector<8x1x64x64xf32> to vector<8x64x64xf32>
    %18 = arith.maximumf %15, %17 : vector<8x64x64xf32>
    %19 = arith.maximumf %13, %18 : vector<8x64x64xf32>
    %cst_6 = arith.constant 0.000000e+00 : f32
    %20 = vector.broadcast %cst_6 : f32 to vector<1192x192xf32>
    %c0_7 = arith.constant 0 : index
    %c0_8 = arith.constant 0 : index
    %21 = vector.load %arg7[%c0_7, %c0_8] : memref<1192x192xf32, #tpu.memory_space<vmem>>, vector<1192x192xf32>
    tpu.vector_store %arg7[%c0_7, %c0_8], %20 {strides = array<i32>} : memref<1192x192xf32, #tpu.memory_space<vmem>>, vector<1192x192xf32>,
    %22 = vector.extract_strided_slice %19 {offsets = [0, 0, 0], sizes = [1, 8, 64], strides = [1, 1, 1]} : vector<8x64x64xf32> to vector<1x8x64xf32>
    %23 = vector.shape_cast %22 : vector<1x8x64xf32> to vector<8x64xf32>
    %c25 = arith.constant 25 : index
    %c0_9 = arith.constant 0 : index
    %24 = vector.load %arg7[%c25, %c0_9] : memref<1192x192xf32, #tpu.memory_space<vmem>>, vector<8x64xf32>
    tpu.vector_store %arg7[%c25, %c0_9], %23 {strides = array<i32>} : memref<1192x192xf32, #tpu.memory_space<vmem>>, vector<8x64xf32>,
    %c24 = arith.constant 24 : index
    %c64 = arith.constant 64 : index
    %25 = vector.load %arg7[%c24, %c64] : memref<1192x192xf32, #tpu.memory_space<vmem>>, vector<8x64xf32>
    tpu.vector_store %arg7[%c24, %c64], %23 {strides = array<i32>} : memref<1192x192xf32, #tpu.memory_space<vmem>>, vector<8x64xf32>,
    %c23 = arith.constant 23 : index
    %c128 = arith.constant 128 : index
    %26 = vector.load %arg7[%c23, %c128] : memref<1192x192xf32, #tpu.memory_space<vmem>>, vector<8x64xf32>
    tpu.vector_store %arg7[%c23, %c128], %23 {strides = array<i32>} : memref<1192x192xf32, #tpu.memory_space<vmem>>, vector<8x64xf32>,
    %27 = vector.extract_strided_slice %19 {offsets = [0, 8, 0], sizes = [1, 8, 64], strides = [1, 1, 1]} : vector<8x64x64xf32> to vector<1x8x64xf32>
    %28 = vector.shape_cast %27 : vector<1x8x64xf32> to vector<8x64xf32>
    %c41 = arith.constant 41 : index
    %c0_10 = arith.constant 0 : index
    %29 = vector.load %arg7[%c41, %c0_10] : memref<1192x192xf32, #tpu.memory_space<vmem>>, vector<8x64xf32>
    tpu.vector_store %arg7[%c41, %c0_10], %28 {strides = array<i32>} : memref<1192x192xf32, #tpu.memory_space<vmem>>, vector<8x64xf32>,
    %c40 = arith.constant 40 : index
    %c64_11 = arith.constant 64 : index
    %30 = vector.load %arg7[%c40, %c64_11] : memref<1192x192xf32, #tpu.memory_space<vmem>>, vector<8x64xf32>
    tpu.vector_store %arg7[%c40, %c64_11], %28 {strides = array<i32>} : memref<1192x192xf32, #tpu.memory_space<vmem>>, vector<8x64xf32>,
    %c39 = arith.constant 39 : index
    %c128_12 = arith.constant 128 : index
    %31 = vector.load %arg7[%c39, %c128_12] : memref<1192x192xf32, #tpu.memory_space<vmem>>, vector<8x64xf32>
    tpu.vector_store %arg7[%c39, %c128_12], %28 {strides = array<i32>} : memref<1192x192xf32, #tpu.memory_space<vmem>>, vector<8x64xf32>,
    %32 = vector.extract_strided_slice %19 {offsets = [0, 16, 0], sizes = [1, 8, 64], strides = [1, 1, 1]} : vector<8x64x64xf32> to vector<1x8x64xf32>
    %33 = vector.shape_cast %32 : vector<1x8x64xf32> to vector<8x64xf32>
    %c57 = arith.constant 57 : index
    %c0_13 = arith.constant 0 : index
    %34 = vector.load %arg7[%c57, %c0_13] : memref<1192x192xf32, #tpu.memory_space<vmem>>, vector<8x64xf32>
    tpu.vector_store %arg7[%c57, %c0_13], %33 {strides = array<i32>} : memref<1192x192xf32, #tpu.memory_space<vmem>>, vector<8x64xf32>,
    %c56 = arith.constant 56 : index
    %c64_14 = arith.constant 64 : index
    %35 = vector.load %arg7[%c56, %c64_14] : memref<1192x192xf32, #tpu.memory_space<vmem>>, vector<8x64xf32>
    tpu.vector_store %arg7[%c56, %c64_14], %33 {strides = array<i32>} : memref<1192x192xf32, #tpu.memory_space<vmem>>, vector<8x64xf32>,
    %c55 = arith.constant 55 : index
    %c128_15 = arith.constant 128 : index
    %36 = vector.load %arg7[%c55, %c128_15] : memref<1192x192xf32, #tpu.memory_space<vmem>>, vector<8x64xf32>
    tpu.vector_store %arg7[%c55, %c128_15], %33 {strides = array<i32>} : memref<1192x192xf32, #tpu.memory_space<vmem>>, vector<8x64xf32>,
    %37 = vector.extract_strided_slice %19 {offsets = [0, 24, 0], sizes = [1, 8, 64], strides = [1, 1, 1]} : vector<8x64x64xf32> to vector<1x8x64xf32>
    %38 = vector.shape_cast %37 : vector<1x8x64xf32> to vector<8x64xf32>
    %c73 = arith.constant 73 : index
    %c0_16 = arith.constant 0 : index
    %39 = vector.load %arg7[%c73, %c0_16] : memref<1192x192xf32, #tpu.memory_space<vmem>>, vector<8x64xf32>
    tpu.vector_store %arg7[%c73, %c0_16], %38 {strides = array<i32>} : memref<1192x192xf32, #tpu.memory_space<vmem>>, vector<8x64xf32>,
    %c72 = arith.constant 72 : index
    %c64_17 = arith.constant 64 : index
    %40 = vector.load %arg7[%c72, %c64_17] : memref<1192x192xf32, #tpu.memory_space<vmem>>, vector<8x64xf32>
    tpu.vector_store %arg7[%c72, %c64_17], %38 {strides = array<i32>} : memref<1192x192xf32, #tpu.memory_space<vmem>>, vector<8x64xf32>,
    %c71 = arith.constant 71 : index
    %c128_18 = arith.constant 128 : index
    %41 = vector.load %arg7[%c71, %c128_18] : memref<1192x192xf32, #tpu.memory_space<vmem>>, vector<8x64xf32>
    tpu.vector_store %arg7[%c71, %c128_18], %38 {strides = array<i32>} : memref<1192x192xf32, #tpu.memory_space<vmem>>, vector<8x64xf32>,
    %42 = vector.extract_strided_slice %19 {offsets = [0, 32, 0], sizes = [1, 8, 64], strides = [1, 1, 1]} : vector<8x64x64xf32> to vector<1x8x64xf32>
    %43 = vector.shape_cast %42 : vector<1x8x64xf32> to vector<8x64xf32>
    %c89 = arith.constant 89 : index
    %c0_19 = arith.constant 0 : index
    %44 = vector.load %arg7[%c89, %c0_19] : memref<1192x192xf32, #tpu.memory_space<vmem>>, vector<8x64xf32>
    tpu.vector_store %arg7[%c89, %c0_19], %43 {strides = array<i32>} : memref<1192x192xf32, #tpu.memory_space<vmem>>, vector<8x64xf32>,
    %c88 = arith.constant 88 : index
    %c64_20 = arith.constant 64 : index
    %45 = vector.load %arg7[%c88, %c64_20] : memref<1192x192xf32, #tpu.memory_space<vmem>>, vector<8x64xf32>
    tpu.vector_store %arg7[%c88, %c64_20], %43 {strides = array<i32>} : memref<1192x192xf32, #tpu.memory_space<vmem>>, vector<8x64xf32>,
    %c87 = arith.constant 87 : index
    %c128_21 = arith.constant 128 : index
    %46 = vector.load %arg7[%c87, %c128_21] : memref<1192x192xf32, #tpu.memory_space<vmem>>, vector<8x64xf32>
    tpu.vector_store %arg7[%c87, %c128_21], %43 {strides = array<i32>} : memref<1192x192xf32, #tpu.memory_space<vmem>>, vector<8x64xf32>,
    %47 = vector.extract_strided_slice %19 {offsets = [0, 40, 0], sizes = [1, 8, 64], strides = [1, 1, 1]} : vector<8x64x64xf32> to vector<1x8x64xf32>
    %48 = vector.shape_cast %47 : vector<1x8x64xf32> to vector<8x64xf32>
    %c105 = arith.constant 105 : index
    %c0_22 = arith.constant 0 : index
    %49 = vector.load %arg7[%c105, %c0_22] : memref<1192x192xf32, #tpu.memory_space<vmem>>, vector<8x64xf32>
    tpu.vector_store %arg7[%c105, %c0_22], %48 {strides = array<i32>} : memref<1192x192xf32, #tpu.memory_space<vmem>>, vector<8x64xf32>,
    %c104 = arith.constant 104 : index
    %c64_23 = arith.constant 64 : index
    %50 = vector.load %arg7[%c104, %c64_23] : memref<1192x192xf32, #tpu.memory_space<vmem>>, vector<8x64xf32>
    tpu.vector_store %arg7[%c104, %c64_23], %48 {strides = array<i32>} : memref<1192x192xf32, #tpu.memory_space<vmem>>, vector<8x64xf32>,
    %c103 = arith.constant 103 : index
    %c128_24 = arith.constant 128 : index
    %51 = vector.load %arg7[%c103, %c128_24] : memref<1192x192xf32, #tpu.memory_space<vmem>>, vector<8x64xf32>
    tpu.vector_store %arg7[%c103, %c128_24], %48 {strides = array<i32>} : memref<1192x192xf32, #tpu.memory_space<vmem>>, vector<8x64xf32>,
    %52 = vector.extract_strided_slice %19 {offsets = [0, 48, 0], sizes = [1, 8, 64], strides = [1, 1, 1]} : vector<8x64x64xf32> to vector<1x8x64xf32>
    %53 = vector.shape_cast %52 : vector<1x8x64xf32> to vector<8x64xf32>
    %c121 = arith.constant 121 : index
    %c0_25 = arith.constant 0 : index
    %54 = vector.load %arg7[%c121, %c0_25] : memref<1192x192xf32, #tpu.memory_space<vmem>>, vector<8x64xf32>
    tpu.vector_store %arg7[%c121, %c0_25], %53 {strides = array<i32>} : memref<1192x192xf32, #tpu.memory_space<vmem>>, vector<8x64xf32>,
    %c120 = arith.constant 120 : index
    %c64_26 = arith.constant 64 : index
    %55 = vector.load %arg7[%c120, %c64_26] : memref<1192x192xf32, #tpu.memory_space<vmem>>, vector<8x64xf32>
    tpu.vector_store %arg7[%c120, %c64_26], %53 {strides = array<i32>} : memref<1192x192xf32, #tpu.memory_space<vmem>>, vector<8x64xf32>,
    %c119 = arith.constant 119 : index
    %c128_27 = arith.constant 128 : index
    %56 = vector.load %arg7[%c119, %c128_27] : memref<1192x192xf32, #tpu.memory_space<vmem>>, vector<8x64xf32>
    tpu.vector_store %arg7[%c119, %c128_27], %53 {strides = array<i32>} : memref<1192x192xf32, #tpu.memory_space<vmem>>, vector<8x64xf32>,
    %57 = vector.extract_strided_slice %19 {offsets = [0, 56, 0], sizes = [1, 8, 64], strides = [1, 1, 1]} : vector<8x64x64xf32> to vector<1x8x64xf32>
    %58 = vector.shape_cast %57 : vector<1x8x64xf32> to vector<8x64xf32>
    %c137 = arith.constant 137 : index
    %c0_28 = arith.constant 0 : index
    %59 = vector.load %arg7[%c137, %c0_28] : memref<1192x192xf32, #tpu.memory_space<vmem>>, vector<8x64xf32>
    tpu.vector_store %arg7[%c137, %c0_28], %58 {strides = array<i32>} : memref<1192x192xf32, #tpu.memory_space<vmem>>, vector<8x64xf32>,
    %c136 = arith.constant 136 : index
    %c64_29 = arith.constant 64 : index
    %60 = vector.load %arg7[%c136, %c64_29] : memref<1192x192xf32, #tpu.memory_space<vmem>>, vector<8x64xf32>
    tpu.vector_store %arg7[%c136, %c64_29], %58 {strides = array<i32>} : memref<1192x192xf32, #tpu.memory_space<vmem>>, vector<8x64xf32>,
    %c135 = arith.constant 135 : index
    %c128_30 = arith.constant 128 : index
    %61 = vector.load %arg7[%c135, %c128_30] : memref<1192x192xf32, #tpu.memory_space<vmem>>, vector<8x64xf32>
    tpu.vector_store %arg7[%c135, %c128_30], %58 {strides = array<i32>} : memref<1192x192xf32, #tpu.memory_space<vmem>>, vector<8x64xf32>,
    %62 = vector.extract_strided_slice %19 {offsets = [1, 0, 0], sizes = [1, 8, 64], strides = [1, 1, 1]} : vector<8x64x64xf32> to vector<1x8x64xf32>
    %63 = vector.shape_cast %62 : vector<1x8x64xf32> to vector<8x64xf32>
    %c169 = arith.constant 169 : index
    %c0_31 = arith.constant 0 : index
    %64 = vector.load %arg7[%c169, %c0_31] : memref<1192x192xf32, #tpu.memory_space<vmem>>, vector<8x64xf32>
    tpu.vector_store %arg7[%c169, %c0_31], %63 {strides = array<i32>} : memref<1192x192xf32, #tpu.memory_space<vmem>>, vector<8x64xf32>,
    %c168 = arith.constant 168 : index
    %c64_32 = arith.constant 64 : index
    %65 = vector.load %arg7[%c168, %c64_32] : memref<1192x192xf32, #tpu.memory_space<vmem>>, vector<8x64xf32>
    tpu.vector_store %arg7[%c168, %c64_32], %63 {strides = array<i32>} : memref<1192x192xf32, #tpu.memory_space<vmem>>, vector<8x64xf32>,
    %c167 = arith.constant 167 : index
    %c128_33 = arith.constant 128 : index
    %66 = vector.load %arg7[%c167, %c128_33] : memref<1192x192xf32, #tpu.memory_space<vmem>>, vector<8x64xf32>
    tpu.vector_store %arg7[%c167, %c128_33], %63 {strides = array<i32>} : memref<1192x192xf32, #tpu.memory_space<vmem>>, vector<8x64xf32>,
    %67 = vector.extract_strided_slice %19 {offsets = [1, 8, 0], sizes = [1, 8, 64], strides = [1, 1, 1]} : vector<8x64x64xf32> to vector<1x8x64xf32>
    %68 = vector.shape_cast %67 : vector<1x8x64xf32> to vector<8x64xf32>
    %c185 = arith.constant 185 : index
    %c0_34 = arith.constant 0 : index
    %69 = vector.load %arg7[%c185, %c0_34] : memref<1192x192xf32, #tpu.memory_space<vmem>>, vector<8x64xf32>
    tpu.vector_store %arg7[%c185, %c0_34], %68 {strides = array<i32>} : memref<1192x192xf32, #tpu.memory_space<vmem>>, vector<8x64xf32>,
    %c184 = arith.constant 184 : index
    %c64_35 = arith.constant 64 : index
    %70 = vector.load %arg7[%c184, %c64_35] : memref<1192x192xf32, #tpu.memory_space<vmem>>, vector<8x64xf32>
    tpu.vector_store %arg7[%c184, %c64_35], %68 {strides = array<i32>} : memref<1192x192xf32, #tpu.memory_space<vmem>>, vector<8x64xf32>,
    %c183 = arith.constant 183 : index
    %c128_36 = arith.constant 128 : index
    %71 = vector.load %arg7[%c183, %c128_36] : memref<1192x192xf32, #tpu.memory_space<vmem>>, vector<8x64xf32>
    tpu.vector_store %arg7[%c183, %c128_36], %68 {strides = array<i32>} : memref<1192x192xf32, #tpu.memory_space<vmem>>, vector<8x64xf32>,
    %72 = vector.extract_strided_slice %19 {offsets = [1, 16, 0], sizes = [1, 8, 64], strides = [1, 1, 1]} : vector<8x64x64xf32> to vector<1x8x64xf32>
    %73 = vector.shape_cast %72 : vector<1x8x64xf32> to vector<8x64xf32>
    %c201 = arith.constant 201 : index
    %c0_37 = arith.constant 0 : index
    %74 = vector.load %arg7[%c201, %c0_37] : memref<1192x192xf32, #tpu.memory_space<vmem>>, vector<8x64xf32>
    tpu.vector_store %arg7[%c201, %c0_37], %73 {strides = array<i32>} : memref<1192x192xf32, #tpu.memory_space<vmem>>, vector<8x64xf32>,
    %c200 = arith.constant 200 : index
    %c64_38 = arith.constant 64 : index
    %75 = vector.load %arg7[%c200, %c64_38] : memref<1192x192xf32, #tpu.memory_space<vmem>>, vector<8x64xf32>
    tpu.vector_store %arg7[%c200, %c64_38], %73 {strides = array<i32>} : memref<1192x192xf32, #tpu.memory_space<vmem>>, vector<8x64xf32>,
    %c199 = arith.constant 199 : index
    %c128_39 = arith.constant 128 : index
    %76 = vector.load %arg7[%c199, %c128_39] : memref<1192x192xf32, #tpu.memory_space<vmem>>, vector<8x64xf32>
    tpu.vector_store %arg7[%c199, %c128_39], %73 {strides = array<i32>} : memref<1192x192xf32, #tpu.memory_space<vmem>>, vector<8x64xf32>,
    %77 = vector.extract_strided_slice %19 {offsets = [1, 24, 0], sizes = [1, 8, 64], strides = [1, 1, 1]} : vector<8x64x64xf32> to vector<1x8x64xf32>
    %78 = vector.shape_cast %77 : vector<1x8x64xf32> to vector<8x64xf32>
    %c217 = arith.constant 217 : index
    %c0_40 = arith.constant 0 : index
    %79 = vector.load %arg7[%c217, %c0_40] : memref<1192x192xf32, #tpu.memory_space<vmem>>, vector<8x64xf32>
    tpu.vector_store %arg7[%c217, %c0_40], %78 {strides = array<i32>} : memref<1192x192xf32, #tpu.memory_space<vmem>>, vector<8x64xf32>,
    %c216 = arith.constant 216 : index
    %c64_41 = arith.constant 64 : index
    %80 = vector.load %arg7[%c216, %c64_41] : memref<1192x192xf32, #tpu.memory_space<vmem>>, vector<8x64xf32>
    tpu.vector_store %arg7[%c216, %c64_41], %78 {strides = array<i32>} : memref<1192x192xf32, #tpu.memory_space<vmem>>, vector<8x64xf32>,
    %c215 = arith.constant 215 : index
    %c128_42 = arith.constant 128 : index
    %81 = vector.load %arg7[%c215, %c128_42] : memref<1192x192xf32, #tpu.memory_space<vmem>>, vector<8x64xf32>
    tpu.vector_store %arg7[%c215, %c128_42], %78 {strides = array<i32>} : memref<1192x192xf32, #tpu.memory_space<vmem>>, vector<8x64xf32>,
    %82 = vector.extract_strided_slice %19 {offsets = [1, 32, 0], sizes = [1, 8, 64], strides = [1, 1, 1]} : vector<8x64x64xf32> to vector<1x8x64xf32>
    %83 = vector.shape_cast %82 : vector<1x8x64xf32> to vector<8x64xf32>
    %c233 = arith.constant 233 : index
    %c0_43 = arith.constant 0 : index
    %84 = vector.load %arg7[%c233, %c0_43] : memref<1192x192xf32, #tpu.memory_space<vmem>>, vector<8x64xf32>
    tpu.vector_store %arg7[%c233, %c0_43], %83 {strides = array<i32>} : memref<1192x192xf32, #tpu.memory_space<vmem>>, vector<8x64xf32>,
    %c232 = arith.constant 232 : index
    %c64_44 = arith.constant 64 : index
    %85 = vector.load %arg7[%c232, %c64_44] : memref<1192x192xf32, #tpu.memory_space<vmem>>, vector<8x64xf32>
    tpu.vector_store %arg7[%c232, %c64_44], %83 {strides = array<i32>} : memref<1192x192xf32, #tpu.memory_space<vmem>>, vector<8x64xf32>,
    %c231 = arith.constant 231 : index
    %c128_45 = arith.constant 128 : index
    %86 = vector.load %arg7[%c231, %c128_45] : memref<1192x192xf32, #tpu.memory_space<vmem>>, vector<8x64xf32>
    tpu.vector_store %arg7[%c231, %c128_45], %83 {strides = array<i32>} : memref<1192x192xf32, #tpu.memory_space<vmem>>, vector<8x64xf32>,
    %87 = vector.extract_strided_slice %19 {offsets = [1, 40, 0], sizes = [1, 8, 64], strides = [1, 1, 1]} : vector<8x64x64xf32> to vector<1x8x64xf32>
    %88 = vector.shape_cast %87 : vector<1x8x64xf32> to vector<8x64xf32>
    %c249 = arith.constant 249 : index
    %c0_46 = arith.constant 0 : index
    %89 = vector.load %arg7[%c249, %c0_46] : memref<1192x192xf32, #tpu.memory_space<vmem>>, vector<8x64xf32>
    tpu.vector_store %arg7[%c249, %c0_46], %88 {strides = array<i32>} : memref<1192x192xf32, #tpu.memory_space<vmem>>, vector<8x64xf32>,
    %c248 = arith.constant 248 : index
    %c64_47 = arith.constant 64 : index
    %90 = vector.load %arg7[%c248, %c64_47] : memref<1192x192xf32, #tpu.memory_space<vmem>>, vector<8x64xf32>
    tpu.vector_store %arg7[%c248, %c64_47], %88 {strides = array<i32>} : memref<1192x192xf32, #tpu.memory_space<vmem>>, vector<8x64xf32>,
    %c247 = arith.constant 247 : index
    %c128_48 = arith.constant 128 : index
    %91 = vector.load %arg7[%c247, %c128_48] : memref<1192x192xf32, #tpu.memory_space<vmem>>, vector<8x64xf32>
    tpu.vector_store %arg7[%c247, %c128_48], %88 {strides = array<i32>} : memref<1192x192xf32, #tpu.memory_space<vmem>>, vector<8x64xf32>,
    %92 = vector.extract_strided_slice %19 {offsets = [1, 48, 0], sizes = [1, 8, 64], strides = [1, 1, 1]} : vector<8x64x64xf32> to vector<1x8x64xf32>
    %93 = vector.shape_cast %92 : vector<1x8x64xf32> to vector<8x64xf32>
    %c265 = arith.constant 265 : index
    %c0_49 = arith.constant 0 : index
    %94 = vector.load %arg7[%c265, %c0_49] : memref<1192x192xf32, #tpu.memory_space<vmem>>, vector<8x64xf32>
    tpu.vector_store %arg7[%c265, %c0_49], %93 {strides = array<i32>} : memref<1192x192xf32, #tpu.memory_space<vmem>>, vector<8x64xf32>,
    %c264 = arith.constant 264 : index
    %c64_50 = arith.constant 64 : index
    %95 = vector.load %arg7[%c264, %c64_50] : memref<1192x192xf32, #tpu.memory_space<vmem>>, vector<8x64xf32>
    tpu.vector_store %arg7[%c264, %c64_50], %93 {strides = array<i32>} : memref<1192x192xf32, #tpu.memory_space<vmem>>, vector<8x64xf32>,
    %c263 = arith.constant 263 : index
    %c128_51 = arith.constant 128 : index
    %96 = vector.load %arg7[%c263, %c128_51] : memref<1192x192xf32, #tpu.memory_space<vmem>>, vector<8x64xf32>
    tpu.vector_store %arg7[%c263, %c128_51], %93 {strides = array<i32>} : memref<1192x192xf32, #tpu.memory_space<vmem>>, vector<8x64xf32>,
    %97 = vector.extract_strided_slice %19 {offsets = [1, 56, 0], sizes = [1, 8, 64], strides = [1, 1, 1]} : vector<8x64x64xf32> to vector<1x8x64xf32>
    %98 = vector.shape_cast %97 : vector<1x8x64xf32> to vector<8x64xf32>
    %c281 = arith.constant 281 : index
    %c0_52 = arith.constant 0 : index
    %99 = vector.load %arg7[%c281, %c0_52] : memref<1192x192xf32, #tpu.memory_space<vmem>>, vector<8x64xf32>
    tpu.vector_store %arg7[%c281, %c0_52], %98 {strides = array<i32>} : memref<1192x192xf32, #tpu.memory_space<vmem>>, vector<8x64xf32>,
    %c280 = arith.constant 280 : index
    %c64_53 = arith.constant 64 : index
    %100 = vector.load %arg7[%c280, %c64_53] : memref<1192x192xf32, #tpu.memory_space<vmem>>, vector<8x64xf32>
    tpu.vector_store %arg7[%c280, %c64_53], %98 {strides = array<i32>} : memref<1192x192xf32, #tpu.memory_space<vmem>>, vector<8x64xf32>,
    %c279 = arith.constant 279 : index
    %c128_54 = arith.constant 128 : index
    %101 = vector.load %arg7[%c279, %c128_54] : memref<1192x192xf32, #tpu.memory_space<vmem>>, vector<8x64xf32>
    tpu.vector_store %arg7[%c279, %c128_54], %98 {strides = array<i32>} : memref<1192x192xf32, #tpu.memory_space<vmem>>, vector<8x64xf32>,
    %102 = vector.extract_strided_slice %19 {offsets = [2, 0, 0], sizes = [1, 8, 64], strides = [1, 1, 1]} : vector<8x64x64xf32> to vector<1x8x64xf32>
    %103 = vector.shape_cast %102 : vector<1x8x64xf32> to vector<8x64xf32>
    %c313 = arith.constant 313 : index
    %c0_55 = arith.constant 0 : index
    %104 = vector.load %arg7[%c313, %c0_55] : memref<1192x192xf32, #tpu.memory_space<vmem>>, vector<8x64xf32>
    tpu.vector_store %arg7[%c313, %c0_55], %103 {strides = array<i32>} : memref<1192x192xf32, #tpu.memory_space<vmem>>, vector<8x64xf32>,
    %c312 = arith.constant 312 : index
    %c64_56 = arith.constant 64 : index
    %105 = vector.load %arg7[%c312, %c64_56] : memref<1192x192xf32, #tpu.memory_space<vmem>>, vector<8x64xf32>
    tpu.vector_store %arg7[%c312, %c64_56], %103 {strides = array<i32>} : memref<1192x192xf32, #tpu.memory_space<vmem>>, vector<8x64xf32>,
    %c311 = arith.constant 311 : index
    %c128_57 = arith.constant 128 : index
    %106 = vector.load %arg7[%c311, %c128_57] : memref<1192x192xf32, #tpu.memory_space<vmem>>, vector<8x64xf32>
    tpu.vector_store %arg7[%c311, %c128_57], %103 {strides = array<i32>} : memref<1192x192xf32, #tpu.memory_space<vmem>>, vector<8x64xf32>,
    %107 = vector.extract_strided_slice %19 {offsets = [2, 8, 0], sizes = [1, 8, 64], strides = [1, 1, 1]} : vector<8x64x64xf32> to vector<1x8x64xf32>
    %108 = vector.shape_cast %107 : vector<1x8x64xf32> to vector<8x64xf32>
    %c329 = arith.constant 329 : index
    %c0_58 = arith.constant 0 : index
    %109 = vector.load %arg7[%c329, %c0_58] : memref<1192x192xf32, #tpu.memory_space<vmem>>, vector<8x64xf32>
    tpu.vector_store %arg7[%c329, %c0_58], %108 {strides = array<i32>} : memref<1192x192xf32, #tpu.memory_space<vmem>>, vector<8x64xf32>,
    %c328 = arith.constant 328 : index
    %c64_59 = arith.constant 64 : index
    %110 = vector.load %arg7[%c328, %c64_59] : memref<1192x192xf32, #tpu.memory_space<vmem>>, vector<8x64xf32>
    tpu.vector_store %arg7[%c328, %c64_59], %108 {strides = array<i32>} : memref<1192x192xf32, #tpu.memory_space<vmem>>, vector<8x64xf32>,
    %c327 = arith.constant 327 : index
    %c128_60 = arith.constant 128 : index
    %111 = vector.load %arg7[%c327, %c128_60] : memref<1192x192xf32, #tpu.memory_space<vmem>>, vector<8x64xf32>
    tpu.vector_store %arg7[%c327, %c128_60], %108 {strides = array<i32>} : memref<1192x192xf32, #tpu.memory_space<vmem>>, vector<8x64xf32>,
    %112 = vector.extract_strided_slice %19 {offsets = [2, 16, 0], sizes = [1, 8, 64], strides = [1, 1, 1]} : vector<8x64x64xf32> to vector<1x8x64xf32>
    %113 = vector.shape_cast %112 : vector<1x8x64xf32> to vector<8x64xf32>
    %c345 = arith.constant 345 : index
    %c0_61 = arith.constant 0 : index
    %114 = vector.load %arg7[%c345, %c0_61] : memref<1192x192xf32, #tpu.memory_space<vmem>>, vector<8x64xf32>
    tpu.vector_store %arg7[%c345, %c0_61], %113 {strides = array<i32>} : memref<1192x192xf32, #tpu.memory_space<vmem>>, vector<8x64xf32>,
    %c344 = arith.constant 344 : index
    %c64_62 = arith.constant 64 : index
    %115 = vector.load %arg7[%c344, %c64_62] : memref<1192x192xf32, #tpu.memory_space<vmem>>, vector<8x64xf32>
    tpu.vector_store %arg7[%c344, %c64_62], %113 {strides = array<i32>} : memref<1192x192xf32, #tpu.memory_space<vmem>>, vector<8x64xf32>,
    %c343 = arith.constant 343 : index
    %c128_63 = arith.constant 128 : index
    %116 = vector.load %arg7[%c343, %c128_63] : memref<1192x192xf32, #tpu.memory_space<vmem>>, vector<8x64xf32>
    tpu.vector_store %arg7[%c343, %c128_63], %113 {strides = array<i32>} : memref<1192x192xf32, #tpu.memory_space<vmem>>, vector<8x64xf32>,
    %117 = vector.extract_strided_slice %19 {offsets = [2, 24, 0], sizes = [1, 8, 64], strides = [1, 1, 1]} : vector<8x64x64xf32> to vector<1x8x64xf32>
    %118 = vector.shape_cast %117 : vector<1x8x64xf32> to vector<8x64xf32>
    %c361 = arith.constant 361 : index
    %c0_64 = arith.constant 0 : index
    %119 = vector.load %arg7[%c361, %c0_64] : memref<1192x192xf32, #tpu.memory_space<vmem>>, vector<8x64xf32>
    tpu.vector_store %arg7[%c361, %c0_64], %118 {strides = array<i32>} : memref<1192x192xf32, #tpu.memory_space<vmem>>, vector<8x64xf32>,
    %c360 = arith.constant 360 : index
    %c64_65 = arith.constant 64 : index
    %120 = vector.load %arg7[%c360, %c64_65] : memref<1192x192xf32, #tpu.memory_space<vmem>>, vector<8x64xf32>
    tpu.vector_store %arg7[%c360, %c64_65], %118 {strides = array<i32>} : memref<1192x192xf32, #tpu.memory_space<vmem>>, vector<8x64xf32>,
    %c359 = arith.constant 359 : index
    %c128_66 = arith.constant 128 : index
    %121 = vector.load %arg7[%c359, %c128_66] : memref<1192x192xf32, #tpu.memory_space<vmem>>, vector<8x64xf32>
    tpu.vector_store %arg7[%c359, %c128_66], %118 {strides = array<i32>} : memref<1192x192xf32, #tpu.memory_space<vmem>>, vector<8x64xf32>,
    %122 = vector.extract_strided_slice %19 {offsets = [2, 32, 0], sizes = [1, 8, 64], strides = [1, 1, 1]} : vector<8x64x64xf32> to vector<1x8x64xf32>
    %123 = vector.shape_cast %122 : vector<1x8x64xf32> to vector<8x64xf32>
    %c377 = arith.constant 377 : index
    %c0_67 = arith.constant 0 : index
    %124 = vector.load %arg7[%c377, %c0_67] : memref<1192x192xf32, #tpu.memory_space<vmem>>, vector<8x64xf32>
    tpu.vector_store %arg7[%c377, %c0_67], %123 {strides = array<i32>} : memref<1192x192xf32, #tpu.memory_space<vmem>>, vector<8x64xf32>,
    %c376 = arith.constant 376 : index
    %c64_68 = arith.constant 64 : index
    %125 = vector.load %arg7[%c376, %c64_68] : memref<1192x192xf32, #tpu.memory_space<vmem>>, vector<8x64xf32>
    tpu.vector_store %arg7[%c376, %c64_68], %123 {strides = array<i32>} : memref<1192x192xf32, #tpu.memory_space<vmem>>, vector<8x64xf32>,
    %c375 = arith.constant 375 : index
    %c128_69 = arith.constant 128 : index
    %126 = vector.load %arg7[%c375, %c128_69] : memref<1192x192xf32, #tpu.memory_space<vmem>>, vector<8x64xf32>
    tpu.vector_store %arg7[%c375, %c128_69], %123 {strides = array<i32>} : memref<1192x192xf32, #tpu.memory_space<vmem>>, vector<8x64xf32>,
    %127 = vector.extract_strided_slice %19 {offsets = [2, 40, 0], sizes = [1, 8, 64], strides = [1, 1, 1]} : vector<8x64x64xf32> to vector<1x8x64xf32>
    %128 = vector.shape_cast %127 : vector<1x8x64xf32> to vector<8x64xf32>
    %c393 = arith.constant 393 : index
    %c0_70 = arith.constant 0 : index
    %129 = vector.load %arg7[%c393, %c0_70] : memref<1192x192xf32, #tpu.memory_space<vmem>>, vector<8x64xf32>
    tpu.vector_store %arg7[%c393, %c0_70], %128 {strides = array<i32>} : memref<1192x192xf32, #tpu.memory_space<vmem>>, vector<8x64xf32>,
    %c392 = arith.constant 392 : index
    %c64_71 = arith.constant 64 : index
    %130 = vector.load %arg7[%c392, %c64_71] : memref<1192x192xf32, #tpu.memory_space<vmem>>, vector<8x64xf32>
    tpu.vector_store %arg7[%c392, %c64_71], %128 {strides = array<i32>} : memref<1192x192xf32, #tpu.memory_space<vmem>>, vector<8x64xf32>,
    %c391 = arith.constant 391 : index
    %c128_72 = arith.constant 128 : index
    %131 = vector.load %arg7[%c391, %c128_72] : memref<1192x192xf32, #tpu.memory_space<vmem>>, vector<8x64xf32>
    tpu.vector_store %arg7[%c391, %c128_72], %128 {strides = array<i32>} : memref<1192x192xf32, #tpu.memory_space<vmem>>, vector<8x64xf32>,
    %132 = vector.extract_strided_slice %19 {offsets = [2, 48, 0], sizes = [1, 8, 64], strides = [1, 1, 1]} : vector<8x64x64xf32> to vector<1x8x64xf32>
    %133 = vector.shape_cast %132 : vector<1x8x64xf32> to vector<8x64xf32>
    %c409 = arith.constant 409 : index
    %c0_73 = arith.constant 0 : index
    %134 = vector.load %arg7[%c409, %c0_73] : memref<1192x192xf32, #tpu.memory_space<vmem>>, vector<8x64xf32>
    tpu.vector_store %arg7[%c409, %c0_73], %133 {strides = array<i32>} : memref<1192x192xf32, #tpu.memory_space<vmem>>, vector<8x64xf32>,
    %c408 = arith.constant 408 : index
    %c64_74 = arith.constant 64 : index
    %135 = vector.load %arg7[%c408, %c64_74] : memref<1192x192xf32, #tpu.memory_space<vmem>>, vector<8x64xf32>
    tpu.vector_store %arg7[%c408, %c64_74], %133 {strides = array<i32>} : memref<1192x192xf32, #tpu.memory_space<vmem>>, vector<8x64xf32>,
    %c407 = arith.constant 407 : index
    %c128_75 = arith.constant 128 : index
    %136 = vector.load %arg7[%c407, %c128_75] : memref<1192x192xf32, #tpu.memory_space<vmem>>, vector<8x64xf32>
    tpu.vector_store %arg7[%c407, %c128_75], %133 {strides = array<i32>} : memref<1192x192xf32, #tpu.memory_space<vmem>>, vector<8x64xf32>,
    %137 = vector.extract_strided_slice %19 {offsets = [2, 56, 0], sizes = [1, 8, 64], strides = [1, 1, 1]} : vector<8x64x64xf32> to vector<1x8x64xf32>
    %138 = vector.shape_cast %137 : vector<1x8x64xf32> to vector<8x64xf32>
    %c425 = arith.constant 425 : index
    %c0_76 = arith.constant 0 : index
    %139 = vector.load %arg7[%c425, %c0_76] : memref<1192x192xf32, #tpu.memory_space<vmem>>, vector<8x64xf32>
    tpu.vector_store %arg7[%c425, %c0_76], %138 {strides = array<i32>} : memref<1192x192xf32, #tpu.memory_space<vmem>>, vector<8x64xf32>,
    %c424 = arith.constant 424 : index
    %c64_77 = arith.constant 64 : index
    %140 = vector.load %arg7[%c424, %c64_77] : memref<1192x192xf32, #tpu.memory_space<vmem>>, vector<8x64xf32>
    tpu.vector_store %arg7[%c424, %c64_77], %138 {strides = array<i32>} : memref<1192x192xf32, #tpu.memory_space<vmem>>, vector<8x64xf32>,
    %c423 = arith.constant 423 : index
    %c128_78 = arith.constant 128 : index
    %141 = vector.load %arg7[%c423, %c128_78] : memref<1192x192xf32, #tpu.memory_space<vmem>>, vector<8x64xf32>
    tpu.vector_store %arg7[%c423, %c128_78], %138 {strides = array<i32>} : memref<1192x192xf32, #tpu.memory_space<vmem>>, vector<8x64xf32>,
    %142 = vector.extract_strided_slice %19 {offsets = [3, 0, 0], sizes = [1, 8, 64], strides = [1, 1, 1]} : vector<8x64x64xf32> to vector<1x8x64xf32>
    %143 = vector.shape_cast %142 : vector<1x8x64xf32> to vector<8x64xf32>
    %c457 = arith.constant 457 : index
    %c0_79 = arith.constant 0 : index
    %144 = vector.load %arg7[%c457, %c0_79] : memref<1192x192xf32, #tpu.memory_space<vmem>>, vector<8x64xf32>
    tpu.vector_store %arg7[%c457, %c0_79], %143 {strides = array<i32>} : memref<1192x192xf32, #tpu.memory_space<vmem>>, vector<8x64xf32>,
    %c456 = arith.constant 456 : index
    %c64_80 = arith.constant 64 : index
    %145 = vector.load %arg7[%c456, %c64_80] : memref<1192x192xf32, #tpu.memory_space<vmem>>, vector<8x64xf32>
    tpu.vector_store %arg7[%c456, %c64_80], %143 {strides = array<i32>} : memref<1192x192xf32, #tpu.memory_space<vmem>>, vector<8x64xf32>,
    %c455 = arith.constant 455 : index
    %c128_81 = arith.constant 128 : index
    %146 = vector.load %arg7[%c455, %c128_81] : memref<1192x192xf32, #tpu.memory_space<vmem>>, vector<8x64xf32>
    tpu.vector_store %arg7[%c455, %c128_81], %143 {strides = array<i32>} : memref<1192x192xf32, #tpu.memory_space<vmem>>, vector<8x64xf32>,
    %147 = vector.extract_strided_slice %19 {offsets = [3, 8, 0], sizes = [1, 8, 64], strides = [1, 1, 1]} : vector<8x64x64xf32> to vector<1x8x64xf32>
    %148 = vector.shape_cast %147 : vector<1x8x64xf32> to vector<8x64xf32>
    %c473 = arith.constant 473 : index
    %c0_82 = arith.constant 0 : index
    %149 = vector.load %arg7[%c473, %c0_82] : memref<1192x192xf32, #tpu.memory_space<vmem>>, vector<8x64xf32>
    tpu.vector_store %arg7[%c473, %c0_82], %148 {strides = array<i32>} : memref<1192x192xf32, #tpu.memory_space<vmem>>, vector<8x64xf32>,
    %c472 = arith.constant 472 : index
    %c64_83 = arith.constant 64 : index
    %150 = vector.load %arg7[%c472, %c64_83] : memref<1192x192xf32, #tpu.memory_space<vmem>>, vector<8x64xf32>
    tpu.vector_store %arg7[%c472, %c64_83], %148 {strides = array<i32>} : memref<1192x192xf32, #tpu.memory_space<vmem>>, vector<8x64xf32>,
    %c471 = arith.constant 471 : index
    %c128_84 = arith.constant 128 : index
    %151 = vector.load %arg7[%c471, %c128_84] : memref<1192x192xf32, #tpu.memory_space<vmem>>, vector<8x64xf32>
    tpu.vector_store %arg7[%c471, %c128_84], %148 {strides = array<i32>} : memref<1192x192xf32, #tpu.memory_space<vmem>>, vector<8x64xf32>,
    %152 = vector.extract_strided_slice %19 {offsets = [3, 16, 0], sizes = [1, 8, 64], strides = [1, 1, 1]} : vector<8x64x64xf32> to vector<1x8x64xf32>
    %153 = vector.shape_cast %152 : vector<1x8x64xf32> to vector<8x64xf32>
    %c489 = arith.constant 489 : index
    %c0_85 = arith.constant 0 : index
    %154 = vector.load %arg7[%c489, %c0_85] : memref<1192x192xf32, #tpu.memory_space<vmem>>, vector<8x64xf32>
    tpu.vector_store %arg7[%c489, %c0_85], %153 {strides = array<i32>} : memref<1192x192xf32, #tpu.memory_space<vmem>>, vector<8x64xf32>,
    %c488 = arith.constant 488 : index
    %c64_86 = arith.constant 64 : index
    %155 = vector.load %arg7[%c488, %c64_86] : memref<1192x192xf32, #tpu.memory_space<vmem>>, vector<8x64xf32>
    tpu.vector_store %arg7[%c488, %c64_86], %153 {strides = array<i32>} : memref<1192x192xf32, #tpu.memory_space<vmem>>, vector<8x64xf32>,
    %c487 = arith.constant 487 : index
    %c128_87 = arith.constant 128 : index
    %156 = vector.load %arg7[%c487, %c128_87] : memref<1192x192xf32, #tpu.memory_space<vmem>>, vector<8x64xf32>
    tpu.vector_store %arg7[%c487, %c128_87], %153 {strides = array<i32>} : memref<1192x192xf32, #tpu.memory_space<vmem>>, vector<8x64xf32>,
    %157 = vector.extract_strided_slice %19 {offsets = [3, 24, 0], sizes = [1, 8, 64], strides = [1, 1, 1]} : vector<8x64x64xf32> to vector<1x8x64xf32>
    %158 = vector.shape_cast %157 : vector<1x8x64xf32> to vector<8x64xf32>
    %c505 = arith.constant 505 : index
    %c0_88 = arith.constant 0 : index
    %159 = vector.load %arg7[%c505, %c0_88] : memref<1192x192xf32, #tpu.memory_space<vmem>>, vector<8x64xf32>
    tpu.vector_store %arg7[%c505, %c0_88], %158 {strides = array<i32>} : memref<1192x192xf32, #tpu.memory_space<vmem>>, vector<8x64xf32>,
    %c504 = arith.constant 504 : index
    %c64_89 = arith.constant 64 : index
    %160 = vector.load %arg7[%c504, %c64_89] : memref<1192x192xf32, #tpu.memory_space<vmem>>, vector<8x64xf32>
    tpu.vector_store %arg7[%c504, %c64_89], %158 {strides = array<i32>} : memref<1192x192xf32, #tpu.memory_space<vmem>>, vector<8x64xf32>,
    %c503 = arith.constant 503 : index
    %c128_90 = arith.constant 128 : index
    %161 = vector.load %arg7[%c503, %c128_90] : memref<1192x192xf32, #tpu.memory_space<vmem>>, vector<8x64xf32>
    tpu.vector_store %arg7[%c503, %c128_90], %158 {strides = array<i32>} : memref<1192x192xf32, #tpu.memory_space<vmem>>, vector<8x64xf32>,
    %162 = vector.extract_strided_slice %19 {offsets = [3, 32, 0], sizes = [1, 8, 64], strides = [1, 1, 1]} : vector<8x64x64xf32> to vector<1x8x64xf32>
    %163 = vector.shape_cast %162 : vector<1x8x64xf32> to vector<8x64xf32>
    %c521 = arith.constant 521 : index
    %c0_91 = arith.constant 0 : index
    %164 = vector.load %arg7[%c521, %c0_91] : memref<1192x192xf32, #tpu.memory_space<vmem>>, vector<8x64xf32>
    tpu.vector_store %arg7[%c521, %c0_91], %163 {strides = array<i32>} : memref<1192x192xf32, #tpu.memory_space<vmem>>, vector<8x64xf32>,
    %c520 = arith.constant 520 : index
    %c64_92 = arith.constant 64 : index
    %165 = vector.load %arg7[%c520, %c64_92] : memref<1192x192xf32, #tpu.memory_space<vmem>>, vector<8x64xf32>
    tpu.vector_store %arg7[%c520, %c64_92], %163 {strides = array<i32>} : memref<1192x192xf32, #tpu.memory_space<vmem>>, vector<8x64xf32>,
    %c519 = arith.constant 519 : index
    %c128_93 = arith.constant 128 : index
    %166 = vector.load %arg7[%c519, %c128_93] : memref<1192x192xf32, #tpu.memory_space<vmem>>, vector<8x64xf32>
    tpu.vector_store %arg7[%c519, %c128_93], %163 {strides = array<i32>} : memref<1192x192xf32, #tpu.memory_space<vmem>>, vector<8x64xf32>,
    %167 = vector.extract_strided_slice %19 {offsets = [3, 40, 0], sizes = [1, 8, 64], strides = [1, 1, 1]} : vector<8x64x64xf32> to vector<1x8x64xf32>
    %168 = vector.shape_cast %167 : vector<1x8x64xf32> to vector<8x64xf32>
    %c537 = arith.constant 537 : index
    %c0_94 = arith.constant 0 : index
    %169 = vector.load %arg7[%c537, %c0_94] : memref<1192x192xf32, #tpu.memory_space<vmem>>, vector<8x64xf32>
    tpu.vector_store %arg7[%c537, %c0_94], %168 {strides = array<i32>} : memref<1192x192xf32, #tpu.memory_space<vmem>>, vector<8x64xf32>,
    %c536 = arith.constant 536 : index
    %c64_95 = arith.constant 64 : index
    %170 = vector.load %arg7[%c536, %c64_95] : memref<1192x192xf32, #tpu.memory_space<vmem>>, vector<8x64xf32>
    tpu.vector_store %arg7[%c536, %c64_95], %168 {strides = array<i32>} : memref<1192x192xf32, #tpu.memory_space<vmem>>, vector<8x64xf32>,
    %c535 = arith.constant 535 : index
    %c128_96 = arith.constant 128 : index
    %171 = vector.load %arg7[%c535, %c128_96] : memref<1192x192xf32, #tpu.memory_space<vmem>>, vector<8x64xf32>
    tpu.vector_store %arg7[%c535, %c128_96], %168 {strides = array<i32>} : memref<1192x192xf32, #tpu.memory_space<vmem>>, vector<8x64xf32>,
    %172 = vector.extract_strided_slice %19 {offsets = [3, 48, 0], sizes = [1, 8, 64], strides = [1, 1, 1]} : vector<8x64x64xf32> to vector<1x8x64xf32>
    %173 = vector.shape_cast %172 : vector<1x8x64xf32> to vector<8x64xf32>
    %c553 = arith.constant 553 : index
    %c0_97 = arith.constant 0 : index
    %174 = vector.load %arg7[%c553, %c0_97] : memref<1192x192xf32, #tpu.memory_space<vmem>>, vector<8x64xf32>
    tpu.vector_store %arg7[%c553, %c0_97], %173 {strides = array<i32>} : memref<1192x192xf32, #tpu.memory_space<vmem>>, vector<8x64xf32>,
    %c552 = arith.constant 552 : index
    %c64_98 = arith.constant 64 : index
    %175 = vector.load %arg7[%c552, %c64_98] : memref<1192x192xf32, #tpu.memory_space<vmem>>, vector<8x64xf32>
    tpu.vector_store %arg7[%c552, %c64_98], %173 {strides = array<i32>} : memref<1192x192xf32, #tpu.memory_space<vmem>>, vector<8x64xf32>,
    %c551 = arith.constant 551 : index
    %c128_99 = arith.constant 128 : index
    %176 = vector.load %arg7[%c551, %c128_99] : memref<1192x192xf32, #tpu.memory_space<vmem>>, vector<8x64xf32>
    tpu.vector_store %arg7[%c551, %c128_99], %173 {strides = array<i32>} : memref<1192x192xf32, #tpu.memory_space<vmem>>, vector<8x64xf32>,
    %177 = vector.extract_strided_slice %19 {offsets = [3, 56, 0], sizes = [1, 8, 64], strides = [1, 1, 1]} : vector<8x64x64xf32> to vector<1x8x64xf32>
    %178 = vector.shape_cast %177 : vector<1x8x64xf32> to vector<8x64xf32>
    %c569 = arith.constant 569 : index
    %c0_100 = arith.constant 0 : index
    %179 = vector.load %arg7[%c569, %c0_100] : memref<1192x192xf32, #tpu.memory_space<vmem>>, vector<8x64xf32>
    tpu.vector_store %arg7[%c569, %c0_100], %178 {strides = array<i32>} : memref<1192x192xf32, #tpu.memory_space<vmem>>, vector<8x64xf32>,
    %c568 = arith.constant 568 : index
    %c64_101 = arith.constant 64 : index
    %180 = vector.load %arg7[%c568, %c64_101] : memref<1192x192xf32, #tpu.memory_space<vmem>>, vector<8x64xf32>
    tpu.vector_store %arg7[%c568, %c64_101], %178 {strides = array<i32>} : memref<1192x192xf32, #tpu.memory_space<vmem>>, vector<8x64xf32>,
    %c567 = arith.constant 567 : index
    %c128_102 = arith.constant 128 : index
    %181 = vector.load %arg7[%c567, %c128_102] : memref<1192x192xf32, #tpu.memory_space<vmem>>, vector<8x64xf32>
    tpu.vector_store %arg7[%c567, %c128_102], %178 {strides = array<i32>} : memref<1192x192xf32, #tpu.memory_space<vmem>>, vector<8x64xf32>,
    %182 = vector.extract_strided_slice %19 {offsets = [4, 0, 0], sizes = [1, 8, 64], strides = [1, 1, 1]} : vector<8x64x64xf32> to vector<1x8x64xf32>
    %183 = vector.shape_cast %182 : vector<1x8x64xf32> to vector<8x64xf32>
    %c601 = arith.constant 601 : index
    %c0_103 = arith.constant 0 : index
    %184 = vector.load %arg7[%c601, %c0_103] : memref<1192x192xf32, #tpu.memory_space<vmem>>, vector<8x64xf32>
    tpu.vector_store %arg7[%c601, %c0_103], %183 {strides = array<i32>} : memref<1192x192xf32, #tpu.memory_space<vmem>>, vector<8x64xf32>,
    %c600 = arith.constant 600 : index
    %c64_104 = arith.constant 64 : index
    %185 = vector.load %arg7[%c600, %c64_104] : memref<1192x192xf32, #tpu.memory_space<vmem>>, vector<8x64xf32>
    tpu.vector_store %arg7[%c600, %c64_104], %183 {strides = array<i32>} : memref<1192x192xf32, #tpu.memory_space<vmem>>, vector<8x64xf32>,
    %c599 = arith.constant 599 : index
    %c128_105 = arith.constant 128 : index
    %186 = vector.load %arg7[%c599, %c128_105] : memref<1192x192xf32, #tpu.memory_space<vmem>>, vector<8x64xf32>
    tpu.vector_store %arg7[%c599, %c128_105], %183 {strides = array<i32>} : memref<1192x192xf32, #tpu.memory_space<vmem>>, vector<8x64xf32>,
    %187 = vector.extract_strided_slice %19 {offsets = [4, 8, 0], sizes = [1, 8, 64], strides = [1, 1, 1]} : vector<8x64x64xf32> to vector<1x8x64xf32>
    %188 = vector.shape_cast %187 : vector<1x8x64xf32> to vector<8x64xf32>
    %c617 = arith.constant 617 : index
    %c0_106 = arith.constant 0 : index
    %189 = vector.load %arg7[%c617, %c0_106] : memref<1192x192xf32, #tpu.memory_space<vmem>>, vector<8x64xf32>
    tpu.vector_store %arg7[%c617, %c0_106], %188 {strides = array<i32>} : memref<1192x192xf32, #tpu.memory_space<vmem>>, vector<8x64xf32>,
    %c616 = arith.constant 616 : index
    %c64_107 = arith.constant 64 : index
    %190 = vector.load %arg7[%c616, %c64_107] : memref<1192x192xf32, #tpu.memory_space<vmem>>, vector<8x64xf32>
    tpu.vector_store %arg7[%c616, %c64_107], %188 {strides = array<i32>} : memref<1192x192xf32, #tpu.memory_space<vmem>>, vector<8x64xf32>,
    %c615 = arith.constant 615 : index
    %c128_108 = arith.constant 128 : index
    %191 = vector.load %arg7[%c615, %c128_108] : memref<1192x192xf32, #tpu.memory_space<vmem>>, vector<8x64xf32>
    tpu.vector_store %arg7[%c615, %c128_108], %188 {strides = array<i32>} : memref<1192x192xf32, #tpu.memory_space<vmem>>, vector<8x64xf32>,
    %192 = vector.extract_strided_slice %19 {offsets = [4, 16, 0], sizes = [1, 8, 64], strides = [1, 1, 1]} : vector<8x64x64xf32> to vector<1x8x64xf32>
    %193 = vector.shape_cast %192 : vector<1x8x64xf32> to vector<8x64xf32>
    %c633 = arith.constant 633 : index
    %c0_109 = arith.constant 0 : index
    %194 = vector.load %arg7[%c633, %c0_109] : memref<1192x192xf32, #tpu.memory_space<vmem>>, vector<8x64xf32>
    tpu.vector_store %arg7[%c633, %c0_109], %193 {strides = array<i32>} : memref<1192x192xf32, #tpu.memory_space<vmem>>, vector<8x64xf32>,
    %c632 = arith.constant 632 : index
    %c64_110 = arith.constant 64 : index
    %195 = vector.load %arg7[%c632, %c64_110] : memref<1192x192xf32, #tpu.memory_space<vmem>>, vector<8x64xf32>
    tpu.vector_store %arg7[%c632, %c64_110], %193 {strides = array<i32>} : memref<1192x192xf32, #tpu.memory_space<vmem>>, vector<8x64xf32>,
    %c631 = arith.constant 631 : index
    %c128_111 = arith.constant 128 : index
    %196 = vector.load %arg7[%c631, %c128_111] : memref<1192x192xf32, #tpu.memory_space<vmem>>, vector<8x64xf32>
    tpu.vector_store %arg7[%c631, %c128_111], %193 {strides = array<i32>} : memref<1192x192xf32, #tpu.memory_space<vmem>>, vector<8x64xf32>,
    %197 = vector.extract_strided_slice %19 {offsets = [4, 24, 0], sizes = [1, 8, 64], strides = [1, 1, 1]} : vector<8x64x64xf32> to vector<1x8x64xf32>
    %198 = vector.shape_cast %197 : vector<1x8x64xf32> to vector<8x64xf32>
    %c649 = arith.constant 649 : index
    %c0_112 = arith.constant 0 : index
    %199 = vector.load %arg7[%c649, %c0_112] : memref<1192x192xf32, #tpu.memory_space<vmem>>, vector<8x64xf32>
    tpu.vector_store %arg7[%c649, %c0_112], %198 {strides = array<i32>} : memref<1192x192xf32, #tpu.memory_space<vmem>>, vector<8x64xf32>,
    %c648 = arith.constant 648 : index
    %c64_113 = arith.constant 64 : index
    %200 = vector.load %arg7[%c648, %c64_113] : memref<1192x192xf32, #tpu.memory_space<vmem>>, vector<8x64xf32>
    tpu.vector_store %arg7[%c648, %c64_113], %198 {strides = array<i32>} : memref<1192x192xf32, #tpu.memory_space<vmem>>, vector<8x64xf32>,
    %c647 = arith.constant 647 : index
    %c128_114 = arith.constant 128 : index
    %201 = vector.load %arg7[%c647, %c128_114] : memref<1192x192xf32, #tpu.memory_space<vmem>>, vector<8x64xf32>
    tpu.vector_store %arg7[%c647, %c128_114], %198 {strides = array<i32>} : memref<1192x192xf32, #tpu.memory_space<vmem>>, vector<8x64xf32>,
    %202 = vector.extract_strided_slice %19 {offsets = [4, 32, 0], sizes = [1, 8, 64], strides = [1, 1, 1]} : vector<8x64x64xf32> to vector<1x8x64xf32>
    %203 = vector.shape_cast %202 : vector<1x8x64xf32> to vector<8x64xf32>
    %c665 = arith.constant 665 : index
    %c0_115 = arith.constant 0 : index
    %204 = vector.load %arg7[%c665, %c0_115] : memref<1192x192xf32, #tpu.memory_space<vmem>>, vector<8x64xf32>
    tpu.vector_store %arg7[%c665, %c0_115], %203 {strides = array<i32>} : memref<1192x192xf32, #tpu.memory_space<vmem>>, vector<8x64xf32>,
    %c664 = arith.constant 664 : index
    %c64_116 = arith.constant 64 : index
    %205 = vector.load %arg7[%c664, %c64_116] : memref<1192x192xf32, #tpu.memory_space<vmem>>, vector<8x64xf32>
    tpu.vector_store %arg7[%c664, %c64_116], %203 {strides = array<i32>} : memref<1192x192xf32, #tpu.memory_space<vmem>>, vector<8x64xf32>,
    %c663 = arith.constant 663 : index
    %c128_117 = arith.constant 128 : index
    %206 = vector.load %arg7[%c663, %c128_117] : memref<1192x192xf32, #tpu.memory_space<vmem>>, vector<8x64xf32>
    tpu.vector_store %arg7[%c663, %c128_117], %203 {strides = array<i32>} : memref<1192x192xf32, #tpu.memory_space<vmem>>, vector<8x64xf32>,
    %207 = vector.extract_strided_slice %19 {offsets = [4, 40, 0], sizes = [1, 8, 64], strides = [1, 1, 1]} : vector<8x64x64xf32> to vector<1x8x64xf32>
    %208 = vector.shape_cast %207 : vector<1x8x64xf32> to vector<8x64xf32>
    %c681 = arith.constant 681 : index
    %c0_118 = arith.constant 0 : index
    %209 = vector.load %arg7[%c681, %c0_118] : memref<1192x192xf32, #tpu.memory_space<vmem>>, vector<8x64xf32>
    tpu.vector_store %arg7[%c681, %c0_118], %208 {strides = array<i32>} : memref<1192x192xf32, #tpu.memory_space<vmem>>, vector<8x64xf32>,
    %c680 = arith.constant 680 : index
    %c64_119 = arith.constant 64 : index
    %210 = vector.load %arg7[%c680, %c64_119] : memref<1192x192xf32, #tpu.memory_space<vmem>>, vector<8x64xf32>
    tpu.vector_store %arg7[%c680, %c64_119], %208 {strides = array<i32>} : memref<1192x192xf32, #tpu.memory_space<vmem>>, vector<8x64xf32>,
    %c679 = arith.constant 679 : index
    %c128_120 = arith.constant 128 : index
    %211 = vector.load %arg7[%c679, %c128_120] : memref<1192x192xf32, #tpu.memory_space<vmem>>, vector<8x64xf32>
    tpu.vector_store %arg7[%c679, %c128_120], %208 {strides = array<i32>} : memref<1192x192xf32, #tpu.memory_space<vmem>>, vector<8x64xf32>,
    %212 = vector.extract_strided_slice %19 {offsets = [4, 48, 0], sizes = [1, 8, 64], strides = [1, 1, 1]} : vector<8x64x64xf32> to vector<1x8x64xf32>
    %213 = vector.shape_cast %212 : vector<1x8x64xf32> to vector<8x64xf32>
    %c697 = arith.constant 697 : index
    %c0_121 = arith.constant 0 : index
    %214 = vector.load %arg7[%c697, %c0_121] : memref<1192x192xf32, #tpu.memory_space<vmem>>, vector<8x64xf32>
    tpu.vector_store %arg7[%c697, %c0_121], %213 {strides = array<i32>} : memref<1192x192xf32, #tpu.memory_space<vmem>>, vector<8x64xf32>,
    %c696 = arith.constant 696 : index
    %c64_122 = arith.constant 64 : index
    %215 = vector.load %arg7[%c696, %c64_122] : memref<1192x192xf32, #tpu.memory_space<vmem>>, vector<8x64xf32>
    tpu.vector_store %arg7[%c696, %c64_122], %213 {strides = array<i32>} : memref<1192x192xf32, #tpu.memory_space<vmem>>, vector<8x64xf32>,
    %c695 = arith.constant 695 : index
    %c128_123 = arith.constant 128 : index
    %216 = vector.load %arg7[%c695, %c128_123] : memref<1192x192xf32, #tpu.memory_space<vmem>>, vector<8x64xf32>
    tpu.vector_store %arg7[%c695, %c128_123], %213 {strides = array<i32>} : memref<1192x192xf32, #tpu.memory_space<vmem>>, vector<8x64xf32>,
    %217 = vector.extract_strided_slice %19 {offsets = [4, 56, 0], sizes = [1, 8, 64], strides = [1, 1, 1]} : vector<8x64x64xf32> to vector<1x8x64xf32>
    %218 = vector.shape_cast %217 : vector<1x8x64xf32> to vector<8x64xf32>
    %c713 = arith.constant 713 : index
    %c0_124 = arith.constant 0 : index
    %219 = vector.load %arg7[%c713, %c0_124] : memref<1192x192xf32, #tpu.memory_space<vmem>>, vector<8x64xf32>
    tpu.vector_store %arg7[%c713, %c0_124], %218 {strides = array<i32>} : memref<1192x192xf32, #tpu.memory_space<vmem>>, vector<8x64xf32>,
    %c712 = arith.constant 712 : index
    %c64_125 = arith.constant 64 : index
    %220 = vector.load %arg7[%c712, %c64_125] : memref<1192x192xf32, #tpu.memory_space<vmem>>, vector<8x64xf32>
    tpu.vector_store %arg7[%c712, %c64_125], %218 {strides = array<i32>} : memref<1192x192xf32, #tpu.memory_space<vmem>>, vector<8x64xf32>,
    %c711 = arith.constant 711 : index
    %c128_126 = arith.constant 128 : index
    %221 = vector.load %arg7[%c711, %c128_126] : memref<1192x192xf32, #tpu.memory_space<vmem>>, vector<8x64xf32>
    tpu.vector_store %arg7[%c711, %c128_126], %218 {strides = array<i32>} : memref<1192x192xf32, #tpu.memory_space<vmem>>, vector<8x64xf32>,
    %222 = vector.extract_strided_slice %19 {offsets = [5, 0, 0], sizes = [1, 8, 64], strides = [1, 1, 1]} : vector<8x64x64xf32> to vector<1x8x64xf32>
    %223 = vector.shape_cast %222 : vector<1x8x64xf32> to vector<8x64xf32>
    %c745 = arith.constant 745 : index
    %c0_127 = arith.constant 0 : index
    %224 = vector.load %arg7[%c745, %c0_127] : memref<1192x192xf32, #tpu.memory_space<vmem>>, vector<8x64xf32>
    tpu.vector_store %arg7[%c745, %c0_127], %223 {strides = array<i32>} : memref<1192x192xf32, #tpu.memory_space<vmem>>, vector<8x64xf32>,
    %c744 = arith.constant 744 : index
    %c64_128 = arith.constant 64 : index
    %225 = vector.load %arg7[%c744, %c64_128] : memref<1192x192xf32, #tpu.memory_space<vmem>>, vector<8x64xf32>
    tpu.vector_store %arg7[%c744, %c64_128], %223 {strides = array<i32>} : memref<1192x192xf32, #tpu.memory_space<vmem>>, vector<8x64xf32>,
    %c743 = arith.constant 743 : index
    %c128_129 = arith.constant 128 : index
    %226 = vector.load %arg7[%c743, %c128_129] : memref<1192x192xf32, #tpu.memory_space<vmem>>, vector<8x64xf32>
    tpu.vector_store %arg7[%c743, %c128_129], %223 {strides = array<i32>} : memref<1192x192xf32, #tpu.memory_space<vmem>>, vector<8x64xf32>,
    %227 = vector.extract_strided_slice %19 {offsets = [5, 8, 0], sizes = [1, 8, 64], strides = [1, 1, 1]} : vector<8x64x64xf32> to vector<1x8x64xf32>
    %228 = vector.shape_cast %227 : vector<1x8x64xf32> to vector<8x64xf32>
    %c761 = arith.constant 761 : index
    %c0_130 = arith.constant 0 : index
    %229 = vector.load %arg7[%c761, %c0_130] : memref<1192x192xf32, #tpu.memory_space<vmem>>, vector<8x64xf32>
    tpu.vector_store %arg7[%c761, %c0_130], %228 {strides = array<i32>} : memref<1192x192xf32, #tpu.memory_space<vmem>>, vector<8x64xf32>,
    %c760 = arith.constant 760 : index
    %c64_131 = arith.constant 64 : index
    %230 = vector.load %arg7[%c760, %c64_131] : memref<1192x192xf32, #tpu.memory_space<vmem>>, vector<8x64xf32>
    tpu.vector_store %arg7[%c760, %c64_131], %228 {strides = array<i32>} : memref<1192x192xf32, #tpu.memory_space<vmem>>, vector<8x64xf32>,
    %c759 = arith.constant 759 : index
    %c128_132 = arith.constant 128 : index
    %231 = vector.load %arg7[%c759, %c128_132] : memref<1192x192xf32, #tpu.memory_space<vmem>>, vector<8x64xf32>
    tpu.vector_store %arg7[%c759, %c128_132], %228 {strides = array<i32>} : memref<1192x192xf32, #tpu.memory_space<vmem>>, vector<8x64xf32>,
    %232 = vector.extract_strided_slice %19 {offsets = [5, 16, 0], sizes = [1, 8, 64], strides = [1, 1, 1]} : vector<8x64x64xf32> to vector<1x8x64xf32>
    %233 = vector.shape_cast %232 : vector<1x8x64xf32> to vector<8x64xf32>
    %c777 = arith.constant 777 : index
    %c0_133 = arith.constant 0 : index
    %234 = vector.load %arg7[%c777, %c0_133] : memref<1192x192xf32, #tpu.memory_space<vmem>>, vector<8x64xf32>
    tpu.vector_store %arg7[%c777, %c0_133], %233 {strides = array<i32>} : memref<1192x192xf32, #tpu.memory_space<vmem>>, vector<8x64xf32>,
    %c776 = arith.constant 776 : index
    %c64_134 = arith.constant 64 : index
    %235 = vector.load %arg7[%c776, %c64_134] : memref<1192x192xf32, #tpu.memory_space<vmem>>, vector<8x64xf32>
    tpu.vector_store %arg7[%c776, %c64_134], %233 {strides = array<i32>} : memref<1192x192xf32, #tpu.memory_space<vmem>>, vector<8x64xf32>,
    %c775 = arith.constant 775 : index
    %c128_135 = arith.constant 128 : index
    %236 = vector.load %arg7[%c775, %c128_135] : memref<1192x192xf32, #tpu.memory_space<vmem>>, vector<8x64xf32>
    tpu.vector_store %arg7[%c775, %c128_135], %233 {strides = array<i32>} : memref<1192x192xf32, #tpu.memory_space<vmem>>, vector<8x64xf32>,
    %237 = vector.extract_strided_slice %19 {offsets = [5, 24, 0], sizes = [1, 8, 64], strides = [1, 1, 1]} : vector<8x64x64xf32> to vector<1x8x64xf32>
    %238 = vector.shape_cast %237 : vector<1x8x64xf32> to vector<8x64xf32>
    %c793 = arith.constant 793 : index
    %c0_136 = arith.constant 0 : index
    %239 = vector.load %arg7[%c793, %c0_136] : memref<1192x192xf32, #tpu.memory_space<vmem>>, vector<8x64xf32>
    tpu.vector_store %arg7[%c793, %c0_136], %238 {strides = array<i32>} : memref<1192x192xf32, #tpu.memory_space<vmem>>, vector<8x64xf32>,
    %c792 = arith.constant 792 : index
    %c64_137 = arith.constant 64 : index
    %240 = vector.load %arg7[%c792, %c64_137] : memref<1192x192xf32, #tpu.memory_space<vmem>>, vector<8x64xf32>
    tpu.vector_store %arg7[%c792, %c64_137], %238 {strides = array<i32>} : memref<1192x192xf32, #tpu.memory_space<vmem>>, vector<8x64xf32>,
    %c791 = arith.constant 791 : index
    %c128_138 = arith.constant 128 : index
    %241 = vector.load %arg7[%c791, %c128_138] : memref<1192x192xf32, #tpu.memory_space<vmem>>, vector<8x64xf32>
    tpu.vector_store %arg7[%c791, %c128_138], %238 {strides = array<i32>} : memref<1192x192xf32, #tpu.memory_space<vmem>>, vector<8x64xf32>,
    %242 = vector.extract_strided_slice %19 {offsets = [5, 32, 0], sizes = [1, 8, 64], strides = [1, 1, 1]} : vector<8x64x64xf32> to vector<1x8x64xf32>
    %243 = vector.shape_cast %242 : vector<1x8x64xf32> to vector<8x64xf32>
    %c809 = arith.constant 809 : index
    %c0_139 = arith.constant 0 : index
    %244 = vector.load %arg7[%c809, %c0_139] : memref<1192x192xf32, #tpu.memory_space<vmem>>, vector<8x64xf32>
    tpu.vector_store %arg7[%c809, %c0_139], %243 {strides = array<i32>} : memref<1192x192xf32, #tpu.memory_space<vmem>>, vector<8x64xf32>,
    %c808 = arith.constant 808 : index
    %c64_140 = arith.constant 64 : index
    %245 = vector.load %arg7[%c808, %c64_140] : memref<1192x192xf32, #tpu.memory_space<vmem>>, vector<8x64xf32>
    tpu.vector_store %arg7[%c808, %c64_140], %243 {strides = array<i32>} : memref<1192x192xf32, #tpu.memory_space<vmem>>, vector<8x64xf32>,
    %c807 = arith.constant 807 : index
    %c128_141 = arith.constant 128 : index
    %246 = vector.load %arg7[%c807, %c128_141] : memref<1192x192xf32, #tpu.memory_space<vmem>>, vector<8x64xf32>
    tpu.vector_store %arg7[%c807, %c128_141], %243 {strides = array<i32>} : memref<1192x192xf32, #tpu.memory_space<vmem>>, vector<8x64xf32>,
    %247 = vector.extract_strided_slice %19 {offsets = [5, 40, 0], sizes = [1, 8, 64], strides = [1, 1, 1]} : vector<8x64x64xf32> to vector<1x8x64xf32>
    %248 = vector.shape_cast %247 : vector<1x8x64xf32> to vector<8x64xf32>
    %c825 = arith.constant 825 : index
    %c0_142 = arith.constant 0 : index
    %249 = vector.load %arg7[%c825, %c0_142] : memref<1192x192xf32, #tpu.memory_space<vmem>>, vector<8x64xf32>
    tpu.vector_store %arg7[%c825, %c0_142], %248 {strides = array<i32>} : memref<1192x192xf32, #tpu.memory_space<vmem>>, vector<8x64xf32>,
    %c824 = arith.constant 824 : index
    %c64_143 = arith.constant 64 : index
    %250 = vector.load %arg7[%c824, %c64_143] : memref<1192x192xf32, #tpu.memory_space<vmem>>, vector<8x64xf32>
    tpu.vector_store %arg7[%c824, %c64_143], %248 {strides = array<i32>} : memref<1192x192xf32, #tpu.memory_space<vmem>>, vector<8x64xf32>,
    %c823 = arith.constant 823 : index
    %c128_144 = arith.constant 128 : index
    %251 = vector.load %arg7[%c823, %c128_144] : memref<1192x192xf32, #tpu.memory_space<vmem>>, vector<8x64xf32>
    tpu.vector_store %arg7[%c823, %c128_144], %248 {strides = array<i32>} : memref<1192x192xf32, #tpu.memory_space<vmem>>, vector<8x64xf32>,
    %252 = vector.extract_strided_slice %19 {offsets = [5, 48, 0], sizes = [1, 8, 64], strides = [1, 1, 1]} : vector<8x64x64xf32> to vector<1x8x64xf32>
    %253 = vector.shape_cast %252 : vector<1x8x64xf32> to vector<8x64xf32>
    %c841 = arith.constant 841 : index
    %c0_145 = arith.constant 0 : index
    %254 = vector.load %arg7[%c841, %c0_145] : memref<1192x192xf32, #tpu.memory_space<vmem>>, vector<8x64xf32>
    tpu.vector_store %arg7[%c841, %c0_145], %253 {strides = array<i32>} : memref<1192x192xf32, #tpu.memory_space<vmem>>, vector<8x64xf32>,
    %c840 = arith.constant 840 : index
    %c64_146 = arith.constant 64 : index
    %255 = vector.load %arg7[%c840, %c64_146] : memref<1192x192xf32, #tpu.memory_space<vmem>>, vector<8x64xf32>
    tpu.vector_store %arg7[%c840, %c64_146], %253 {strides = array<i32>} : memref<1192x192xf32, #tpu.memory_space<vmem>>, vector<8x64xf32>,
    %c839 = arith.constant 839 : index
    %c128_147 = arith.constant 128 : index
    %256 = vector.load %arg7[%c839, %c128_147] : memref<1192x192xf32, #tpu.memory_space<vmem>>, vector<8x64xf32>
    tpu.vector_store %arg7[%c839, %c128_147], %253 {strides = array<i32>} : memref<1192x192xf32, #tpu.memory_space<vmem>>, vector<8x64xf32>,
    %257 = vector.extract_strided_slice %19 {offsets = [5, 56, 0], sizes = [1, 8, 64], strides = [1, 1, 1]} : vector<8x64x64xf32> to vector<1x8x64xf32>
    %258 = vector.shape_cast %257 : vector<1x8x64xf32> to vector<8x64xf32>
    %c857 = arith.constant 857 : index
    %c0_148 = arith.constant 0 : index
    %259 = vector.load %arg7[%c857, %c0_148] : memref<1192x192xf32, #tpu.memory_space<vmem>>, vector<8x64xf32>
    tpu.vector_store %arg7[%c857, %c0_148], %258 {strides = array<i32>} : memref<1192x192xf32, #tpu.memory_space<vmem>>, vector<8x64xf32>,
    %c856 = arith.constant 856 : index
    %c64_149 = arith.constant 64 : index
    %260 = vector.load %arg7[%c856, %c64_149] : memref<1192x192xf32, #tpu.memory_space<vmem>>, vector<8x64xf32>
    tpu.vector_store %arg7[%c856, %c64_149], %258 {strides = array<i32>} : memref<1192x192xf32, #tpu.memory_space<vmem>>, vector<8x64xf32>,
    %c855 = arith.constant 855 : index
    %c128_150 = arith.constant 128 : index
    %261 = vector.load %arg7[%c855, %c128_150] : memref<1192x192xf32, #tpu.memory_space<vmem>>, vector<8x64xf32>
    tpu.vector_store %arg7[%c855, %c128_150], %258 {strides = array<i32>} : memref<1192x192xf32, #tpu.memory_space<vmem>>, vector<8x64xf32>,
    %262 = vector.extract_strided_slice %19 {offsets = [6, 0, 0], sizes = [1, 8, 64], strides = [1, 1, 1]} : vector<8x64x64xf32> to vector<1x8x64xf32>
    %263 = vector.shape_cast %262 : vector<1x8x64xf32> to vector<8x64xf32>
    %c889 = arith.constant 889 : index
    %c0_151 = arith.constant 0 : index
    %264 = vector.load %arg7[%c889, %c0_151] : memref<1192x192xf32, #tpu.memory_space<vmem>>, vector<8x64xf32>
    tpu.vector_store %arg7[%c889, %c0_151], %263 {strides = array<i32>} : memref<1192x192xf32, #tpu.memory_space<vmem>>, vector<8x64xf32>,
    %c888 = arith.constant 888 : index
    %c64_152 = arith.constant 64 : index
    %265 = vector.load %arg7[%c888, %c64_152] : memref<1192x192xf32, #tpu.memory_space<vmem>>, vector<8x64xf32>
    tpu.vector_store %arg7[%c888, %c64_152], %263 {strides = array<i32>} : memref<1192x192xf32, #tpu.memory_space<vmem>>, vector<8x64xf32>,
    %c887 = arith.constant 887 : index
    %c128_153 = arith.constant 128 : index
    %266 = vector.load %arg7[%c887, %c128_153] : memref<1192x192xf32, #tpu.memory_space<vmem>>, vector<8x64xf32>
    tpu.vector_store %arg7[%c887, %c128_153], %263 {strides = array<i32>} : memref<1192x192xf32, #tpu.memory_space<vmem>>, vector<8x64xf32>,
    %267 = vector.extract_strided_slice %19 {offsets = [6, 8, 0], sizes = [1, 8, 64], strides = [1, 1, 1]} : vector<8x64x64xf32> to vector<1x8x64xf32>
    %268 = vector.shape_cast %267 : vector<1x8x64xf32> to vector<8x64xf32>
    %c905 = arith.constant 905 : index
    %c0_154 = arith.constant 0 : index
    %269 = vector.load %arg7[%c905, %c0_154] : memref<1192x192xf32, #tpu.memory_space<vmem>>, vector<8x64xf32>
    tpu.vector_store %arg7[%c905, %c0_154], %268 {strides = array<i32>} : memref<1192x192xf32, #tpu.memory_space<vmem>>, vector<8x64xf32>,
    %c904 = arith.constant 904 : index
    %c64_155 = arith.constant 64 : index
    %270 = vector.load %arg7[%c904, %c64_155] : memref<1192x192xf32, #tpu.memory_space<vmem>>, vector<8x64xf32>
    tpu.vector_store %arg7[%c904, %c64_155], %268 {strides = array<i32>} : memref<1192x192xf32, #tpu.memory_space<vmem>>, vector<8x64xf32>,
    %c903 = arith.constant 903 : index
    %c128_156 = arith.constant 128 : index
    %271 = vector.load %arg7[%c903, %c128_156] : memref<1192x192xf32, #tpu.memory_space<vmem>>, vector<8x64xf32>
    tpu.vector_store %arg7[%c903, %c128_156], %268 {strides = array<i32>} : memref<1192x192xf32, #tpu.memory_space<vmem>>, vector<8x64xf32>,
    %272 = vector.extract_strided_slice %19 {offsets = [6, 16, 0], sizes = [1, 8, 64], strides = [1, 1, 1]} : vector<8x64x64xf32> to vector<1x8x64xf32>
    %273 = vector.shape_cast %272 : vector<1x8x64xf32> to vector<8x64xf32>
    %c921 = arith.constant 921 : index
    %c0_157 = arith.constant 0 : index
    %274 = vector.load %arg7[%c921, %c0_157] : memref<1192x192xf32, #tpu.memory_space<vmem>>, vector<8x64xf32>
    tpu.vector_store %arg7[%c921, %c0_157], %273 {strides = array<i32>} : memref<1192x192xf32, #tpu.memory_space<vmem>>, vector<8x64xf32>,
    %c920 = arith.constant 920 : index
    %c64_158 = arith.constant 64 : index
    %275 = vector.load %arg7[%c920, %c64_158] : memref<1192x192xf32, #tpu.memory_space<vmem>>, vector<8x64xf32>
    tpu.vector_store %arg7[%c920, %c64_158], %273 {strides = array<i32>} : memref<1192x192xf32, #tpu.memory_space<vmem>>, vector<8x64xf32>,
    %c919 = arith.constant 919 : index
    %c128_159 = arith.constant 128 : index
    %276 = vector.load %arg7[%c919, %c128_159] : memref<1192x192xf32, #tpu.memory_space<vmem>>, vector<8x64xf32>
    tpu.vector_store %arg7[%c919, %c128_159], %273 {strides = array<i32>} : memref<1192x192xf32, #tpu.memory_space<vmem>>, vector<8x64xf32>,
    %277 = vector.extract_strided_slice %19 {offsets = [6, 24, 0], sizes = [1, 8, 64], strides = [1, 1, 1]} : vector<8x64x64xf32> to vector<1x8x64xf32>
    %278 = vector.shape_cast %277 : vector<1x8x64xf32> to vector<8x64xf32>
    %c937 = arith.constant 937 : index
    %c0_160 = arith.constant 0 : index
    %279 = vector.load %arg7[%c937, %c0_160] : memref<1192x192xf32, #tpu.memory_space<vmem>>, vector<8x64xf32>
    tpu.vector_store %arg7[%c937, %c0_160], %278 {strides = array<i32>} : memref<1192x192xf32, #tpu.memory_space<vmem>>, vector<8x64xf32>,
    %c936 = arith.constant 936 : index
    %c64_161 = arith.constant 64 : index
    %280 = vector.load %arg7[%c936, %c64_161] : memref<1192x192xf32, #tpu.memory_space<vmem>>, vector<8x64xf32>
    tpu.vector_store %arg7[%c936, %c64_161], %278 {strides = array<i32>} : memref<1192x192xf32, #tpu.memory_space<vmem>>, vector<8x64xf32>,
    %c935 = arith.constant 935 : index
    %c128_162 = arith.constant 128 : index
    %281 = vector.load %arg7[%c935, %c128_162] : memref<1192x192xf32, #tpu.memory_space<vmem>>, vector<8x64xf32>
    tpu.vector_store %arg7[%c935, %c128_162], %278 {strides = array<i32>} : memref<1192x192xf32, #tpu.memory_space<vmem>>, vector<8x64xf32>,
    %282 = vector.extract_strided_slice %19 {offsets = [6, 32, 0], sizes = [1, 8, 64], strides = [1, 1, 1]} : vector<8x64x64xf32> to vector<1x8x64xf32>
    %283 = vector.shape_cast %282 : vector<1x8x64xf32> to vector<8x64xf32>
    %c953 = arith.constant 953 : index
    %c0_163 = arith.constant 0 : index
    %284 = vector.load %arg7[%c953, %c0_163] : memref<1192x192xf32, #tpu.memory_space<vmem>>, vector<8x64xf32>
    tpu.vector_store %arg7[%c953, %c0_163], %283 {strides = array<i32>} : memref<1192x192xf32, #tpu.memory_space<vmem>>, vector<8x64xf32>,
    %c952 = arith.constant 952 : index
    %c64_164 = arith.constant 64 : index
    %285 = vector.load %arg7[%c952, %c64_164] : memref<1192x192xf32, #tpu.memory_space<vmem>>, vector<8x64xf32>
    tpu.vector_store %arg7[%c952, %c64_164], %283 {strides = array<i32>} : memref<1192x192xf32, #tpu.memory_space<vmem>>, vector<8x64xf32>,
    %c951 = arith.constant 951 : index
    %c128_165 = arith.constant 128 : index
    %286 = vector.load %arg7[%c951, %c128_165] : memref<1192x192xf32, #tpu.memory_space<vmem>>, vector<8x64xf32>
    tpu.vector_store %arg7[%c951, %c128_165], %283 {strides = array<i32>} : memref<1192x192xf32, #tpu.memory_space<vmem>>, vector<8x64xf32>,
    %287 = vector.extract_strided_slice %19 {offsets = [6, 40, 0], sizes = [1, 8, 64], strides = [1, 1, 1]} : vector<8x64x64xf32> to vector<1x8x64xf32>
    %288 = vector.shape_cast %287 : vector<1x8x64xf32> to vector<8x64xf32>
    %c969 = arith.constant 969 : index
    %c0_166 = arith.constant 0 : index
    %289 = vector.load %arg7[%c969, %c0_166] : memref<1192x192xf32, #tpu.memory_space<vmem>>, vector<8x64xf32>
    tpu.vector_store %arg7[%c969, %c0_166], %288 {strides = array<i32>} : memref<1192x192xf32, #tpu.memory_space<vmem>>, vector<8x64xf32>,
    %c968 = arith.constant 968 : index
    %c64_167 = arith.constant 64 : index
    %290 = vector.load %arg7[%c968, %c64_167] : memref<1192x192xf32, #tpu.memory_space<vmem>>, vector<8x64xf32>
    tpu.vector_store %arg7[%c968, %c64_167], %288 {strides = array<i32>} : memref<1192x192xf32, #tpu.memory_space<vmem>>, vector<8x64xf32>,
    %c967 = arith.constant 967 : index
    %c128_168 = arith.constant 128 : index
    %291 = vector.load %arg7[%c967, %c128_168] : memref<1192x192xf32, #tpu.memory_space<vmem>>, vector<8x64xf32>
    tpu.vector_store %arg7[%c967, %c128_168], %288 {strides = array<i32>} : memref<1192x192xf32, #tpu.memory_space<vmem>>, vector<8x64xf32>,
    %292 = vector.extract_strided_slice %19 {offsets = [6, 48, 0], sizes = [1, 8, 64], strides = [1, 1, 1]} : vector<8x64x64xf32> to vector<1x8x64xf32>
    %293 = vector.shape_cast %292 : vector<1x8x64xf32> to vector<8x64xf32>
    %c985 = arith.constant 985 : index
    %c0_169 = arith.constant 0 : index
    %294 = vector.load %arg7[%c985, %c0_169] : memref<1192x192xf32, #tpu.memory_space<vmem>>, vector<8x64xf32>
    tpu.vector_store %arg7[%c985, %c0_169], %293 {strides = array<i32>} : memref<1192x192xf32, #tpu.memory_space<vmem>>, vector<8x64xf32>,
    %c984 = arith.constant 984 : index
    %c64_170 = arith.constant 64 : index
    %295 = vector.load %arg7[%c984, %c64_170] : memref<1192x192xf32, #tpu.memory_space<vmem>>, vector<8x64xf32>
    tpu.vector_store %arg7[%c984, %c64_170], %293 {strides = array<i32>} : memref<1192x192xf32, #tpu.memory_space<vmem>>, vector<8x64xf32>,
    %c983 = arith.constant 983 : index
    %c128_171 = arith.constant 128 : index
    %296 = vector.load %arg7[%c983, %c128_171] : memref<1192x192xf32, #tpu.memory_space<vmem>>, vector<8x64xf32>
    tpu.vector_store %arg7[%c983, %c128_171], %293 {strides = array<i32>} : memref<1192x192xf32, #tpu.memory_space<vmem>>, vector<8x64xf32>,
    %297 = vector.extract_strided_slice %19 {offsets = [6, 56, 0], sizes = [1, 8, 64], strides = [1, 1, 1]} : vector<8x64x64xf32> to vector<1x8x64xf32>
    %298 = vector.shape_cast %297 : vector<1x8x64xf32> to vector<8x64xf32>
    %c1001 = arith.constant 1001 : index
    %c0_172 = arith.constant 0 : index
    %299 = vector.load %arg7[%c1001, %c0_172] : memref<1192x192xf32, #tpu.memory_space<vmem>>, vector<8x64xf32>
    tpu.vector_store %arg7[%c1001, %c0_172], %298 {strides = array<i32>} : memref<1192x192xf32, #tpu.memory_space<vmem>>, vector<8x64xf32>,
    %c1000 = arith.constant 1000 : index
    %c64_173 = arith.constant 64 : index
    %300 = vector.load %arg7[%c1000, %c64_173] : memref<1192x192xf32, #tpu.memory_space<vmem>>, vector<8x64xf32>
    tpu.vector_store %arg7[%c1000, %c64_173], %298 {strides = array<i32>} : memref<1192x192xf32, #tpu.memory_space<vmem>>, vector<8x64xf32>,
    %c999 = arith.constant 999 : index
    %c128_174 = arith.constant 128 : index
    %301 = vector.load %arg7[%c999, %c128_174] : memref<1192x192xf32, #tpu.memory_space<vmem>>, vector<8x64xf32>
    tpu.vector_store %arg7[%c999, %c128_174], %298 {strides = array<i32>} : memref<1192x192xf32, #tpu.memory_space<vmem>>, vector<8x64xf32>,
    %302 = vector.extract_strided_slice %19 {offsets = [7, 0, 0], sizes = [1, 8, 64], strides = [1, 1, 1]} : vector<8x64x64xf32> to vector<1x8x64xf32>
    %303 = vector.shape_cast %302 : vector<1x8x64xf32> to vector<8x64xf32>
    %c1033 = arith.constant 1033 : index
    %c0_175 = arith.constant 0 : index
    %304 = vector.load %arg7[%c1033, %c0_175] : memref<1192x192xf32, #tpu.memory_space<vmem>>, vector<8x64xf32>
    tpu.vector_store %arg7[%c1033, %c0_175], %303 {strides = array<i32>} : memref<1192x192xf32, #tpu.memory_space<vmem>>, vector<8x64xf32>,
    %c1032 = arith.constant 1032 : index
    %c64_176 = arith.constant 64 : index
    %305 = vector.load %arg7[%c1032, %c64_176] : memref<1192x192xf32, #tpu.memory_space<vmem>>, vector<8x64xf32>
    tpu.vector_store %arg7[%c1032, %c64_176], %303 {strides = array<i32>} : memref<1192x192xf32, #tpu.memory_space<vmem>>, vector<8x64xf32>,
    %c1031 = arith.constant 1031 : index
    %c128_177 = arith.constant 128 : index
    %306 = vector.load %arg7[%c1031, %c128_177] : memref<1192x192xf32, #tpu.memory_space<vmem>>, vector<8x64xf32>
    tpu.vector_store %arg7[%c1031, %c128_177], %303 {strides = array<i32>} : memref<1192x192xf32, #tpu.memory_space<vmem>>, vector<8x64xf32>,
    %307 = vector.extract_strided_slice %19 {offsets = [7, 8, 0], sizes = [1, 8, 64], strides = [1, 1, 1]} : vector<8x64x64xf32> to vector<1x8x64xf32>
    %308 = vector.shape_cast %307 : vector<1x8x64xf32> to vector<8x64xf32>
    %c1049 = arith.constant 1049 : index
    %c0_178 = arith.constant 0 : index
    %309 = vector.load %arg7[%c1049, %c0_178] : memref<1192x192xf32, #tpu.memory_space<vmem>>, vector<8x64xf32>
    tpu.vector_store %arg7[%c1049, %c0_178], %308 {strides = array<i32>} : memref<1192x192xf32, #tpu.memory_space<vmem>>, vector<8x64xf32>,
    %c1048 = arith.constant 1048 : index
    %c64_179 = arith.constant 64 : index
    %310 = vector.load %arg7[%c1048, %c64_179] : memref<1192x192xf32, #tpu.memory_space<vmem>>, vector<8x64xf32>
    tpu.vector_store %arg7[%c1048, %c64_179], %308 {strides = array<i32>} : memref<1192x192xf32, #tpu.memory_space<vmem>>, vector<8x64xf32>,
    %c1047 = arith.constant 1047 : index
    %c128_180 = arith.constant 128 : index
    %311 = vector.load %arg7[%c1047, %c128_180] : memref<1192x192xf32, #tpu.memory_space<vmem>>, vector<8x64xf32>
    tpu.vector_store %arg7[%c1047, %c128_180], %308 {strides = array<i32>} : memref<1192x192xf32, #tpu.memory_space<vmem>>, vector<8x64xf32>,
    %312 = vector.extract_strided_slice %19 {offsets = [7, 16, 0], sizes = [1, 8, 64], strides = [1, 1, 1]} : vector<8x64x64xf32> to vector<1x8x64xf32>
    %313 = vector.shape_cast %312 : vector<1x8x64xf32> to vector<8x64xf32>
    %c1065 = arith.constant 1065 : index
    %c0_181 = arith.constant 0 : index
    %314 = vector.load %arg7[%c1065, %c0_181] : memref<1192x192xf32, #tpu.memory_space<vmem>>, vector<8x64xf32>
    tpu.vector_store %arg7[%c1065, %c0_181], %313 {strides = array<i32>} : memref<1192x192xf32, #tpu.memory_space<vmem>>, vector<8x64xf32>,
    %c1064 = arith.constant 1064 : index
    %c64_182 = arith.constant 64 : index
    %315 = vector.load %arg7[%c1064, %c64_182] : memref<1192x192xf32, #tpu.memory_space<vmem>>, vector<8x64xf32>
    tpu.vector_store %arg7[%c1064, %c64_182], %313 {strides = array<i32>} : memref<1192x192xf32, #tpu.memory_space<vmem>>, vector<8x64xf32>,
    %c1063 = arith.constant 1063 : index
    %c128_183 = arith.constant 128 : index
    %316 = vector.load %arg7[%c1063, %c128_183] : memref<1192x192xf32, #tpu.memory_space<vmem>>, vector<8x64xf32>
    tpu.vector_store %arg7[%c1063, %c128_183], %313 {strides = array<i32>} : memref<1192x192xf32, #tpu.memory_space<vmem>>, vector<8x64xf32>,
    %317 = vector.extract_strided_slice %19 {offsets = [7, 24, 0], sizes = [1, 8, 64], strides = [1, 1, 1]} : vector<8x64x64xf32> to vector<1x8x64xf32>
    %318 = vector.shape_cast %317 : vector<1x8x64xf32> to vector<8x64xf32>
    %c1081 = arith.constant 1081 : index
    %c0_184 = arith.constant 0 : index
    %319 = vector.load %arg7[%c1081, %c0_184] : memref<1192x192xf32, #tpu.memory_space<vmem>>, vector<8x64xf32>
    tpu.vector_store %arg7[%c1081, %c0_184], %318 {strides = array<i32>} : memref<1192x192xf32, #tpu.memory_space<vmem>>, vector<8x64xf32>,
    %c1080 = arith.constant 1080 : index
    %c64_185 = arith.constant 64 : index
    %320 = vector.load %arg7[%c1080, %c64_185] : memref<1192x192xf32, #tpu.memory_space<vmem>>, vector<8x64xf32>
    tpu.vector_store %arg7[%c1080, %c64_185], %318 {strides = array<i32>} : memref<1192x192xf32, #tpu.memory_space<vmem>>, vector<8x64xf32>,
    %c1079 = arith.constant 1079 : index
    %c128_186 = arith.constant 128 : index
    %321 = vector.load %arg7[%c1079, %c128_186] : memref<1192x192xf32, #tpu.memory_space<vmem>>, vector<8x64xf32>
    tpu.vector_store %arg7[%c1079, %c128_186], %318 {strides = array<i32>} : memref<1192x192xf32, #tpu.memory_space<vmem>>, vector<8x64xf32>,
    %322 = vector.extract_strided_slice %19 {offsets = [7, 32, 0], sizes = [1, 8, 64], strides = [1, 1, 1]} : vector<8x64x64xf32> to vector<1x8x64xf32>
    %323 = vector.shape_cast %322 : vector<1x8x64xf32> to vector<8x64xf32>
    %c1097 = arith.constant 1097 : index
    %c0_187 = arith.constant 0 : index
    %324 = vector.load %arg7[%c1097, %c0_187] : memref<1192x192xf32, #tpu.memory_space<vmem>>, vector<8x64xf32>
    tpu.vector_store %arg7[%c1097, %c0_187], %323 {strides = array<i32>} : memref<1192x192xf32, #tpu.memory_space<vmem>>, vector<8x64xf32>,
    %c1096 = arith.constant 1096 : index
    %c64_188 = arith.constant 64 : index
    %325 = vector.load %arg7[%c1096, %c64_188] : memref<1192x192xf32, #tpu.memory_space<vmem>>, vector<8x64xf32>
    tpu.vector_store %arg7[%c1096, %c64_188], %323 {strides = array<i32>} : memref<1192x192xf32, #tpu.memory_space<vmem>>, vector<8x64xf32>,
    %c1095 = arith.constant 1095 : index
    %c128_189 = arith.constant 128 : index
    %326 = vector.load %arg7[%c1095, %c128_189] : memref<1192x192xf32, #tpu.memory_space<vmem>>, vector<8x64xf32>
    tpu.vector_store %arg7[%c1095, %c128_189], %323 {strides = array<i32>} : memref<1192x192xf32, #tpu.memory_space<vmem>>, vector<8x64xf32>,
    %327 = vector.extract_strided_slice %19 {offsets = [7, 40, 0], sizes = [1, 8, 64], strides = [1, 1, 1]} : vector<8x64x64xf32> to vector<1x8x64xf32>
    %328 = vector.shape_cast %327 : vector<1x8x64xf32> to vector<8x64xf32>
    %c1113 = arith.constant 1113 : index
    %c0_190 = arith.constant 0 : index
    %329 = vector.load %arg7[%c1113, %c0_190] : memref<1192x192xf32, #tpu.memory_space<vmem>>, vector<8x64xf32>
    tpu.vector_store %arg7[%c1113, %c0_190], %328 {strides = array<i32>} : memref<1192x192xf32, #tpu.memory_space<vmem>>, vector<8x64xf32>,
    %c1112 = arith.constant 1112 : index
    %c64_191 = arith.constant 64 : index
    %330 = vector.load %arg7[%c1112, %c64_191] : memref<1192x192xf32, #tpu.memory_space<vmem>>, vector<8x64xf32>
    tpu.vector_store %arg7[%c1112, %c64_191], %328 {strides = array<i32>} : memref<1192x192xf32, #tpu.memory_space<vmem>>, vector<8x64xf32>,
    %c1111 = arith.constant 1111 : index
    %c128_192 = arith.constant 128 : index
    %331 = vector.load %arg7[%c1111, %c128_192] : memref<1192x192xf32, #tpu.memory_space<vmem>>, vector<8x64xf32>
    tpu.vector_store %arg7[%c1111, %c128_192], %328 {strides = array<i32>} : memref<1192x192xf32, #tpu.memory_space<vmem>>, vector<8x64xf32>,
    %332 = vector.extract_strided_slice %19 {offsets = [7, 48, 0], sizes = [1, 8, 64], strides = [1, 1, 1]} : vector<8x64x64xf32> to vector<1x8x64xf32>
    %333 = vector.shape_cast %332 : vector<1x8x64xf32> to vector<8x64xf32>
    %c1129 = arith.constant 1129 : index
    %c0_193 = arith.constant 0 : index
    %334 = vector.load %arg7[%c1129, %c0_193] : memref<1192x192xf32, #tpu.memory_space<vmem>>, vector<8x64xf32>
    tpu.vector_store %arg7[%c1129, %c0_193], %333 {strides = array<i32>} : memref<1192x192xf32, #tpu.memory_space<vmem>>, vector<8x64xf32>,
    %c1128 = arith.constant 1128 : index
    %c64_194 = arith.constant 64 : index
    %335 = vector.load %arg7[%c1128, %c64_194] : memref<1192x192xf32, #tpu.memory_space<vmem>>, vector<8x64xf32>
    tpu.vector_store %arg7[%c1128, %c64_194], %333 {strides = array<i32>} : memref<1192x192xf32, #tpu.memory_space<vmem>>, vector<8x64xf32>,
    %c1127 = arith.constant 1127 : index
    %c128_195 = arith.constant 128 : index
    %336 = vector.load %arg7[%c1127, %c128_195] : memref<1192x192xf32, #tpu.memory_space<vmem>>, vector<8x64xf32>
    tpu.vector_store %arg7[%c1127, %c128_195], %333 {strides = array<i32>} : memref<1192x192xf32, #tpu.memory_space<vmem>>, vector<8x64xf32>,
    %337 = vector.extract_strided_slice %19 {offsets = [7, 56, 0], sizes = [1, 8, 64], strides = [1, 1, 1]} : vector<8x64x64xf32> to vector<1x8x64xf32>
    %338 = vector.shape_cast %337 : vector<1x8x64xf32> to vector<8x64xf32>
    %c1145 = arith.constant 1145 : index
    %c0_196 = arith.constant 0 : index
    %339 = vector.load %arg7[%c1145, %c0_196] : memref<1192x192xf32, #tpu.memory_space<vmem>>, vector<8x64xf32>
    tpu.vector_store %arg7[%c1145, %c0_196], %338 {strides = array<i32>} : memref<1192x192xf32, #tpu.memory_space<vmem>>, vector<8x64xf32>,
    %c1144 = arith.constant 1144 : index
    %c64_197 = arith.constant 64 : index
    %340 = vector.load %arg7[%c1144, %c64_197] : memref<1192x192xf32, #tpu.memory_space<vmem>>, vector<8x64xf32>
    tpu.vector_store %arg7[%c1144, %c64_197], %338 {strides = array<i32>} : memref<1192x192xf32, #tpu.memory_space<vmem>>, vector<8x64xf32>,
    %c1143 = arith.constant 1143 : index
    %c128_198 = arith.constant 128 : index
    %341 = vector.load %arg7[%c1143, %c128_198] : memref<1192x192xf32, #tpu.memory_space<vmem>>, vector<8x64xf32>
    tpu.vector_store %arg7[%c1143, %c128_198], %338 {strides = array<i32>} : memref<1192x192xf32, #tpu.memory_space<vmem>>, vector<8x64xf32>,
    %c8 = arith.constant 8 : index
    %c0_199 = arith.constant 0 : index
    %342 = vector.load %arg7[%c8, %c0_199] : memref<1192x192xf32, #tpu.memory_space<vmem>>, vector<1152x192xf32>
    %c0_200 = arith.constant 0 : index
    %c0_201 = arith.constant 0 : index
    %c0_202 = arith.constant 0 : index
    %343 = vector.load %arg4[%c0_200, %c0_201, %c0_202] : memref<3x192x128xf32, #tpu.memory_space<vmem>>, vector<1x192x128xf32>
    %344 = vector.shape_cast %343 : vector<1x192x128xf32> to vector<192x128xf32>
    %cst_203 = arith.constant dense<0.000000e+00> : vector<1152x128xf32>
    %345 = tpu.matmul %342, %344, %cst_203 {dimension_numbers = #tpu.dot_dimension_numbers<[1], [0], [0], [1], [0, 0, 1, 1], [], []>} : vector<1152x192xf32>, vector<192x128xf32>, vector<1152x128xf32> -> vector<1152x128xf32>
    %c24_204 = arith.constant 24 : index
    %c0_205 = arith.constant 0 : index
    %346 = vector.load %arg7[%c24_204, %c0_205] : memref<1192x192xf32, #tpu.memory_space<vmem>>, vector<1152x192xf32>
    %c1 = arith.constant 1 : index
    %c0_206 = arith.constant 0 : index
    %c0_207 = arith.constant 0 : index
    %347 = vector.load %arg4[%c1, %c0_206, %c0_207] : memref<3x192x128xf32, #tpu.memory_space<vmem>>, vector<1x192x128xf32>
    %348 = vector.shape_cast %347 : vector<1x192x128xf32> to vector<192x128xf32>
    %cst_208 = arith.constant dense<0.000000e+00> : vector<1152x128xf32>
    %349 = tpu.matmul %346, %348, %cst_208 {dimension_numbers = #tpu.dot_dimension_numbers<[1], [0], [0], [1], [0, 0, 1, 1], [], []>} : vector<1152x192xf32>, vector<192x128xf32>, vector<1152x128xf32> -> vector<1152x128xf32>
    %350 = arith.addf %345, %349 : vector<1152x128xf32>
    %c40_209 = arith.constant 40 : index
    %c0_210 = arith.constant 0 : index
    %351 = vector.load %arg7[%c40_209, %c0_210] : memref<1192x192xf32, #tpu.memory_space<vmem>>, vector<1152x192xf32>
    %c2 = arith.constant 2 : index
    %c0_211 = arith.constant 0 : index
    %c0_212 = arith.constant 0 : index
    %352 = vector.load %arg4[%c2, %c0_211, %c0_212] : memref<3x192x128xf32, #tpu.memory_space<vmem>>, vector<1x192x128xf32>
    %353 = vector.shape_cast %352 : vector<1x192x128xf32> to vector<192x128xf32>
    %cst_213 = arith.constant dense<0.000000e+00> : vector<1152x128xf32>
    %354 = tpu.matmul %351, %353, %cst_213 {dimension_numbers = #tpu.dot_dimension_numbers<[1], [0], [0], [1], [0, 0, 1, 1], [], []>} : vector<1152x192xf32>, vector<192x128xf32>, vector<1152x128xf32> -> vector<1152x128xf32>
    %355 = arith.addf %350, %354 : vector<1152x128xf32>
    %c0_214 = arith.constant 0 : index
    %c0_215 = arith.constant 0 : index
    %356 = vector.load %arg5[%c0_214, %c0_215] : memref<1x128xf32, #tpu.memory_space<vmem>>, vector<1x128xf32>
    %357 = vector.broadcast %356 : vector<1x128xf32> to vector<1152x128xf32>
    %358 = arith.addf %355, %357 : vector<1152x128xf32>
    %cst_216 = arith.constant 0.000000e+00 : f32
    %359 = vector.broadcast %cst_216 : f32 to vector<1152x128xf32>
    %360 = arith.maximumf %358, %359 : vector<1152x128xf32>
    %361 = vector.shape_cast %360 : vector<1152x128xf32> to vector<8x144x128xf32>
    %362 = vector.extract_strided_slice %361 {offsets = [0, 0, 0], sizes = [8, 128, 128], strides = [1, 1, 1]} : vector<8x144x128xf32> to vector<8x128x128xf32>
    %363 = vector.shape_cast %362 : vector<8x128x128xf32> to vector<8x4x32x128xf32>
    %364 = vector.extract_strided_slice %363 {offsets = [0, 0, 0, 0], sizes = [8, 4, 8, 128], strides = [1, 1, 1, 1]} : vector<8x4x32x128xf32> to vector<8x4x8x128xf32>
    %365 = vector.extract_strided_slice %363 {offsets = [0, 0, 16, 0], sizes = [8, 4, 8, 128], strides = [1, 1, 1, 1]} : vector<8x4x32x128xf32> to vector<8x4x8x128xf32>
    %366 = arith.maximumf %364, %365 : vector<8x4x8x128xf32>
    %367 = vector.extract_strided_slice %366 {offsets = [0, 0, 0, 0], sizes = [8, 4, 1, 128], strides = [1, 1, 1, 1]} : vector<8x4x8x128xf32> to vector<8x4x1x128xf32>
    %368 = vector.shape_cast %367 : vector<8x4x1x128xf32> to vector<8x4x128xf32>
    %369 = vector.extract_strided_slice %366 {offsets = [0, 0, 1, 0], sizes = [8, 4, 1, 128], strides = [1, 1, 1, 1]} : vector<8x4x8x128xf32> to vector<8x4x1x128xf32>
    %370 = vector.shape_cast %369 : vector<8x4x1x128xf32> to vector<8x4x128xf32>
    %371 = arith.maximumf %368, %370 : vector<8x4x128xf32>
    %372 = vector.extract_strided_slice %366 {offsets = [0, 0, 2, 0], sizes = [8, 4, 1, 128], strides = [1, 1, 1, 1]} : vector<8x4x8x128xf32> to vector<8x4x1x128xf32>
    %373 = vector.shape_cast %372 : vector<8x4x1x128xf32> to vector<8x4x128xf32>
    %374 = vector.extract_strided_slice %366 {offsets = [0, 0, 3, 0], sizes = [8, 4, 1, 128], strides = [1, 1, 1, 1]} : vector<8x4x8x128xf32> to vector<8x4x1x128xf32>
    %375 = vector.shape_cast %374 : vector<8x4x1x128xf32> to vector<8x4x128xf32>
    %376 = arith.maximumf %373, %375 : vector<8x4x128xf32>
    %377 = arith.addf %371, %376 : vector<8x4x128xf32>
    %378 = vector.extract_strided_slice %366 {offsets = [0, 0, 4, 0], sizes = [8, 4, 1, 128], strides = [1, 1, 1, 1]} : vector<8x4x8x128xf32> to vector<8x4x1x128xf32>
    %379 = vector.shape_cast %378 : vector<8x4x1x128xf32> to vector<8x4x128xf32>
    %380 = vector.extract_strided_slice %366 {offsets = [0, 0, 5, 0], sizes = [8, 4, 1, 128], strides = [1, 1, 1, 1]} : vector<8x4x8x128xf32> to vector<8x4x1x128xf32>
    %381 = vector.shape_cast %380 : vector<8x4x1x128xf32> to vector<8x4x128xf32>
    %382 = arith.maximumf %379, %381 : vector<8x4x128xf32>
    %383 = arith.addf %377, %382 : vector<8x4x128xf32>
    %384 = vector.extract_strided_slice %366 {offsets = [0, 0, 6, 0], sizes = [8, 4, 1, 128], strides = [1, 1, 1, 1]} : vector<8x4x8x128xf32> to vector<8x4x1x128xf32>
    %385 = vector.shape_cast %384 : vector<8x4x1x128xf32> to vector<8x4x128xf32>
    %386 = vector.extract_strided_slice %366 {offsets = [0, 0, 7, 0], sizes = [8, 4, 1, 128], strides = [1, 1, 1, 1]} : vector<8x4x8x128xf32> to vector<8x4x1x128xf32>
    %387 = vector.shape_cast %386 : vector<8x4x1x128xf32> to vector<8x4x128xf32>
    %388 = arith.maximumf %385, %387 : vector<8x4x128xf32>
    %389 = arith.addf %383, %388 : vector<8x4x128xf32>
    %cst_217 = arith.constant dense<0.000000e+00> : vector<8x128xf32>
    %390 = vector.multi_reduction <add>, %389, %cst_217 [1] : vector<8x4x128xf32> to vector<8x128xf32>
    %cst_218 = arith.constant 6.250000e-02 : f32
    %391 = vector.broadcast %cst_218 : f32 to vector<8x128xf32>
    %392 = arith.mulf %390, %391 : vector<8x128xf32>
    %c0_219 = arith.constant 0 : index
    %c0_220 = arith.constant 0 : index
    %393 = vector.load %arg6[%c0_219, %c0_220] : memref<8x128xf32, #tpu.memory_space<vmem>>, vector<8x128xf32>
    tpu.vector_store %arg6[%c0_219, %c0_220], %392 {strides = array<i32>} : memref<8x128xf32, #tpu.memory_space<vmem>>, vector<8x128xf32>,
    return
  }
  func.func @transform_0(%arg0: i32) -> (i32, i32) {
    %c0_i32 = arith.constant 0 : i32
    %c0_i32_0 = arith.constant 0 : i32
    return %arg0, %c0_i32 : i32, i32
  }
  func.func @transform_1(%arg0: i32) -> (i32, i32) {
    %c0_i32 = arith.constant 0 : i32
    %c0_i32_0 = arith.constant 0 : i32
    %c0_i32_1 = arith.constant 0 : i32
    return %c0_i32, %c0_i32_0 : i32, i32
  }
  func.func @transform_2(%arg0: i32) -> (i32, i32) {
    %c0_i32 = arith.constant 0 : i32
    %c0_i32_0 = arith.constant 0 : i32
    %c0_i32_1 = arith.constant 0 : i32
    return %c0_i32, %c0_i32_0 : i32, i32
  }
  func.func @transform_3(%arg0: i32) -> (i32, i32, i32) {
    %c0_i32 = arith.constant 0 : i32
    %c0_i32_0 = arith.constant 0 : i32
    %c0_i32_1 = arith.constant 0 : i32
    %c0_i32_2 = arith.constant 0 : i32
    return %c0_i32, %c0_i32_0, %c0_i32_1 : i32, i32, i32
  }
  func.func @transform_4(%arg0: i32) -> (i32, i32) {
    %c0_i32 = arith.constant 0 : i32
    %c0_i32_0 = arith.constant 0 : i32
    %c0_i32_1 = arith.constant 0 : i32
    return %c0_i32, %c0_i32_0 : i32, i32
  }
  func.func @transform_5(%arg0: i32) -> (i32, i32) {
    %c0_i32 = arith.constant 0 : i32
    %c0_i32_0 = arith.constant 0 : i32
    return %arg0, %c0_i32 : i32, i32
  }
}

</mosaic_0001>

<llo_original>
// kernel: baby_conv_net.1
$region0: #{baby_conv_net.1}
  #allocation0 [shape = 'u32[]', space=smem, size = 0x4, offset = 0x4, fixed_abs, tag = 'smem constant byte address 0x4 - core index']
  #allocation1 [shape = 'u32[144,128]{1,0:T(1,128)}', space=vmem, size = 0x12000, scoped, tag = 'internal scratch']
  #allocation2 [shape = 'f32[1192,192]{1,0:T(8,128)}', space=vmem, size = 0x12a000, scoped, tag = 'scratch operand']
  %s0 = inlined_call_operand.vmem [shape: f32[2048,16], index: 0, kind: input, shape index: {}]
  %s1 = inlined_call_operand.vmem [shape: f32[16,64], index: 1, kind: input, shape index: {}]
  %s2 = inlined_call_operand.vmem [shape: f32[1,64], index: 2, kind: input, shape index: {}]
  %s3 = inlined_call_operand.vmem [shape: f32[3,192,128], index: 3, kind: input, shape index: {}]
  %s4 = inlined_call_operand.vmem [shape: f32[1,128], index: 4, kind: input, shape index: {}]
  %s5 = inlined_call_operand.vmem [shape: f32[8,128], index: 5, kind: output, shape index: {}]
  %s6 = sld [smem:[#allocation0]]
  $region30: #{baby_conv_net.1} parent=0
    _
  %s8 = ssub.s32 1, %s6
  %s9 = scalar_select 0, %s8, %s6
  // Predicated region
  $region2: #{baby_conv_net.1} parent=0 // pred_check
    _
  $region3: #{baby_conv_net.1} parent=0 // pred_check_branch
    %11 = sbr.rel (0) target = $region5
  $region4: #{baby_conv_net.1} parent=0 // pred_region
    _
  $region5: #{baby_conv_net.1} parent=0 // pred_fallthru
    _
  // Predicated region
  $region6: #{baby_conv_net.1} parent=0 // pred_check
    _
  $region7: #{baby_conv_net.1} parent=0 // pred_check_branch
    %13 = sbr.rel (0) target = $region9
  $region8: #{baby_conv_net.1} parent=0 // pred_region
    _
  $region9: #{baby_conv_net.1} parent=0 // pred_fallthru
    _
  // Predicated region
  $region10: #{baby_conv_net.1} parent=0 // pred_check
    _
  $region11: #{baby_conv_net.1} parent=0 // pred_check_branch
    %15 = sbr.rel (0) target = $region13
  $region12: #{baby_conv_net.1} parent=0 // pred_region
    _
  $region13: #{baby_conv_net.1} parent=0 // pred_fallthru
    _
  // Predicated region
  $region14: #{baby_conv_net.1} parent=0 // pred_check
    _
  $region15: #{baby_conv_net.1} parent=0 // pred_check_branch
    %17 = sbr.rel (0) target = $region17
  $region16: #{baby_conv_net.1} parent=0 // pred_region
    _
  $region17: #{baby_conv_net.1} parent=0 // pred_fallthru
    _
  // Predicated region
  $region18: #{baby_conv_net.1} parent=0 // pred_check
    _
  $region19: #{baby_conv_net.1} parent=0 // pred_check_branch
    %19 = sbr.rel (0) target = $region21
  $region20: #{baby_conv_net.1} parent=0 // pred_region
    _
  $region21: #{baby_conv_net.1} parent=0 // pred_fallthru
    _
  %v20 = vld [vmem:[%s0] sm:$0xff]
  %v21 = vld [vmem:[%s0 + $0x8] sm:$0xff]
  %v22 = vld [vmem:[%s0 + $0x10] sm:$0xff]
  %v23 = vld [vmem:[%s0 + $0x18] sm:$0xff]
  %v24 = vld [vmem:[%s0 + $0x20] sm:$0xff]
  %v25 = vld [vmem:[%s0 + $0x28] sm:$0xff]
  %v26 = vld [vmem:[%s0 + $0x30] sm:$0xff]
  %v27 = vld [vmem:[%s0 + $0x38] sm:$0xff]
  %v28 = vld [vmem:[%s0 + $0x40] sm:$0xff]
  %v29 = vld [vmem:[%s0 + $0x48] sm:$0xff]
  %v30 = vld [vmem:[%s0 + $0x50] sm:$0xff]
  %v31 = vld [vmem:[%s0 + $0x58] sm:$0xff]
  %v32 = vld [vmem:[%s0 + $0x60] sm:$0xff]
  %v33 = vld [vmem:[%s0 + $0x68] sm:$0xff]
  %v34 = vld [vmem:[%s0 + $0x70] sm:$0xff]
  %v35 = vld [vmem:[%s0 + $0x78] sm:$0xff]
  %v36 = vld [vmem:[%s0 + $0x80] sm:$0xff]
  %v37 = vld [vmem:[%s0 + $0x88] sm:$0xff]
  %v38 = vld [vmem:[%s0 + $0x90] sm:$0xff]
  %v39 = vld [vmem:[%s0 + $0x98] sm:$0xff]
  %v40 = vld [vmem:[%s0 + $0xa0] sm:$0xff]
  %v41 = vld [vmem:[%s0 + $0xa8] sm:$0xff]
  %v42 = vld [vmem:[%s0 + $0xb0] sm:$0xff]
  %v43 = vld [vmem:[%s0 + $0xb8] sm:$0xff]
  %v44 = vld [vmem:[%s0 + $0xc0] sm:$0xff]
  %v45 = vld [vmem:[%s0 + $0xc8] sm:$0xff]
  %v46 = vld [vmem:[%s0 + $0xd0] sm:$0xff]
  %v47 = vld [vmem:[%s0 + $0xd8] sm:$0xff]
  %v48 = vld [vmem:[%s0 + $0xe0] sm:$0xff]
  %v49 = vld [vmem:[%s0 + $0xe8] sm:$0xff]
  %v50 = vld [vmem:[%s0 + $0xf0] sm:$0xff]
  %v51 = vld [vmem:[%s0 + $0xf8] sm:$0xff]
  %v52 = vld [vmem:[%s0 + $0x100] sm:$0xff]
  %v53 = vld [vmem:[%s0 + $0x108] sm:$0xff]
  %v54 = vld [vmem:[%s0 + $0x110] sm:$0xff]
  %v55 = vld [vmem:[%s0 + $0x118] sm:$0xff]
  %v56 = vld [vmem:[%s0 + $0x120] sm:$0xff]
  %v57 = vld [vmem:[%s0 + $0x128] sm:$0xff]
  %v58 = vld [vmem:[%s0 + $0x130] sm:$0xff]
  %v59 = vld [vmem:[%s0 + $0x138] sm:$0xff]
  %v60 = vld [vmem:[%s0 + $0x140] sm:$0xff]
  %v61 = vld [vmem:[%s0 + $0x148] sm:$0xff]
  %v62 = vld [vmem:[%s0 + $0x150] sm:$0xff]
  %v63 = vld [vmem:[%s0 + $0x158] sm:$0xff]
  %v64 = vld [vmem:[%s0 + $0x160] sm:$0xff]
  %v65 = vld [vmem:[%s0 + $0x168] sm:$0xff]
  %v66 = vld [vmem:[%s0 + $0x170] sm:$0xff]
  %v67 = vld [vmem:[%s0 + $0x178] sm:$0xff]
  %v68 = vld [vmem:[%s0 + $0x180] sm:$0xff]
  %v69 = vld [vmem:[%s0 + $0x188] sm:$0xff]
  %v70 = vld [vmem:[%s0 + $0x190] sm:$0xff]
  %v71 = vld [vmem:[%s0 + $0x198] sm:$0xff]
  %v72 = vld [vmem:[%s0 + $0x1a0] sm:$0xff]
  %v73 = vld [vmem:[%s0 + $0x1a8] sm:$0xff]
  %v74 = vld [vmem:[%s0 + $0x1b0] sm:$0xff]
  %v75 = vld [vmem:[%s0 + $0x1b8] sm:$0xff]
  %v76 = vld [vmem:[%s0 + $0x1c0] sm:$0xff]
  %v77 = vld [vmem:[%s0 + $0x1c8] sm:$0xff]
  %v78 = vld [vmem:[%s0 + $0x1d0] sm:$0xff]
  %v79 = vld [vmem:[%s0 + $0x1d8] sm:$0xff]
  %v80 = vld [vmem:[%s0 + $0x1e0] sm:$0xff]
  %v81 = vld [vmem:[%s0 + $0x1e8] sm:$0xff]
  %v82 = vld [vmem:[%s0 + $0x1f0] sm:$0xff]
  %v83 = vld [vmem:[%s0 + $0x1f8] sm:$0xff]
  %v84 = vld [vmem:[%s0 + $0x200] sm:$0xff]
  %v85 = vld [vmem:[%s0 + $0x208] sm:$0xff]
  %v86 = vld [vmem:[%s0 + $0x210] sm:$0xff]
  %v87 = vld [vmem:[%s0 + $0x218] sm:$0xff]
  %v88 = vld [vmem:[%s0 + $0x220] sm:$0xff]
  %v89 = vld [vmem:[%s0 + $0x228] sm:$0xff]
  %v90 = vld [vmem:[%s0 + $0x230] sm:$0xff]
  %v91 = vld [vmem:[%s0 + $0x238] sm:$0xff]
  %v92 = vld [vmem:[%s0 + $0x240] sm:$0xff]
  %v93 = vld [vmem:[%s0 + $0x248] sm:$0xff]
  %v94 = vld [vmem:[%s0 + $0x250] sm:$0xff]
  %v95 = vld [vmem:[%s0 + $0x258] sm:$0xff]
  %v96 = vld [vmem:[%s0 + $0x260] sm:$0xff]
  %v97 = vld [vmem:[%s0 + $0x268] sm:$0xff]
  %v98 = vld [vmem:[%s0 + $0x270] sm:$0xff]
  %v99 = vld [vmem:[%s0 + $0x278] sm:$0xff]
  %v100 = vld [vmem:[%s0 + $0x280] sm:$0xff]
  %v101 = vld [vmem:[%s0 + $0x288] sm:$0xff]
  %v102 = vld [vmem:[%s0 + $0x290] sm:$0xff]
  %v103 = vld [vmem:[%s0 + $0x298] sm:$0xff]
  %v104 = vld [vmem:[%s0 + $0x2a0] sm:$0xff]
  %v105 = vld [vmem:[%s0 + $0x2a8] sm:$0xff]
  %v106 = vld [vmem:[%s0 + $0x2b0] sm:$0xff]
  %v107 = vld [vmem:[%s0 + $0x2b8] sm:$0xff]
  %v108 = vld [vmem:[%s0 + $0x2c0] sm:$0xff]
  %v109 = vld [vmem:[%s0 + $0x2c8] sm:$0xff]
  %v110 = vld [vmem:[%s0 + $0x2d0] sm:$0xff]
  %v111 = vld [vmem:[%s0 + $0x2d8] sm:$0xff]
  %v112 = vld [vmem:[%s0 + $0x2e0] sm:$0xff]
  %v113 = vld [vmem:[%s0 + $0x2e8] sm:$0xff]
  %v114 = vld [vmem:[%s0 + $0x2f0] sm:$0xff]
  %v115 = vld [vmem:[%s0 + $0x2f8] sm:$0xff]
  %v116 = vld [vmem:[%s0 + $0x300] sm:$0xff]
  %v117 = vld [vmem:[%s0 + $0x308] sm:$0xff]
  %v118 = vld [vmem:[%s0 + $0x310] sm:$0xff]
  %v119 = vld [vmem:[%s0 + $0x318] sm:$0xff]
  %v120 = vld [vmem:[%s0 + $0x320] sm:$0xff]
  %v121 = vld [vmem:[%s0 + $0x328] sm:$0xff]
  %v122 = vld [vmem:[%s0 + $0x330] sm:$0xff]
  %v123 = vld [vmem:[%s0 + $0x338] sm:$0xff]
  %v124 = vld [vmem:[%s0 + $0x340] sm:$0xff]
  %v125 = vld [vmem:[%s0 + $0x348] sm:$0xff]
  %v126 = vld [vmem:[%s0 + $0x350] sm:$0xff]
  %v127 = vld [vmem:[%s0 + $0x358] sm:$0xff]
  %v128 = vld [vmem:[%s0 + $0x360] sm:$0xff]
  %v129 = vld [vmem:[%s0 + $0x368] sm:$0xff]
  %v130 = vld [vmem:[%s0 + $0x370] sm:$0xff]
  %v131 = vld [vmem:[%s0 + $0x378] sm:$0xff]
  %v132 = vld [vmem:[%s0 + $0x380] sm:$0xff]
  %v133 = vld [vmem:[%s0 + $0x388] sm:$0xff]
  %v134 = vld [vmem:[%s0 + $0x390] sm:$0xff]
  %v135 = vld [vmem:[%s0 + $0x398] sm:$0xff]
  %v136 = vld [vmem:[%s0 + $0x3a0] sm:$0xff]
  %v137 = vld [vmem:[%s0 + $0x3a8] sm:$0xff]
  %v138 = vld [vmem:[%s0 + $0x3b0] sm:$0xff]
  %v139 = vld [vmem:[%s0 + $0x3b8] sm:$0xff]
  %v140 = vld [vmem:[%s0 + $0x3c0] sm:$0xff]
  %v141 = vld [vmem:[%s0 + $0x3c8] sm:$0xff]
  %v142 = vld [vmem:[%s0 + $0x3d0] sm:$0xff]
  %v143 = vld [vmem:[%s0 + $0x3d8] sm:$0xff]
  %v144 = vld [vmem:[%s0 + $0x3e0] sm:$0xff]
  %v145 = vld [vmem:[%s0 + $0x3e8] sm:$0xff]
  %v146 = vld [vmem:[%s0 + $0x3f0] sm:$0xff]
  %v147 = vld [vmem:[%s0 + $0x3f8] sm:$0xff]
  %v148 = vld [vmem:[%s0 + $0x400] sm:$0xff]
  %v149 = vld [vmem:[%s0 + $0x408] sm:$0xff]
  %v150 = vld [vmem:[%s0 + $0x410] sm:$0xff]
  %v151 = vld [vmem:[%s0 + $0x418] sm:$0xff]
  %v152 = vld [vmem:[%s0 + $0x420] sm:$0xff]
  %v153 = vld [vmem:[%s0 + $0x428] sm:$0xff]
  %v154 = vld [vmem:[%s0 + $0x430] sm:$0xff]
  %v155 = vld [vmem:[%s0 + $0x438] sm:$0xff]
  %v156 = vld [vmem:[%s0 + $0x440] sm:$0xff]
  %v157 = vld [vmem:[%s0 + $0x448] sm:$0xff]
  %v158 = vld [vmem:[%s0 + $0x450] sm:$0xff]
  %v159 = vld [vmem:[%s0 + $0x458] sm:$0xff]
  %v160 = vld [vmem:[%s0 + $0x460] sm:$0xff]
  %v161 = vld [vmem:[%s0 + $0x468] sm:$0xff]
  %v162 = vld [vmem:[%s0 + $0x470] sm:$0xff]
  %v163 = vld [vmem:[%s0 + $0x478] sm:$0xff]
  %v164 = vld [vmem:[%s0 + $0x480] sm:$0xff]
  %v165 = vld [vmem:[%s0 + $0x488] sm:$0xff]
  %v166 = vld [vmem:[%s0 + $0x490] sm:$0xff]
  %v167 = vld [vmem:[%s0 + $0x498] sm:$0xff]
  %v168 = vld [vmem:[%s0 + $0x4a0] sm:$0xff]
  %v169 = vld [vmem:[%s0 + $0x4a8] sm:$0xff]
  %v170 = vld [vmem:[%s0 + $0x4b0] sm:$0xff]
  %v171 = vld [vmem:[%s0 + $0x4b8] sm:$0xff]
  %v172 = vld [vmem:[%s0 + $0x4c0] sm:$0xff]
  %v173 = vld [vmem:[%s0 + $0x4c8] sm:$0xff]
  %v174 = vld [vmem:[%s0 + $0x4d0] sm:$0xff]
  %v175 = vld [vmem:[%s0 + $0x4d8] sm:$0xff]
  %v176 = vld [vmem:[%s0 + $0x4e0] sm:$0xff]
  %v177 = vld [vmem:[%s0 + $0x4e8] sm:$0xff]
  %v178 = vld [vmem:[%s0 + $0x4f0] sm:$0xff]
  %v179 = vld [vmem:[%s0 + $0x4f8] sm:$0xff]
  %v180 = vld [vmem:[%s0 + $0x500] sm:$0xff]
  %v181 = vld [vmem:[%s0 + $0x508] sm:$0xff]
  %v182 = vld [vmem:[%s0 + $0x510] sm:$0xff]
  %v183 = vld [vmem:[%s0 + $0x518] sm:$0xff]
  %v184 = vld [vmem:[%s0 + $0x520] sm:$0xff]
  %v185 = vld [vmem:[%s0 + $0x528] sm:$0xff]
  %v186 = vld [vmem:[%s0 + $0x530] sm:$0xff]
  %v187 = vld [vmem:[%s0 + $0x538] sm:$0xff]
  %v188 = vld [vmem:[%s0 + $0x540] sm:$0xff]
  %v189 = vld [vmem:[%s0 + $0x548] sm:$0xff]
  %v190 = vld [vmem:[%s0 + $0x550] sm:$0xff]
  %v191 = vld [vmem:[%s0 + $0x558] sm:$0xff]
  %v192 = vld [vmem:[%s0 + $0x560] sm:$0xff]
  %v193 = vld [vmem:[%s0 + $0x568] sm:$0xff]
  %v194 = vld [vmem:[%s0 + $0x570] sm:$0xff]
  %v195 = vld [vmem:[%s0 + $0x578] sm:$0xff]
  %v196 = vld [vmem:[%s0 + $0x580] sm:$0xff]
  %v197 = vld [vmem:[%s0 + $0x588] sm:$0xff]
  %v198 = vld [vmem:[%s0 + $0x590] sm:$0xff]
  %v199 = vld [vmem:[%s0 + $0x598] sm:$0xff]
  %v200 = vld [vmem:[%s0 + $0x5a0] sm:$0xff]
  %v201 = vld [vmem:[%s0 + $0x5a8] sm:$0xff]
  %v202 = vld [vmem:[%s0 + $0x5b0] sm:$0xff]
  %v203 = vld [vmem:[%s0 + $0x5b8] sm:$0xff]
  %v204 = vld [vmem:[%s0 + $0x5c0] sm:$0xff]
  %v205 = vld [vmem:[%s0 + $0x5c8] sm:$0xff]
  %v206 = vld [vmem:[%s0 + $0x5d0] sm:$0xff]
  %v207 = vld [vmem:[%s0 + $0x5d8] sm:$0xff]
  %v208 = vld [vmem:[%s0 + $0x5e0] sm:$0xff]
  %v209 = vld [vmem:[%s0 + $0x5e8] sm:$0xff]
  %v210 = vld [vmem:[%s0 + $0x5f0] sm:$0xff]
  %v211 = vld [vmem:[%s0 + $0x5f8] sm:$0xff]
  %v212 = vld [vmem:[%s0 + $0x600] sm:$0xff]
  %v213 = vld [vmem:[%s0 + $0x608] sm:$0xff]
  %v214 = vld [vmem:[%s0 + $0x610] sm:$0xff]
  %v215 = vld [vmem:[%s0 + $0x618] sm:$0xff]
  %v216 = vld [vmem:[%s0 + $0x620] sm:$0xff]
  %v217 = vld [vmem:[%s0 + $0x628] sm:$0xff]
  %v218 = vld [vmem:[%s0 + $0x630] sm:$0xff]
  %v219 = vld [vmem:[%s0 + $0x638] sm:$0xff]
  %v220 = vld [vmem:[%s0 + $0x640] sm:$0xff]
  %v221 = vld [vmem:[%s0 + $0x648] sm:$0xff]
  %v222 = vld [vmem:[%s0 + $0x650] sm:$0xff]
  %v223 = vld [vmem:[%s0 + $0x658] sm:$0xff]
  %v224 = vld [vmem:[%s0 + $0x660] sm:$0xff]
  %v225 = vld [vmem:[%s0 + $0x668] sm:$0xff]
  %v226 = vld [vmem:[%s0 + $0x670] sm:$0xff]
  %v227 = vld [vmem:[%s0 + $0x678] sm:$0xff]
  %v228 = vld [vmem:[%s0 + $0x680] sm:$0xff]
  %v229 = vld [vmem:[%s0 + $0x688] sm:$0xff]
  %v230 = vld [vmem:[%s0 + $0x690] sm:$0xff]
  %v231 = vld [vmem:[%s0 + $0x698] sm:$0xff]
  %v232 = vld [vmem:[%s0 + $0x6a0] sm:$0xff]
  %v233 = vld [vmem:[%s0 + $0x6a8] sm:$0xff]
  %v234 = vld [vmem:[%s0 + $0x6b0] sm:$0xff]
  %v235 = vld [vmem:[%s0 + $0x6b8] sm:$0xff]
  %v236 = vld [vmem:[%s0 + $0x6c0] sm:$0xff]
  %v237 = vld [vmem:[%s0 + $0x6c8] sm:$0xff]
  %v238 = vld [vmem:[%s0 + $0x6d0] sm:$0xff]
  %v239 = vld [vmem:[%s0 + $0x6d8] sm:$0xff]
  %v240 = vld [vmem:[%s0 + $0x6e0] sm:$0xff]
  %v241 = vld [vmem:[%s0 + $0x6e8] sm:$0xff]
  %v242 = vld [vmem:[%s0 + $0x6f0] sm:$0xff]
  %v243 = vld [vmem:[%s0 + $0x6f8] sm:$0xff]
  %v244 = vld [vmem:[%s0 + $0x700] sm:$0xff]
  %v245 = vld [vmem:[%s0 + $0x708] sm:$0xff]
  %v246 = vld [vmem:[%s0 + $0x710] sm:$0xff]
  %v247 = vld [vmem:[%s0 + $0x718] sm:$0xff]
  %v248 = vld [vmem:[%s0 + $0x720] sm:$0xff]
  %v249 = vld [vmem:[%s0 + $0x728] sm:$0xff]
  %v250 = vld [vmem:[%s0 + $0x730] sm:$0xff]
  %v251 = vld [vmem:[%s0 + $0x738] sm:$0xff]
  %v252 = vld [vmem:[%s0 + $0x740] sm:$0xff]
  %v253 = vld [vmem:[%s0 + $0x748] sm:$0xff]
  %v254 = vld [vmem:[%s0 + $0x750] sm:$0xff]
  %v255 = vld [vmem:[%s0 + $0x758] sm:$0xff]
  %v256 = vld [vmem:[%s0 + $0x760] sm:$0xff]
  %v257 = vld [vmem:[%s0 + $0x768] sm:$0xff]
  %v258 = vld [vmem:[%s0 + $0x770] sm:$0xff]
  %v259 = vld [vmem:[%s0 + $0x778] sm:$0xff]
  %v260 = vld [vmem:[%s0 + $0x780] sm:$0xff]
  %v261 = vld [vmem:[%s0 + $0x788] sm:$0xff]
  %v262 = vld [vmem:[%s0 + $0x790] sm:$0xff]
  %v263 = vld [vmem:[%s0 + $0x798] sm:$0xff]
  %v264 = vld [vmem:[%s0 + $0x7a0] sm:$0xff]
  %v265 = vld [vmem:[%s0 + $0x7a8] sm:$0xff]
  %v266 = vld [vmem:[%s0 + $0x7b0] sm:$0xff]
  %v267 = vld [vmem:[%s0 + $0x7b8] sm:$0xff]
  %v268 = vld [vmem:[%s0 + $0x7c0] sm:$0xff]
  %v269 = vld [vmem:[%s0 + $0x7c8] sm:$0xff]
  %v270 = vld [vmem:[%s0 + $0x7d0] sm:$0xff]
  %v271 = vld [vmem:[%s0 + $0x7d8] sm:$0xff]
  %v272 = vld [vmem:[%s0 + $0x7e0] sm:$0xff]
  %v273 = vld [vmem:[%s0 + $0x7e8] sm:$0xff]
  %v274 = vld [vmem:[%s0 + $0x7f0] sm:$0xff]
  %v275 = vld [vmem:[%s0 + $0x7f8] sm:$0xff]
  %v276 = vld [vmem:[%s1] sm:$0xff]
  %v277 = vld [vmem:[%s1 + $0x8] sm:$0xff]
  %v278 = vld [vmem:[%s2] sm:$0x1]
  %v280 = vlaneseq
  %v281 = vshrl.u32 %v280, 7
  %v282 = vsub.s32 0, %v281
  %v283 = vrot.slane %v278, %v282
  %vm285 = vcmask 130048
  %v287 = vsel %vm285, %v20, 0
  %v290 = vsel %vm285, %v21, 0
  %v293 = vsel %vm285, %v22, 0
  %v296 = vsel %vm285, %v23, 0
  %v299 = vsel %vm285, %v24, 0
  %v302 = vsel %vm285, %v25, 0
  %v305 = vsel %vm285, %v26, 0
  %v308 = vsel %vm285, %v27, 0
  %v311 = vsel %vm285, %v28, 0
  %v314 = vsel %vm285, %v29, 0
  %v317 = vsel %vm285, %v30, 0
  %v320 = vsel %vm285, %v31, 0
  %v323 = vsel %vm285, %v32, 0
  %v326 = vsel %vm285, %v33, 0
  %v329 = vsel %vm285, %v34, 0
  %v332 = vsel %vm285, %v35, 0
  %v335 = vsel %vm285, %v36, 0
  %v338 = vsel %vm285, %v37, 0
  %v341 = vsel %vm285, %v38, 0
  %v344 = vsel %vm285, %v39, 0
  %v347 = vsel %vm285, %v40, 0
  %v350 = vsel %vm285, %v41, 0
  %v353 = vsel %vm285, %v42, 0
  %v356 = vsel %vm285, %v43, 0
  %v359 = vsel %vm285, %v44, 0
  %v362 = vsel %vm285, %v45, 0
  %v365 = vsel %vm285, %v46, 0
  %v368 = vsel %vm285, %v47, 0
  %v371 = vsel %vm285, %v48, 0
  %v374 = vsel %vm285, %v49, 0
  %v377 = vsel %vm285, %v50, 0
  %v380 = vsel %vm285, %v51, 0
  %v383 = vsel %vm285, %v52, 0
  %v386 = vsel %vm285, %v53, 0
  %v389 = vsel %vm285, %v54, 0
  %v392 = vsel %vm285, %v55, 0
  %v395 = vsel %vm285, %v56, 0
  %v398 = vsel %vm285, %v57, 0
  %v401 = vsel %vm285, %v58, 0
  %v404 = vsel %vm285, %v59, 0
  %v407 = vsel %vm285, %v60, 0
  %v410 = vsel %vm285, %v61, 0
  %v413 = vsel %vm285, %v62, 0
  %v416 = vsel %vm285, %v63, 0
  %v419 = vsel %vm285, %v64, 0
  %v422 = vsel %vm285, %v65, 0
  %v425 = vsel %vm285, %v66, 0
  %v428 = vsel %vm285, %v67, 0
  %v431 = vsel %vm285, %v68, 0
  %v434 = vsel %vm285, %v69, 0
  %v437 = vsel %vm285, %v70, 0
  %v440 = vsel %vm285, %v71, 0
  %v443 = vsel %vm285, %v72, 0
  %v446 = vsel %vm285, %v73, 0
  %v449 = vsel %vm285, %v74, 0
  %v452 = vsel %vm285, %v75, 0
  %v455 = vsel %vm285, %v76, 0
  %v458 = vsel %vm285, %v77, 0
  %v461 = vsel %vm285, %v78, 0
  %v464 = vsel %vm285, %v79, 0
  %v467 = vsel %vm285, %v80, 0
  %v470 = vsel %vm285, %v81, 0
  %v473 = vsel %vm285, %v82, 0
  %v476 = vsel %vm285, %v83, 0
  %v479 = vsel %vm285, %v84, 0
  %v482 = vsel %vm285, %v85, 0
  %v485 = vsel %vm285, %v86, 0
  %v488 = vsel %vm285, %v87, 0
  %v491 = vsel %vm285, %v88, 0
  %v494 = vsel %vm285, %v89, 0
  %v497 = vsel %vm285, %v90, 0
  %v500 = vsel %vm285, %v91, 0
  %v503 = vsel %vm285, %v92, 0
  %v506 = vsel %vm285, %v93, 0
  %v509 = vsel %vm285, %v94, 0
  %v512 = vsel %vm285, %v95, 0
  %v515 = vsel %vm285, %v96, 0
  %v518 = vsel %vm285, %v97, 0
  %v521 = vsel %vm285, %v98, 0
  %v524 = vsel %vm285, %v99, 0
  %v527 = vsel %vm285, %v100, 0
  %v530 = vsel %vm285, %v101, 0
  %v533 = vsel %vm285, %v102, 0
  %v536 = vsel %vm285, %v103, 0
  %v539 = vsel %vm285, %v104, 0
  %v542 = vsel %vm285, %v105, 0
  %v545 = vsel %vm285, %v106, 0
  %v548 = vsel %vm285, %v107, 0
  %v551 = vsel %vm285, %v108, 0
  %v554 = vsel %vm285, %v109, 0
  %v557 = vsel %vm285, %v110, 0
  %v560 = vsel %vm285, %v111, 0
  %v563 = vsel %vm285, %v112, 0
  %v566 = vsel %vm285, %v113, 0
  %v569 = vsel %vm285, %v114, 0
  %v572 = vsel %vm285, %v115, 0
  %v575 = vsel %vm285, %v116, 0
  %v578 = vsel %vm285, %v117, 0
  %v581 = vsel %vm285, %v118, 0
  %v584 = vsel %vm285, %v119, 0
  %v587 = vsel %vm285, %v120, 0
  %v590 = vsel %vm285, %v121, 0
  %v593 = vsel %vm285, %v122, 0
  %v596 = vsel %vm285, %v123, 0
  %v599 = vsel %vm285, %v124, 0
  %v602 = vsel %vm285, %v125, 0
  %v605 = vsel %vm285, %v126, 0
  %v608 = vsel %vm285, %v127, 0
  %v611 = vsel %vm285, %v128, 0
  %v614 = vsel %vm285, %v129, 0
  %v617 = vsel %vm285, %v130, 0
  %v620 = vsel %vm285, %v131, 0
  %v623 = vsel %vm285, %v132, 0
  %v626 = vsel %vm285, %v133, 0
  %v629 = vsel %vm285, %v134, 0
  %v632 = vsel %vm285, %v135, 0
  %v635 = vsel %vm285, %v136, 0
  %v638 = vsel %vm285, %v137, 0
  %v641 = vsel %vm285, %v138, 0
  %v644 = vsel %vm285, %v139, 0
  %v647 = vsel %vm285, %v140, 0
  %v650 = vsel %vm285, %v141, 0
  %v653 = vsel %vm285, %v142, 0
  %v656 = vsel %vm285, %v143, 0
  %v659 = vsel %vm285, %v144, 0
  %v662 = vsel %vm285, %v145, 0
  %v665 = vsel %vm285, %v146, 0
  %v668 = vsel %vm285, %v147, 0
  %v671 = vsel %vm285, %v148, 0
  %v674 = vsel %vm285, %v149, 0
  %v677 = vsel %vm285, %v150, 0
  %v680 = vsel %vm285, %v151, 0
  %v683 = vsel %vm285, %v152, 0
  %v686 = vsel %vm285, %v153, 0
  %v689 = vsel %vm285, %v154, 0
  %v692 = vsel %vm285, %v155, 0
  %v695 = vsel %vm285, %v156, 0
  %v698 = vsel %vm285, %v157, 0
  %v701 = vsel %vm285, %v158, 0
  %v704 = vsel %vm285, %v159, 0
  %v707 = vsel %vm285, %v160, 0
  %v710 = vsel %vm285, %v161, 0
  %v713 = vsel %vm285, %v162, 0
  %v716 = vsel %vm285, %v163, 0
  %v719 = vsel %vm285, %v164, 0
  %v722 = vsel %vm285, %v165, 0
  %v725 = vsel %vm285, %v166, 0
  %v728 = vsel %vm285, %v167, 0
  %v731 = vsel %vm285, %v168, 0
  %v734 = vsel %vm285, %v169, 0
  %v737 = vsel %vm285, %v170, 0
  %v740 = vsel %vm285, %v171, 0
  %v743 = vsel %vm285, %v172, 0
  %v746 = vsel %vm285, %v173, 0
  %v749 = vsel %vm285, %v174, 0
  %v752 = vsel %vm285, %v175, 0
  %v755 = vsel %vm285, %v176, 0
  %v758 = vsel %vm285, %v177, 0
  %v761 = vsel %vm285, %v178, 0
  %v764 = vsel %vm285, %v179, 0
  %v767 = vsel %vm285, %v180, 0
  %v770 = vsel %vm285, %v181, 0
  %v773 = vsel %vm285, %v182, 0
  %v776 = vsel %vm285, %v183, 0
  %v779 = vsel %vm285, %v184, 0
  %v782 = vsel %vm285, %v185, 0
  %v785 = vsel %vm285, %v186, 0
  %v788 = vsel %vm285, %v187, 0
  %v791 = vsel %vm285, %v188, 0
  %v794 = vsel %vm285, %v189, 0
  %v797 = vsel %vm285, %v190, 0
  %v800 = vsel %vm285, %v191, 0
  %v803 = vsel %vm285, %v192, 0
  %v806 = vsel %vm285, %v193, 0
  %v809 = vsel %vm285, %v194, 0
  %v812 = vsel %vm285, %v195, 0
  %v815 = vsel %vm285, %v196, 0
  %v818 = vsel %vm285, %v197, 0
  %v821 = vsel %vm285, %v198, 0
  %v824 = vsel %vm285, %v199, 0
  %v827 = vsel %vm285, %v200, 0
  %v830 = vsel %vm285, %v201, 0
  %v833 = vsel %vm285, %v202, 0
  %v836 = vsel %vm285, %v203, 0
  %v839 = vsel %vm285, %v204, 0
  %v842 = vsel %vm285, %v205, 0
  %v845 = vsel %vm285, %v206, 0
  %v848 = vsel %vm285, %v207, 0
  %v851 = vsel %vm285, %v208, 0
  %v854 = vsel %vm285, %v209, 0
  %v857 = vsel %vm285, %v210, 0
  %v860 = vsel %vm285, %v211, 0
  %v863 = vsel %vm285, %v212, 0
  %v866 = vsel %vm285, %v213, 0
  %v869 = vsel %vm285, %v214, 0
  %v872 = vsel %vm285, %v215, 0
  %v875 = vsel %vm285, %v216, 0
  %v878 = vsel %vm285, %v217, 0
  %v881 = vsel %vm285, %v218, 0
  %v884 = vsel %vm285, %v219, 0
  %v887 = vsel %vm285, %v220, 0
  %v890 = vsel %vm285, %v221, 0
  %v893 = vsel %vm285, %v222, 0
  %v896 = vsel %vm285, %v223, 0
  %v899 = vsel %vm285, %v224, 0
  %v902 = vsel %vm285, %v225, 0
  %v905 = vsel %vm285, %v226, 0
  %v908 = vsel %vm285, %v227, 0
  %v911 = vsel %vm285, %v228, 0
  %v914 = vsel %vm285, %v229, 0
  %v917 = vsel %vm285, %v230, 0
  %v920 = vsel %vm285, %v231, 0
  %v923 = vsel %vm285, %v232, 0
  %v926 = vsel %vm285, %v233, 0
  %v929 = vsel %vm285, %v234, 0
  %v932 = vsel %vm285, %v235, 0
  %v935 = vsel %vm285, %v236, 0
  %v938 = vsel %vm285, %v237, 0
  %v941 = vsel %vm285, %v238, 0
  %v944 = vsel %vm285, %v239, 0
  %v947 = vsel %vm285, %v240, 0
  %v950 = vsel %vm285, %v241, 0
  %v953 = vsel %vm285, %v242, 0
  %v956 = vsel %vm285, %v243, 0
  %v959 = vsel %vm285, %v244, 0
  %v962 = vsel %vm285, %v245, 0
  %v965 = vsel %vm285, %v246, 0
  %v968 = vsel %vm285, %v247, 0
  %v971 = vsel %vm285, %v248, 0
  %v974 = vsel %vm285, %v249, 0
  %v977 = vsel %vm285, %v250, 0
  %v980 = vsel %vm285, %v251, 0
  %v983 = vsel %vm285, %v252, 0
  %v986 = vsel %vm285, %v253, 0
  %v989 = vsel %vm285, %v254, 0
  %v992 = vsel %vm285, %v255, 0
  %v995 = vsel %vm285, %v256, 0
  %v998 = vsel %vm285, %v257, 0
  %v1001 = vsel %vm285, %v258, 0
  %v1004 = vsel %vm285, %v259, 0
  %v1007 = vsel %vm285, %v260, 0
  %v1010 = vsel %vm285, %v261, 0
  %v1013 = vsel %vm285, %v262, 0
  %v1016 = vsel %vm285, %v263, 0
  %v1019 = vsel %vm285, %v264, 0
  %v1022 = vsel %vm285, %v265, 0
  %v1025 = vsel %vm285, %v266, 0
  %v1028 = vsel %vm285, %v267, 0
  %v1031 = vsel %vm285, %v268, 0
  %v1034 = vsel %vm285, %v269, 0
  %v1037 = vsel %vm285, %v270, 0
  %v1040 = vsel %vm285, %v271, 0
  %v1043 = vsel %vm285, %v272, 0
  %v1046 = vsel %vm285, %v273, 0
  %v1049 = vsel %vm285, %v274, 0
  %v1052 = vsel %vm285, %v275, 0
  %1054 = vmatprep.subr.mxu0 0.0
  %1055 = vmatpush1.msra.mxu0 0.0
  %1056 = vmatprep.subr.mxu0 0.0
  %1057 = vmatpush1.msra.mxu0 0.0
  %1058 = vmatprep.subr.mxu0 0.0
  %1059 = vmatpush1.msra.mxu0 0.0
  %1060 = vmatprep.subr.mxu0 0.0
  %1061 = vmatpush1.msra.mxu0 0.0
  %1062 = vmatprep.subr.mxu0 0.0
  %1063 = vmatpush1.msra.mxu0 0.0
  %1064 = vmatprep.subr.mxu0 0.0
  %1065 = vmatpush1.msra.mxu0 0.0
  %1066 = vmatprep.subr.mxu0 0.0
  %1067 = vmatpush1.msra.mxu0 0.0
  %1068 = vmatprep.subr.mxu0 0.0
  %1069 = vmatpush1.msra.mxu0 0.0
  %1070 = vmatprep.subr.mxu0 0.0
  %1071 = vmatpush1.msra.mxu0 0.0
  %1072 = vmatprep.subr.mxu0 0.0
  %1073 = vmatpush1.msra.mxu0 0.0
  %1074 = vmatprep.subr.mxu0 0.0
  %1075 = vmatpush1.msra.mxu0 0.0
  %1076 = vmatprep.subr.mxu0 0.0
  %1077 = vmatpush1.msra.mxu0 0.0
  %1078 = vmatprep.subr.mxu0 0.0
  %1079 = vmatpush1.msra.mxu0 0.0
  %1080 = vmatprep.subr.mxu0 0.0
  %1081 = vmatpush1.msra.mxu0 0.0
  %1082 = vmatprep.subr.mxu0 0.0
  %1083 = vmatpush1.msra.mxu0 %v277
  %1084 = vmatprep.subr.mxu0 0.0
  %1085 = vmatpush1.msra.mxu0 %v276
  %1086 = vmatprep.subr.mxu0 0.0
  %1087 = vmatpush2.msra.mxu0 0.0
  %1088 = vmatprep.subr.mxu0 0.0
  %1089 = vmatpush2.msra.mxu0 0.0
  %1090 = vmatprep.subr.mxu0 0.0
  %1091 = vmatpush2.msra.mxu0 0.0
  %1092 = vmatprep.subr.mxu0 0.0
  %1093 = vmatpush2.msra.mxu0 0.0
  %1094 = vmatprep.subr.mxu0 0.0
  %1095 = vmatpush2.msra.mxu0 0.0
  %1096 = vmatprep.subr.mxu0 0.0
  %1097 = vmatpush2.msra.mxu0 0.0
  %1098 = vmatprep.subr.mxu0 0.0
  %1099 = vmatpush2.msra.mxu0 0.0
  %1100 = vmatprep.subr.mxu0 0.0
  %1101 = vmatpush2.msra.mxu0 0.0
  %1102 = vmatprep.subr.mxu0 0.0
  %1103 = vmatpush2.msra.mxu0 0.0
  %1104 = vmatprep.subr.mxu0 0.0
  %1105 = vmatpush2.msra.mxu0 0.0
  %1106 = vmatprep.subr.mxu0 0.0
  %1107 = vmatpush2.msra.mxu0 0.0
  %1108 = vmatprep.subr.mxu0 0.0
  %1109 = vmatpush2.msra.mxu0 0.0
  %1110 = vmatprep.subr.mxu0 0.0
  %1111 = vmatpush2.msra.mxu0 0.0
  %1112 = vmatprep.subr.mxu0 0.0
  %1113 = vmatpush2.msra.mxu0 0.0
  %1114 = vmatprep.subr.mxu0 0.0
  %1115 = vmatpush2.msra.mxu0 0.0
  %1116 = vmatprep.subr.mxu0 0.0
  %1117 = vmatpush2.msra.mxu0 0.0
  %1118 = vmatprep.mubr.f32.mxu0 0.0
  %1119 = vmatmul.mubr.f32.gmra.mxu0 %v287
  %v1120 = vpop.f32.mrf.mxu0
  %v1121 = vadd.f32 %v283, %v1120
  %v1122 = vpop.f32.mrf.mxu0
  %1123 = vmatprep.mubr.f32.mxu0 0.0
  %1124 = vmatmul.mubr.f32.gmra.mxu0 %v290
  %v1125 = vpop.f32.mrf.mxu0
  %v1126 = vadd.f32 %v283, %v1125
  %v1127 = vpop.f32.mrf.mxu0
  %1128 = vmatprep.mubr.f32.mxu0 0.0
  %1129 = vmatmul.mubr.f32.gmra.mxu0 %v293
  %v1130 = vpop.f32.mrf.mxu0
  %v1131 = vadd.f32 %v283, %v1130
  %v1132 = vpop.f32.mrf.mxu0
  %1133 = vmatprep.mubr.f32.mxu0 0.0
  %1134 = vmatmul.mubr.f32.gmra.mxu0 %v296
  %v1135 = vpop.f32.mrf.mxu0
  %v1136 = vadd.f32 %v283, %v1135
  %v1137 = vpop.f32.mrf.mxu0
  %1138 = vmatprep.mubr.f32.mxu0 0.0
  %1139 = vmatmul.mubr.f32.gmra.mxu0 %v299
  %v1140 = vpop.f32.mrf.mxu0
  %v1141 = vadd.f32 %v283, %v1140
  %v1142 = vpop.f32.mrf.mxu0
  %1143 = vmatprep.mubr.f32.mxu0 0.0
  %1144 = vmatmul.mubr.f32.gmra.mxu0 %v302
  %v1145 = vpop.f32.mrf.mxu0
  %v1146 = vadd.f32 %v283, %v1145
  %v1147 = vpop.f32.mrf.mxu0
  %1148 = vmatprep.mubr.f32.mxu0 0.0
  %1149 = vmatmul.mubr.f32.gmra.mxu0 %v305
  %v1150 = vpop.f32.mrf.mxu0
  %v1151 = vadd.f32 %v283, %v1150
  %v1152 = vpop.f32.mrf.mxu0
  %1153 = vmatprep.mubr.f32.mxu0 0.0
  %1154 = vmatmul.mubr.f32.gmra.mxu0 %v308
  %v1155 = vpop.f32.mrf.mxu0
  %v1156 = vadd.f32 %v283, %v1155
  %v1157 = vpop.f32.mrf.mxu0
  %1158 = vmatprep.mubr.f32.mxu0 0.0
  %1159 = vmatmul.mubr.f32.gmra.mxu0 %v311
  %v1160 = vpop.f32.mrf.mxu0
  %v1161 = vadd.f32 %v283, %v1160
  %v1162 = vpop.f32.mrf.mxu0
  %1163 = vmatprep.mubr.f32.mxu0 0.0
  %1164 = vmatmul.mubr.f32.gmra.mxu0 %v314
  %v1165 = vpop.f32.mrf.mxu0
  %v1166 = vadd.f32 %v283, %v1165
  %v1167 = vpop.f32.mrf.mxu0
  %1168 = vmatprep.mubr.f32.mxu0 0.0
  %1169 = vmatmul.mubr.f32.gmra.mxu0 %v317
  %v1170 = vpop.f32.mrf.mxu0
  %v1171 = vadd.f32 %v283, %v1170
  %v1172 = vpop.f32.mrf.mxu0
  %1173 = vmatprep.mubr.f32.mxu0 0.0
  %1174 = vmatmul.mubr.f32.gmra.mxu0 %v320
  %v1175 = vpop.f32.mrf.mxu0
  %v1176 = vadd.f32 %v283, %v1175
  %v1177 = vpop.f32.mrf.mxu0
  %1178 = vmatprep.mubr.f32.mxu0 0.0
  %1179 = vmatmul.mubr.f32.gmra.mxu0 %v323
  %v1180 = vpop.f32.mrf.mxu0
  %v1181 = vadd.f32 %v283, %v1180
  %v1182 = vpop.f32.mrf.mxu0
  %1183 = vmatprep.mubr.f32.mxu0 0.0
  %1184 = vmatmul.mubr.f32.gmra.mxu0 %v326
  %v1185 = vpop.f32.mrf.mxu0
  %v1186 = vadd.f32 %v283, %v1185
  %v1187 = vpop.f32.mrf.mxu0
  %1188 = vmatprep.mubr.f32.mxu0 0.0
  %1189 = vmatmul.mubr.f32.gmra.mxu0 %v329
  %v1190 = vpop.f32.mrf.mxu0
  %v1191 = vadd.f32 %v283, %v1190
  %v1192 = vpop.f32.mrf.mxu0
  %1193 = vmatprep.mubr.f32.mxu0 0.0
  %1194 = vmatmul.mubr.f32.gmra.mxu0 %v332
  %v1195 = vpop.f32.mrf.mxu0
  %v1196 = vadd.f32 %v283, %v1195
  %v1197 = vpop.f32.mrf.mxu0
  %1198 = vmatprep.mubr.f32.mxu0 0.0
  %1199 = vmatmul.mubr.f32.gmra.mxu0 %v335
  %v1200 = vpop.f32.mrf.mxu0
  %v1201 = vadd.f32 %v283, %v1200
  %v1202 = vpop.f32.mrf.mxu0
  %1203 = vmatprep.mubr.f32.mxu0 0.0
  %1204 = vmatmul.mubr.f32.gmra.mxu0 %v338
  %v1205 = vpop.f32.mrf.mxu0
  %v1206 = vadd.f32 %v283, %v1205
  %v1207 = vpop.f32.mrf.mxu0
  %1208 = vmatprep.mubr.f32.mxu0 0.0
  %1209 = vmatmul.mubr.f32.gmra.mxu0 %v341
  %v1210 = vpop.f32.mrf.mxu0
  %v1211 = vadd.f32 %v283, %v1210
  %v1212 = vpop.f32.mrf.mxu0
  %1213 = vmatprep.mubr.f32.mxu0 0.0
  %1214 = vmatmul.mubr.f32.gmra.mxu0 %v344
  %v1215 = vpop.f32.mrf.mxu0
  %v1216 = vadd.f32 %v283, %v1215
  %v1217 = vpop.f32.mrf.mxu0
  %1218 = vmatprep.mubr.f32.mxu0 0.0
  %1219 = vmatmul.mubr.f32.gmra.mxu0 %v347
  %v1220 = vpop.f32.mrf.mxu0
  %v1221 = vadd.f32 %v283, %v1220
  %v1222 = vpop.f32.mrf.mxu0
  %1223 = vmatprep.mubr.f32.mxu0 0.0
  %1224 = vmatmul.mubr.f32.gmra.mxu0 %v350
  %v1225 = vpop.f32.mrf.mxu0
  %v1226 = vadd.f32 %v283, %v1225
  %v1227 = vpop.f32.mrf.mxu0
  %1228 = vmatprep.mubr.f32.mxu0 0.0
  %1229 = vmatmul.mubr.f32.gmra.mxu0 %v353
  %v1230 = vpop.f32.mrf.mxu0
  %v1231 = vadd.f32 %v283, %v1230
  %v1232 = vpop.f32.mrf.mxu0
  %1233 = vmatprep.mubr.f32.mxu0 0.0
  %1234 = vmatmul.mubr.f32.gmra.mxu0 %v356
  %v1235 = vpop.f32.mrf.mxu0
  %v1236 = vadd.f32 %v283, %v1235
  %v1237 = vpop.f32.mrf.mxu0
  %1238 = vmatprep.mubr.f32.mxu0 0.0
  %1239 = vmatmul.mubr.f32.gmra.mxu0 %v359
  %v1240 = vpop.f32.mrf.mxu0
  %v1241 = vadd.f32 %v283, %v1240
  %v1242 = vpop.f32.mrf.mxu0
  %1243 = vmatprep.mubr.f32.mxu0 0.0
  %1244 = vmatmul.mubr.f32.gmra.mxu0 %v362
  %v1245 = vpop.f32.mrf.mxu0
  %v1246 = vadd.f32 %v283, %v1245
  %v1247 = vpop.f32.mrf.mxu0
  %1248 = vmatprep.mubr.f32.mxu0 0.0
  %1249 = vmatmul.mubr.f32.gmra.mxu0 %v365
  %v1250 = vpop.f32.mrf.mxu0
  %v1251 = vadd.f32 %v283, %v1250
  %v1252 = vpop.f32.mrf.mxu0
  %1253 = vmatprep.mubr.f32.mxu0 0.0
  %1254 = vmatmul.mubr.f32.gmra.mxu0 %v368
  %v1255 = vpop.f32.mrf.mxu0
  %v1256 = vadd.f32 %v283, %v1255
  %v1257 = vpop.f32.mrf.mxu0
  %1258 = vmatprep.mubr.f32.mxu0 0.0
  %1259 = vmatmul.mubr.f32.gmra.mxu0 %v371
  %v1260 = vpop.f32.mrf.mxu0
  %v1261 = vadd.f32 %v283, %v1260
  %v1262 = vpop.f32.mrf.mxu0
  %1263 = vmatprep.mubr.f32.mxu0 0.0
  %1264 = vmatmul.mubr.f32.gmra.mxu0 %v374
  %v1265 = vpop.f32.mrf.mxu0
  %v1266 = vadd.f32 %v283, %v1265
  %v1267 = vpop.f32.mrf.mxu0
  %1268 = vmatprep.mubr.f32.mxu0 0.0
  %1269 = vmatmul.mubr.f32.gmra.mxu0 %v377
  %v1270 = vpop.f32.mrf.mxu0
  %v1271 = vadd.f32 %v283, %v1270
  %v1272 = vpop.f32.mrf.mxu0
  %1273 = vmatprep.mubr.f32.mxu0 0.0
  %1274 = vmatmul.mubr.f32.gmra.mxu0 %v380
  %v1275 = vpop.f32.mrf.mxu0
  %v1276 = vadd.f32 %v283, %v1275
  %v1277 = vpop.f32.mrf.mxu0
  %1278 = vmatprep.mubr.f32.mxu0 0.0
  %1279 = vmatmul.mubr.f32.gmra.mxu0 %v383
  %v1280 = vpop.f32.mrf.mxu0
  %v1281 = vadd.f32 %v283, %v1280
  %v1282 = vpop.f32.mrf.mxu0
  %1283 = vmatprep.mubr.f32.mxu0 0.0
  %1284 = vmatmul.mubr.f32.gmra.mxu0 %v386
  %v1285 = vpop.f32.mrf.mxu0
  %v1286 = vadd.f32 %v283, %v1285
  %v1287 = vpop.f32.mrf.mxu0
  %1288 = vmatprep.mubr.f32.mxu0 0.0
  %1289 = vmatmul.mubr.f32.gmra.mxu0 %v389
  %v1290 = vpop.f32.mrf.mxu0
  %v1291 = vadd.f32 %v283, %v1290
  %v1292 = vpop.f32.mrf.mxu0
  %1293 = vmatprep.mubr.f32.mxu0 0.0
  %1294 = vmatmul.mubr.f32.gmra.mxu0 %v392
  %v1295 = vpop.f32.mrf.mxu0
  %v1296 = vadd.f32 %v283, %v1295
  %v1297 = vpop.f32.mrf.mxu0
  %1298 = vmatprep.mubr.f32.mxu0 0.0
  %1299 = vmatmul.mubr.f32.gmra.mxu0 %v395
  %v1300 = vpop.f32.mrf.mxu0
  %v1301 = vadd.f32 %v283, %v1300
  %v1302 = vpop.f32.mrf.mxu0
  %1303 = vmatprep.mubr.f32.mxu0 0.0
  %1304 = vmatmul.mubr.f32.gmra.mxu0 %v398
  %v1305 = vpop.f32.mrf.mxu0
  %v1306 = vadd.f32 %v283, %v1305
  %v1307 = vpop.f32.mrf.mxu0
  %1308 = vmatprep.mubr.f32.mxu0 0.0
  %1309 = vmatmul.mubr.f32.gmra.mxu0 %v401
  %v1310 = vpop.f32.mrf.mxu0
  %v1311 = vadd.f32 %v283, %v1310
  %v1312 = vpop.f32.mrf.mxu0
  %1313 = vmatprep.mubr.f32.mxu0 0.0
  %1314 = vmatmul.mubr.f32.gmra.mxu0 %v404
  %v1315 = vpop.f32.mrf.mxu0
  %v1316 = vadd.f32 %v283, %v1315
  %v1317 = vpop.f32.mrf.mxu0
  %1318 = vmatprep.mubr.f32.mxu0 0.0
  %1319 = vmatmul.mubr.f32.gmra.mxu0 %v407
  %v1320 = vpop.f32.mrf.mxu0
  %v1321 = vadd.f32 %v283, %v1320
  %v1322 = vpop.f32.mrf.mxu0
  %1323 = vmatprep.mubr.f32.mxu0 0.0
  %1324 = vmatmul.mubr.f32.gmra.mxu0 %v410
  %v1325 = vpop.f32.mrf.mxu0
  %v1326 = vadd.f32 %v283, %v1325
  %v1327 = vpop.f32.mrf.mxu0
  %1328 = vmatprep.mubr.f32.mxu0 0.0
  %1329 = vmatmul.mubr.f32.gmra.mxu0 %v413
  %v1330 = vpop.f32.mrf.mxu0
  %v1331 = vadd.f32 %v283, %v1330
  %v1332 = vpop.f32.mrf.mxu0
  %1333 = vmatprep.mubr.f32.mxu0 0.0
  %1334 = vmatmul.mubr.f32.gmra.mxu0 %v416
  %v1335 = vpop.f32.mrf.mxu0
  %v1336 = vadd.f32 %v283, %v1335
  %v1337 = vpop.f32.mrf.mxu0
  %1338 = vmatprep.mubr.f32.mxu0 0.0
  %1339 = vmatmul.mubr.f32.gmra.mxu0 %v419
  %v1340 = vpop.f32.mrf.mxu0
  %v1341 = vadd.f32 %v283, %v1340
  %v1342 = vpop.f32.mrf.mxu0
  %1343 = vmatprep.mubr.f32.mxu0 0.0
  %1344 = vmatmul.mubr.f32.gmra.mxu0 %v422
  %v1345 = vpop.f32.mrf.mxu0
  %v1346 = vadd.f32 %v283, %v1345
  %v1347 = vpop.f32.mrf.mxu0
  %1348 = vmatprep.mubr.f32.mxu0 0.0
  %1349 = vmatmul.mubr.f32.gmra.mxu0 %v425
  %v1350 = vpop.f32.mrf.mxu0
  %v1351 = vadd.f32 %v283, %v1350
  %v1352 = vpop.f32.mrf.mxu0
  %1353 = vmatprep.mubr.f32.mxu0 0.0
  %1354 = vmatmul.mubr.f32.gmra.mxu0 %v428
  %v1355 = vpop.f32.mrf.mxu0
  %v1356 = vadd.f32 %v283, %v1355
  %v1357 = vpop.f32.mrf.mxu0
  %1358 = vmatprep.mubr.f32.mxu0 0.0
  %1359 = vmatmul.mubr.f32.gmra.mxu0 %v431
  %v1360 = vpop.f32.mrf.mxu0
  %v1361 = vadd.f32 %v283, %v1360
  %v1362 = vpop.f32.mrf.mxu0
  %1363 = vmatprep.mubr.f32.mxu0 0.0
  %1364 = vmatmul.mubr.f32.gmra.mxu0 %v434
  %v1365 = vpop.f32.mrf.mxu0
  %v1366 = vadd.f32 %v283, %v1365
  %v1367 = vpop.f32.mrf.mxu0
  %1368 = vmatprep.mubr.f32.mxu0 0.0
  %1369 = vmatmul.mubr.f32.gmra.mxu0 %v437
  %v1370 = vpop.f32.mrf.mxu0
  %v1371 = vadd.f32 %v283, %v1370
  %v1372 = vpop.f32.mrf.mxu0
  %1373 = vmatprep.mubr.f32.mxu0 0.0
  %1374 = vmatmul.mubr.f32.gmra.mxu0 %v440
  %v1375 = vpop.f32.mrf.mxu0
  %v1376 = vadd.f32 %v283, %v1375
  %v1377 = vpop.f32.mrf.mxu0
  %1378 = vmatprep.mubr.f32.mxu0 0.0
  %1379 = vmatmul.mubr.f32.gmra.mxu0 %v443
  %v1380 = vpop.f32.mrf.mxu0
  %v1381 = vadd.f32 %v283, %v1380
  %v1382 = vpop.f32.mrf.mxu0
  %1383 = vmatprep.mubr.f32.mxu0 0.0
  %1384 = vmatmul.mubr.f32.gmra.mxu0 %v446
  %v1385 = vpop.f32.mrf.mxu0
  %v1386 = vadd.f32 %v283, %v1385
  %v1387 = vpop.f32.mrf.mxu0
  %1388 = vmatprep.mubr.f32.mxu0 0.0
  %1389 = vmatmul.mubr.f32.gmra.mxu0 %v449
  %v1390 = vpop.f32.mrf.mxu0
  %v1391 = vadd.f32 %v283, %v1390
  %v1392 = vpop.f32.mrf.mxu0
  %1393 = vmatprep.mubr.f32.mxu0 0.0
  %1394 = vmatmul.mubr.f32.gmra.mxu0 %v452
  %v1395 = vpop.f32.mrf.mxu0
  %v1396 = vadd.f32 %v283, %v1395
  %v1397 = vpop.f32.mrf.mxu0
  %1398 = vmatprep.mubr.f32.mxu0 0.0
  %1399 = vmatmul.mubr.f32.gmra.mxu0 %v455
  %v1400 = vpop.f32.mrf.mxu0
  %v1401 = vadd.f32 %v283, %v1400
  %v1402 = vpop.f32.mrf.mxu0
  %1403 = vmatprep.mubr.f32.mxu0 0.0
  %1404 = vmatmul.mubr.f32.gmra.mxu0 %v458
  %v1405 = vpop.f32.mrf.mxu0
  %v1406 = vadd.f32 %v283, %v1405
  %v1407 = vpop.f32.mrf.mxu0
  %1408 = vmatprep.mubr.f32.mxu0 0.0
  %1409 = vmatmul.mubr.f32.gmra.mxu0 %v461
  %v1410 = vpop.f32.mrf.mxu0
  %v1411 = vadd.f32 %v283, %v1410
  %v1412 = vpop.f32.mrf.mxu0
  %1413 = vmatprep.mubr.f32.mxu0 0.0
  %1414 = vmatmul.mubr.f32.gmra.mxu0 %v464
  %v1415 = vpop.f32.mrf.mxu0
  %v1416 = vadd.f32 %v283, %v1415
  %v1417 = vpop.f32.mrf.mxu0
  %1418 = vmatprep.mubr.f32.mxu0 0.0
  %1419 = vmatmul.mubr.f32.gmra.mxu0 %v467
  %v1420 = vpop.f32.mrf.mxu0
  %v1421 = vadd.f32 %v283, %v1420
  %v1422 = vpop.f32.mrf.mxu0
  %1423 = vmatprep.mubr.f32.mxu0 0.0
  %1424 = vmatmul.mubr.f32.gmra.mxu0 %v470
  %v1425 = vpop.f32.mrf.mxu0
  %v1426 = vadd.f32 %v283, %v1425
  %v1427 = vpop.f32.mrf.mxu0
  %1428 = vmatprep.mubr.f32.mxu0 0.0
  %1429 = vmatmul.mubr.f32.gmra.mxu0 %v473
  %v1430 = vpop.f32.mrf.mxu0
  %v1431 = vadd.f32 %v283, %v1430
  %v1432 = vpop.f32.mrf.mxu0
  %1433 = vmatprep.mubr.f32.mxu0 0.0
  %1434 = vmatmul.mubr.f32.gmra.mxu0 %v476
  %v1435 = vpop.f32.mrf.mxu0
  %v1436 = vadd.f32 %v283, %v1435
  %v1437 = vpop.f32.mrf.mxu0
  %1438 = vmatprep.mubr.f32.mxu0 0.0
  %1439 = vmatmul.mubr.f32.gmra.mxu0 %v479
  %v1440 = vpop.f32.mrf.mxu0
  %v1441 = vadd.f32 %v283, %v1440
  %v1442 = vpop.f32.mrf.mxu0
  %1443 = vmatprep.mubr.f32.mxu0 0.0
  %1444 = vmatmul.mubr.f32.gmra.mxu0 %v482
  %v1445 = vpop.f32.mrf.mxu0
  %v1446 = vadd.f32 %v283, %v1445
  %v1447 = vpop.f32.mrf.mxu0
  %1448 = vmatprep.mubr.f32.mxu0 0.0
  %1449 = vmatmul.mubr.f32.gmra.mxu0 %v485
  %v1450 = vpop.f32.mrf.mxu0
  %v1451 = vadd.f32 %v283, %v1450
  %v1452 = vpop.f32.mrf.mxu0
  %1453 = vmatprep.mubr.f32.mxu0 0.0
  %1454 = vmatmul.mubr.f32.gmra.mxu0 %v488
  %v1455 = vpop.f32.mrf.mxu0
  %v1456 = vadd.f32 %v283, %v1455
  %v1457 = vpop.f32.mrf.mxu0
  %1458 = vmatprep.mubr.f32.mxu0 0.0
  %1459 = vmatmul.mubr.f32.gmra.mxu0 %v491
  %v1460 = vpop.f32.mrf.mxu0
  %v1461 = vadd.f32 %v283, %v1460
  %v1462 = vpop.f32.mrf.mxu0
  %1463 = vmatprep.mubr.f32.mxu0 0.0
  %1464 = vmatmul.mubr.f32.gmra.mxu0 %v494
  %v1465 = vpop.f32.mrf.mxu0
  %v1466 = vadd.f32 %v283, %v1465
  %v1467 = vpop.f32.mrf.mxu0
  %1468 = vmatprep.mubr.f32.mxu0 0.0
  %1469 = vmatmul.mubr.f32.gmra.mxu0 %v497
  %v1470 = vpop.f32.mrf.mxu0
  %v1471 = vadd.f32 %v283, %v1470
  %v1472 = vpop.f32.mrf.mxu0
  %1473 = vmatprep.mubr.f32.mxu0 0.0
  %1474 = vmatmul.mubr.f32.gmra.mxu0 %v500
  %v1475 = vpop.f32.mrf.mxu0
  %v1476 = vadd.f32 %v283, %v1475
  %v1477 = vpop.f32.mrf.mxu0
  %1478 = vmatprep.mubr.f32.mxu0 0.0
  %1479 = vmatmul.mubr.f32.gmra.mxu0 %v503
  %v1480 = vpop.f32.mrf.mxu0
  %v1481 = vadd.f32 %v283, %v1480
  %v1482 = vpop.f32.mrf.mxu0
  %1483 = vmatprep.mubr.f32.mxu0 0.0
  %1484 = vmatmul.mubr.f32.gmra.mxu0 %v506
  %v1485 = vpop.f32.mrf.mxu0
  %v1486 = vadd.f32 %v283, %v1485
  %v1487 = vpop.f32.mrf.mxu0
  %1488 = vmatprep.mubr.f32.mxu0 0.0
  %1489 = vmatmul.mubr.f32.gmra.mxu0 %v509
  %v1490 = vpop.f32.mrf.mxu0
  %v1491 = vadd.f32 %v283, %v1490
  %v1492 = vpop.f32.mrf.mxu0
  %1493 = vmatprep.mubr.f32.mxu0 0.0
  %1494 = vmatmul.mubr.f32.gmra.mxu0 %v512
  %v1495 = vpop.f32.mrf.mxu0
  %v1496 = vadd.f32 %v283, %v1495
  %v1497 = vpop.f32.mrf.mxu0
  %1498 = vmatprep.mubr.f32.mxu0 0.0
  %1499 = vmatmul.mubr.f32.gmra.mxu0 %v515
  %v1500 = vpop.f32.mrf.mxu0
  %v1501 = vadd.f32 %v283, %v1500
  %v1502 = vpop.f32.mrf.mxu0
  %1503 = vmatprep.mubr.f32.mxu0 0.0
  %1504 = vmatmul.mubr.f32.gmra.mxu0 %v518
  %v1505 = vpop.f32.mrf.mxu0
  %v1506 = vadd.f32 %v283, %v1505
  %v1507 = vpop.f32.mrf.mxu0
  %1508 = vmatprep.mubr.f32.mxu0 0.0
  %1509 = vmatmul.mubr.f32.gmra.mxu0 %v521
  %v1510 = vpop.f32.mrf.mxu0
  %v1511 = vadd.f32 %v283, %v1510
  %v1512 = vpop.f32.mrf.mxu0
  %1513 = vmatprep.mubr.f32.mxu0 0.0
  %1514 = vmatmul.mubr.f32.gmra.mxu0 %v524
  %v1515 = vpop.f32.mrf.mxu0
  %v1516 = vadd.f32 %v283, %v1515
  %v1517 = vpop.f32.mrf.mxu0
  %1518 = vmatprep.mubr.f32.mxu0 0.0
  %1519 = vmatmul.mubr.f32.gmra.mxu0 %v527
  %v1520 = vpop.f32.mrf.mxu0
  %v1521 = vadd.f32 %v283, %v1520
  %v1522 = vpop.f32.mrf.mxu0
  %1523 = vmatprep.mubr.f32.mxu0 0.0
  %1524 = vmatmul.mubr.f32.gmra.mxu0 %v530
  %v1525 = vpop.f32.mrf.mxu0
  %v1526 = vadd.f32 %v283, %v1525
  %v1527 = vpop.f32.mrf.mxu0
  %1528 = vmatprep.mubr.f32.mxu0 0.0
  %1529 = vmatmul.mubr.f32.gmra.mxu0 %v533
  %v1530 = vpop.f32.mrf.mxu0
  %v1531 = vadd.f32 %v283, %v1530
  %v1532 = vpop.f32.mrf.mxu0
  %1533 = vmatprep.mubr.f32.mxu0 0.0
  %1534 = vmatmul.mubr.f32.gmra.mxu0 %v536
  %v1535 = vpop.f32.mrf.mxu0
  %v1536 = vadd.f32 %v283, %v1535
  %v1537 = vpop.f32.mrf.mxu0
  %1538 = vmatprep.mubr.f32.mxu0 0.0
  %1539 = vmatmul.mubr.f32.gmra.mxu0 %v539
  %v1540 = vpop.f32.mrf.mxu0
  %v1541 = vadd.f32 %v283, %v1540
  %v1542 = vpop.f32.mrf.mxu0
  %1543 = vmatprep.mubr.f32.mxu0 0.0
  %1544 = vmatmul.mubr.f32.gmra.mxu0 %v542
  %v1545 = vpop.f32.mrf.mxu0
  %v1546 = vadd.f32 %v283, %v1545
  %v1547 = vpop.f32.mrf.mxu0
  %1548 = vmatprep.mubr.f32.mxu0 0.0
  %1549 = vmatmul.mubr.f32.gmra.mxu0 %v545
  %v1550 = vpop.f32.mrf.mxu0
  %v1551 = vadd.f32 %v283, %v1550
  %v1552 = vpop.f32.mrf.mxu0
  %1553 = vmatprep.mubr.f32.mxu0 0.0
  %1554 = vmatmul.mubr.f32.gmra.mxu0 %v548
  %v1555 = vpop.f32.mrf.mxu0
  %v1556 = vadd.f32 %v283, %v1555
  %v1557 = vpop.f32.mrf.mxu0
  %1558 = vmatprep.mubr.f32.mxu0 0.0
  %1559 = vmatmul.mubr.f32.gmra.mxu0 %v551
  %v1560 = vpop.f32.mrf.mxu0
  %v1561 = vadd.f32 %v283, %v1560
  %v1562 = vpop.f32.mrf.mxu0
  %1563 = vmatprep.mubr.f32.mxu0 0.0
  %1564 = vmatmul.mubr.f32.gmra.mxu0 %v554
  %v1565 = vpop.f32.mrf.mxu0
  %v1566 = vadd.f32 %v283, %v1565
  %v1567 = vpop.f32.mrf.mxu0
  %1568 = vmatprep.mubr.f32.mxu0 0.0
  %1569 = vmatmul.mubr.f32.gmra.mxu0 %v557
  %v1570 = vpop.f32.mrf.mxu0
  %v1571 = vadd.f32 %v283, %v1570
  %v1572 = vpop.f32.mrf.mxu0
  %1573 = vmatprep.mubr.f32.mxu0 0.0
  %1574 = vmatmul.mubr.f32.gmra.mxu0 %v560
  %v1575 = vpop.f32.mrf.mxu0
  %v1576 = vadd.f32 %v283, %v1575
  %v1577 = vpop.f32.mrf.mxu0
  %1578 = vmatprep.mubr.f32.mxu0 0.0
  %1579 = vmatmul.mubr.f32.gmra.mxu0 %v563
  %v1580 = vpop.f32.mrf.mxu0
  %v1581 = vadd.f32 %v283, %v1580
  %v1582 = vpop.f32.mrf.mxu0
  %1583 = vmatprep.mubr.f32.mxu0 0.0
  %1584 = vmatmul.mubr.f32.gmra.mxu0 %v566
  %v1585 = vpop.f32.mrf.mxu0
  %v1586 = vadd.f32 %v283, %v1585
  %v1587 = vpop.f32.mrf.mxu0
  %1588 = vmatprep.mubr.f32.mxu0 0.0
  %1589 = vmatmul.mubr.f32.gmra.mxu0 %v569
  %v1590 = vpop.f32.mrf.mxu0
  %v1591 = vadd.f32 %v283, %v1590
  %v1592 = vpop.f32.mrf.mxu0
  %1593 = vmatprep.mubr.f32.mxu0 0.0
  %1594 = vmatmul.mubr.f32.gmra.mxu0 %v572
  %v1595 = vpop.f32.mrf.mxu0
  %v1596 = vadd.f32 %v283, %v1595
  %v1597 = vpop.f32.mrf.mxu0
  %1598 = vmatprep.mubr.f32.mxu0 0.0
  %1599 = vmatmul.mubr.f32.gmra.mxu0 %v575
  %v1600 = vpop.f32.mrf.mxu0
  %v1601 = vadd.f32 %v283, %v1600
  %v1602 = vpop.f32.mrf.mxu0
  %1603 = vmatprep.mubr.f32.mxu0 0.0
  %1604 = vmatmul.mubr.f32.gmra.mxu0 %v578
  %v1605 = vpop.f32.mrf.mxu0
  %v1606 = vadd.f32 %v283, %v1605
  %v1607 = vpop.f32.mrf.mxu0
  %1608 = vmatprep.mubr.f32.mxu0 0.0
  %1609 = vmatmul.mubr.f32.gmra.mxu0 %v581
  %v1610 = vpop.f32.mrf.mxu0
  %v1611 = vadd.f32 %v283, %v1610
  %v1612 = vpop.f32.mrf.mxu0
  %1613 = vmatprep.mubr.f32.mxu0 0.0
  %1614 = vmatmul.mubr.f32.gmra.mxu0 %v584
  %v1615 = vpop.f32.mrf.mxu0
  %v1616 = vadd.f32 %v283, %v1615
  %v1617 = vpop.f32.mrf.mxu0
  %1618 = vmatprep.mubr.f32.mxu0 0.0
  %1619 = vmatmul.mubr.f32.gmra.mxu0 %v587
  %v1620 = vpop.f32.mrf.mxu0
  %v1621 = vadd.f32 %v283, %v1620
  %v1622 = vpop.f32.mrf.mxu0
  %1623 = vmatprep.mubr.f32.mxu0 0.0
  %1624 = vmatmul.mubr.f32.gmra.mxu0 %v590
  %v1625 = vpop.f32.mrf.mxu0
  %v1626 = vadd.f32 %v283, %v1625
  %v1627 = vpop.f32.mrf.mxu0
  %1628 = vmatprep.mubr.f32.mxu0 0.0
  %1629 = vmatmul.mubr.f32.gmra.mxu0 %v593
  %v1630 = vpop.f32.mrf.mxu0
  %v1631 = vadd.f32 %v283, %v1630
  %v1632 = vpop.f32.mrf.mxu0
  %1633 = vmatprep.mubr.f32.mxu0 0.0
  %1634 = vmatmul.mubr.f32.gmra.mxu0 %v596
  %v1635 = vpop.f32.mrf.mxu0
  %v1636 = vadd.f32 %v283, %v1635
  %v1637 = vpop.f32.mrf.mxu0
  %1638 = vmatprep.mubr.f32.mxu0 0.0
  %1639 = vmatmul.mubr.f32.gmra.mxu0 %v599
  %v1640 = vpop.f32.mrf.mxu0
  %v1641 = vadd.f32 %v283, %v1640
  %v1642 = vpop.f32.mrf.mxu0
  %1643 = vmatprep.mubr.f32.mxu0 0.0
  %1644 = vmatmul.mubr.f32.gmra.mxu0 %v602
  %v1645 = vpop.f32.mrf.mxu0
  %v1646 = vadd.f32 %v283, %v1645
  %v1647 = vpop.f32.mrf.mxu0
  %1648 = vmatprep.mubr.f32.mxu0 0.0
  %1649 = vmatmul.mubr.f32.gmra.mxu0 %v605
  %v1650 = vpop.f32.mrf.mxu0
  %v1651 = vadd.f32 %v283, %v1650
  %v1652 = vpop.f32.mrf.mxu0
  %1653 = vmatprep.mubr.f32.mxu0 0.0
  %1654 = vmatmul.mubr.f32.gmra.mxu0 %v608
  %v1655 = vpop.f32.mrf.mxu0
  %v1656 = vadd.f32 %v283, %v1655
  %v1657 = vpop.f32.mrf.mxu0
  %1658 = vmatprep.mubr.f32.mxu0 0.0
  %1659 = vmatmul.mubr.f32.gmra.mxu0 %v611
  %v1660 = vpop.f32.mrf.mxu0
  %v1661 = vadd.f32 %v283, %v1660
  %v1662 = vpop.f32.mrf.mxu0
  %1663 = vmatprep.mubr.f32.mxu0 0.0
  %1664 = vmatmul.mubr.f32.gmra.mxu0 %v614
  %v1665 = vpop.f32.mrf.mxu0
  %v1666 = vadd.f32 %v283, %v1665
  %v1667 = vpop.f32.mrf.mxu0
  %1668 = vmatprep.mubr.f32.mxu0 0.0
  %1669 = vmatmul.mubr.f32.gmra.mxu0 %v617
  %v1670 = vpop.f32.mrf.mxu0
  %v1671 = vadd.f32 %v283, %v1670
  %v1672 = vpop.f32.mrf.mxu0
  %1673 = vmatprep.mubr.f32.mxu0 0.0
  %1674 = vmatmul.mubr.f32.gmra.mxu0 %v620
  %v1675 = vpop.f32.mrf.mxu0
  %v1676 = vadd.f32 %v283, %v1675
  %v1677 = vpop.f32.mrf.mxu0
  %1678 = vmatprep.mubr.f32.mxu0 0.0
  %1679 = vmatmul.mubr.f32.gmra.mxu0 %v623
  %v1680 = vpop.f32.mrf.mxu0
  %v1681 = vadd.f32 %v283, %v1680
  %v1682 = vpop.f32.mrf.mxu0
  %1683 = vmatprep.mubr.f32.mxu0 0.0
  %1684 = vmatmul.mubr.f32.gmra.mxu0 %v626
  %v1685 = vpop.f32.mrf.mxu0
  %v1686 = vadd.f32 %v283, %v1685
  %v1687 = vpop.f32.mrf.mxu0
  %1688 = vmatprep.mubr.f32.mxu0 0.0
  %1689 = vmatmul.mubr.f32.gmra.mxu0 %v629
  %v1690 = vpop.f32.mrf.mxu0
  %v1691 = vadd.f32 %v283, %v1690
  %v1692 = vpop.f32.mrf.mxu0
  %1693 = vmatprep.mubr.f32.mxu0 0.0
  %1694 = vmatmul.mubr.f32.gmra.mxu0 %v632
  %v1695 = vpop.f32.mrf.mxu0
  %v1696 = vadd.f32 %v283, %v1695
  %v1697 = vpop.f32.mrf.mxu0
  %1698 = vmatprep.mubr.f32.mxu0 0.0
  %1699 = vmatmul.mubr.f32.gmra.mxu0 %v635
  %v1700 = vpop.f32.mrf.mxu0
  %v1701 = vadd.f32 %v283, %v1700
  %v1702 = vpop.f32.mrf.mxu0
  %1703 = vmatprep.mubr.f32.mxu0 0.0
  %1704 = vmatmul.mubr.f32.gmra.mxu0 %v638
  %v1705 = vpop.f32.mrf.mxu0
  %v1706 = vadd.f32 %v283, %v1705
  %v1707 = vpop.f32.mrf.mxu0
  %1708 = vmatprep.mubr.f32.mxu0 0.0
  %1709 = vmatmul.mubr.f32.gmra.mxu0 %v641
  %v1710 = vpop.f32.mrf.mxu0
  %v1711 = vadd.f32 %v283, %v1710
  %v1712 = vpop.f32.mrf.mxu0
  %1713 = vmatprep.mubr.f32.mxu0 0.0
  %1714 = vmatmul.mubr.f32.gmra.mxu0 %v644
  %v1715 = vpop.f32.mrf.mxu0
  %v1716 = vadd.f32 %v283, %v1715
  %v1717 = vpop.f32.mrf.mxu0
  %1718 = vmatprep.mubr.f32.mxu0 0.0
  %1719 = vmatmul.mubr.f32.gmra.mxu0 %v647
  %v1720 = vpop.f32.mrf.mxu0
  %v1721 = vadd.f32 %v283, %v1720
  %v1722 = vpop.f32.mrf.mxu0
  %1723 = vmatprep.mubr.f32.mxu0 0.0
  %1724 = vmatmul.mubr.f32.gmra.mxu0 %v650
  %v1725 = vpop.f32.mrf.mxu0
  %v1726 = vadd.f32 %v283, %v1725
  %v1727 = vpop.f32.mrf.mxu0
  %1728 = vmatprep.mubr.f32.mxu0 0.0
  %1729 = vmatmul.mubr.f32.gmra.mxu0 %v653
  %v1730 = vpop.f32.mrf.mxu0
  %v1731 = vadd.f32 %v283, %v1730
  %v1732 = vpop.f32.mrf.mxu0
  %1733 = vmatprep.mubr.f32.mxu0 0.0
  %1734 = vmatmul.mubr.f32.gmra.mxu0 %v656
  %v1735 = vpop.f32.mrf.mxu0
  %v1736 = vadd.f32 %v283, %v1735
  %v1737 = vpop.f32.mrf.mxu0
  %1738 = vmatprep.mubr.f32.mxu0 0.0
  %1739 = vmatmul.mubr.f32.gmra.mxu0 %v659
  %v1740 = vpop.f32.mrf.mxu0
  %v1741 = vadd.f32 %v283, %v1740
  %v1742 = vpop.f32.mrf.mxu0
  %1743 = vmatprep.mubr.f32.mxu0 0.0
  %1744 = vmatmul.mubr.f32.gmra.mxu0 %v662
  %v1745 = vpop.f32.mrf.mxu0
  %v1746 = vadd.f32 %v283, %v1745
  %v1747 = vpop.f32.mrf.mxu0
  %1748 = vmatprep.mubr.f32.mxu0 0.0
  %1749 = vmatmul.mubr.f32.gmra.mxu0 %v665
  %v1750 = vpop.f32.mrf.mxu0
  %v1751 = vadd.f32 %v283, %v1750
  %v1752 = vpop.f32.mrf.mxu0
  %1753 = vmatprep.mubr.f32.mxu0 0.0
  %1754 = vmatmul.mubr.f32.gmra.mxu0 %v668
  %v1755 = vpop.f32.mrf.mxu0
  %v1756 = vadd.f32 %v283, %v1755
  %v1757 = vpop.f32.mrf.mxu0
  %1758 = vmatprep.mubr.f32.mxu0 0.0
  %1759 = vmatmul.mubr.f32.gmra.mxu0 %v671
  %v1760 = vpop.f32.mrf.mxu0
  %v1761 = vadd.f32 %v283, %v1760
  %v1762 = vpop.f32.mrf.mxu0
  %1763 = vmatprep.mubr.f32.mxu0 0.0
  %1764 = vmatmul.mubr.f32.gmra.mxu0 %v674
  %v1765 = vpop.f32.mrf.mxu0
  %v1766 = vadd.f32 %v283, %v1765
  %v1767 = vpop.f32.mrf.mxu0
  %1768 = vmatprep.mubr.f32.mxu0 0.0
  %1769 = vmatmul.mubr.f32.gmra.mxu0 %v677
  %v1770 = vpop.f32.mrf.mxu0
  %v1771 = vadd.f32 %v283, %v1770
  %v1772 = vpop.f32.mrf.mxu0
  %1773 = vmatprep.mubr.f32.mxu0 0.0
  %1774 = vmatmul.mubr.f32.gmra.mxu0 %v680
  %v1775 = vpop.f32.mrf.mxu0
  %v1776 = vadd.f32 %v283, %v1775
  %v1777 = vpop.f32.mrf.mxu0
  %1778 = vmatprep.mubr.f32.mxu0 0.0
  %1779 = vmatmul.mubr.f32.gmra.mxu0 %v683
  %v1780 = vpop.f32.mrf.mxu0
  %v1781 = vadd.f32 %v283, %v1780
  %v1782 = vpop.f32.mrf.mxu0
  %1783 = vmatprep.mubr.f32.mxu0 0.0
  %1784 = vmatmul.mubr.f32.gmra.mxu0 %v686
  %v1785 = vpop.f32.mrf.mxu0
  %v1786 = vadd.f32 %v283, %v1785
  %v1787 = vpop.f32.mrf.mxu0
  %1788 = vmatprep.mubr.f32.mxu0 0.0
  %1789 = vmatmul.mubr.f32.gmra.mxu0 %v689
  %v1790 = vpop.f32.mrf.mxu0
  %v1791 = vadd.f32 %v283, %v1790
  %v1792 = vpop.f32.mrf.mxu0
  %1793 = vmatprep.mubr.f32.mxu0 0.0
  %1794 = vmatmul.mubr.f32.gmra.mxu0 %v692
  %v1795 = vpop.f32.mrf.mxu0
  %v1796 = vadd.f32 %v283, %v1795
  %v1797 = vpop.f32.mrf.mxu0
  %1798 = vmatprep.mubr.f32.mxu0 0.0
  %1799 = vmatmul.mubr.f32.gmra.mxu0 %v695
  %v1800 = vpop.f32.mrf.mxu0
  %v1801 = vadd.f32 %v283, %v1800
  %v1802 = vpop.f32.mrf.mxu0
  %1803 = vmatprep.mubr.f32.mxu0 0.0
  %1804 = vmatmul.mubr.f32.gmra.mxu0 %v698
  %v1805 = vpop.f32.mrf.mxu0
  %v1806 = vadd.f32 %v283, %v1805
  %v1807 = vpop.f32.mrf.mxu0
  %1808 = vmatprep.mubr.f32.mxu0 0.0
  %1809 = vmatmul.mubr.f32.gmra.mxu0 %v701
  %v1810 = vpop.f32.mrf.mxu0
  %v1811 = vadd.f32 %v283, %v1810
  %v1812 = vpop.f32.mrf.mxu0
  %1813 = vmatprep.mubr.f32.mxu0 0.0
  %1814 = vmatmul.mubr.f32.gmra.mxu0 %v704
  %v1815 = vpop.f32.mrf.mxu0
  %v1816 = vadd.f32 %v283, %v1815
  %v1817 = vpop.f32.mrf.mxu0
  %1818 = vmatprep.mubr.f32.mxu0 0.0
  %1819 = vmatmul.mubr.f32.gmra.mxu0 %v707
  %v1820 = vpop.f32.mrf.mxu0
  %v1821 = vadd.f32 %v283, %v1820
  %v1822 = vpop.f32.mrf.mxu0
  %1823 = vmatprep.mubr.f32.mxu0 0.0
  %1824 = vmatmul.mubr.f32.gmra.mxu0 %v710
  %v1825 = vpop.f32.mrf.mxu0
  %v1826 = vadd.f32 %v283, %v1825
  %v1827 = vpop.f32.mrf.mxu0
  %1828 = vmatprep.mubr.f32.mxu0 0.0
  %1829 = vmatmul.mubr.f32.gmra.mxu0 %v713
  %v1830 = vpop.f32.mrf.mxu0
  %v1831 = vadd.f32 %v283, %v1830
  %v1832 = vpop.f32.mrf.mxu0
  %1833 = vmatprep.mubr.f32.mxu0 0.0
  %1834 = vmatmul.mubr.f32.gmra.mxu0 %v716
  %v1835 = vpop.f32.mrf.mxu0
  %v1836 = vadd.f32 %v283, %v1835
  %v1837 = vpop.f32.mrf.mxu0
  %1838 = vmatprep.mubr.f32.mxu0 0.0
  %1839 = vmatmul.mubr.f32.gmra.mxu0 %v719
  %v1840 = vpop.f32.mrf.mxu0
  %v1841 = vadd.f32 %v283, %v1840
  %v1842 = vpop.f32.mrf.mxu0
  %1843 = vmatprep.mubr.f32.mxu0 0.0
  %1844 = vmatmul.mubr.f32.gmra.mxu0 %v722
  %v1845 = vpop.f32.mrf.mxu0
  %v1846 = vadd.f32 %v283, %v1845
  %v1847 = vpop.f32.mrf.mxu0
  %1848 = vmatprep.mubr.f32.mxu0 0.0
  %1849 = vmatmul.mubr.f32.gmra.mxu0 %v725
  %v1850 = vpop.f32.mrf.mxu0
  %v1851 = vadd.f32 %v283, %v1850
  %v1852 = vpop.f32.mrf.mxu0
  %1853 = vmatprep.mubr.f32.mxu0 0.0
  %1854 = vmatmul.mubr.f32.gmra.mxu0 %v728
  %v1855 = vpop.f32.mrf.mxu0
  %v1856 = vadd.f32 %v283, %v1855
  %v1857 = vpop.f32.mrf.mxu0
  %1858 = vmatprep.mubr.f32.mxu0 0.0
  %1859 = vmatmul.mubr.f32.gmra.mxu0 %v731
  %v1860 = vpop.f32.mrf.mxu0
  %v1861 = vadd.f32 %v283, %v1860
  %v1862 = vpop.f32.mrf.mxu0
  %1863 = vmatprep.mubr.f32.mxu0 0.0
  %1864 = vmatmul.mubr.f32.gmra.mxu0 %v734
  %v1865 = vpop.f32.mrf.mxu0
  %v1866 = vadd.f32 %v283, %v1865
  %v1867 = vpop.f32.mrf.mxu0
  %1868 = vmatprep.mubr.f32.mxu0 0.0
  %1869 = vmatmul.mubr.f32.gmra.mxu0 %v737
  %v1870 = vpop.f32.mrf.mxu0
  %v1871 = vadd.f32 %v283, %v1870
  %v1872 = vpop.f32.mrf.mxu0
  %1873 = vmatprep.mubr.f32.mxu0 0.0
  %1874 = vmatmul.mubr.f32.gmra.mxu0 %v740
  %v1875 = vpop.f32.mrf.mxu0
  %v1876 = vadd.f32 %v283, %v1875
  %v1877 = vpop.f32.mrf.mxu0
  %1878 = vmatprep.mubr.f32.mxu0 0.0
  %1879 = vmatmul.mubr.f32.gmra.mxu0 %v743
  %v1880 = vpop.f32.mrf.mxu0
  %v1881 = vadd.f32 %v283, %v1880
  %v1882 = vpop.f32.mrf.mxu0
  %1883 = vmatprep.mubr.f32.mxu0 0.0
  %1884 = vmatmul.mubr.f32.gmra.mxu0 %v746
  %v1885 = vpop.f32.mrf.mxu0
  %v1886 = vadd.f32 %v283, %v1885
  %v1887 = vpop.f32.mrf.mxu0
  %1888 = vmatprep.mubr.f32.mxu0 0.0
  %1889 = vmatmul.mubr.f32.gmra.mxu0 %v749
  %v1890 = vpop.f32.mrf.mxu0
  %v1891 = vadd.f32 %v283, %v1890
  %v1892 = vpop.f32.mrf.mxu0
  %1893 = vmatprep.mubr.f32.mxu0 0.0
  %1894 = vmatmul.mubr.f32.gmra.mxu0 %v752
  %v1895 = vpop.f32.mrf.mxu0
  %v1896 = vadd.f32 %v283, %v1895
  %v1897 = vpop.f32.mrf.mxu0
  %1898 = vmatprep.mubr.f32.mxu0 0.0
  %1899 = vmatmul.mubr.f32.gmra.mxu0 %v755
  %v1900 = vpop.f32.mrf.mxu0
  %v1901 = vadd.f32 %v283, %v1900
  %v1902 = vpop.f32.mrf.mxu0
  %1903 = vmatprep.mubr.f32.mxu0 0.0
  %1904 = vmatmul.mubr.f32.gmra.mxu0 %v758
  %v1905 = vpop.f32.mrf.mxu0
  %v1906 = vadd.f32 %v283, %v1905
  %v1907 = vpop.f32.mrf.mxu0
  %1908 = vmatprep.mubr.f32.mxu0 0.0
  %1909 = vmatmul.mubr.f32.gmra.mxu0 %v761
  %v1910 = vpop.f32.mrf.mxu0
  %v1911 = vadd.f32 %v283, %v1910
  %v1912 = vpop.f32.mrf.mxu0
  %1913 = vmatprep.mubr.f32.mxu0 0.0
  %1914 = vmatmul.mubr.f32.gmra.mxu0 %v764
  %v1915 = vpop.f32.mrf.mxu0
  %v1916 = vadd.f32 %v283, %v1915
  %v1917 = vpop.f32.mrf.mxu0
  %1918 = vmatprep.mubr.f32.mxu0 0.0
  %1919 = vmatmul.mubr.f32.gmra.mxu0 %v767
  %v1920 = vpop.f32.mrf.mxu0
  %v1921 = vadd.f32 %v283, %v1920
  %v1922 = vpop.f32.mrf.mxu0
  %1923 = vmatprep.mubr.f32.mxu0 0.0
  %1924 = vmatmul.mubr.f32.gmra.mxu0 %v770
  %v1925 = vpop.f32.mrf.mxu0
  %v1926 = vadd.f32 %v283, %v1925
  %v1927 = vpop.f32.mrf.mxu0
  %1928 = vmatprep.mubr.f32.mxu0 0.0
  %1929 = vmatmul.mubr.f32.gmra.mxu0 %v773
  %v1930 = vpop.f32.mrf.mxu0
  %v1931 = vadd.f32 %v283, %v1930
  %v1932 = vpop.f32.mrf.mxu0
  %1933 = vmatprep.mubr.f32.mxu0 0.0
  %1934 = vmatmul.mubr.f32.gmra.mxu0 %v776
  %v1935 = vpop.f32.mrf.mxu0
  %v1936 = vadd.f32 %v283, %v1935
  %v1937 = vpop.f32.mrf.mxu0
  %1938 = vmatprep.mubr.f32.mxu0 0.0
  %1939 = vmatmul.mubr.f32.gmra.mxu0 %v779
  %v1940 = vpop.f32.mrf.mxu0
  %v1941 = vadd.f32 %v283, %v1940
  %v1942 = vpop.f32.mrf.mxu0
  %1943 = vmatprep.mubr.f32.mxu0 0.0
  %1944 = vmatmul.mubr.f32.gmra.mxu0 %v782
  %v1945 = vpop.f32.mrf.mxu0
  %v1946 = vadd.f32 %v283, %v1945
  %v1947 = vpop.f32.mrf.mxu0
  %1948 = vmatprep.mubr.f32.mxu0 0.0
  %1949 = vmatmul.mubr.f32.gmra.mxu0 %v785
  %v1950 = vpop.f32.mrf.mxu0
  %v1951 = vadd.f32 %v283, %v1950
  %v1952 = vpop.f32.mrf.mxu0
  %1953 = vmatprep.mubr.f32.mxu0 0.0
  %1954 = vmatmul.mubr.f32.gmra.mxu0 %v788
  %v1955 = vpop.f32.mrf.mxu0
  %v1956 = vadd.f32 %v283, %v1955
  %v1957 = vpop.f32.mrf.mxu0
  %1958 = vmatprep.mubr.f32.mxu0 0.0
  %1959 = vmatmul.mubr.f32.gmra.mxu0 %v791
  %v1960 = vpop.f32.mrf.mxu0
  %v1961 = vadd.f32 %v283, %v1960
  %v1962 = vpop.f32.mrf.mxu0
  %1963 = vmatprep.mubr.f32.mxu0 0.0
  %1964 = vmatmul.mubr.f32.gmra.mxu0 %v794
  %v1965 = vpop.f32.mrf.mxu0
  %v1966 = vadd.f32 %v283, %v1965
  %v1967 = vpop.f32.mrf.mxu0
  %1968 = vmatprep.mubr.f32.mxu0 0.0
  %1969 = vmatmul.mubr.f32.gmra.mxu0 %v797
  %v1970 = vpop.f32.mrf.mxu0
  %v1971 = vadd.f32 %v283, %v1970
  %v1972 = vpop.f32.mrf.mxu0
  %1973 = vmatprep.mubr.f32.mxu0 0.0
  %1974 = vmatmul.mubr.f32.gmra.mxu0 %v800
  %v1975 = vpop.f32.mrf.mxu0
  %v1976 = vadd.f32 %v283, %v1975
  %v1977 = vpop.f32.mrf.mxu0
  %1978 = vmatprep.mubr.f32.mxu0 0.0
  %1979 = vmatmul.mubr.f32.gmra.mxu0 %v803
  %v1980 = vpop.f32.mrf.mxu0
  %v1981 = vadd.f32 %v283, %v1980
  %v1982 = vpop.f32.mrf.mxu0
  %1983 = vmatprep.mubr.f32.mxu0 0.0
  %1984 = vmatmul.mubr.f32.gmra.mxu0 %v806
  %v1985 = vpop.f32.mrf.mxu0
  %v1986 = vadd.f32 %v283, %v1985
  %v1987 = vpop.f32.mrf.mxu0
  %1988 = vmatprep.mubr.f32.mxu0 0.0
  %1989 = vmatmul.mubr.f32.gmra.mxu0 %v809
  %v1990 = vpop.f32.mrf.mxu0
  %v1991 = vadd.f32 %v283, %v1990
  %v1992 = vpop.f32.mrf.mxu0
  %1993 = vmatprep.mubr.f32.mxu0 0.0
  %1994 = vmatmul.mubr.f32.gmra.mxu0 %v812
  %v1995 = vpop.f32.mrf.mxu0
  %v1996 = vadd.f32 %v283, %v1995
  %v1997 = vpop.f32.mrf.mxu0
  %1998 = vmatprep.mubr.f32.mxu0 0.0
  %1999 = vmatmul.mubr.f32.gmra.mxu0 %v815
  %v2000 = vpop.f32.mrf.mxu0
  %v2001 = vadd.f32 %v283, %v2000
  %v2002 = vpop.f32.mrf.mxu0
  %2003 = vmatprep.mubr.f32.mxu0 0.0
  %2004 = vmatmul.mubr.f32.gmra.mxu0 %v818
  %v2005 = vpop.f32.mrf.mxu0
  %v2006 = vadd.f32 %v283, %v2005
  %v2007 = vpop.f32.mrf.mxu0
  %2008 = vmatprep.mubr.f32.mxu0 0.0
  %2009 = vmatmul.mubr.f32.gmra.mxu0 %v821
  %v2010 = vpop.f32.mrf.mxu0
  %v2011 = vadd.f32 %v283, %v2010
  %v2012 = vpop.f32.mrf.mxu0
  %2013 = vmatprep.mubr.f32.mxu0 0.0
  %2014 = vmatmul.mubr.f32.gmra.mxu0 %v824
  %v2015 = vpop.f32.mrf.mxu0
  %v2016 = vadd.f32 %v283, %v2015
  %v2017 = vpop.f32.mrf.mxu0
  %2018 = vmatprep.mubr.f32.mxu0 0.0
  %2019 = vmatmul.mubr.f32.gmra.mxu0 %v827
  %v2020 = vpop.f32.mrf.mxu0
  %v2021 = vadd.f32 %v283, %v2020
  %v2022 = vpop.f32.mrf.mxu0
  %2023 = vmatprep.mubr.f32.mxu0 0.0
  %2024 = vmatmul.mubr.f32.gmra.mxu0 %v830
  %v2025 = vpop.f32.mrf.mxu0
  %v2026 = vadd.f32 %v283, %v2025
  %v2027 = vpop.f32.mrf.mxu0
  %2028 = vmatprep.mubr.f32.mxu0 0.0
  %2029 = vmatmul.mubr.f32.gmra.mxu0 %v833
  %v2030 = vpop.f32.mrf.mxu0
  %v2031 = vadd.f32 %v283, %v2030
  %v2032 = vpop.f32.mrf.mxu0
  %2033 = vmatprep.mubr.f32.mxu0 0.0
  %2034 = vmatmul.mubr.f32.gmra.mxu0 %v836
  %v2035 = vpop.f32.mrf.mxu0
  %v2036 = vadd.f32 %v283, %v2035
  %v2037 = vpop.f32.mrf.mxu0
  %2038 = vmatprep.mubr.f32.mxu0 0.0
  %2039 = vmatmul.mubr.f32.gmra.mxu0 %v839
  %v2040 = vpop.f32.mrf.mxu0
  %v2041 = vadd.f32 %v283, %v2040
  %v2042 = vpop.f32.mrf.mxu0
  %2043 = vmatprep.mubr.f32.mxu0 0.0
  %2044 = vmatmul.mubr.f32.gmra.mxu0 %v842
  %v2045 = vpop.f32.mrf.mxu0
  %v2046 = vadd.f32 %v283, %v2045
  %v2047 = vpop.f32.mrf.mxu0
  %2048 = vmatprep.mubr.f32.mxu0 0.0
  %2049 = vmatmul.mubr.f32.gmra.mxu0 %v845
  %v2050 = vpop.f32.mrf.mxu0
  %v2051 = vadd.f32 %v283, %v2050
  %v2052 = vpop.f32.mrf.mxu0
  %2053 = vmatprep.mubr.f32.mxu0 0.0
  %2054 = vmatmul.mubr.f32.gmra.mxu0 %v848
  %v2055 = vpop.f32.mrf.mxu0
  %v2056 = vadd.f32 %v283, %v2055
  %v2057 = vpop.f32.mrf.mxu0
  %2058 = vmatprep.mubr.f32.mxu0 0.0
  %2059 = vmatmul.mubr.f32.gmra.mxu0 %v851
  %v2060 = vpop.f32.mrf.mxu0
  %v2061 = vadd.f32 %v283, %v2060
  %v2062 = vpop.f32.mrf.mxu0
  %2063 = vmatprep.mubr.f32.mxu0 0.0
  %2064 = vmatmul.mubr.f32.gmra.mxu0 %v854
  %v2065 = vpop.f32.mrf.mxu0
  %v2066 = vadd.f32 %v283, %v2065
  %v2067 = vpop.f32.mrf.mxu0
  %2068 = vmatprep.mubr.f32.mxu0 0.0
  %2069 = vmatmul.mubr.f32.gmra.mxu0 %v857
  %v2070 = vpop.f32.mrf.mxu0
  %v2071 = vadd.f32 %v283, %v2070
  %v2072 = vpop.f32.mrf.mxu0
  %2073 = vmatprep.mubr.f32.mxu0 0.0
  %2074 = vmatmul.mubr.f32.gmra.mxu0 %v860
  %v2075 = vpop.f32.mrf.mxu0
  %v2076 = vadd.f32 %v283, %v2075
  %v2077 = vpop.f32.mrf.mxu0
  %2078 = vmatprep.mubr.f32.mxu0 0.0
  %2079 = vmatmul.mubr.f32.gmra.mxu0 %v863
  %v2080 = vpop.f32.mrf.mxu0
  %v2081 = vadd.f32 %v283, %v2080
  %v2082 = vpop.f32.mrf.mxu0
  %2083 = vmatprep.mubr.f32.mxu0 0.0
  %2084 = vmatmul.mubr.f32.gmra.mxu0 %v866
  %v2085 = vpop.f32.mrf.mxu0
  %v2086 = vadd.f32 %v283, %v2085
  %v2087 = vpop.f32.mrf.mxu0
  %2088 = vmatprep.mubr.f32.mxu0 0.0
  %2089 = vmatmul.mubr.f32.gmra.mxu0 %v869
  %v2090 = vpop.f32.mrf.mxu0
  %v2091 = vadd.f32 %v283, %v2090
  %v2092 = vpop.f32.mrf.mxu0
  %2093 = vmatprep.mubr.f32.mxu0 0.0
  %2094 = vmatmul.mubr.f32.gmra.mxu0 %v872
  %v2095 = vpop.f32.mrf.mxu0
  %v2096 = vadd.f32 %v283, %v2095
  %v2097 = vpop.f32.mrf.mxu0
  %2098 = vmatprep.mubr.f32.mxu0 0.0
  %2099 = vmatmul.mubr.f32.gmra.mxu0 %v875
  %v2100 = vpop.f32.mrf.mxu0
  %v2101 = vadd.f32 %v283, %v2100
  %v2102 = vpop.f32.mrf.mxu0
  %2103 = vmatprep.mubr.f32.mxu0 0.0
  %2104 = vmatmul.mubr.f32.gmra.mxu0 %v878
  %v2105 = vpop.f32.mrf.mxu0
  %v2106 = vadd.f32 %v283, %v2105
  %v2107 = vpop.f32.mrf.mxu0
  %2108 = vmatprep.mubr.f32.mxu0 0.0
  %2109 = vmatmul.mubr.f32.gmra.mxu0 %v881
  %v2110 = vpop.f32.mrf.mxu0
  %v2111 = vadd.f32 %v283, %v2110
  %v2112 = vpop.f32.mrf.mxu0
  %2113 = vmatprep.mubr.f32.mxu0 0.0
  %2114 = vmatmul.mubr.f32.gmra.mxu0 %v884
  %v2115 = vpop.f32.mrf.mxu0
  %v2116 = vadd.f32 %v283, %v2115
  %v2117 = vpop.f32.mrf.mxu0
  %2118 = vmatprep.mubr.f32.mxu0 0.0
  %2119 = vmatmul.mubr.f32.gmra.mxu0 %v887
  %v2120 = vpop.f32.mrf.mxu0
  %v2121 = vadd.f32 %v283, %v2120
  %v2122 = vpop.f32.mrf.mxu0
  %2123 = vmatprep.mubr.f32.mxu0 0.0
  %2124 = vmatmul.mubr.f32.gmra.mxu0 %v890
  %v2125 = vpop.f32.mrf.mxu0
  %v2126 = vadd.f32 %v283, %v2125
  %v2127 = vpop.f32.mrf.mxu0
  %2128 = vmatprep.mubr.f32.mxu0 0.0
  %2129 = vmatmul.mubr.f32.gmra.mxu0 %v893
  %v2130 = vpop.f32.mrf.mxu0
  %v2131 = vadd.f32 %v283, %v2130
  %v2132 = vpop.f32.mrf.mxu0
  %2133 = vmatprep.mubr.f32.mxu0 0.0
  %2134 = vmatmul.mubr.f32.gmra.mxu0 %v896
  %v2135 = vpop.f32.mrf.mxu0
  %v2136 = vadd.f32 %v283, %v2135
  %v2137 = vpop.f32.mrf.mxu0
  %2138 = vmatprep.mubr.f32.mxu0 0.0
  %2139 = vmatmul.mubr.f32.gmra.mxu0 %v899
  %v2140 = vpop.f32.mrf.mxu0
  %v2141 = vadd.f32 %v283, %v2140
  %v2142 = vpop.f32.mrf.mxu0
  %2143 = vmatprep.mubr.f32.mxu0 0.0
  %2144 = vmatmul.mubr.f32.gmra.mxu0 %v902
  %v2145 = vpop.f32.mrf.mxu0
  %v2146 = vadd.f32 %v283, %v2145
  %v2147 = vpop.f32.mrf.mxu0
  %2148 = vmatprep.mubr.f32.mxu0 0.0
  %2149 = vmatmul.mubr.f32.gmra.mxu0 %v905
  %v2150 = vpop.f32.mrf.mxu0
  %v2151 = vadd.f32 %v283, %v2150
  %v2152 = vpop.f32.mrf.mxu0
  %2153 = vmatprep.mubr.f32.mxu0 0.0
  %2154 = vmatmul.mubr.f32.gmra.mxu0 %v908
  %v2155 = vpop.f32.mrf.mxu0
  %v2156 = vadd.f32 %v283, %v2155
  %v2157 = vpop.f32.mrf.mxu0
  %2158 = vmatprep.mubr.f32.mxu0 0.0
  %2159 = vmatmul.mubr.f32.gmra.mxu0 %v911
  %v2160 = vpop.f32.mrf.mxu0
  %v2161 = vadd.f32 %v283, %v2160
  %v2162 = vpop.f32.mrf.mxu0
  %2163 = vmatprep.mubr.f32.mxu0 0.0
  %2164 = vmatmul.mubr.f32.gmra.mxu0 %v914
  %v2165 = vpop.f32.mrf.mxu0
  %v2166 = vadd.f32 %v283, %v2165
  %v2167 = vpop.f32.mrf.mxu0
  %2168 = vmatprep.mubr.f32.mxu0 0.0
  %2169 = vmatmul.mubr.f32.gmra.mxu0 %v917
  %v2170 = vpop.f32.mrf.mxu0
  %v2171 = vadd.f32 %v283, %v2170
  %v2172 = vpop.f32.mrf.mxu0
  %2173 = vmatprep.mubr.f32.mxu0 0.0
  %2174 = vmatmul.mubr.f32.gmra.mxu0 %v920
  %v2175 = vpop.f32.mrf.mxu0
  %v2176 = vadd.f32 %v283, %v2175
  %v2177 = vpop.f32.mrf.mxu0
  %2178 = vmatprep.mubr.f32.mxu0 0.0
  %2179 = vmatmul.mubr.f32.gmra.mxu0 %v923
  %v2180 = vpop.f32.mrf.mxu0
  %v2181 = vadd.f32 %v283, %v2180
  %v2182 = vpop.f32.mrf.mxu0
  %2183 = vmatprep.mubr.f32.mxu0 0.0
  %2184 = vmatmul.mubr.f32.gmra.mxu0 %v926
  %v2185 = vpop.f32.mrf.mxu0
  %v2186 = vadd.f32 %v283, %v2185
  %v2187 = vpop.f32.mrf.mxu0
  %2188 = vmatprep.mubr.f32.mxu0 0.0
  %2189 = vmatmul.mubr.f32.gmra.mxu0 %v929
  %v2190 = vpop.f32.mrf.mxu0
  %v2191 = vadd.f32 %v283, %v2190
  %v2192 = vpop.f32.mrf.mxu0
  %2193 = vmatprep.mubr.f32.mxu0 0.0
  %2194 = vmatmul.mubr.f32.gmra.mxu0 %v932
  %v2195 = vpop.f32.mrf.mxu0
  %v2196 = vadd.f32 %v283, %v2195
  %v2197 = vpop.f32.mrf.mxu0
  %2198 = vmatprep.mubr.f32.mxu0 0.0
  %2199 = vmatmul.mubr.f32.gmra.mxu0 %v935
  %v2200 = vpop.f32.mrf.mxu0
  %v2201 = vadd.f32 %v283, %v2200
  %v2202 = vpop.f32.mrf.mxu0
  %2203 = vmatprep.mubr.f32.mxu0 0.0
  %2204 = vmatmul.mubr.f32.gmra.mxu0 %v938
  %v2205 = vpop.f32.mrf.mxu0
  %v2206 = vadd.f32 %v283, %v2205
  %v2207 = vpop.f32.mrf.mxu0
  %2208 = vmatprep.mubr.f32.mxu0 0.0
  %2209 = vmatmul.mubr.f32.gmra.mxu0 %v941
  %v2210 = vpop.f32.mrf.mxu0
  %v2211 = vadd.f32 %v283, %v2210
  %v2212 = vpop.f32.mrf.mxu0
  %2213 = vmatprep.mubr.f32.mxu0 0.0
  %2214 = vmatmul.mubr.f32.gmra.mxu0 %v944
  %v2215 = vpop.f32.mrf.mxu0
  %v2216 = vadd.f32 %v283, %v2215
  %v2217 = vpop.f32.mrf.mxu0
  %2218 = vmatprep.mubr.f32.mxu0 0.0
  %2219 = vmatmul.mubr.f32.gmra.mxu0 %v947
  %v2220 = vpop.f32.mrf.mxu0
  %v2221 = vadd.f32 %v283, %v2220
  %v2222 = vpop.f32.mrf.mxu0
  %2223 = vmatprep.mubr.f32.mxu0 0.0
  %2224 = vmatmul.mubr.f32.gmra.mxu0 %v950
  %v2225 = vpop.f32.mrf.mxu0
  %v2226 = vadd.f32 %v283, %v2225
  %v2227 = vpop.f32.mrf.mxu0
  %2228 = vmatprep.mubr.f32.mxu0 0.0
  %2229 = vmatmul.mubr.f32.gmra.mxu0 %v953
  %v2230 = vpop.f32.mrf.mxu0
  %v2231 = vadd.f32 %v283, %v2230
  %v2232 = vpop.f32.mrf.mxu0
  %2233 = vmatprep.mubr.f32.mxu0 0.0
  %2234 = vmatmul.mubr.f32.gmra.mxu0 %v956
  %v2235 = vpop.f32.mrf.mxu0
  %v2236 = vadd.f32 %v283, %v2235
  %v2237 = vpop.f32.mrf.mxu0
  %2238 = vmatprep.mubr.f32.mxu0 0.0
  %2239 = vmatmul.mubr.f32.gmra.mxu0 %v959
  %v2240 = vpop.f32.mrf.mxu0
  %v2241 = vadd.f32 %v283, %v2240
  %v2242 = vpop.f32.mrf.mxu0
  %2243 = vmatprep.mubr.f32.mxu0 0.0
  %2244 = vmatmul.mubr.f32.gmra.mxu0 %v962
  %v2245 = vpop.f32.mrf.mxu0
  %v2246 = vadd.f32 %v283, %v2245
  %v2247 = vpop.f32.mrf.mxu0
  %2248 = vmatprep.mubr.f32.mxu0 0.0
  %2249 = vmatmul.mubr.f32.gmra.mxu0 %v965
  %v2250 = vpop.f32.mrf.mxu0
  %v2251 = vadd.f32 %v283, %v2250
  %v2252 = vpop.f32.mrf.mxu0
  %2253 = vmatprep.mubr.f32.mxu0 0.0
  %2254 = vmatmul.mubr.f32.gmra.mxu0 %v968
  %v2255 = vpop.f32.mrf.mxu0
  %v2256 = vadd.f32 %v283, %v2255
  %v2257 = vpop.f32.mrf.mxu0
  %2258 = vmatprep.mubr.f32.mxu0 0.0
  %2259 = vmatmul.mubr.f32.gmra.mxu0 %v971
  %v2260 = vpop.f32.mrf.mxu0
  %v2261 = vadd.f32 %v283, %v2260
  %v2262 = vpop.f32.mrf.mxu0
  %2263 = vmatprep.mubr.f32.mxu0 0.0
  %2264 = vmatmul.mubr.f32.gmra.mxu0 %v974
  %v2265 = vpop.f32.mrf.mxu0
  %v2266 = vadd.f32 %v283, %v2265
  %v2267 = vpop.f32.mrf.mxu0
  %2268 = vmatprep.mubr.f32.mxu0 0.0
  %2269 = vmatmul.mubr.f32.gmra.mxu0 %v977
  %v2270 = vpop.f32.mrf.mxu0
  %v2271 = vadd.f32 %v283, %v2270
  %v2272 = vpop.f32.mrf.mxu0
  %2273 = vmatprep.mubr.f32.mxu0 0.0
  %2274 = vmatmul.mubr.f32.gmra.mxu0 %v980
  %v2275 = vpop.f32.mrf.mxu0
  %v2276 = vadd.f32 %v283, %v2275
  %v2277 = vpop.f32.mrf.mxu0
  %2278 = vmatprep.mubr.f32.mxu0 0.0
  %2279 = vmatmul.mubr.f32.gmra.mxu0 %v983
  %v2280 = vpop.f32.mrf.mxu0
  %v2281 = vadd.f32 %v283, %v2280
  %v2282 = vpop.f32.mrf.mxu0
  %2283 = vmatprep.mubr.f32.mxu0 0.0
  %2284 = vmatmul.mubr.f32.gmra.mxu0 %v986
  %v2285 = vpop.f32.mrf.mxu0
  %v2286 = vadd.f32 %v283, %v2285
  %v2287 = vpop.f32.mrf.mxu0
  %2288 = vmatprep.mubr.f32.mxu0 0.0
  %2289 = vmatmul.mubr.f32.gmra.mxu0 %v989
  %v2290 = vpop.f32.mrf.mxu0
  %v2291 = vadd.f32 %v283, %v2290
  %v2292 = vpop.f32.mrf.mxu0
  %2293 = vmatprep.mubr.f32.mxu0 0.0
  %2294 = vmatmul.mubr.f32.gmra.mxu0 %v992
  %v2295 = vpop.f32.mrf.mxu0
  %v2296 = vadd.f32 %v283, %v2295
  %v2297 = vpop.f32.mrf.mxu0
  %2298 = vmatprep.mubr.f32.mxu0 0.0
  %2299 = vmatmul.mubr.f32.gmra.mxu0 %v995
  %v2300 = vpop.f32.mrf.mxu0
  %v2301 = vadd.f32 %v283, %v2300
  %v2302 = vpop.f32.mrf.mxu0
  %2303 = vmatprep.mubr.f32.mxu0 0.0
  %2304 = vmatmul.mubr.f32.gmra.mxu0 %v998
  %v2305 = vpop.f32.mrf.mxu0
  %v2306 = vadd.f32 %v283, %v2305
  %v2307 = vpop.f32.mrf.mxu0
  %2308 = vmatprep.mubr.f32.mxu0 0.0
  %2309 = vmatmul.mubr.f32.gmra.mxu0 %v1001
  %v2310 = vpop.f32.mrf.mxu0
  %v2311 = vadd.f32 %v283, %v2310
  %v2312 = vpop.f32.mrf.mxu0
  %2313 = vmatprep.mubr.f32.mxu0 0.0
  %2314 = vmatmul.mubr.f32.gmra.mxu0 %v1004
  %v2315 = vpop.f32.mrf.mxu0
  %v2316 = vadd.f32 %v283, %v2315
  %v2317 = vpop.f32.mrf.mxu0
  %2318 = vmatprep.mubr.f32.mxu0 0.0
  %2319 = vmatmul.mubr.f32.gmra.mxu0 %v1007
  %v2320 = vpop.f32.mrf.mxu0
  %v2321 = vadd.f32 %v283, %v2320
  %v2322 = vpop.f32.mrf.mxu0
  %2323 = vmatprep.mubr.f32.mxu0 0.0
  %2324 = vmatmul.mubr.f32.gmra.mxu0 %v1010
  %v2325 = vpop.f32.mrf.mxu0
  %v2326 = vadd.f32 %v283, %v2325
  %v2327 = vpop.f32.mrf.mxu0
  %2328 = vmatprep.mubr.f32.mxu0 0.0
  %2329 = vmatmul.mubr.f32.gmra.mxu0 %v1013
  %v2330 = vpop.f32.mrf.mxu0
  %v2331 = vadd.f32 %v283, %v2330
  %v2332 = vpop.f32.mrf.mxu0
  %2333 = vmatprep.mubr.f32.mxu0 0.0
  %2334 = vmatmul.mubr.f32.gmra.mxu0 %v1016
  %v2335 = vpop.f32.mrf.mxu0
  %v2336 = vadd.f32 %v283, %v2335
  %v2337 = vpop.f32.mrf.mxu0
  %2338 = vmatprep.mubr.f32.mxu0 0.0
  %2339 = vmatmul.mubr.f32.gmra.mxu0 %v1019
  %v2340 = vpop.f32.mrf.mxu0
  %v2341 = vadd.f32 %v283, %v2340
  %v2342 = vpop.f32.mrf.mxu0
  %2343 = vmatprep.mubr.f32.mxu0 0.0
  %2344 = vmatmul.mubr.f32.gmra.mxu0 %v1022
  %v2345 = vpop.f32.mrf.mxu0
  %v2346 = vadd.f32 %v283, %v2345
  %v2347 = vpop.f32.mrf.mxu0
  %2348 = vmatprep.mubr.f32.mxu0 0.0
  %2349 = vmatmul.mubr.f32.gmra.mxu0 %v1025
  %v2350 = vpop.f32.mrf.mxu0
  %v2351 = vadd.f32 %v283, %v2350
  %v2352 = vpop.f32.mrf.mxu0
  %2353 = vmatprep.mubr.f32.mxu0 0.0
  %2354 = vmatmul.mubr.f32.gmra.mxu0 %v1028
  %v2355 = vpop.f32.mrf.mxu0
  %v2356 = vadd.f32 %v283, %v2355
  %v2357 = vpop.f32.mrf.mxu0
  %2358 = vmatprep.mubr.f32.mxu0 0.0
  %2359 = vmatmul.mubr.f32.gmra.mxu0 %v1031
  %v2360 = vpop.f32.mrf.mxu0
  %v2361 = vadd.f32 %v283, %v2360
  %v2362 = vpop.f32.mrf.mxu0
  %2363 = vmatprep.mubr.f32.mxu0 0.0
  %2364 = vmatmul.mubr.f32.gmra.mxu0 %v1034
  %v2365 = vpop.f32.mrf.mxu0
  %v2366 = vadd.f32 %v283, %v2365
  %v2367 = vpop.f32.mrf.mxu0
  %2368 = vmatprep.mubr.f32.mxu0 0.0
  %2369 = vmatmul.mubr.f32.gmra.mxu0 %v1037
  %v2370 = vpop.f32.mrf.mxu0
  %v2371 = vadd.f32 %v283, %v2370
  %v2372 = vpop.f32.mrf.mxu0
  %2373 = vmatprep.mubr.f32.mxu0 0.0
  %2374 = vmatmul.mubr.f32.gmra.mxu0 %v1040
  %v2375 = vpop.f32.mrf.mxu0
  %v2376 = vadd.f32 %v283, %v2375
  %v2377 = vpop.f32.mrf.mxu0
  %2378 = vmatprep.mubr.f32.mxu0 0.0
  %2379 = vmatmul.mubr.f32.gmra.mxu0 %v1043
  %v2380 = vpop.f32.mrf.mxu0
  %v2381 = vadd.f32 %v283, %v2380
  %v2382 = vpop.f32.mrf.mxu0
  %2383 = vmatprep.mubr.f32.mxu0 0.0
  %2384 = vmatmul.mubr.f32.gmra.mxu0 %v1046
  %v2385 = vpop.f32.mrf.mxu0
  %v2386 = vadd.f32 %v283, %v2385
  %v2387 = vpop.f32.mrf.mxu0
  %2388 = vmatprep.mubr.f32.mxu0 0.0
  %2389 = vmatmul.mubr.f32.gmra.mxu0 %v1049
  %v2390 = vpop.f32.mrf.mxu0
  %v2391 = vadd.f32 %v283, %v2390
  %v2392 = vpop.f32.mrf.mxu0
  %2393 = vmatprep.mubr.f32.mxu0 0.0
  %2394 = vmatmul.mubr.f32.gmra.mxu0 %v1052
  %v2395 = vpop.f32.mrf.mxu0
  %v2396 = vadd.f32 %v283, %v2395
  %v2397 = vpop.f32.mrf.mxu0
  %2398 = vdwg.mxu0
  %v2399 = vmax.f32 %v1121, 0.0
  %v2400 = vmax.f32 %v1126, 0.0
  %v2401 = vmax.f32 %v1131, 0.0
  %v2402 = vmax.f32 %v1136, 0.0
  %v2403 = vmax.f32 %v1141, 0.0
  %v2404 = vmax.f32 %v1146, 0.0
  %v2405 = vmax.f32 %v1151, 0.0
  %v2406 = vmax.f32 %v1156, 0.0
  %v2407 = vmax.f32 %v1161, 0.0
  %v2408 = vmax.f32 %v1166, 0.0
  %v2409 = vmax.f32 %v1171, 0.0
  %v2410 = vmax.f32 %v1176, 0.0
  %v2411 = vmax.f32 %v1181, 0.0
  %v2412 = vmax.f32 %v1186, 0.0
  %v2413 = vmax.f32 %v1191, 0.0
  %v2414 = vmax.f32 %v1196, 0.0
  %v2415 = vmax.f32 %v1201, 0.0
  %v2416 = vmax.f32 %v1206, 0.0
  %v2417 = vmax.f32 %v1211, 0.0
  %v2418 = vmax.f32 %v1216, 0.0
  %v2419 = vmax.f32 %v1221, 0.0
  %v2420 = vmax.f32 %v1226, 0.0
  %v2421 = vmax.f32 %v1231, 0.0
  %v2422 = vmax.f32 %v1236, 0.0
  %v2423 = vmax.f32 %v1241, 0.0
  %v2424 = vmax.f32 %v1246, 0.0
  %v2425 = vmax.f32 %v1251, 0.0
  %v2426 = vmax.f32 %v1256, 0.0
  %v2427 = vmax.f32 %v1261, 0.0
  %v2428 = vmax.f32 %v1266, 0.0
  %v2429 = vmax.f32 %v1271, 0.0
  %v2430 = vmax.f32 %v1276, 0.0
  %v2431 = vmax.f32 %v1281, 0.0
  %v2432 = vmax.f32 %v1286, 0.0
  %v2433 = vmax.f32 %v1291, 0.0
  %v2434 = vmax.f32 %v1296, 0.0
  %v2435 = vmax.f32 %v1301, 0.0
  %v2436 = vmax.f32 %v1306, 0.0
  %v2437 = vmax.f32 %v1311, 0.0
  %v2438 = vmax.f32 %v1316, 0.0
  %v2439 = vmax.f32 %v1321, 0.0
  %v2440 = vmax.f32 %v1326, 0.0
  %v2441 = vmax.f32 %v1331, 0.0
  %v2442 = vmax.f32 %v1336, 0.0
  %v2443 = vmax.f32 %v1341, 0.0
  %v2444 = vmax.f32 %v1346, 0.0
  %v2445 = vmax.f32 %v1351, 0.0
  %v2446 = vmax.f32 %v1356, 0.0
  %v2447 = vmax.f32 %v1361, 0.0
  %v2448 = vmax.f32 %v1366, 0.0
  %v2449 = vmax.f32 %v1371, 0.0
  %v2450 = vmax.f32 %v1376, 0.0
  %v2451 = vmax.f32 %v1381, 0.0
  %v2452 = vmax.f32 %v1386, 0.0
  %v2453 = vmax.f32 %v1391, 0.0
  %v2454 = vmax.f32 %v1396, 0.0
  %v2455 = vmax.f32 %v1401, 0.0
  %v2456 = vmax.f32 %v1406, 0.0
  %v2457 = vmax.f32 %v1411, 0.0
  %v2458 = vmax.f32 %v1416, 0.0
  %v2459 = vmax.f32 %v1421, 0.0
  %v2460 = vmax.f32 %v1426, 0.0
  %v2461 = vmax.f32 %v1431, 0.0
  %v2462 = vmax.f32 %v1436, 0.0
  %v2463 = vmax.f32 %v1441, 0.0
  %v2464 = vmax.f32 %v1446, 0.0
  %v2465 = vmax.f32 %v1451, 0.0
  %v2466 = vmax.f32 %v1456, 0.0
  %v2467 = vmax.f32 %v1461, 0.0
  %v2468 = vmax.f32 %v1466, 0.0
  %v2469 = vmax.f32 %v1471, 0.0
  %v2470 = vmax.f32 %v1476, 0.0
  %v2471 = vmax.f32 %v1481, 0.0
  %v2472 = vmax.f32 %v1486, 0.0
  %v2473 = vmax.f32 %v1491, 0.0
  %v2474 = vmax.f32 %v1496, 0.0
  %v2475 = vmax.f32 %v1501, 0.0
  %v2476 = vmax.f32 %v1506, 0.0
  %v2477 = vmax.f32 %v1511, 0.0
  %v2478 = vmax.f32 %v1516, 0.0
  %v2479 = vmax.f32 %v1521, 0.0
  %v2480 = vmax.f32 %v1526, 0.0
  %v2481 = vmax.f32 %v1531, 0.0
  %v2482 = vmax.f32 %v1536, 0.0
  %v2483 = vmax.f32 %v1541, 0.0
  %v2484 = vmax.f32 %v1546, 0.0
  %v2485 = vmax.f32 %v1551, 0.0
  %v2486 = vmax.f32 %v1556, 0.0
  %v2487 = vmax.f32 %v1561, 0.0
  %v2488 = vmax.f32 %v1566, 0.0
  %v2489 = vmax.f32 %v1571, 0.0
  %v2490 = vmax.f32 %v1576, 0.0
  %v2491 = vmax.f32 %v1581, 0.0
  %v2492 = vmax.f32 %v1586, 0.0
  %v2493 = vmax.f32 %v1591, 0.0
  %v2494 = vmax.f32 %v1596, 0.0
  %v2495 = vmax.f32 %v1601, 0.0
  %v2496 = vmax.f32 %v1606, 0.0
  %v2497 = vmax.f32 %v1611, 0.0
  %v2498 = vmax.f32 %v1616, 0.0
  %v2499 = vmax.f32 %v1621, 0.0
  %v2500 = vmax.f32 %v1626, 0.0
  %v2501 = vmax.f32 %v1631, 0.0
  %v2502 = vmax.f32 %v1636, 0.0
  %v2503 = vmax.f32 %v1641, 0.0
  %v2504 = vmax.f32 %v1646, 0.0
  %v2505 = vmax.f32 %v1651, 0.0
  %v2506 = vmax.f32 %v1656, 0.0
  %v2507 = vmax.f32 %v1661, 0.0
  %v2508 = vmax.f32 %v1666, 0.0
  %v2509 = vmax.f32 %v1671, 0.0
  %v2510 = vmax.f32 %v1676, 0.0
  %v2511 = vmax.f32 %v1681, 0.0
  %v2512 = vmax.f32 %v1686, 0.0
  %v2513 = vmax.f32 %v1691, 0.0
  %v2514 = vmax.f32 %v1696, 0.0
  %v2515 = vmax.f32 %v1701, 0.0
  %v2516 = vmax.f32 %v1706, 0.0
  %v2517 = vmax.f32 %v1711, 0.0
  %v2518 = vmax.f32 %v1716, 0.0
  %v2519 = vmax.f32 %v1721, 0.0
  %v2520 = vmax.f32 %v1726, 0.0
  %v2521 = vmax.f32 %v1731, 0.0
  %v2522 = vmax.f32 %v1736, 0.0
  %v2523 = vmax.f32 %v1741, 0.0
  %v2524 = vmax.f32 %v1746, 0.0
  %v2525 = vmax.f32 %v1751, 0.0
  %v2526 = vmax.f32 %v1756, 0.0
  %v2527 = vmax.f32 %v1761, 0.0
  %v2528 = vmax.f32 %v1766, 0.0
  %v2529 = vmax.f32 %v1771, 0.0
  %v2530 = vmax.f32 %v1776, 0.0
  %v2531 = vmax.f32 %v1781, 0.0
  %v2532 = vmax.f32 %v1786, 0.0
  %v2533 = vmax.f32 %v1791, 0.0
  %v2534 = vmax.f32 %v1796, 0.0
  %v2535 = vmax.f32 %v1801, 0.0
  %v2536 = vmax.f32 %v1806, 0.0
  %v2537 = vmax.f32 %v1811, 0.0
  %v2538 = vmax.f32 %v1816, 0.0
  %v2539 = vmax.f32 %v1821, 0.0
  %v2540 = vmax.f32 %v1826, 0.0
  %v2541 = vmax.f32 %v1831, 0.0
  %v2542 = vmax.f32 %v1836, 0.0
  %v2543 = vmax.f32 %v1841, 0.0
  %v2544 = vmax.f32 %v1846, 0.0
  %v2545 = vmax.f32 %v1851, 0.0
  %v2546 = vmax.f32 %v1856, 0.0
  %v2547 = vmax.f32 %v1861, 0.0
  %v2548 = vmax.f32 %v1866, 0.0
  %v2549 = vmax.f32 %v1871, 0.0
  %v2550 = vmax.f32 %v1876, 0.0
  %v2551 = vmax.f32 %v1881, 0.0
  %v2552 = vmax.f32 %v1886, 0.0
  %v2553 = vmax.f32 %v1891, 0.0
  %v2554 = vmax.f32 %v1896, 0.0
  %v2555 = vmax.f32 %v1901, 0.0
  %v2556 = vmax.f32 %v1906, 0.0
  %v2557 = vmax.f32 %v1911, 0.0
  %v2558 = vmax.f32 %v1916, 0.0
  %v2559 = vmax.f32 %v1921, 0.0
  %v2560 = vmax.f32 %v1926, 0.0
  %v2561 = vmax.f32 %v1931, 0.0
  %v2562 = vmax.f32 %v1936, 0.0
  %v2563 = vmax.f32 %v1941, 0.0
  %v2564 = vmax.f32 %v1946, 0.0
  %v2565 = vmax.f32 %v1951, 0.0
  %v2566 = vmax.f32 %v1956, 0.0
  %v2567 = vmax.f32 %v1961, 0.0
  %v2568 = vmax.f32 %v1966, 0.0
  %v2569 = vmax.f32 %v1971, 0.0
  %v2570 = vmax.f32 %v1976, 0.0
  %v2571 = vmax.f32 %v1981, 0.0
  %v2572 = vmax.f32 %v1986, 0.0
  %v2573 = vmax.f32 %v1991, 0.0
  %v2574 = vmax.f32 %v1996, 0.0
  %v2575 = vmax.f32 %v2001, 0.0
  %v2576 = vmax.f32 %v2006, 0.0
  %v2577 = vmax.f32 %v2011, 0.0
  %v2578 = vmax.f32 %v2016, 0.0
  %v2579 = vmax.f32 %v2021, 0.0
  %v2580 = vmax.f32 %v2026, 0.0
  %v2581 = vmax.f32 %v2031, 0.0
  %v2582 = vmax.f32 %v2036, 0.0
  %v2583 = vmax.f32 %v2041, 0.0
  %v2584 = vmax.f32 %v2046, 0.0
  %v2585 = vmax.f32 %v2051, 0.0
  %v2586 = vmax.f32 %v2056, 0.0
  %v2587 = vmax.f32 %v2061, 0.0
  %v2588 = vmax.f32 %v2066, 0.0
  %v2589 = vmax.f32 %v2071, 0.0
  %v2590 = vmax.f32 %v2076, 0.0
  %v2591 = vmax.f32 %v2081, 0.0
  %v2592 = vmax.f32 %v2086, 0.0
  %v2593 = vmax.f32 %v2091, 0.0
  %v2594 = vmax.f32 %v2096, 0.0
  %v2595 = vmax.f32 %v2101, 0.0
  %v2596 = vmax.f32 %v2106, 0.0
  %v2597 = vmax.f32 %v2111, 0.0
  %v2598 = vmax.f32 %v2116, 0.0
  %v2599 = vmax.f32 %v2121, 0.0
  %v2600 = vmax.f32 %v2126, 0.0
  %v2601 = vmax.f32 %v2131, 0.0
  %v2602 = vmax.f32 %v2136, 0.0
  %v2603 = vmax.f32 %v2141, 0.0
  %v2604 = vmax.f32 %v2146, 0.0
  %v2605 = vmax.f32 %v2151, 0.0
  %v2606 = vmax.f32 %v2156, 0.0
  %v2607 = vmax.f32 %v2161, 0.0
  %v2608 = vmax.f32 %v2166, 0.0
  %v2609 = vmax.f32 %v2171, 0.0
  %v2610 = vmax.f32 %v2176, 0.0
  %v2611 = vmax.f32 %v2181, 0.0
  %v2612 = vmax.f32 %v2186, 0.0
  %v2613 = vmax.f32 %v2191, 0.0
  %v2614 = vmax.f32 %v2196, 0.0
  %v2615 = vmax.f32 %v2201, 0.0
  %v2616 = vmax.f32 %v2206, 0.0
  %v2617 = vmax.f32 %v2211, 0.0
  %v2618 = vmax.f32 %v2216, 0.0
  %v2619 = vmax.f32 %v2221, 0.0
  %v2620 = vmax.f32 %v2226, 0.0
  %v2621 = vmax.f32 %v2231, 0.0
  %v2622 = vmax.f32 %v2236, 0.0
  %v2623 = vmax.f32 %v2241, 0.0
  %v2624 = vmax.f32 %v2246, 0.0
  %v2625 = vmax.f32 %v2251, 0.0
  %v2626 = vmax.f32 %v2256, 0.0
  %v2627 = vmax.f32 %v2261, 0.0
  %v2628 = vmax.f32 %v2266, 0.0
  %v2629 = vmax.f32 %v2271, 0.0
  %v2630 = vmax.f32 %v2276, 0.0
  %v2631 = vmax.f32 %v2281, 0.0
  %v2632 = vmax.f32 %v2286, 0.0
  %v2633 = vmax.f32 %v2291, 0.0
  %v2634 = vmax.f32 %v2296, 0.0
  %v2635 = vmax.f32 %v2301, 0.0
  %v2636 = vmax.f32 %v2306, 0.0
  %v2637 = vmax.f32 %v2311, 0.0
  %v2638 = vmax.f32 %v2316, 0.0
  %v2639 = vmax.f32 %v2321, 0.0
  %v2640 = vmax.f32 %v2326, 0.0
  %v2641 = vmax.f32 %v2331, 0.0
  %v2642 = vmax.f32 %v2336, 0.0
  %v2643 = vmax.f32 %v2341, 0.0
  %v2644 = vmax.f32 %v2346, 0.0
  %v2645 = vmax.f32 %v2351, 0.0
  %v2646 = vmax.f32 %v2356, 0.0
  %v2647 = vmax.f32 %v2361, 0.0
  %v2648 = vmax.f32 %v2366, 0.0
  %v2649 = vmax.f32 %v2371, 0.0
  %v2650 = vmax.f32 %v2376, 0.0
  %v2651 = vmax.f32 %v2381, 0.0
  %v2652 = vmax.f32 %v2386, 0.0
  %v2653 = vmax.f32 %v2391, 0.0
  %v2654 = vmax.f32 %v2396, 0.0
  %v2655 = vmax.f32 %v2399, %v2407
  %v2656 = vmax.f32 %v2400, %v2408
  %v2657 = vmax.f32 %v2401, %v2409
  %v2658 = vmax.f32 %v2402, %v2410
  %v2659 = vmax.f32 %v2403, %v2411
  %v2660 = vmax.f32 %v2404, %v2412
  %v2661 = vmax.f32 %v2405, %v2413
  %v2662 = vmax.f32 %v2406, %v2414
  %v2663 = vmax.f32 %v2431, %v2439
  %v2664 = vmax.f32 %v2432, %v2440
  %v2665 = vmax.f32 %v2433, %v2441
  %v2666 = vmax.f32 %v2434, %v2442
  %v2667 = vmax.f32 %v2435, %v2443
  %v2668 = vmax.f32 %v2436, %v2444
  %v2669 = vmax.f32 %v2437, %v2445
  %v2670 = vmax.f32 %v2438, %v2446
  %v2671 = vmax.f32 %v2463, %v2471
  %v2672 = vmax.f32 %v2464, %v2472
  %v2673 = vmax.f32 %v2465, %v2473
  %v2674 = vmax.f32 %v2466, %v2474
  %v2675 = vmax.f32 %v2467, %v2475
  %v2676 = vmax.f32 %v2468, %v2476
  %v2677 = vmax.f32 %v2469, %v2477
  %v2678 = vmax.f32 %v2470, %v2478
  %v2679 = vmax.f32 %v2495, %v2503
  %v2680 = vmax.f32 %v2496, %v2504
  %v2681 = vmax.f32 %v2497, %v2505
  %v2682 = vmax.f32 %v2498, %v2506
  %v2683 = vmax.f32 %v2499, %v2507
  %v2684 = vmax.f32 %v2500, %v2508
  %v2685 = vmax.f32 %v2501, %v2509
  %v2686 = vmax.f32 %v2502, %v2510
  %v2687 = vmax.f32 %v2527, %v2535
  %v2688 = vmax.f32 %v2528, %v2536
  %v2689 = vmax.f32 %v2529, %v2537
  %v2690 = vmax.f32 %v2530, %v2538
  %v2691 = vmax.f32 %v2531, %v2539
  %v2692 = vmax.f32 %v2532, %v2540
  %v2693 = vmax.f32 %v2533, %v2541
  %v2694 = vmax.f32 %v2534, %v2542
  %v2695 = vmax.f32 %v2559, %v2567
  %v2696 = vmax.f32 %v2560, %v2568
  %v2697 = vmax.f32 %v2561, %v2569
  %v2698 = vmax.f32 %v2562, %v2570
  %v2699 = vmax.f32 %v2563, %v2571
  %v2700 = vmax.f32 %v2564, %v2572
  %v2701 = vmax.f32 %v2565, %v2573
  %v2702 = vmax.f32 %v2566, %v2574
  %v2703 = vmax.f32 %v2591, %v2599
  %v2704 = vmax.f32 %v2592, %v2600
  %v2705 = vmax.f32 %v2593, %v2601
  %v2706 = vmax.f32 %v2594, %v2602
  %v2707 = vmax.f32 %v2595, %v2603
  %v2708 = vmax.f32 %v2596, %v2604
  %v2709 = vmax.f32 %v2597, %v2605
  %v2710 = vmax.f32 %v2598, %v2606
  %v2711 = vmax.f32 %v2623, %v2631
  %v2712 = vmax.f32 %v2624, %v2632
  %v2713 = vmax.f32 %v2625, %v2633
  %v2714 = vmax.f32 %v2626, %v2634
  %v2715 = vmax.f32 %v2627, %v2635
  %v2716 = vmax.f32 %v2628, %v2636
  %v2717 = vmax.f32 %v2629, %v2637
  %v2718 = vmax.f32 %v2630, %v2638
  %v2719 = vmax.f32 %v2415, %v2423
  %v2720 = vmax.f32 %v2416, %v2424
  %v2721 = vmax.f32 %v2417, %v2425
  %v2722 = vmax.f32 %v2418, %v2426
  %v2723 = vmax.f32 %v2419, %v2427
  %v2724 = vmax.f32 %v2420, %v2428
  %v2725 = vmax.f32 %v2421, %v2429
  %v2726 = vmax.f32 %v2422, %v2430
  %v2727 = vmax.f32 %v2447, %v2455
  %v2728 = vmax.f32 %v2448, %v2456
  %v2729 = vmax.f32 %v2449, %v2457
  %v2730 = vmax.f32 %v2450, %v2458
  %v2731 = vmax.f32 %v2451, %v2459
  %v2732 = vmax.f32 %v2452, %v2460
  %v2733 = vmax.f32 %v2453, %v2461
  %v2734 = vmax.f32 %v2454, %v2462
  %v2735 = vmax.f32 %v2479, %v2487
  %v2736 = vmax.f32 %v2480, %v2488
  %v2737 = vmax.f32 %v2481, %v2489
  %v2738 = vmax.f32 %v2482, %v2490
  %v2739 = vmax.f32 %v2483, %v2491
  %v2740 = vmax.f32 %v2484, %v2492
  %v2741 = vmax.f32 %v2485, %v2493
  %v2742 = vmax.f32 %v2486, %v2494
  %v2743 = vmax.f32 %v2511, %v2519
  %v2744 = vmax.f32 %v2512, %v2520
  %v2745 = vmax.f32 %v2513, %v2521
  %v2746 = vmax.f32 %v2514, %v2522
  %v2747 = vmax.f32 %v2515, %v2523
  %v2748 = vmax.f32 %v2516, %v2524
  %v2749 = vmax.f32 %v2517, %v2525
  %v2750 = vmax.f32 %v2518, %v2526
  %v2751 = vmax.f32 %v2543, %v2551
  %v2752 = vmax.f32 %v2544, %v2552
  %v2753 = vmax.f32 %v2545, %v2553
  %v2754 = vmax.f32 %v2546, %v2554
  %v2755 = vmax.f32 %v2547, %v2555
  %v2756 = vmax.f32 %v2548, %v2556
  %v2757 = vmax.f32 %v2549, %v2557
  %v2758 = vmax.f32 %v2550, %v2558
  %v2759 = vmax.f32 %v2575, %v2583
  %v2760 = vmax.f32 %v2576, %v2584
  %v2761 = vmax.f32 %v2577, %v2585
  %v2762 = vmax.f32 %v2578, %v2586
  %v2763 = vmax.f32 %v2579, %v2587
  %v2764 = vmax.f32 %v2580, %v2588
  %v2765 = vmax.f32 %v2581, %v2589
  %v2766 = vmax.f32 %v2582, %v2590
  %v2767 = vmax.f32 %v2607, %v2615
  %v2768 = vmax.f32 %v2608, %v2616
  %v2769 = vmax.f32 %v2609, %v2617
  %v2770 = vmax.f32 %v2610, %v2618
  %v2771 = vmax.f32 %v2611, %v2619
  %v2772 = vmax.f32 %v2612, %v2620
  %v2773 = vmax.f32 %v2613, %v2621
  %v2774 = vmax.f32 %v2614, %v2622
  %v2775 = vmax.f32 %v2639, %v2647
  %v2776 = vmax.f32 %v2640, %v2648
  %v2777 = vmax.f32 %v2641, %v2649
  %v2778 = vmax.f32 %v2642, %v2650
  %v2779 = vmax.f32 %v2643, %v2651
  %v2780 = vmax.f32 %v2644, %v2652
  %v2781 = vmax.f32 %v2645, %v2653
  %v2782 = vmax.f32 %v2646, %v2654
  %v2783 = vmax.f32 %v2655, %v2719
  %v2784 = vmax.f32 %v2656, %v2720
  %v2785 = vmax.f32 %v2657, %v2721
  %v2786 = vmax.f32 %v2658, %v2722
  %v2787 = vmax.f32 %v2659, %v2723
  %v2788 = vmax.f32 %v2660, %v2724
  %v2789 = vmax.f32 %v2661, %v2725
  %v2790 = vmax.f32 %v2662, %v2726
  %v2791 = vmax.f32 %v2663, %v2727
  %v2792 = vmax.f32 %v2664, %v2728
  %v2793 = vmax.f32 %v2665, %v2729
  %v2794 = vmax.f32 %v2666, %v2730
  %v2795 = vmax.f32 %v2667, %v2731
  %v2796 = vmax.f32 %v2668, %v2732
  %v2797 = vmax.f32 %v2669, %v2733
  %v2798 = vmax.f32 %v2670, %v2734
  %v2799 = vmax.f32 %v2671, %v2735
  %v2800 = vmax.f32 %v2672, %v2736
  %v2801 = vmax.f32 %v2673, %v2737
  %v2802 = vmax.f32 %v2674, %v2738
  %v2803 = vmax.f32 %v2675, %v2739
  %v2804 = vmax.f32 %v2676, %v2740
  %v2805 = vmax.f32 %v2677, %v2741
  %v2806 = vmax.f32 %v2678, %v2742
  %v2807 = vmax.f32 %v2679, %v2743
  %v2808 = vmax.f32 %v2680, %v2744
  %v2809 = vmax.f32 %v2681, %v2745
  %v2810 = vmax.f32 %v2682, %v2746
  %v2811 = vmax.f32 %v2683, %v2747
  %v2812 = vmax.f32 %v2684, %v2748
  %v2813 = vmax.f32 %v2685, %v2749
  %v2814 = vmax.f32 %v2686, %v2750
  %v2815 = vmax.f32 %v2687, %v2751
  %v2816 = vmax.f32 %v2688, %v2752
  %v2817 = vmax.f32 %v2689, %v2753
  %v2818 = vmax.f32 %v2690, %v2754
  %v2819 = vmax.f32 %v2691, %v2755
  %v2820 = vmax.f32 %v2692, %v2756
  %v2821 = vmax.f32 %v2693, %v2757
  %v2822 = vmax.f32 %v2694, %v2758
  %v2823 = vmax.f32 %v2695, %v2759
  %v2824 = vmax.f32 %v2696, %v2760
  %v2825 = vmax.f32 %v2697, %v2761
  %v2826 = vmax.f32 %v2698, %v2762
  %v2827 = vmax.f32 %v2699, %v2763
  %v2828 = vmax.f32 %v2700, %v2764
  %v2829 = vmax.f32 %v2701, %v2765
  %v2830 = vmax.f32 %v2702, %v2766
  %v2831 = vmax.f32 %v2703, %v2767
  %v2832 = vmax.f32 %v2704, %v2768
  %v2833 = vmax.f32 %v2705, %v2769
  %v2834 = vmax.f32 %v2706, %v2770
  %v2835 = vmax.f32 %v2707, %v2771
  %v2836 = vmax.f32 %v2708, %v2772
  %v2837 = vmax.f32 %v2709, %v2773
  %v2838 = vmax.f32 %v2710, %v2774
  %v2839 = vmax.f32 %v2711, %v2775
  %v2840 = vmax.f32 %v2712, %v2776
  %v2841 = vmax.f32 %v2713, %v2777
  %v2842 = vmax.f32 %v2714, %v2778
  %v2843 = vmax.f32 %v2715, %v2779
  %v2844 = vmax.f32 %v2716, %v2780
  %v2845 = vmax.f32 %v2717, %v2781
  %v2846 = vmax.f32 %v2718, %v2782
  %2847 = vst [vmem:[#allocation2] sm:$0xff] 0.0
  %vm2848 = vcmask 523264
  %2849 = vst.msk [vmem:[#allocation2 + $0x8] sm:$0xff] %vm2848, 0.0
  %2850 = vst [vmem:[#allocation2 + $0x10] sm:$0xff] 0.0
  %2851 = vst.msk [vmem:[#allocation2 + $0x18] sm:$0xff] %vm2848, 0.0
  %2852 = vst [vmem:[#allocation2 + $0x20] sm:$0xff] 0.0
  %2853 = vst.msk [vmem:[#allocation2 + $0x28] sm:$0xff] %vm2848, 0.0
  %2854 = vst [vmem:[#allocation2 + $0x30] sm:$0xff] 0.0
  %2855 = vst.msk [vmem:[#allocation2 + $0x38] sm:$0xff] %vm2848, 0.0
  %2856 = vst [vmem:[#allocation2 + $0x40] sm:$0xff] 0.0
  %2857 = vst.msk [vmem:[#allocation2 + $0x48] sm:$0xff] %vm2848, 0.0
  %2858 = vst [vmem:[#allocation2 + $0x50] sm:$0xff] 0.0
  %2859 = vst.msk [vmem:[#allocation2 + $0x58] sm:$0xff] %vm2848, 0.0
  %2860 = vst [vmem:[#allocation2 + $0x60] sm:$0xff] 0.0
  %2861 = vst.msk [vmem:[#allocation2 + $0x68] sm:$0xff] %vm2848, 0.0
  %2862 = vst [vmem:[#allocation2 + $0x70] sm:$0xff] 0.0
  %2863 = vst.msk [vmem:[#allocation2 + $0x78] sm:$0xff] %vm2848, 0.0
  %2864 = vst [vmem:[#allocation2 + $0x80] sm:$0xff] 0.0
  %2865 = vst.msk [vmem:[#allocation2 + $0x88] sm:$0xff] %vm2848, 0.0
  %2866 = vst [vmem:[#allocation2 + $0x90] sm:$0xff] 0.0
  %2867 = vst.msk [vmem:[#allocation2 + $0x98] sm:$0xff] %vm2848, 0.0
  %2868 = vst [vmem:[#allocation2 + $0xa0] sm:$0xff] 0.0
  %2869 = vst.msk [vmem:[#allocation2 + $0xa8] sm:$0xff] %vm2848, 0.0
  %2870 = vst [vmem:[#allocation2 + $0xb0] sm:$0xff] 0.0
  %2871 = vst.msk [vmem:[#allocation2 + $0xb8] sm:$0xff] %vm2848, 0.0
  %2872 = vst [vmem:[#allocation2 + $0xc0] sm:$0xff] 0.0
  %2873 = vst.msk [vmem:[#allocation2 + $0xc8] sm:$0xff] %vm2848, 0.0
  %2874 = vst [vmem:[#allocation2 + $0xd0] sm:$0xff] 0.0
  %2875 = vst.msk [vmem:[#allocation2 + $0xd8] sm:$0xff] %vm2848, 0.0
  %2876 = vst [vmem:[#allocation2 + $0xe0] sm:$0xff] 0.0
  %2877 = vst.msk [vmem:[#allocation2 + $0xe8] sm:$0xff] %vm2848, 0.0
  %2878 = vst [vmem:[#allocation2 + $0xf0] sm:$0xff] 0.0
  %2879 = vst.msk [vmem:[#allocation2 + $0xf8] sm:$0xff] %vm2848, 0.0
  %2880 = vst [vmem:[#allocation2 + $0x100] sm:$0xff] 0.0
  %2881 = vst.msk [vmem:[#allocation2 + $0x108] sm:$0xff] %vm2848, 0.0
  %2882 = vst [vmem:[#allocation2 + $0x110] sm:$0xff] 0.0
  %2883 = vst.msk [vmem:[#allocation2 + $0x118] sm:$0xff] %vm2848, 0.0
  %2884 = vst [vmem:[#allocation2 + $0x120] sm:$0xff] 0.0
  %2885 = vst.msk [vmem:[#allocation2 + $0x128] sm:$0xff] %vm2848, 0.0
  %2886 = vst [vmem:[#allocation2 + $0x130] sm:$0xff] 0.0
  %2887 = vst.msk [vmem:[#allocation2 + $0x138] sm:$0xff] %vm2848, 0.0
  %2888 = vst [vmem:[#allocation2 + $0x140] sm:$0xff] 0.0
  %2889 = vst.msk [vmem:[#allocation2 + $0x148] sm:$0xff] %vm2848, 0.0
  %2890 = vst [vmem:[#allocation2 + $0x150] sm:$0xff] 0.0
  %2891 = vst.msk [vmem:[#allocation2 + $0x158] sm:$0xff] %vm2848, 0.0
  %2892 = vst [vmem:[#allocation2 + $0x160] sm:$0xff] 0.0
  %2893 = vst.msk [vmem:[#allocation2 + $0x168] sm:$0xff] %vm2848, 0.0
  %2894 = vst [vmem:[#allocation2 + $0x170] sm:$0xff] 0.0
  %2895 = vst.msk [vmem:[#allocation2 + $0x178] sm:$0xff] %vm2848, 0.0
  %2896 = vst [vmem:[#allocation2 + $0x180] sm:$0xff] 0.0
  %2897 = vst.msk [vmem:[#allocation2 + $0x188] sm:$0xff] %vm2848, 0.0
  %2898 = vst [vmem:[#allocation2 + $0x190] sm:$0xff] 0.0
  %2899 = vst.msk [vmem:[#allocation2 + $0x198] sm:$0xff] %vm2848, 0.0
  %2900 = vst [vmem:[#allocation2 + $0x1a0] sm:$0xff] 0.0
  %2901 = vst.msk [vmem:[#allocation2 + $0x1a8] sm:$0xff] %vm2848, 0.0
  %2902 = vst [vmem:[#allocation2 + $0x1b0] sm:$0xff] 0.0
  %2903 = vst.msk [vmem:[#allocation2 + $0x1b8] sm:$0xff] %vm2848, 0.0
  %2904 = vst [vmem:[#allocation2 + $0x1c0] sm:$0xff] 0.0
  %2905 = vst.msk [vmem:[#allocation2 + $0x1c8] sm:$0xff] %vm2848, 0.0
  %2906 = vst [vmem:[#allocation2 + $0x1d0] sm:$0xff] 0.0
  %2907 = vst.msk [vmem:[#allocation2 + $0x1d8] sm:$0xff] %vm2848, 0.0
  %2908 = vst [vmem:[#allocation2 + $0x1e0] sm:$0xff] 0.0
  %2909 = vst.msk [vmem:[#allocation2 + $0x1e8] sm:$0xff] %vm2848, 0.0
  %2910 = vst [vmem:[#allocation2 + $0x1f0] sm:$0xff] 0.0
  %2911 = vst.msk [vmem:[#allocation2 + $0x1f8] sm:$0xff] %vm2848, 0.0
  %2912 = vst [vmem:[#allocation2 + $0x200] sm:$0xff] 0.0
  %2913 = vst.msk [vmem:[#allocation2 + $0x208] sm:$0xff] %vm2848, 0.0
  %2914 = vst [vmem:[#allocation2 + $0x210] sm:$0xff] 0.0
  %2915 = vst.msk [vmem:[#allocation2 + $0x218] sm:$0xff] %vm2848, 0.0
  %2916 = vst [vmem:[#allocation2 + $0x220] sm:$0xff] 0.0
  %2917 = vst.msk [vmem:[#allocation2 + $0x228] sm:$0xff] %vm2848, 0.0
  %2918 = vst [vmem:[#allocation2 + $0x230] sm:$0xff] 0.0
  %2919 = vst.msk [vmem:[#allocation2 + $0x238] sm:$0xff] %vm2848, 0.0
  %2920 = vst [vmem:[#allocation2 + $0x240] sm:$0xff] 0.0
  %2921 = vst.msk [vmem:[#allocation2 + $0x248] sm:$0xff] %vm2848, 0.0
  %2922 = vst [vmem:[#allocation2 + $0x250] sm:$0xff] 0.0
  %2923 = vst.msk [vmem:[#allocation2 + $0x258] sm:$0xff] %vm2848, 0.0
  %2924 = vst [vmem:[#allocation2 + $0x260] sm:$0xff] 0.0
  %2925 = vst.msk [vmem:[#allocation2 + $0x268] sm:$0xff] %vm2848, 0.0
  %2926 = vst [vmem:[#allocation2 + $0x270] sm:$0xff] 0.0
  %2927 = vst.msk [vmem:[#allocation2 + $0x278] sm:$0xff] %vm2848, 0.0
  %2928 = vst [vmem:[#allocation2 + $0x280] sm:$0xff] 0.0
  %2929 = vst.msk [vmem:[#allocation2 + $0x288] sm:$0xff] %vm2848, 0.0
  %2930 = vst [vmem:[#allocation2 + $0x290] sm:$0xff] 0.0
  %2931 = vst.msk [vmem:[#allocation2 + $0x298] sm:$0xff] %vm2848, 0.0
  %2932 = vst [vmem:[#allocation2 + $0x2a0] sm:$0xff] 0.0
  %2933 = vst.msk [vmem:[#allocation2 + $0x2a8] sm:$0xff] %vm2848, 0.0
  %2934 = vst [vmem:[#allocation2 + $0x2b0] sm:$0xff] 0.0
  %2935 = vst.msk [vmem:[#allocation2 + $0x2b8] sm:$0xff] %vm2848, 0.0
  %2936 = vst [vmem:[#allocation2 + $0x2c0] sm:$0xff] 0.0
  %2937 = vst.msk [vmem:[#allocation2 + $0x2c8] sm:$0xff] %vm2848, 0.0
  %2938 = vst [vmem:[#allocation2 + $0x2d0] sm:$0xff] 0.0
  %2939 = vst.msk [vmem:[#allocation2 + $0x2d8] sm:$0xff] %vm2848, 0.0
  %2940 = vst [vmem:[#allocation2 + $0x2e0] sm:$0xff] 0.0
  %2941 = vst.msk [vmem:[#allocation2 + $0x2e8] sm:$0xff] %vm2848, 0.0
  %2942 = vst [vmem:[#allocation2 + $0x2f0] sm:$0xff] 0.0
  %2943 = vst.msk [vmem:[#allocation2 + $0x2f8] sm:$0xff] %vm2848, 0.0
  %2944 = vst [vmem:[#allocation2 + $0x300] sm:$0xff] 0.0
  %2945 = vst.msk [vmem:[#allocation2 + $0x308] sm:$0xff] %vm2848, 0.0
  %2946 = vst [vmem:[#allocation2 + $0x310] sm:$0xff] 0.0
  %2947 = vst.msk [vmem:[#allocation2 + $0x318] sm:$0xff] %vm2848, 0.0
  %2948 = vst [vmem:[#allocation2 + $0x320] sm:$0xff] 0.0
  %2949 = vst.msk [vmem:[#allocation2 + $0x328] sm:$0xff] %vm2848, 0.0
  %2950 = vst [vmem:[#allocation2 + $0x330] sm:$0xff] 0.0
  %2951 = vst.msk [vmem:[#allocation2 + $0x338] sm:$0xff] %vm2848, 0.0
  %2952 = vst [vmem:[#allocation2 + $0x340] sm:$0xff] 0.0
  %2953 = vst.msk [vmem:[#allocation2 + $0x348] sm:$0xff] %vm2848, 0.0
  %2954 = vst [vmem:[#allocation2 + $0x350] sm:$0xff] 0.0
  %2955 = vst.msk [vmem:[#allocation2 + $0x358] sm:$0xff] %vm2848, 0.0
  %2956 = vst [vmem:[#allocation2 + $0x360] sm:$0xff] 0.0
  %2957 = vst.msk [vmem:[#allocation2 + $0x368] sm:$0xff] %vm2848, 0.0
  %2958 = vst [vmem:[#allocation2 + $0x370] sm:$0xff] 0.0
  %2959 = vst.msk [vmem:[#allocation2 + $0x378] sm:$0xff] %vm2848, 0.0
  %2960 = vst [vmem:[#allocation2 + $0x380] sm:$0xff] 0.0
  %2961 = vst.msk [vmem:[#allocation2 + $0x388] sm:$0xff] %vm2848, 0.0
  %2962 = vst [vmem:[#allocation2 + $0x390] sm:$0xff] 0.0
  %2963 = vst.msk [vmem:[#allocation2 + $0x398] sm:$0xff] %vm2848, 0.0
  %2964 = vst [vmem:[#allocation2 + $0x3a0] sm:$0xff] 0.0
  %2965 = vst.msk [vmem:[#allocation2 + $0x3a8] sm:$0xff] %vm2848, 0.0
  %2966 = vst [vmem:[#allocation2 + $0x3b0] sm:$0xff] 0.0
  %2967 = vst.msk [vmem:[#allocation2 + $0x3b8] sm:$0xff] %vm2848, 0.0
  %2968 = vst [vmem:[#allocation2 + $0x3c0] sm:$0xff] 0.0
  %2969 = vst.msk [vmem:[#allocation2 + $0x3c8] sm:$0xff] %vm2848, 0.0
  %2970 = vst [vmem:[#allocation2 + $0x3d0] sm:$0xff] 0.0
  %2971 = vst.msk [vmem:[#allocation2 + $0x3d8] sm:$0xff] %vm2848, 0.0
  %2972 = vst [vmem:[#allocation2 + $0x3e0] sm:$0xff] 0.0
  %2973 = vst.msk [vmem:[#allocation2 + $0x3e8] sm:$0xff] %vm2848, 0.0
  %2974 = vst [vmem:[#allocation2 + $0x3f0] sm:$0xff] 0.0
  %2975 = vst.msk [vmem:[#allocation2 + $0x3f8] sm:$0xff] %vm2848, 0.0
  %2976 = vst [vmem:[#allocation2 + $0x400] sm:$0xff] 0.0
  %2977 = vst.msk [vmem:[#allocation2 + $0x408] sm:$0xff] %vm2848, 0.0
  %2978 = vst [vmem:[#allocation2 + $0x410] sm:$0xff] 0.0
  %2979 = vst.msk [vmem:[#allocation2 + $0x418] sm:$0xff] %vm2848, 0.0
  %2980 = vst [vmem:[#allocation2 + $0x420] sm:$0xff] 0.0
  %2981 = vst.msk [vmem:[#allocation2 + $0x428] sm:$0xff] %vm2848, 0.0
  %2982 = vst [vmem:[#allocation2 + $0x430] sm:$0xff] 0.0
  %2983 = vst.msk [vmem:[#allocation2 + $0x438] sm:$0xff] %vm2848, 0.0
  %2984 = vst [vmem:[#allocation2 + $0x440] sm:$0xff] 0.0
  %2985 = vst.msk [vmem:[#allocation2 + $0x448] sm:$0xff] %vm2848, 0.0
  %2986 = vst [vmem:[#allocation2 + $0x450] sm:$0xff] 0.0
  %2987 = vst.msk [vmem:[#allocation2 + $0x458] sm:$0xff] %vm2848, 0.0
  %2988 = vst [vmem:[#allocation2 + $0x460] sm:$0xff] 0.0
  %2989 = vst.msk [vmem:[#allocation2 + $0x468] sm:$0xff] %vm2848, 0.0
  %2990 = vst [vmem:[#allocation2 + $0x470] sm:$0xff] 0.0
  %2991 = vst.msk [vmem:[#allocation2 + $0x478] sm:$0xff] %vm2848, 0.0
  %2992 = vst [vmem:[#allocation2 + $0x480] sm:$0xff] 0.0
  %2993 = vst.msk [vmem:[#allocation2 + $0x488] sm:$0xff] %vm2848, 0.0
  %2994 = vst [vmem:[#allocation2 + $0x490] sm:$0xff] 0.0
  %2995 = vst.msk [vmem:[#allocation2 + $0x498] sm:$0xff] %vm2848, 0.0
  %2996 = vst [vmem:[#allocation2 + $0x4a0] sm:$0xff] 0.0
  %2997 = vst.msk [vmem:[#allocation2 + $0x4a8] sm:$0xff] %vm2848, 0.0
  %2998 = vst [vmem:[#allocation2 + $0x4b0] sm:$0xff] 0.0
  %2999 = vst.msk [vmem:[#allocation2 + $0x4b8] sm:$0xff] %vm2848, 0.0
  %3000 = vst [vmem:[#allocation2 + $0x4c0] sm:$0xff] 0.0
  %3001 = vst.msk [vmem:[#allocation2 + $0x4c8] sm:$0xff] %vm2848, 0.0
  %3002 = vst [vmem:[#allocation2 + $0x4d0] sm:$0xff] 0.0
  %3003 = vst.msk [vmem:[#allocation2 + $0x4d8] sm:$0xff] %vm2848, 0.0
  %3004 = vst [vmem:[#allocation2 + $0x4e0] sm:$0xff] 0.0
  %3005 = vst.msk [vmem:[#allocation2 + $0x4e8] sm:$0xff] %vm2848, 0.0
  %3006 = vst [vmem:[#allocation2 + $0x4f0] sm:$0xff] 0.0
  %3007 = vst.msk [vmem:[#allocation2 + $0x4f8] sm:$0xff] %vm2848, 0.0
  %3008 = vst [vmem:[#allocation2 + $0x500] sm:$0xff] 0.0
  %3009 = vst.msk [vmem:[#allocation2 + $0x508] sm:$0xff] %vm2848, 0.0
  %3010 = vst [vmem:[#allocation2 + $0x510] sm:$0xff] 0.0
  %3011 = vst.msk [vmem:[#allocation2 + $0x518] sm:$0xff] %vm2848, 0.0
  %3012 = vst [vmem:[#allocation2 + $0x520] sm:$0xff] 0.0
  %3013 = vst.msk [vmem:[#allocation2 + $0x528] sm:$0xff] %vm2848, 0.0
  %3014 = vst [vmem:[#allocation2 + $0x530] sm:$0xff] 0.0
  %3015 = vst.msk [vmem:[#allocation2 + $0x538] sm:$0xff] %vm2848, 0.0
  %3016 = vst [vmem:[#allocation2 + $0x540] sm:$0xff] 0.0
  %3017 = vst.msk [vmem:[#allocation2 + $0x548] sm:$0xff] %vm2848, 0.0
  %3018 = vst [vmem:[#allocation2 + $0x550] sm:$0xff] 0.0
  %3019 = vst.msk [vmem:[#allocation2 + $0x558] sm:$0xff] %vm2848, 0.0
  %3020 = vst [vmem:[#allocation2 + $0x560] sm:$0xff] 0.0
  %3021 = vst.msk [vmem:[#allocation2 + $0x568] sm:$0xff] %vm2848, 0.0
  %3022 = vst [vmem:[#allocation2 + $0x570] sm:$0xff] 0.0
  %3023 = vst.msk [vmem:[#allocation2 + $0x578] sm:$0xff] %vm2848, 0.0
  %3024 = vst [vmem:[#allocation2 + $0x580] sm:$0xff] 0.0
  %3025 = vst.msk [vmem:[#allocation2 + $0x588] sm:$0xff] %vm2848, 0.0
  %3026 = vst [vmem:[#allocation2 + $0x590] sm:$0xff] 0.0
  %3027 = vst.msk [vmem:[#allocation2 + $0x598] sm:$0xff] %vm2848, 0.0
  %3028 = vst [vmem:[#allocation2 + $0x5a0] sm:$0xff] 0.0
  %3029 = vst.msk [vmem:[#allocation2 + $0x5a8] sm:$0xff] %vm2848, 0.0
  %3030 = vst [vmem:[#allocation2 + $0x5b0] sm:$0xff] 0.0
  %3031 = vst.msk [vmem:[#allocation2 + $0x5b8] sm:$0xff] %vm2848, 0.0
  %3032 = vst [vmem:[#allocation2 + $0x5c0] sm:$0xff] 0.0
  %3033 = vst.msk [vmem:[#allocation2 + $0x5c8] sm:$0xff] %vm2848, 0.0
  %3034 = vst [vmem:[#allocation2 + $0x5d0] sm:$0xff] 0.0
  %3035 = vst.msk [vmem:[#allocation2 + $0x5d8] sm:$0xff] %vm2848, 0.0
  %3036 = vst [vmem:[#allocation2 + $0x5e0] sm:$0xff] 0.0
  %3037 = vst.msk [vmem:[#allocation2 + $0x5e8] sm:$0xff] %vm2848, 0.0
  %3038 = vst [vmem:[#allocation2 + $0x5f0] sm:$0xff] 0.0
  %3039 = vst.msk [vmem:[#allocation2 + $0x5f8] sm:$0xff] %vm2848, 0.0
  %3040 = vst [vmem:[#allocation2 + $0x600] sm:$0xff] 0.0
  %3041 = vst.msk [vmem:[#allocation2 + $0x608] sm:$0xff] %vm2848, 0.0
  %3042 = vst [vmem:[#allocation2 + $0x610] sm:$0xff] 0.0
  %3043 = vst.msk [vmem:[#allocation2 + $0x618] sm:$0xff] %vm2848, 0.0
  %3044 = vst [vmem:[#allocation2 + $0x620] sm:$0xff] 0.0
  %3045 = vst.msk [vmem:[#allocation2 + $0x628] sm:$0xff] %vm2848, 0.0
  %3046 = vst [vmem:[#allocation2 + $0x630] sm:$0xff] 0.0
  %3047 = vst.msk [vmem:[#allocation2 + $0x638] sm:$0xff] %vm2848, 0.0
  %3048 = vst [vmem:[#allocation2 + $0x640] sm:$0xff] 0.0
  %3049 = vst.msk [vmem:[#allocation2 + $0x648] sm:$0xff] %vm2848, 0.0
  %3050 = vst [vmem:[#allocation2 + $0x650] sm:$0xff] 0.0
  %3051 = vst.msk [vmem:[#allocation2 + $0x658] sm:$0xff] %vm2848, 0.0
  %3052 = vst [vmem:[#allocation2 + $0x660] sm:$0xff] 0.0
  %3053 = vst.msk [vmem:[#allocation2 + $0x668] sm:$0xff] %vm2848, 0.0
  %3054 = vst [vmem:[#allocation2 + $0x670] sm:$0xff] 0.0
  %3055 = vst.msk [vmem:[#allocation2 + $0x678] sm:$0xff] %vm2848, 0.0
  %3056 = vst [vmem:[#allocation2 + $0x680] sm:$0xff] 0.0
  %3057 = vst.msk [vmem:[#allocation2 + $0x688] sm:$0xff] %vm2848, 0.0
  %3058 = vst [vmem:[#allocation2 + $0x690] sm:$0xff] 0.0
  %3059 = vst.msk [vmem:[#allocation2 + $0x698] sm:$0xff] %vm2848, 0.0
  %3060 = vst [vmem:[#allocation2 + $0x6a0] sm:$0xff] 0.0
  %3061 = vst.msk [vmem:[#allocation2 + $0x6a8] sm:$0xff] %vm2848, 0.0
  %3062 = vst [vmem:[#allocation2 + $0x6b0] sm:$0xff] 0.0
  %3063 = vst.msk [vmem:[#allocation2 + $0x6b8] sm:$0xff] %vm2848, 0.0
  %3064 = vst [vmem:[#allocation2 + $0x6c0] sm:$0xff] 0.0
  %3065 = vst.msk [vmem:[#allocation2 + $0x6c8] sm:$0xff] %vm2848, 0.0
  %3066 = vst [vmem:[#allocation2 + $0x6d0] sm:$0xff] 0.0
  %3067 = vst.msk [vmem:[#allocation2 + $0x6d8] sm:$0xff] %vm2848, 0.0
  %3068 = vst [vmem:[#allocation2 + $0x6e0] sm:$0xff] 0.0
  %3069 = vst.msk [vmem:[#allocation2 + $0x6e8] sm:$0xff] %vm2848, 0.0
  %3070 = vst [vmem:[#allocation2 + $0x6f0] sm:$0xff] 0.0
  %3071 = vst.msk [vmem:[#allocation2 + $0x6f8] sm:$0xff] %vm2848, 0.0
  %3072 = vst [vmem:[#allocation2 + $0x700] sm:$0xff] 0.0
  %3073 = vst.msk [vmem:[#allocation2 + $0x708] sm:$0xff] %vm2848, 0.0
  %3074 = vst [vmem:[#allocation2 + $0x710] sm:$0xff] 0.0
  %3075 = vst.msk [vmem:[#allocation2 + $0x718] sm:$0xff] %vm2848, 0.0
  %3076 = vst [vmem:[#allocation2 + $0x720] sm:$0xff] 0.0
  %3077 = vst.msk [vmem:[#allocation2 + $0x728] sm:$0xff] %vm2848, 0.0
  %3078 = vst [vmem:[#allocation2 + $0x730] sm:$0xff] 0.0
  %3079 = vst.msk [vmem:[#allocation2 + $0x738] sm:$0xff] %vm2848, 0.0
  %3080 = vst [vmem:[#allocation2 + $0x740] sm:$0xff] 0.0
  %3081 = vst.msk [vmem:[#allocation2 + $0x748] sm:$0xff] %vm2848, 0.0
  %3082 = vst [vmem:[#allocation2 + $0x750] sm:$0xff] 0.0
  %3083 = vst.msk [vmem:[#allocation2 + $0x758] sm:$0xff] %vm2848, 0.0
  %3084 = vst [vmem:[#allocation2 + $0x760] sm:$0xff] 0.0
  %3085 = vst.msk [vmem:[#allocation2 + $0x768] sm:$0xff] %vm2848, 0.0
  %3086 = vst [vmem:[#allocation2 + $0x770] sm:$0xff] 0.0
  %3087 = vst.msk [vmem:[#allocation2 + $0x778] sm:$0xff] %vm2848, 0.0
  %3088 = vst [vmem:[#allocation2 + $0x780] sm:$0xff] 0.0
  %3089 = vst.msk [vmem:[#allocation2 + $0x788] sm:$0xff] %vm2848, 0.0
  %3090 = vst [vmem:[#allocation2 + $0x790] sm:$0xff] 0.0
  %3091 = vst.msk [vmem:[#allocation2 + $0x798] sm:$0xff] %vm2848, 0.0
  %3092 = vst [vmem:[#allocation2 + $0x7a0] sm:$0xff] 0.0
  %3093 = vst.msk [vmem:[#allocation2 + $0x7a8] sm:$0xff] %vm2848, 0.0
  %3094 = vst [vmem:[#allocation2 + $0x7b0] sm:$0xff] 0.0
  %3095 = vst.msk [vmem:[#allocation2 + $0x7b8] sm:$0xff] %vm2848, 0.0
  %3096 = vst [vmem:[#allocation2 + $0x7c0] sm:$0xff] 0.0
  %3097 = vst.msk [vmem:[#allocation2 + $0x7c8] sm:$0xff] %vm2848, 0.0
  %3098 = vst [vmem:[#allocation2 + $0x7d0] sm:$0xff] 0.0
  %3099 = vst.msk [vmem:[#allocation2 + $0x7d8] sm:$0xff] %vm2848, 0.0
  %3100 = vst [vmem:[#allocation2 + $0x7e0] sm:$0xff] 0.0
  %3101 = vst.msk [vmem:[#allocation2 + $0x7e8] sm:$0xff] %vm2848, 0.0
  %3102 = vst [vmem:[#allocation2 + $0x7f0] sm:$0xff] 0.0
  %3103 = vst.msk [vmem:[#allocation2 + $0x7f8] sm:$0xff] %vm2848, 0.0
  %3104 = vst [vmem:[#allocation2 + $0x800] sm:$0xff] 0.0
  %3105 = vst.msk [vmem:[#allocation2 + $0x808] sm:$0xff] %vm2848, 0.0
  %3106 = vst [vmem:[#allocation2 + $0x810] sm:$0xff] 0.0
  %3107 = vst.msk [vmem:[#allocation2 + $0x818] sm:$0xff] %vm2848, 0.0
  %3108 = vst [vmem:[#allocation2 + $0x820] sm:$0xff] 0.0
  %3109 = vst.msk [vmem:[#allocation2 + $0x828] sm:$0xff] %vm2848, 0.0
  %3110 = vst [vmem:[#allocation2 + $0x830] sm:$0xff] 0.0
  %3111 = vst.msk [vmem:[#allocation2 + $0x838] sm:$0xff] %vm2848, 0.0
  %3112 = vst [vmem:[#allocation2 + $0x840] sm:$0xff] 0.0
  %3113 = vst.msk [vmem:[#allocation2 + $0x848] sm:$0xff] %vm2848, 0.0
  %3114 = vst [vmem:[#allocation2 + $0x850] sm:$0xff] 0.0
  %3115 = vst.msk [vmem:[#allocation2 + $0x858] sm:$0xff] %vm2848, 0.0
  %3116 = vst [vmem:[#allocation2 + $0x860] sm:$0xff] 0.0
  %3117 = vst.msk [vmem:[#allocation2 + $0x868] sm:$0xff] %vm2848, 0.0
  %3118 = vst [vmem:[#allocation2 + $0x870] sm:$0xff] 0.0
  %3119 = vst.msk [vmem:[#allocation2 + $0x878] sm:$0xff] %vm2848, 0.0
  %3120 = vst [vmem:[#allocation2 + $0x880] sm:$0xff] 0.0
  %3121 = vst.msk [vmem:[#allocation2 + $0x888] sm:$0xff] %vm2848, 0.0
  %3122 = vst [vmem:[#allocation2 + $0x890] sm:$0xff] 0.0
  %3123 = vst.msk [vmem:[#allocation2 + $0x898] sm:$0xff] %vm2848, 0.0
  %3124 = vst [vmem:[#allocation2 + $0x8a0] sm:$0xff] 0.0
  %3125 = vst.msk [vmem:[#allocation2 + $0x8a8] sm:$0xff] %vm2848, 0.0
  %3126 = vst [vmem:[#allocation2 + $0x8b0] sm:$0xff] 0.0
  %3127 = vst.msk [vmem:[#allocation2 + $0x8b8] sm:$0xff] %vm2848, 0.0
  %3128 = vst [vmem:[#allocation2 + $0x8c0] sm:$0xff] 0.0
  %3129 = vst.msk [vmem:[#allocation2 + $0x8c8] sm:$0xff] %vm2848, 0.0
  %3130 = vst [vmem:[#allocation2 + $0x8d0] sm:$0xff] 0.0
  %3131 = vst.msk [vmem:[#allocation2 + $0x8d8] sm:$0xff] %vm2848, 0.0
  %3132 = vst [vmem:[#allocation2 + $0x8e0] sm:$0xff] 0.0
  %3133 = vst.msk [vmem:[#allocation2 + $0x8e8] sm:$0xff] %vm2848, 0.0
  %3134 = vst [vmem:[#allocation2 + $0x8f0] sm:$0xff] 0.0
  %3135 = vst.msk [vmem:[#allocation2 + $0x8f8] sm:$0xff] %vm2848, 0.0
  %3136 = vst [vmem:[#allocation2 + $0x900] sm:$0xff] 0.0
  %3137 = vst.msk [vmem:[#allocation2 + $0x908] sm:$0xff] %vm2848, 0.0
  %3138 = vst [vmem:[#allocation2 + $0x910] sm:$0xff] 0.0
  %3139 = vst.msk [vmem:[#allocation2 + $0x918] sm:$0xff] %vm2848, 0.0
  %3140 = vst [vmem:[#allocation2 + $0x920] sm:$0xff] 0.0
  %3141 = vst.msk [vmem:[#allocation2 + $0x928] sm:$0xff] %vm2848, 0.0
  %3142 = vst [vmem:[#allocation2 + $0x930] sm:$0xff] 0.0
  %3143 = vst.msk [vmem:[#allocation2 + $0x938] sm:$0xff] %vm2848, 0.0
  %3144 = vst [vmem:[#allocation2 + $0x940] sm:$0xff] 0.0
  %3145 = vst.msk [vmem:[#allocation2 + $0x948] sm:$0xff] %vm2848, 0.0
  %v3147 = vrot.slane %v2783, 7
  %vm3149 = vcmask 523265
  %3150 = vst.msk [vmem:[#allocation2 + $0x30] sm:$0xfe] %vm3149, %v3147
  %vm3151 = vcmask 516096
  %3152 = vst.msk [vmem:[#allocation2 + $0x40] sm:$0x1] %vm3151, %v3147
  %3153 = vrot.lane.b32.xlu0 %v2783, 64
  %v3154 = vpop.permute.xlu0 %3153
  %vm3156 = vcmask 1048064
  %3157 = vst.msk [vmem:[#allocation2 + $0x30] sm:$0xff] %vm3156, %v3154
  %v3158 = vrot.slane %v2783, 1
  %vm3160 = vcmask 523271
  %3161 = vst.msk [vmem:[#allocation2 + $0x28] sm:$0x80] %vm3160, %v3158
  %vm3162 = vcmask 522240
  %3163 = vst.msk [vmem:[#allocation2 + $0x38] sm:$0x7f] %vm3162, %v3158
  %v3165 = vrot.slane %v2784, 7
  %3167 = vst.msk [vmem:[#allocation2 + $0x50] sm:$0xfe] %vm3149, %v3165
  %3168 = vst.msk [vmem:[#allocation2 + $0x60] sm:$0x1] %vm3151, %v3165
  %3169 = vrot.lane.b32.xlu0 %v2784, 64
  %v3170 = vpop.permute.xlu0 %3169
  %3172 = vst.msk [vmem:[#allocation2 + $0x50] sm:$0xff] %vm3156, %v3170
  %v3173 = vrot.slane %v2784, 1
  %3175 = vst.msk [vmem:[#allocation2 + $0x48] sm:$0x80] %vm3160, %v3173
  %3176 = vst.msk [vmem:[#allocation2 + $0x58] sm:$0x7f] %vm3162, %v3173
  %v3178 = vrot.slane %v2785, 7
  %3180 = vst.msk [vmem:[#allocation2 + $0x70] sm:$0xfe] %vm3149, %v3178
  %3181 = vst.msk [vmem:[#allocation2 + $0x80] sm:$0x1] %vm3151, %v3178
  %3182 = vrot.lane.b32.xlu0 %v2785, 64
  %v3183 = vpop.permute.xlu0 %3182
  %3185 = vst.msk [vmem:[#allocation2 + $0x70] sm:$0xff] %vm3156, %v3183
  %v3186 = vrot.slane %v2785, 1
  %3188 = vst.msk [vmem:[#allocation2 + $0x68] sm:$0x80] %vm3160, %v3186
  %3189 = vst.msk [vmem:[#allocation2 + $0x78] sm:$0x7f] %vm3162, %v3186
  %v3191 = vrot.slane %v2786, 7
  %3193 = vst.msk [vmem:[#allocation2 + $0x90] sm:$0xfe] %vm3149, %v3191
  %3194 = vst.msk [vmem:[#allocation2 + $0xa0] sm:$0x1] %vm3151, %v3191
  %3195 = vrot.lane.b32.xlu0 %v2786, 64
  %v3196 = vpop.permute.xlu0 %3195
  %3198 = vst.msk [vmem:[#allocation2 + $0x90] sm:$0xff] %vm3156, %v3196
  %v3199 = vrot.slane %v2786, 1
  %3201 = vst.msk [vmem:[#allocation2 + $0x88] sm:$0x80] %vm3160, %v3199
  %3202 = vst.msk [vmem:[#allocation2 + $0x98] sm:$0x7f] %vm3162, %v3199
  %v3204 = vrot.slane %v2787, 7
  %3206 = vst.msk [vmem:[#allocation2 + $0xb0] sm:$0xfe] %vm3149, %v3204
  %3207 = vst.msk [vmem:[#allocation2 + $0xc0] sm:$0x1] %vm3151, %v3204
  %3208 = vrot.lane.b32.xlu0 %v2787, 64
  %v3209 = vpop.permute.xlu0 %3208
  %3211 = vst.msk [vmem:[#allocation2 + $0xb0] sm:$0xff] %vm3156, %v3209
  %v3212 = vrot.slane %v2787, 1
  %3214 = vst.msk [vmem:[#allocation2 + $0xa8] sm:$0x80] %vm3160, %v3212
  %3215 = vst.msk [vmem:[#allocation2 + $0xb8] sm:$0x7f] %vm3162, %v3212
  %v3217 = vrot.slane %v2788, 7
  %3219 = vst.msk [vmem:[#allocation2 + $0xd0] sm:$0xfe] %vm3149, %v3217
  %3220 = vst.msk [vmem:[#allocation2 + $0xe0] sm:$0x1] %vm3151, %v3217
  %3221 = vrot.lane.b32.xlu0 %v2788, 64
  %v3222 = vpop.permute.xlu0 %3221
  %3224 = vst.msk [vmem:[#allocation2 + $0xd0] sm:$0xff] %vm3156, %v3222
  %v3225 = vrot.slane %v2788, 1
  %3227 = vst.msk [vmem:[#allocation2 + $0xc8] sm:$0x80] %vm3160, %v3225
  %3228 = vst.msk [vmem:[#allocation2 + $0xd8] sm:$0x7f] %vm3162, %v3225
  %v3230 = vrot.slane %v2789, 7
  %3232 = vst.msk [vmem:[#allocation2 + $0xf0] sm:$0xfe] %vm3149, %v3230
  %3233 = vst.msk [vmem:[#allocation2 + $0x100] sm:$0x1] %vm3151, %v3230
  %3234 = vrot.lane.b32.xlu0 %v2789, 64
  %v3235 = vpop.permute.xlu0 %3234
  %3237 = vst.msk [vmem:[#allocation2 + $0xf0] sm:$0xff] %vm3156, %v3235
  %v3238 = vrot.slane %v2789, 1
  %3240 = vst.msk [vmem:[#allocation2 + $0xe8] sm:$0x80] %vm3160, %v3238
  %3241 = vst.msk [vmem:[#allocation2 + $0xf8] sm:$0x7f] %vm3162, %v3238
  %v3243 = vrot.slane %v2790, 7
  %3245 = vst.msk [vmem:[#allocation2 + $0x110] sm:$0xfe] %vm3149, %v3243
  %3246 = vst.msk [vmem:[#allocation2 + $0x120] sm:$0x1] %vm3151, %v3243
  %3247 = vrot.lane.b32.xlu0 %v2790, 64
  %v3248 = vpop.permute.xlu0 %3247
  %3250 = vst.msk [vmem:[#allocation2 + $0x110] sm:$0xff] %vm3156, %v3248
  %v3251 = vrot.slane %v2790, 1
  %3253 = vst.msk [vmem:[#allocation2 + $0x108] sm:$0x80] %vm3160, %v3251
  %3254 = vst.msk [vmem:[#allocation2 + $0x118] sm:$0x7f] %vm3162, %v3251
  %v3256 = vrot.slane %v2791, 7
  %3258 = vst.msk [vmem:[#allocation2 + $0x150] sm:$0xfe] %vm3149, %v3256
  %3259 = vst.msk [vmem:[#allocation2 + $0x160] sm:$0x1] %vm3151, %v3256
  %3260 = vrot.lane.b32.xlu0 %v2791, 64
  %v3261 = vpop.permute.xlu0 %3260
  %3263 = vst.msk [vmem:[#allocation2 + $0x150] sm:$0xff] %vm3156, %v3261
  %v3264 = vrot.slane %v2791, 1
  %3266 = vst.msk [vmem:[#allocation2 + $0x148] sm:$0x80] %vm3160, %v3264
  %3267 = vst.msk [vmem:[#allocation2 + $0x158] sm:$0x7f] %vm3162, %v3264
  %v3269 = vrot.slane %v2792, 7
  %3271 = vst.msk [vmem:[#allocation2 + $0x170] sm:$0xfe] %vm3149, %v3269
  %3272 = vst.msk [vmem:[#allocation2 + $0x180] sm:$0x1] %vm3151, %v3269
  %3273 = vrot.lane.b32.xlu0 %v2792, 64
  %v3274 = vpop.permute.xlu0 %3273
  %3276 = vst.msk [vmem:[#allocation2 + $0x170] sm:$0xff] %vm3156, %v3274
  %v3277 = vrot.slane %v2792, 1
  %3279 = vst.msk [vmem:[#allocation2 + $0x168] sm:$0x80] %vm3160, %v3277
  %3280 = vst.msk [vmem:[#allocation2 + $0x178] sm:$0x7f] %vm3162, %v3277
  %v3282 = vrot.slane %v2793, 7
  %3284 = vst.msk [vmem:[#allocation2 + $0x190] sm:$0xfe] %vm3149, %v3282
  %3285 = vst.msk [vmem:[#allocation2 + $0x1a0] sm:$0x1] %vm3151, %v3282
  %3286 = vrot.lane.b32.xlu0 %v2793, 64
  %v3287 = vpop.permute.xlu0 %3286
  %3289 = vst.msk [vmem:[#allocation2 + $0x190] sm:$0xff] %vm3156, %v3287
  %v3290 = vrot.slane %v2793, 1
  %3292 = vst.msk [vmem:[#allocation2 + $0x188] sm:$0x80] %vm3160, %v3290
  %3293 = vst.msk [vmem:[#allocation2 + $0x198] sm:$0x7f] %vm3162, %v3290
  %v3295 = vrot.slane %v2794, 7
  %3297 = vst.msk [vmem:[#allocation2 + $0x1b0] sm:$0xfe] %vm3149, %v3295
  %3298 = vst.msk [vmem:[#allocation2 + $0x1c0] sm:$0x1] %vm3151, %v3295
  %3299 = vrot.lane.b32.xlu0 %v2794, 64
  %v3300 = vpop.permute.xlu0 %3299
  %3302 = vst.msk [vmem:[#allocation2 + $0x1b0] sm:$0xff] %vm3156, %v3300
  %v3303 = vrot.slane %v2794, 1
  %3305 = vst.msk [vmem:[#allocation2 + $0x1a8] sm:$0x80] %vm3160, %v3303
  %3306 = vst.msk [vmem:[#allocation2 + $0x1b8] sm:$0x7f] %vm3162, %v3303
  %v3308 = vrot.slane %v2795, 7
  %3310 = vst.msk [vmem:[#allocation2 + $0x1d0] sm:$0xfe] %vm3149, %v3308
  %3311 = vst.msk [vmem:[#allocation2 + $0x1e0] sm:$0x1] %vm3151, %v3308
  %3312 = vrot.lane.b32.xlu0 %v2795, 64
  %v3313 = vpop.permute.xlu0 %3312
  %3315 = vst.msk [vmem:[#allocation2 + $0x1d0] sm:$0xff] %vm3156, %v3313
  %v3316 = vrot.slane %v2795, 1
  %3318 = vst.msk [vmem:[#allocation2 + $0x1c8] sm:$0x80] %vm3160, %v3316
  %3319 = vst.msk [vmem:[#allocation2 + $0x1d8] sm:$0x7f] %vm3162, %v3316
  %v3321 = vrot.slane %v2796, 7
  %3323 = vst.msk [vmem:[#allocation2 + $0x1f0] sm:$0xfe] %vm3149, %v3321
  %3324 = vst.msk [vmem:[#allocation2 + $0x200] sm:$0x1] %vm3151, %v3321
  %3325 = vrot.lane.b32.xlu0 %v2796, 64
  %v3326 = vpop.permute.xlu0 %3325
  %3328 = vst.msk [vmem:[#allocation2 + $0x1f0] sm:$0xff] %vm3156, %v3326
  %v3329 = vrot.slane %v2796, 1
  %3331 = vst.msk [vmem:[#allocation2 + $0x1e8] sm:$0x80] %vm3160, %v3329
  %3332 = vst.msk [vmem:[#allocation2 + $0x1f8] sm:$0x7f] %vm3162, %v3329
  %v3334 = vrot.slane %v2797, 7
  %3336 = vst.msk [vmem:[#allocation2 + $0x210] sm:$0xfe] %vm3149, %v3334
  %3337 = vst.msk [vmem:[#allocation2 + $0x220] sm:$0x1] %vm3151, %v3334
  %3338 = vrot.lane.b32.xlu0 %v2797, 64
  %v3339 = vpop.permute.xlu0 %3338
  %3341 = vst.msk [vmem:[#allocation2 + $0x210] sm:$0xff] %vm3156, %v3339
  %v3342 = vrot.slane %v2797, 1
  %3344 = vst.msk [vmem:[#allocation2 + $0x208] sm:$0x80] %vm3160, %v3342
  %3345 = vst.msk [vmem:[#allocation2 + $0x218] sm:$0x7f] %vm3162, %v3342
  %v3347 = vrot.slane %v2798, 7
  %3349 = vst.msk [vmem:[#allocation2 + $0x230] sm:$0xfe] %vm3149, %v3347
  %3350 = vst.msk [vmem:[#allocation2 + $0x240] sm:$0x1] %vm3151, %v3347
  %3351 = vrot.lane.b32.xlu0 %v2798, 64
  %v3352 = vpop.permute.xlu0 %3351
  %3354 = vst.msk [vmem:[#allocation2 + $0x230] sm:$0xff] %vm3156, %v3352
  %v3355 = vrot.slane %v2798, 1
  %3357 = vst.msk [vmem:[#allocation2 + $0x228] sm:$0x80] %vm3160, %v3355
  %3358 = vst.msk [vmem:[#allocation2 + $0x238] sm:$0x7f] %vm3162, %v3355
  %v3360 = vrot.slane %v2799, 7
  %3362 = vst.msk [vmem:[#allocation2 + $0x270] sm:$0xfe] %vm3149, %v3360
  %3363 = vst.msk [vmem:[#allocation2 + $0x280] sm:$0x1] %vm3151, %v3360
  %3364 = vrot.lane.b32.xlu0 %v2799, 64
  %v3365 = vpop.permute.xlu0 %3364
  %3367 = vst.msk [vmem:[#allocation2 + $0x270] sm:$0xff] %vm3156, %v3365
  %v3368 = vrot.slane %v2799, 1
  %3370 = vst.msk [vmem:[#allocation2 + $0x268] sm:$0x80] %vm3160, %v3368
  %3371 = vst.msk [vmem:[#allocation2 + $0x278] sm:$0x7f] %vm3162, %v3368
  %v3373 = vrot.slane %v2800, 7
  %3375 = vst.msk [vmem:[#allocation2 + $0x290] sm:$0xfe] %vm3149, %v3373
  %3376 = vst.msk [vmem:[#allocation2 + $0x2a0] sm:$0x1] %vm3151, %v3373
  %3377 = vrot.lane.b32.xlu0 %v2800, 64
  %v3378 = vpop.permute.xlu0 %3377
  %3380 = vst.msk [vmem:[#allocation2 + $0x290] sm:$0xff] %vm3156, %v3378
  %v3381 = vrot.slane %v2800, 1
  %3383 = vst.msk [vmem:[#allocation2 + $0x288] sm:$0x80] %vm3160, %v3381
  %3384 = vst.msk [vmem:[#allocation2 + $0x298] sm:$0x7f] %vm3162, %v3381
  %v3386 = vrot.slane %v2801, 7
  %3388 = vst.msk [vmem:[#allocation2 + $0x2b0] sm:$0xfe] %vm3149, %v3386
  %3389 = vst.msk [vmem:[#allocation2 + $0x2c0] sm:$0x1] %vm3151, %v3386
  %3390 = vrot.lane.b32.xlu0 %v2801, 64
  %v3391 = vpop.permute.xlu0 %3390
  %3393 = vst.msk [vmem:[#allocation2 + $0x2b0] sm:$0xff] %vm3156, %v3391
  %v3394 = vrot.slane %v2801, 1
  %3396 = vst.msk [vmem:[#allocation2 + $0x2a8] sm:$0x80] %vm3160, %v3394
  %3397 = vst.msk [vmem:[#allocation2 + $0x2b8] sm:$0x7f] %vm3162, %v3394
  %v3399 = vrot.slane %v2802, 7
  %3401 = vst.msk [vmem:[#allocation2 + $0x2d0] sm:$0xfe] %vm3149, %v3399
  %3402 = vst.msk [vmem:[#allocation2 + $0x2e0] sm:$0x1] %vm3151, %v3399
  %3403 = vrot.lane.b32.xlu0 %v2802, 64
  %v3404 = vpop.permute.xlu0 %3403
  %3406 = vst.msk [vmem:[#allocation2 + $0x2d0] sm:$0xff] %vm3156, %v3404
  %v3407 = vrot.slane %v2802, 1
  %3409 = vst.msk [vmem:[#allocation2 + $0x2c8] sm:$0x80] %vm3160, %v3407
  %3410 = vst.msk [vmem:[#allocation2 + $0x2d8] sm:$0x7f] %vm3162, %v3407
  %v3412 = vrot.slane %v2803, 7
  %3414 = vst.msk [vmem:[#allocation2 + $0x2f0] sm:$0xfe] %vm3149, %v3412
  %3415 = vst.msk [vmem:[#allocation2 + $0x300] sm:$0x1] %vm3151, %v3412
  %3416 = vrot.lane.b32.xlu0 %v2803, 64
  %v3417 = vpop.permute.xlu0 %3416
  %3419 = vst.msk [vmem:[#allocation2 + $0x2f0] sm:$0xff] %vm3156, %v3417
  %v3420 = vrot.slane %v2803, 1
  %3422 = vst.msk [vmem:[#allocation2 + $0x2e8] sm:$0x80] %vm3160, %v3420
  %3423 = vst.msk [vmem:[#allocation2 + $0x2f8] sm:$0x7f] %vm3162, %v3420
  %v3425 = vrot.slane %v2804, 7
  %3427 = vst.msk [vmem:[#allocation2 + $0x310] sm:$0xfe] %vm3149, %v3425
  %3428 = vst.msk [vmem:[#allocation2 + $0x320] sm:$0x1] %vm3151, %v3425
  %3429 = vrot.lane.b32.xlu0 %v2804, 64
  %v3430 = vpop.permute.xlu0 %3429
  %3432 = vst.msk [vmem:[#allocation2 + $0x310] sm:$0xff] %vm3156, %v3430
  %v3433 = vrot.slane %v2804, 1
  %3435 = vst.msk [vmem:[#allocation2 + $0x308] sm:$0x80] %vm3160, %v3433
  %3436 = vst.msk [vmem:[#allocation2 + $0x318] sm:$0x7f] %vm3162, %v3433
  %v3438 = vrot.slane %v2805, 7
  %3440 = vst.msk [vmem:[#allocation2 + $0x330] sm:$0xfe] %vm3149, %v3438
  %3441 = vst.msk [vmem:[#allocation2 + $0x340] sm:$0x1] %vm3151, %v3438
  %3442 = vrot.lane.b32.xlu0 %v2805, 64
  %v3443 = vpop.permute.xlu0 %3442
  %3445 = vst.msk [vmem:[#allocation2 + $0x330] sm:$0xff] %vm3156, %v3443
  %v3446 = vrot.slane %v2805, 1
  %3448 = vst.msk [vmem:[#allocation2 + $0x328] sm:$0x80] %vm3160, %v3446
  %3449 = vst.msk [vmem:[#allocation2 + $0x338] sm:$0x7f] %vm3162, %v3446
  %v3451 = vrot.slane %v2806, 7
  %3453 = vst.msk [vmem:[#allocation2 + $0x350] sm:$0xfe] %vm3149, %v3451
  %3454 = vst.msk [vmem:[#allocation2 + $0x360] sm:$0x1] %vm3151, %v3451
  %3455 = vrot.lane.b32.xlu0 %v2806, 64
  %v3456 = vpop.permute.xlu0 %3455
  %3458 = vst.msk [vmem:[#allocation2 + $0x350] sm:$0xff] %vm3156, %v3456
  %v3459 = vrot.slane %v2806, 1
  %3461 = vst.msk [vmem:[#allocation2 + $0x348] sm:$0x80] %vm3160, %v3459
  %3462 = vst.msk [vmem:[#allocation2 + $0x358] sm:$0x7f] %vm3162, %v3459
  %v3464 = vrot.slane %v2807, 7
  %3466 = vst.msk [vmem:[#allocation2 + $0x390] sm:$0xfe] %vm3149, %v3464
  %3467 = vst.msk [vmem:[#allocation2 + $0x3a0] sm:$0x1] %vm3151, %v3464
  %3468 = vrot.lane.b32.xlu0 %v2807, 64
  %v3469 = vpop.permute.xlu0 %3468
  %3471 = vst.msk [vmem:[#allocation2 + $0x390] sm:$0xff] %vm3156, %v3469
  %v3472 = vrot.slane %v2807, 1
  %3474 = vst.msk [vmem:[#allocation2 + $0x388] sm:$0x80] %vm3160, %v3472
  %3475 = vst.msk [vmem:[#allocation2 + $0x398] sm:$0x7f] %vm3162, %v3472
  %v3477 = vrot.slane %v2808, 7
  %3479 = vst.msk [vmem:[#allocation2 + $0x3b0] sm:$0xfe] %vm3149, %v3477
  %3480 = vst.msk [vmem:[#allocation2 + $0x3c0] sm:$0x1] %vm3151, %v3477
  %3481 = vrot.lane.b32.xlu0 %v2808, 64
  %v3482 = vpop.permute.xlu0 %3481
  %3484 = vst.msk [vmem:[#allocation2 + $0x3b0] sm:$0xff] %vm3156, %v3482
  %v3485 = vrot.slane %v2808, 1
  %3487 = vst.msk [vmem:[#allocation2 + $0x3a8] sm:$0x80] %vm3160, %v3485
  %3488 = vst.msk [vmem:[#allocation2 + $0x3b8] sm:$0x7f] %vm3162, %v3485
  %v3490 = vrot.slane %v2809, 7
  %3492 = vst.msk [vmem:[#allocation2 + $0x3d0] sm:$0xfe] %vm3149, %v3490
  %3493 = vst.msk [vmem:[#allocation2 + $0x3e0] sm:$0x1] %vm3151, %v3490
  %3494 = vrot.lane.b32.xlu0 %v2809, 64
  %v3495 = vpop.permute.xlu0 %3494
  %3497 = vst.msk [vmem:[#allocation2 + $0x3d0] sm:$0xff] %vm3156, %v3495
  %v3498 = vrot.slane %v2809, 1
  %3500 = vst.msk [vmem:[#allocation2 + $0x3c8] sm:$0x80] %vm3160, %v3498
  %3501 = vst.msk [vmem:[#allocation2 + $0x3d8] sm:$0x7f] %vm3162, %v3498
  %v3503 = vrot.slane %v2810, 7
  %3505 = vst.msk [vmem:[#allocation2 + $0x3f0] sm:$0xfe] %vm3149, %v3503
  %3506 = vst.msk [vmem:[#allocation2 + $0x400] sm:$0x1] %vm3151, %v3503
  %3507 = vrot.lane.b32.xlu0 %v2810, 64
  %v3508 = vpop.permute.xlu0 %3507
  %3510 = vst.msk [vmem:[#allocation2 + $0x3f0] sm:$0xff] %vm3156, %v3508
  %v3511 = vrot.slane %v2810, 1
  %3513 = vst.msk [vmem:[#allocation2 + $0x3e8] sm:$0x80] %vm3160, %v3511
  %3514 = vst.msk [vmem:[#allocation2 + $0x3f8] sm:$0x7f] %vm3162, %v3511
  %v3516 = vrot.slane %v2811, 7
  %3518 = vst.msk [vmem:[#allocation2 + $0x410] sm:$0xfe] %vm3149, %v3516
  %3519 = vst.msk [vmem:[#allocation2 + $0x420] sm:$0x1] %vm3151, %v3516
  %3520 = vrot.lane.b32.xlu0 %v2811, 64
  %v3521 = vpop.permute.xlu0 %3520
  %3523 = vst.msk [vmem:[#allocation2 + $0x410] sm:$0xff] %vm3156, %v3521
  %v3524 = vrot.slane %v2811, 1
  %3526 = vst.msk [vmem:[#allocation2 + $0x408] sm:$0x80] %vm3160, %v3524
  %3527 = vst.msk [vmem:[#allocation2 + $0x418] sm:$0x7f] %vm3162, %v3524
  %v3529 = vrot.slane %v2812, 7
  %3531 = vst.msk [vmem:[#allocation2 + $0x430] sm:$0xfe] %vm3149, %v3529
  %3532 = vst.msk [vmem:[#allocation2 + $0x440] sm:$0x1] %vm3151, %v3529
  %3533 = vrot.lane.b32.xlu0 %v2812, 64
  %v3534 = vpop.permute.xlu0 %3533
  %3536 = vst.msk [vmem:[#allocation2 + $0x430] sm:$0xff] %vm3156, %v3534
  %v3537 = vrot.slane %v2812, 1
  %3539 = vst.msk [vmem:[#allocation2 + $0x428] sm:$0x80] %vm3160, %v3537
  %3540 = vst.msk [vmem:[#allocation2 + $0x438] sm:$0x7f] %vm3162, %v3537
  %v3542 = vrot.slane %v2813, 7
  %3544 = vst.msk [vmem:[#allocation2 + $0x450] sm:$0xfe] %vm3149, %v3542
  %3545 = vst.msk [vmem:[#allocation2 + $0x460] sm:$0x1] %vm3151, %v3542
  %3546 = vrot.lane.b32.xlu0 %v2813, 64
  %v3547 = vpop.permute.xlu0 %3546
  %3549 = vst.msk [vmem:[#allocation2 + $0x450] sm:$0xff] %vm3156, %v3547
  %v3550 = vrot.slane %v2813, 1
  %3552 = vst.msk [vmem:[#allocation2 + $0x448] sm:$0x80] %vm3160, %v3550
  %3553 = vst.msk [vmem:[#allocation2 + $0x458] sm:$0x7f] %vm3162, %v3550
  %v3555 = vrot.slane %v2814, 7
  %3557 = vst.msk [vmem:[#allocation2 + $0x470] sm:$0xfe] %vm3149, %v3555
  %3558 = vst.msk [vmem:[#allocation2 + $0x480] sm:$0x1] %vm3151, %v3555
  %3559 = vrot.lane.b32.xlu0 %v2814, 64
  %v3560 = vpop.permute.xlu0 %3559
  %3562 = vst.msk [vmem:[#allocation2 + $0x470] sm:$0xff] %vm3156, %v3560
  %v3563 = vrot.slane %v2814, 1
  %3565 = vst.msk [vmem:[#allocation2 + $0x468] sm:$0x80] %vm3160, %v3563
  %3566 = vst.msk [vmem:[#allocation2 + $0x478] sm:$0x7f] %vm3162, %v3563
  %v3568 = vrot.slane %v2815, 7
  %3570 = vst.msk [vmem:[#allocation2 + $0x4b0] sm:$0xfe] %vm3149, %v3568
  %3571 = vst.msk [vmem:[#allocation2 + $0x4c0] sm:$0x1] %vm3151, %v3568
  %3572 = vrot.lane.b32.xlu0 %v2815, 64
  %v3573 = vpop.permute.xlu0 %3572
  %3575 = vst.msk [vmem:[#allocation2 + $0x4b0] sm:$0xff] %vm3156, %v3573
  %v3576 = vrot.slane %v2815, 1
  %3578 = vst.msk [vmem:[#allocation2 + $0x4a8] sm:$0x80] %vm3160, %v3576
  %3579 = vst.msk [vmem:[#allocation2 + $0x4b8] sm:$0x7f] %vm3162, %v3576
  %v3581 = vrot.slane %v2816, 7
  %3583 = vst.msk [vmem:[#allocation2 + $0x4d0] sm:$0xfe] %vm3149, %v3581
  %3584 = vst.msk [vmem:[#allocation2 + $0x4e0] sm:$0x1] %vm3151, %v3581
  %3585 = vrot.lane.b32.xlu0 %v2816, 64
  %v3586 = vpop.permute.xlu0 %3585
  %3588 = vst.msk [vmem:[#allocation2 + $0x4d0] sm:$0xff] %vm3156, %v3586
  %v3589 = vrot.slane %v2816, 1
  %3591 = vst.msk [vmem:[#allocation2 + $0x4c8] sm:$0x80] %vm3160, %v3589
  %3592 = vst.msk [vmem:[#allocation2 + $0x4d8] sm:$0x7f] %vm3162, %v3589
  %v3594 = vrot.slane %v2817, 7
  %3596 = vst.msk [vmem:[#allocation2 + $0x4f0] sm:$0xfe] %vm3149, %v3594
  %3597 = vst.msk [vmem:[#allocation2 + $0x500] sm:$0x1] %vm3151, %v3594
  %3598 = vrot.lane.b32.xlu0 %v2817, 64
  %v3599 = vpop.permute.xlu0 %3598
  %3601 = vst.msk [vmem:[#allocation2 + $0x4f0] sm:$0xff] %vm3156, %v3599
  %v3602 = vrot.slane %v2817, 1
  %3604 = vst.msk [vmem:[#allocation2 + $0x4e8] sm:$0x80] %vm3160, %v3602
  %3605 = vst.msk [vmem:[#allocation2 + $0x4f8] sm:$0x7f] %vm3162, %v3602
  %v3607 = vrot.slane %v2818, 7
  %3609 = vst.msk [vmem:[#allocation2 + $0x510] sm:$0xfe] %vm3149, %v3607
  %3610 = vst.msk [vmem:[#allocation2 + $0x520] sm:$0x1] %vm3151, %v3607
  %3611 = vrot.lane.b32.xlu0 %v2818, 64
  %v3612 = vpop.permute.xlu0 %3611
  %3614 = vst.msk [vmem:[#allocation2 + $0x510] sm:$0xff] %vm3156, %v3612
  %v3615 = vrot.slane %v2818, 1
  %3617 = vst.msk [vmem:[#allocation2 + $0x508] sm:$0x80] %vm3160, %v3615
  %3618 = vst.msk [vmem:[#allocation2 + $0x518] sm:$0x7f] %vm3162, %v3615
  %v3620 = vrot.slane %v2819, 7
  %3622 = vst.msk [vmem:[#allocation2 + $0x530] sm:$0xfe] %vm3149, %v3620
  %3623 = vst.msk [vmem:[#allocation2 + $0x540] sm:$0x1] %vm3151, %v3620
  %3624 = vrot.lane.b32.xlu0 %v2819, 64
  %v3625 = vpop.permute.xlu0 %3624
  %3627 = vst.msk [vmem:[#allocation2 + $0x530] sm:$0xff] %vm3156, %v3625
  %v3628 = vrot.slane %v2819, 1
  %3630 = vst.msk [vmem:[#allocation2 + $0x528] sm:$0x80] %vm3160, %v3628
  %3631 = vst.msk [vmem:[#allocation2 + $0x538] sm:$0x7f] %vm3162, %v3628
  %v3633 = vrot.slane %v2820, 7
  %3635 = vst.msk [vmem:[#allocation2 + $0x550] sm:$0xfe] %vm3149, %v3633
  %3636 = vst.msk [vmem:[#allocation2 + $0x560] sm:$0x1] %vm3151, %v3633
  %3637 = vrot.lane.b32.xlu0 %v2820, 64
  %v3638 = vpop.permute.xlu0 %3637
  %3640 = vst.msk [vmem:[#allocation2 + $0x550] sm:$0xff] %vm3156, %v3638
  %v3641 = vrot.slane %v2820, 1
  %3643 = vst.msk [vmem:[#allocation2 + $0x548] sm:$0x80] %vm3160, %v3641
  %3644 = vst.msk [vmem:[#allocation2 + $0x558] sm:$0x7f] %vm3162, %v3641
  %v3646 = vrot.slane %v2821, 7
  %3648 = vst.msk [vmem:[#allocation2 + $0x570] sm:$0xfe] %vm3149, %v3646
  %3649 = vst.msk [vmem:[#allocation2 + $0x580] sm:$0x1] %vm3151, %v3646
  %3650 = vrot.lane.b32.xlu0 %v2821, 64
  %v3651 = vpop.permute.xlu0 %3650
  %3653 = vst.msk [vmem:[#allocation2 + $0x570] sm:$0xff] %vm3156, %v3651
  %v3654 = vrot.slane %v2821, 1
  %3656 = vst.msk [vmem:[#allocation2 + $0x568] sm:$0x80] %vm3160, %v3654
  %3657 = vst.msk [vmem:[#allocation2 + $0x578] sm:$0x7f] %vm3162, %v3654
  %v3659 = vrot.slane %v2822, 7
  %3661 = vst.msk [vmem:[#allocation2 + $0x590] sm:$0xfe] %vm3149, %v3659
  %3662 = vst.msk [vmem:[#allocation2 + $0x5a0] sm:$0x1] %vm3151, %v3659
  %3663 = vrot.lane.b32.xlu0 %v2822, 64
  %v3664 = vpop.permute.xlu0 %3663
  %3666 = vst.msk [vmem:[#allocation2 + $0x590] sm:$0xff] %vm3156, %v3664
  %v3667 = vrot.slane %v2822, 1
  %3669 = vst.msk [vmem:[#allocation2 + $0x588] sm:$0x80] %vm3160, %v3667
  %3670 = vst.msk [vmem:[#allocation2 + $0x598] sm:$0x7f] %vm3162, %v3667
  %v3672 = vrot.slane %v2823, 7
  %3674 = vst.msk [vmem:[#allocation2 + $0x5d0] sm:$0xfe] %vm3149, %v3672
  %3675 = vst.msk [vmem:[#allocation2 + $0x5e0] sm:$0x1] %vm3151, %v3672
  %3676 = vrot.lane.b32.xlu0 %v2823, 64
  %v3677 = vpop.permute.xlu0 %3676
  %3679 = vst.msk [vmem:[#allocation2 + $0x5d0] sm:$0xff] %vm3156, %v3677
  %v3680 = vrot.slane %v2823, 1
  %3682 = vst.msk [vmem:[#allocation2 + $0x5c8] sm:$0x80] %vm3160, %v3680
  %3683 = vst.msk [vmem:[#allocation2 + $0x5d8] sm:$0x7f] %vm3162, %v3680
  %v3685 = vrot.slane %v2824, 7
  %3687 = vst.msk [vmem:[#allocation2 + $0x5f0] sm:$0xfe] %vm3149, %v3685
  %3688 = vst.msk [vmem:[#allocation2 + $0x600] sm:$0x1] %vm3151, %v3685
  %3689 = vrot.lane.b32.xlu0 %v2824, 64
  %v3690 = vpop.permute.xlu0 %3689
  %3692 = vst.msk [vmem:[#allocation2 + $0x5f0] sm:$0xff] %vm3156, %v3690
  %v3693 = vrot.slane %v2824, 1
  %3695 = vst.msk [vmem:[#allocation2 + $0x5e8] sm:$0x80] %vm3160, %v3693
  %3696 = vst.msk [vmem:[#allocation2 + $0x5f8] sm:$0x7f] %vm3162, %v3693
  %v3698 = vrot.slane %v2825, 7
  %3700 = vst.msk [vmem:[#allocation2 + $0x610] sm:$0xfe] %vm3149, %v3698
  %3701 = vst.msk [vmem:[#allocation2 + $0x620] sm:$0x1] %vm3151, %v3698
  %3702 = vrot.lane.b32.xlu0 %v2825, 64
  %v3703 = vpop.permute.xlu0 %3702
  %3705 = vst.msk [vmem:[#allocation2 + $0x610] sm:$0xff] %vm3156, %v3703
  %v3706 = vrot.slane %v2825, 1
  %3708 = vst.msk [vmem:[#allocation2 + $0x608] sm:$0x80] %vm3160, %v3706
  %3709 = vst.msk [vmem:[#allocation2 + $0x618] sm:$0x7f] %vm3162, %v3706
  %v3711 = vrot.slane %v2826, 7
  %3713 = vst.msk [vmem:[#allocation2 + $0x630] sm:$0xfe] %vm3149, %v3711
  %3714 = vst.msk [vmem:[#allocation2 + $0x640] sm:$0x1] %vm3151, %v3711
  %3715 = vrot.lane.b32.xlu0 %v2826, 64
  %v3716 = vpop.permute.xlu0 %3715
  %3718 = vst.msk [vmem:[#allocation2 + $0x630] sm:$0xff] %vm3156, %v3716
  %v3719 = vrot.slane %v2826, 1
  %3721 = vst.msk [vmem:[#allocation2 + $0x628] sm:$0x80] %vm3160, %v3719
  %3722 = vst.msk [vmem:[#allocation2 + $0x638] sm:$0x7f] %vm3162, %v3719
  %v3724 = vrot.slane %v2827, 7
  %3726 = vst.msk [vmem:[#allocation2 + $0x650] sm:$0xfe] %vm3149, %v3724
  %3727 = vst.msk [vmem:[#allocation2 + $0x660] sm:$0x1] %vm3151, %v3724
  %3728 = vrot.lane.b32.xlu0 %v2827, 64
  %v3729 = vpop.permute.xlu0 %3728
  %3731 = vst.msk [vmem:[#allocation2 + $0x650] sm:$0xff] %vm3156, %v3729
  %v3732 = vrot.slane %v2827, 1
  %3734 = vst.msk [vmem:[#allocation2 + $0x648] sm:$0x80] %vm3160, %v3732
  %3735 = vst.msk [vmem:[#allocation2 + $0x658] sm:$0x7f] %vm3162, %v3732
  %v3737 = vrot.slane %v2828, 7
  %3739 = vst.msk [vmem:[#allocation2 + $0x670] sm:$0xfe] %vm3149, %v3737
  %3740 = vst.msk [vmem:[#allocation2 + $0x680] sm:$0x1] %vm3151, %v3737
  %3741 = vrot.lane.b32.xlu0 %v2828, 64
  %v3742 = vpop.permute.xlu0 %3741
  %3744 = vst.msk [vmem:[#allocation2 + $0x670] sm:$0xff] %vm3156, %v3742
  %v3745 = vrot.slane %v2828, 1
  %3747 = vst.msk [vmem:[#allocation2 + $0x668] sm:$0x80] %vm3160, %v3745
  %3748 = vst.msk [vmem:[#allocation2 + $0x678] sm:$0x7f] %vm3162, %v3745
  %v3750 = vrot.slane %v2829, 7
  %3752 = vst.msk [vmem:[#allocation2 + $0x690] sm:$0xfe] %vm3149, %v3750
  %3753 = vst.msk [vmem:[#allocation2 + $0x6a0] sm:$0x1] %vm3151, %v3750
  %3754 = vrot.lane.b32.xlu0 %v2829, 64
  %v3755 = vpop.permute.xlu0 %3754
  %3757 = vst.msk [vmem:[#allocation2 + $0x690] sm:$0xff] %vm3156, %v3755
  %v3758 = vrot.slane %v2829, 1
  %3760 = vst.msk [vmem:[#allocation2 + $0x688] sm:$0x80] %vm3160, %v3758
  %3761 = vst.msk [vmem:[#allocation2 + $0x698] sm:$0x7f] %vm3162, %v3758
  %v3763 = vrot.slane %v2830, 7
  %3765 = vst.msk [vmem:[#allocation2 + $0x6b0] sm:$0xfe] %vm3149, %v3763
  %3766 = vst.msk [vmem:[#allocation2 + $0x6c0] sm:$0x1] %vm3151, %v3763
  %3767 = vrot.lane.b32.xlu0 %v2830, 64
  %v3768 = vpop.permute.xlu0 %3767
  %3770 = vst.msk [vmem:[#allocation2 + $0x6b0] sm:$0xff] %vm3156, %v3768
  %v3771 = vrot.slane %v2830, 1
  %3773 = vst.msk [vmem:[#allocation2 + $0x6a8] sm:$0x80] %vm3160, %v3771
  %3774 = vst.msk [vmem:[#allocation2 + $0x6b8] sm:$0x7f] %vm3162, %v3771
  %v3776 = vrot.slane %v2831, 7
  %3778 = vst.msk [vmem:[#allocation2 + $0x6f0] sm:$0xfe] %vm3149, %v3776
  %3779 = vst.msk [vmem:[#allocation2 + $0x700] sm:$0x1] %vm3151, %v3776
  %3780 = vrot.lane.b32.xlu0 %v2831, 64
  %v3781 = vpop.permute.xlu0 %3780
  %3783 = vst.msk [vmem:[#allocation2 + $0x6f0] sm:$0xff] %vm3156, %v3781
  %v3784 = vrot.slane %v2831, 1
  %3786 = vst.msk [vmem:[#allocation2 + $0x6e8] sm:$0x80] %vm3160, %v3784
  %3787 = vst.msk [vmem:[#allocation2 + $0x6f8] sm:$0x7f] %vm3162, %v3784
  %v3789 = vrot.slane %v2832, 7
  %3791 = vst.msk [vmem:[#allocation2 + $0x710] sm:$0xfe] %vm3149, %v3789
  %3792 = vst.msk [vmem:[#allocation2 + $0x720] sm:$0x1] %vm3151, %v3789
  %3793 = vrot.lane.b32.xlu0 %v2832, 64
  %v3794 = vpop.permute.xlu0 %3793
  %3796 = vst.msk [vmem:[#allocation2 + $0x710] sm:$0xff] %vm3156, %v3794
  %v3797 = vrot.slane %v2832, 1
  %3799 = vst.msk [vmem:[#allocation2 + $0x708] sm:$0x80] %vm3160, %v3797
  %3800 = vst.msk [vmem:[#allocation2 + $0x718] sm:$0x7f] %vm3162, %v3797
  %v3802 = vrot.slane %v2833, 7
  %3804 = vst.msk [vmem:[#allocation2 + $0x730] sm:$0xfe] %vm3149, %v3802
  %3805 = vst.msk [vmem:[#allocation2 + $0x740] sm:$0x1] %vm3151, %v3802
  %3806 = vrot.lane.b32.xlu0 %v2833, 64
  %v3807 = vpop.permute.xlu0 %3806
  %3809 = vst.msk [vmem:[#allocation2 + $0x730] sm:$0xff] %vm3156, %v3807
  %v3810 = vrot.slane %v2833, 1
  %3812 = vst.msk [vmem:[#allocation2 + $0x728] sm:$0x80] %vm3160, %v3810
  %3813 = vst.msk [vmem:[#allocation2 + $0x738] sm:$0x7f] %vm3162, %v3810
  %v3815 = vrot.slane %v2834, 7
  %3817 = vst.msk [vmem:[#allocation2 + $0x750] sm:$0xfe] %vm3149, %v3815
  %3818 = vst.msk [vmem:[#allocation2 + $0x760] sm:$0x1] %vm3151, %v3815
  %3819 = vrot.lane.b32.xlu0 %v2834, 64
  %v3820 = vpop.permute.xlu0 %3819
  %3822 = vst.msk [vmem:[#allocation2 + $0x750] sm:$0xff] %vm3156, %v3820
  %v3823 = vrot.slane %v2834, 1
  %3825 = vst.msk [vmem:[#allocation2 + $0x748] sm:$0x80] %vm3160, %v3823
  %3826 = vst.msk [vmem:[#allocation2 + $0x758] sm:$0x7f] %vm3162, %v3823
  %v3828 = vrot.slane %v2835, 7
  %3830 = vst.msk [vmem:[#allocation2 + $0x770] sm:$0xfe] %vm3149, %v3828
  %3831 = vst.msk [vmem:[#allocation2 + $0x780] sm:$0x1] %vm3151, %v3828
  %3832 = vrot.lane.b32.xlu0 %v2835, 64
  %v3833 = vpop.permute.xlu0 %3832
  %3835 = vst.msk [vmem:[#allocation2 + $0x770] sm:$0xff] %vm3156, %v3833
  %v3836 = vrot.slane %v2835, 1
  %3838 = vst.msk [vmem:[#allocation2 + $0x768] sm:$0x80] %vm3160, %v3836
  %3839 = vst.msk [vmem:[#allocation2 + $0x778] sm:$0x7f] %vm3162, %v3836
  %v3841 = vrot.slane %v2836, 7
  %3843 = vst.msk [vmem:[#allocation2 + $0x790] sm:$0xfe] %vm3149, %v3841
  %3844 = vst.msk [vmem:[#allocation2 + $0x7a0] sm:$0x1] %vm3151, %v3841
  %3845 = vrot.lane.b32.xlu0 %v2836, 64
  %v3846 = vpop.permute.xlu0 %3845
  %3848 = vst.msk [vmem:[#allocation2 + $0x790] sm:$0xff] %vm3156, %v3846
  %v3849 = vrot.slane %v2836, 1
  %3851 = vst.msk [vmem:[#allocation2 + $0x788] sm:$0x80] %vm3160, %v3849
  %3852 = vst.msk [vmem:[#allocation2 + $0x798] sm:$0x7f] %vm3162, %v3849
  %v3854 = vrot.slane %v2837, 7
  %3856 = vst.msk [vmem:[#allocation2 + $0x7b0] sm:$0xfe] %vm3149, %v3854
  %3857 = vst.msk [vmem:[#allocation2 + $0x7c0] sm:$0x1] %vm3151, %v3854
  %3858 = vrot.lane.b32.xlu0 %v2837, 64
  %v3859 = vpop.permute.xlu0 %3858
  %3861 = vst.msk [vmem:[#allocation2 + $0x7b0] sm:$0xff] %vm3156, %v3859
  %v3862 = vrot.slane %v2837, 1
  %3864 = vst.msk [vmem:[#allocation2 + $0x7a8] sm:$0x80] %vm3160, %v3862
  %3865 = vst.msk [vmem:[#allocation2 + $0x7b8] sm:$0x7f] %vm3162, %v3862
  %v3867 = vrot.slane %v2838, 7
  %3869 = vst.msk [vmem:[#allocation2 + $0x7d0] sm:$0xfe] %vm3149, %v3867
  %3870 = vst.msk [vmem:[#allocation2 + $0x7e0] sm:$0x1] %vm3151, %v3867
  %3871 = vrot.lane.b32.xlu0 %v2838, 64
  %v3872 = vpop.permute.xlu0 %3871
  %3874 = vst.msk [vmem:[#allocation2 + $0x7d0] sm:$0xff] %vm3156, %v3872
  %v3875 = vrot.slane %v2838, 1
  %3877 = vst.msk [vmem:[#allocation2 + $0x7c8] sm:$0x80] %vm3160, %v3875
  %3878 = vst.msk [vmem:[#allocation2 + $0x7d8] sm:$0x7f] %vm3162, %v3875
  %v3880 = vrot.slane %v2839, 7
  %3882 = vst.msk [vmem:[#allocation2 + $0x810] sm:$0xfe] %vm3149, %v3880
  %3883 = vst.msk [vmem:[#allocation2 + $0x820] sm:$0x1] %vm3151, %v3880
  %3884 = vrot.lane.b32.xlu0 %v2839, 64
  %v3885 = vpop.permute.xlu0 %3884
  %3887 = vst.msk [vmem:[#allocation2 + $0x810] sm:$0xff] %vm3156, %v3885
  %v3888 = vrot.slane %v2839, 1
  %3890 = vst.msk [vmem:[#allocation2 + $0x808] sm:$0x80] %vm3160, %v3888
  %3891 = vst.msk [vmem:[#allocation2 + $0x818] sm:$0x7f] %vm3162, %v3888
  %v3893 = vrot.slane %v2840, 7
  %3895 = vst.msk [vmem:[#allocation2 + $0x830] sm:$0xfe] %vm3149, %v3893
  %3896 = vst.msk [vmem:[#allocation2 + $0x840] sm:$0x1] %vm3151, %v3893
  %3897 = vrot.lane.b32.xlu0 %v2840, 64
  %v3898 = vpop.permute.xlu0 %3897
  %3900 = vst.msk [vmem:[#allocation2 + $0x830] sm:$0xff] %vm3156, %v3898
  %v3901 = vrot.slane %v2840, 1
  %3903 = vst.msk [vmem:[#allocation2 + $0x828] sm:$0x80] %vm3160, %v3901
  %3904 = vst.msk [vmem:[#allocation2 + $0x838] sm:$0x7f] %vm3162, %v3901
  %v3906 = vrot.slane %v2841, 7
  %3908 = vst.msk [vmem:[#allocation2 + $0x850] sm:$0xfe] %vm3149, %v3906
  %3909 = vst.msk [vmem:[#allocation2 + $0x860] sm:$0x1] %vm3151, %v3906
  %3910 = vrot.lane.b32.xlu0 %v2841, 64
  %v3911 = vpop.permute.xlu0 %3910
  %3913 = vst.msk [vmem:[#allocation2 + $0x850] sm:$0xff] %vm3156, %v3911
  %v3914 = vrot.slane %v2841, 1
  %3916 = vst.msk [vmem:[#allocation2 + $0x848] sm:$0x80] %vm3160, %v3914
  %3917 = vst.msk [vmem:[#allocation2 + $0x858] sm:$0x7f] %vm3162, %v3914
  %v3919 = vrot.slane %v2842, 7
  %3921 = vst.msk [vmem:[#allocation2 + $0x870] sm:$0xfe] %vm3149, %v3919
  %3922 = vst.msk [vmem:[#allocation2 + $0x880] sm:$0x1] %vm3151, %v3919
  %3923 = vrot.lane.b32.xlu0 %v2842, 64
  %v3924 = vpop.permute.xlu0 %3923
  %3926 = vst.msk [vmem:[#allocation2 + $0x870] sm:$0xff] %vm3156, %v3924
  %v3927 = vrot.slane %v2842, 1
  %3929 = vst.msk [vmem:[#allocation2 + $0x868] sm:$0x80] %vm3160, %v3927
  %3930 = vst.msk [vmem:[#allocation2 + $0x878] sm:$0x7f] %vm3162, %v3927
  %v3932 = vrot.slane %v2843, 7
  %3934 = vst.msk [vmem:[#allocation2 + $0x890] sm:$0xfe] %vm3149, %v3932
  %3935 = vst.msk [vmem:[#allocation2 + $0x8a0] sm:$0x1] %vm3151, %v3932
  %3936 = vrot.lane.b32.xlu0 %v2843, 64
  %v3937 = vpop.permute.xlu0 %3936
  %3939 = vst.msk [vmem:[#allocation2 + $0x890] sm:$0xff] %vm3156, %v3937
  %v3940 = vrot.slane %v2843, 1
  %3942 = vst.msk [vmem:[#allocation2 + $0x888] sm:$0x80] %vm3160, %v3940
  %3943 = vst.msk [vmem:[#allocation2 + $0x898] sm:$0x7f] %vm3162, %v3940
  %v3945 = vrot.slane %v2844, 7
  %3947 = vst.msk [vmem:[#allocation2 + $0x8b0] sm:$0xfe] %vm3149, %v3945
  %3948 = vst.msk [vmem:[#allocation2 + $0x8c0] sm:$0x1] %vm3151, %v3945
  %3949 = vrot.lane.b32.xlu0 %v2844, 64
  %v3950 = vpop.permute.xlu0 %3949
  %3952 = vst.msk [vmem:[#allocation2 + $0x8b0] sm:$0xff] %vm3156, %v3950
  %v3953 = vrot.slane %v2844, 1
  %3955 = vst.msk [vmem:[#allocation2 + $0x8a8] sm:$0x80] %vm3160, %v3953
  %3956 = vst.msk [vmem:[#allocation2 + $0x8b8] sm:$0x7f] %vm3162, %v3953
  %v3958 = vrot.slane %v2845, 7
  %3960 = vst.msk [vmem:[#allocation2 + $0x8d0] sm:$0xfe] %vm3149, %v3958
  %3961 = vst.msk [vmem:[#allocation2 + $0x8e0] sm:$0x1] %vm3151, %v3958
  %3962 = vrot.lane.b32.xlu0 %v2845, 64
  %v3963 = vpop.permute.xlu0 %3962
  %3965 = vst.msk [vmem:[#allocation2 + $0x8d0] sm:$0xff] %vm3156, %v3963
  %v3966 = vrot.slane %v2845, 1
  %3968 = vst.msk [vmem:[#allocation2 + $0x8c8] sm:$0x80] %vm3160, %v3966
  %3969 = vst.msk [vmem:[#allocation2 + $0x8d8] sm:$0x7f] %vm3162, %v3966
  %v3971 = vrot.slane %v2846, 7
  %3973 = vst.msk [vmem:[#allocation2 + $0x8f0] sm:$0xfe] %vm3149, %v3971
  %3974 = vst.msk [vmem:[#allocation2 + $0x900] sm:$0x1] %vm3151, %v3971
  %3975 = vrot.lane.b32.xlu0 %v2846, 64
  %v3976 = vpop.permute.xlu0 %3975
  %3978 = vst.msk [vmem:[#allocation2 + $0x8f0] sm:$0xff] %vm3156, %v3976
  %v3979 = vrot.slane %v2846, 1
  %3981 = vst.msk [vmem:[#allocation2 + $0x8e8] sm:$0x80] %vm3160, %v3979
  %3982 = vst.msk [vmem:[#allocation2 + $0x8f8] sm:$0x7f] %vm3162, %v3979
  %v3983 = vld [vmem:[#allocation2 + $0x10] sm:$0xff]
  %v3984 = vld [vmem:[#allocation2 + $0x18] sm:$0xff]
  %v3985 = vld [vmem:[#allocation2 + $0x20] sm:$0xff]
  %v3986 = vld [vmem:[#allocation2 + $0x28] sm:$0xff]
  %v3987 = vld [vmem:[#allocation2 + $0x30] sm:$0xff]
  %v3988 = vld [vmem:[#allocation2 + $0x38] sm:$0xff]
  %v3989 = vld [vmem:[#allocation2 + $0x40] sm:$0xff]
  %v3990 = vld [vmem:[#allocation2 + $0x48] sm:$0xff]
  %v3991 = vld [vmem:[#allocation2 + $0x50] sm:$0xff]
  %v3992 = vld [vmem:[#allocation2 + $0x58] sm:$0xff]
  %v3993 = vld [vmem:[#allocation2 + $0x60] sm:$0xff]
  %v3994 = vld [vmem:[#allocation2 + $0x68] sm:$0xff]
  %v3995 = vld [vmem:[#allocation2 + $0x70] sm:$0xff]
  %v3996 = vld [vmem:[#allocation2 + $0x78] sm:$0xff]
  %v3997 = vld [vmem:[#allocation2 + $0x80] sm:$0xff]
  %v3998 = vld [vmem:[#allocation2 + $0x88] sm:$0xff]
  %v3999 = vld [vmem:[#allocation2 + $0x90] sm:$0xff]
  %v4000 = vld [vmem:[#allocation2 + $0x98] sm:$0xff]
  %v4001 = vld [vmem:[#allocation2 + $0xa0] sm:$0xff]
  %v4002 = vld [vmem:[#allocation2 + $0xa8] sm:$0xff]
  %v4003 = vld [vmem:[#allocation2 + $0xb0] sm:$0xff]
  %v4004 = vld [vmem:[#allocation2 + $0xb8] sm:$0xff]
  %v4005 = vld [vmem:[#allocation2 + $0xc0] sm:$0xff]
  %v4006 = vld [vmem:[#allocation2 + $0xc8] sm:$0xff]
  %v4007 = vld [vmem:[#allocation2 + $0xd0] sm:$0xff]
  %v4008 = vld [vmem:[#allocation2 + $0xd8] sm:$0xff]
  %v4009 = vld [vmem:[#allocation2 + $0xe0] sm:$0xff]
  %v4010 = vld [vmem:[#allocation2 + $0xe8] sm:$0xff]
  %v4011 = vld [vmem:[#allocation2 + $0xf0] sm:$0xff]
  %v4012 = vld [vmem:[#allocation2 + $0xf8] sm:$0xff]
  %v4013 = vld [vmem:[#allocation2 + $0x100] sm:$0xff]
  %v4014 = vld [vmem:[#allocation2 + $0x108] sm:$0xff]
  %v4015 = vld [vmem:[#allocation2 + $0x110] sm:$0xff]
  %v4016 = vld [vmem:[#allocation2 + $0x118] sm:$0xff]
  %v4017 = vld [vmem:[#allocation2 + $0x120] sm:$0xff]
  %v4018 = vld [vmem:[#allocation2 + $0x128] sm:$0xff]
  %v4019 = vld [vmem:[#allocation2 + $0x130] sm:$0xff]
  %v4020 = vld [vmem:[#allocation2 + $0x138] sm:$0xff]
  %v4021 = vld [vmem:[#allocation2 + $0x140] sm:$0xff]
  %v4022 = vld [vmem:[#allocation2 + $0x148] sm:$0xff]
  %v4023 = vld [vmem:[#allocation2 + $0x150] sm:$0xff]
  %v4024 = vld [vmem:[#allocation2 + $0x158] sm:$0xff]
  %v4025 = vld [vmem:[#allocation2 + $0x160] sm:$0xff]
  %v4026 = vld [vmem:[#allocation2 + $0x168] sm:$0xff]
  %v4027 = vld [vmem:[#allocation2 + $0x170] sm:$0xff]
  %v4028 = vld [vmem:[#allocation2 + $0x178] sm:$0xff]
  %v4029 = vld [vmem:[#allocation2 + $0x180] sm:$0xff]
  %v4030 = vld [vmem:[#allocation2 + $0x188] sm:$0xff]
  %v4031 = vld [vmem:[#allocation2 + $0x190] sm:$0xff]
  %v4032 = vld [vmem:[#allocation2 + $0x198] sm:$0xff]
  %v4033 = vld [vmem:[#allocation2 + $0x1a0] sm:$0xff]
  %v4034 = vld [vmem:[#allocation2 + $0x1a8] sm:$0xff]
  %v4035 = vld [vmem:[#allocation2 + $0x1b0] sm:$0xff]
  %v4036 = vld [vmem:[#allocation2 + $0x1b8] sm:$0xff]
  %v4037 = vld [vmem:[#allocation2 + $0x1c0] sm:$0xff]
  %v4038 = vld [vmem:[#allocation2 + $0x1c8] sm:$0xff]
  %v4039 = vld [vmem:[#allocation2 + $0x1d0] sm:$0xff]
  %v4040 = vld [vmem:[#allocation2 + $0x1d8] sm:$0xff]
  %v4041 = vld [vmem:[#allocation2 + $0x1e0] sm:$0xff]
  %v4042 = vld [vmem:[#allocation2 + $0x1e8] sm:$0xff]
  %v4043 = vld [vmem:[#allocation2 + $0x1f0] sm:$0xff]
  %v4044 = vld [vmem:[#allocation2 + $0x1f8] sm:$0xff]
  %v4045 = vld [vmem:[#allocation2 + $0x200] sm:$0xff]
  %v4046 = vld [vmem:[#allocation2 + $0x208] sm:$0xff]
  %v4047 = vld [vmem:[#allocation2 + $0x210] sm:$0xff]
  %v4048 = vld [vmem:[#allocation2 + $0x218] sm:$0xff]
  %v4049 = vld [vmem:[#allocation2 + $0x220] sm:$0xff]
  %v4050 = vld [vmem:[#allocation2 + $0x228] sm:$0xff]
  %v4051 = vld [vmem:[#allocation2 + $0x230] sm:$0xff]
  %v4052 = vld [vmem:[#allocation2 + $0x238] sm:$0xff]
  %v4053 = vld [vmem:[#allocation2 + $0x240] sm:$0xff]
  %v4054 = vld [vmem:[#allocation2 + $0x248] sm:$0xff]
  %v4055 = vld [vmem:[#allocation2 + $0x250] sm:$0xff]
  %v4056 = vld [vmem:[#allocation2 + $0x258] sm:$0xff]
  %v4057 = vld [vmem:[#allocation2 + $0x260] sm:$0xff]
  %v4058 = vld [vmem:[#allocation2 + $0x268] sm:$0xff]
  %v4059 = vld [vmem:[#allocation2 + $0x270] sm:$0xff]
  %v4060 = vld [vmem:[#allocation2 + $0x278] sm:$0xff]
  %v4061 = vld [vmem:[#allocation2 + $0x280] sm:$0xff]
  %v4062 = vld [vmem:[#allocation2 + $0x288] sm:$0xff]
  %v4063 = vld [vmem:[#allocation2 + $0x290] sm:$0xff]
  %v4064 = vld [vmem:[#allocation2 + $0x298] sm:$0xff]
  %v4065 = vld [vmem:[#allocation2 + $0x2a0] sm:$0xff]
  %v4066 = vld [vmem:[#allocation2 + $0x2a8] sm:$0xff]
  %v4067 = vld [vmem:[#allocation2 + $0x2b0] sm:$0xff]
  %v4068 = vld [vmem:[#allocation2 + $0x2b8] sm:$0xff]
  %v4069 = vld [vmem:[#allocation2 + $0x2c0] sm:$0xff]
  %v4070 = vld [vmem:[#allocation2 + $0x2c8] sm:$0xff]
  %v4071 = vld [vmem:[#allocation2 + $0x2d0] sm:$0xff]
  %v4072 = vld [vmem:[#allocation2 + $0x2d8] sm:$0xff]
  %v4073 = vld [vmem:[#allocation2 + $0x2e0] sm:$0xff]
  %v4074 = vld [vmem:[#allocation2 + $0x2e8] sm:$0xff]
  %v4075 = vld [vmem:[#allocation2 + $0x2f0] sm:$0xff]
  %v4076 = vld [vmem:[#allocation2 + $0x2f8] sm:$0xff]
  %v4077 = vld [vmem:[#allocation2 + $0x300] sm:$0xff]
  %v4078 = vld [vmem:[#allocation2 + $0x308] sm:$0xff]
  %v4079 = vld [vmem:[#allocation2 + $0x310] sm:$0xff]
  %v4080 = vld [vmem:[#allocation2 + $0x318] sm:$0xff]
  %v4081 = vld [vmem:[#allocation2 + $0x320] sm:$0xff]
  %v4082 = vld [vmem:[#allocation2 + $0x328] sm:$0xff]
  %v4083 = vld [vmem:[#allocation2 + $0x330] sm:$0xff]
  %v4084 = vld [vmem:[#allocation2 + $0x338] sm:$0xff]
  %v4085 = vld [vmem:[#allocation2 + $0x340] sm:$0xff]
  %v4086 = vld [vmem:[#allocation2 + $0x348] sm:$0xff]
  %v4087 = vld [vmem:[#allocation2 + $0x350] sm:$0xff]
  %v4088 = vld [vmem:[#allocation2 + $0x358] sm:$0xff]
  %v4089 = vld [vmem:[#allocation2 + $0x360] sm:$0xff]
  %v4090 = vld [vmem:[#allocation2 + $0x368] sm:$0xff]
  %v4091 = vld [vmem:[#allocation2 + $0x370] sm:$0xff]
  %v4092 = vld [vmem:[#allocation2 + $0x378] sm:$0xff]
  %v4093 = vld [vmem:[#allocation2 + $0x380] sm:$0xff]
  %v4094 = vld [vmem:[#allocation2 + $0x388] sm:$0xff]
  %v4095 = vld [vmem:[#allocation2 + $0x390] sm:$0xff]
  %v4096 = vld [vmem:[#allocation2 + $0x398] sm:$0xff]
  %v4097 = vld [vmem:[#allocation2 + $0x3a0] sm:$0xff]
  %v4098 = vld [vmem:[#allocation2 + $0x3a8] sm:$0xff]
  %v4099 = vld [vmem:[#allocation2 + $0x3b0] sm:$0xff]
  %v4100 = vld [vmem:[#allocation2 + $0x3b8] sm:$0xff]
  %v4101 = vld [vmem:[#allocation2 + $0x3c0] sm:$0xff]
  %v4102 = vld [vmem:[#allocation2 + $0x3c8] sm:$0xff]
  %v4103 = vld [vmem:[#allocation2 + $0x3d0] sm:$0xff]
  %v4104 = vld [vmem:[#allocation2 + $0x3d8] sm:$0xff]
  %v4105 = vld [vmem:[#allocation2 + $0x3e0] sm:$0xff]
  %v4106 = vld [vmem:[#allocation2 + $0x3e8] sm:$0xff]
  %v4107 = vld [vmem:[#allocation2 + $0x3f0] sm:$0xff]
  %v4108 = vld [vmem:[#allocation2 + $0x3f8] sm:$0xff]
  %v4109 = vld [vmem:[#allocation2 + $0x400] sm:$0xff]
  %v4110 = vld [vmem:[#allocation2 + $0x408] sm:$0xff]
  %v4111 = vld [vmem:[#allocation2 + $0x410] sm:$0xff]
  %v4112 = vld [vmem:[#allocation2 + $0x418] sm:$0xff]
  %v4113 = vld [vmem:[#allocation2 + $0x420] sm:$0xff]
  %v4114 = vld [vmem:[#allocation2 + $0x428] sm:$0xff]
  %v4115 = vld [vmem:[#allocation2 + $0x430] sm:$0xff]
  %v4116 = vld [vmem:[#allocation2 + $0x438] sm:$0xff]
  %v4117 = vld [vmem:[#allocation2 + $0x440] sm:$0xff]
  %v4118 = vld [vmem:[#allocation2 + $0x448] sm:$0xff]
  %v4119 = vld [vmem:[#allocation2 + $0x450] sm:$0xff]
  %v4120 = vld [vmem:[#allocation2 + $0x458] sm:$0xff]
  %v4121 = vld [vmem:[#allocation2 + $0x460] sm:$0xff]
  %v4122 = vld [vmem:[#allocation2 + $0x468] sm:$0xff]
  %v4123 = vld [vmem:[#allocation2 + $0x470] sm:$0xff]
  %v4124 = vld [vmem:[#allocation2 + $0x478] sm:$0xff]
  %v4125 = vld [vmem:[#allocation2 + $0x480] sm:$0xff]
  %v4126 = vld [vmem:[#allocation2 + $0x488] sm:$0xff]
  %v4127 = vld [vmem:[#allocation2 + $0x490] sm:$0xff]
  %v4128 = vld [vmem:[#allocation2 + $0x498] sm:$0xff]
  %v4129 = vld [vmem:[#allocation2 + $0x4a0] sm:$0xff]
  %v4130 = vld [vmem:[#allocation2 + $0x4a8] sm:$0xff]
  %v4131 = vld [vmem:[#allocation2 + $0x4b0] sm:$0xff]
  %v4132 = vld [vmem:[#allocation2 + $0x4b8] sm:$0xff]
  %v4133 = vld [vmem:[#allocation2 + $0x4c0] sm:$0xff]
  %v4134 = vld [vmem:[#allocation2 + $0x4c8] sm:$0xff]
  %v4135 = vld [vmem:[#allocation2 + $0x4d0] sm:$0xff]
  %v4136 = vld [vmem:[#allocation2 + $0x4d8] sm:$0xff]
  %v4137 = vld [vmem:[#allocation2 + $0x4e0] sm:$0xff]
  %v4138 = vld [vmem:[#allocation2 + $0x4e8] sm:$0xff]
  %v4139 = vld [vmem:[#allocation2 + $0x4f0] sm:$0xff]
  %v4140 = vld [vmem:[#allocation2 + $0x4f8] sm:$0xff]
  %v4141 = vld [vmem:[#allocation2 + $0x500] sm:$0xff]
  %v4142 = vld [vmem:[#allocation2 + $0x508] sm:$0xff]
  %v4143 = vld [vmem:[#allocation2 + $0x510] sm:$0xff]
  %v4144 = vld [vmem:[#allocation2 + $0x518] sm:$0xff]
  %v4145 = vld [vmem:[#allocation2 + $0x520] sm:$0xff]
  %v4146 = vld [vmem:[#allocation2 + $0x528] sm:$0xff]
  %v4147 = vld [vmem:[#allocation2 + $0x530] sm:$0xff]
  %v4148 = vld [vmem:[#allocation2 + $0x538] sm:$0xff]
  %v4149 = vld [vmem:[#allocation2 + $0x540] sm:$0xff]
  %v4150 = vld [vmem:[#allocation2 + $0x548] sm:$0xff]
  %v4151 = vld [vmem:[#allocation2 + $0x550] sm:$0xff]
  %v4152 = vld [vmem:[#allocation2 + $0x558] sm:$0xff]
  %v4153 = vld [vmem:[#allocation2 + $0x560] sm:$0xff]
  %v4154 = vld [vmem:[#allocation2 + $0x568] sm:$0xff]
  %v4155 = vld [vmem:[#allocation2 + $0x570] sm:$0xff]
  %v4156 = vld [vmem:[#allocation2 + $0x578] sm:$0xff]
  %v4157 = vld [vmem:[#allocation2 + $0x580] sm:$0xff]
  %v4158 = vld [vmem:[#allocation2 + $0x588] sm:$0xff]
  %v4159 = vld [vmem:[#allocation2 + $0x590] sm:$0xff]
  %v4160 = vld [vmem:[#allocation2 + $0x598] sm:$0xff]
  %v4161 = vld [vmem:[#allocation2 + $0x5a0] sm:$0xff]
  %v4162 = vld [vmem:[#allocation2 + $0x5a8] sm:$0xff]
  %v4163 = vld [vmem:[#allocation2 + $0x5b0] sm:$0xff]
  %v4164 = vld [vmem:[#allocation2 + $0x5b8] sm:$0xff]
  %v4165 = vld [vmem:[#allocation2 + $0x5c0] sm:$0xff]
  %v4166 = vld [vmem:[#allocation2 + $0x5c8] sm:$0xff]
  %v4167 = vld [vmem:[#allocation2 + $0x5d0] sm:$0xff]
  %v4168 = vld [vmem:[#allocation2 + $0x5d8] sm:$0xff]
  %v4169 = vld [vmem:[#allocation2 + $0x5e0] sm:$0xff]
  %v4170 = vld [vmem:[#allocation2 + $0x5e8] sm:$0xff]
  %v4171 = vld [vmem:[#allocation2 + $0x5f0] sm:$0xff]
  %v4172 = vld [vmem:[#allocation2 + $0x5f8] sm:$0xff]
  %v4173 = vld [vmem:[#allocation2 + $0x600] sm:$0xff]
  %v4174 = vld [vmem:[#allocation2 + $0x608] sm:$0xff]
  %v4175 = vld [vmem:[#allocation2 + $0x610] sm:$0xff]
  %v4176 = vld [vmem:[#allocation2 + $0x618] sm:$0xff]
  %v4177 = vld [vmem:[#allocation2 + $0x620] sm:$0xff]
  %v4178 = vld [vmem:[#allocation2 + $0x628] sm:$0xff]
  %v4179 = vld [vmem:[#allocation2 + $0x630] sm:$0xff]
  %v4180 = vld [vmem:[#allocation2 + $0x638] sm:$0xff]
  %v4181 = vld [vmem:[#allocation2 + $0x640] sm:$0xff]
  %v4182 = vld [vmem:[#allocation2 + $0x648] sm:$0xff]
  %v4183 = vld [vmem:[#allocation2 + $0x650] sm:$0xff]
  %v4184 = vld [vmem:[#allocation2 + $0x658] sm:$0xff]
  %v4185 = vld [vmem:[#allocation2 + $0x660] sm:$0xff]
  %v4186 = vld [vmem:[#allocation2 + $0x668] sm:$0xff]
  %v4187 = vld [vmem:[#allocation2 + $0x670] sm:$0xff]
  %v4188 = vld [vmem:[#allocation2 + $0x678] sm:$0xff]
  %v4189 = vld [vmem:[#allocation2 + $0x680] sm:$0xff]
  %v4190 = vld [vmem:[#allocation2 + $0x688] sm:$0xff]
  %v4191 = vld [vmem:[#allocation2 + $0x690] sm:$0xff]
  %v4192 = vld [vmem:[#allocation2 + $0x698] sm:$0xff]
  %v4193 = vld [vmem:[#allocation2 + $0x6a0] sm:$0xff]
  %v4194 = vld [vmem:[#allocation2 + $0x6a8] sm:$0xff]
  %v4195 = vld [vmem:[#allocation2 + $0x6b0] sm:$0xff]
  %v4196 = vld [vmem:[#allocation2 + $0x6b8] sm:$0xff]
  %v4197 = vld [vmem:[#allocation2 + $0x6c0] sm:$0xff]
  %v4198 = vld [vmem:[#allocation2 + $0x6c8] sm:$0xff]
  %v4199 = vld [vmem:[#allocation2 + $0x6d0] sm:$0xff]
  %v4200 = vld [vmem:[#allocation2 + $0x6d8] sm:$0xff]
  %v4201 = vld [vmem:[#allocation2 + $0x6e0] sm:$0xff]
  %v4202 = vld [vmem:[#allocation2 + $0x6e8] sm:$0xff]
  %v4203 = vld [vmem:[#allocation2 + $0x6f0] sm:$0xff]
  %v4204 = vld [vmem:[#allocation2 + $0x6f8] sm:$0xff]
  %v4205 = vld [vmem:[#allocation2 + $0x700] sm:$0xff]
  %v4206 = vld [vmem:[#allocation2 + $0x708] sm:$0xff]
  %v4207 = vld [vmem:[#allocation2 + $0x710] sm:$0xff]
  %v4208 = vld [vmem:[#allocation2 + $0x718] sm:$0xff]
  %v4209 = vld [vmem:[#allocation2 + $0x720] sm:$0xff]
  %v4210 = vld [vmem:[#allocation2 + $0x728] sm:$0xff]
  %v4211 = vld [vmem:[#allocation2 + $0x730] sm:$0xff]
  %v4212 = vld [vmem:[#allocation2 + $0x738] sm:$0xff]
  %v4213 = vld [vmem:[#allocation2 + $0x740] sm:$0xff]
  %v4214 = vld [vmem:[#allocation2 + $0x748] sm:$0xff]
  %v4215 = vld [vmem:[#allocation2 + $0x750] sm:$0xff]
  %v4216 = vld [vmem:[#allocation2 + $0x758] sm:$0xff]
  %v4217 = vld [vmem:[#allocation2 + $0x760] sm:$0xff]
  %v4218 = vld [vmem:[#allocation2 + $0x768] sm:$0xff]
  %v4219 = vld [vmem:[#allocation2 + $0x770] sm:$0xff]
  %v4220 = vld [vmem:[#allocation2 + $0x778] sm:$0xff]
  %v4221 = vld [vmem:[#allocation2 + $0x780] sm:$0xff]
  %v4222 = vld [vmem:[#allocation2 + $0x788] sm:$0xff]
  %v4223 = vld [vmem:[#allocation2 + $0x790] sm:$0xff]
  %v4224 = vld [vmem:[#allocation2 + $0x798] sm:$0xff]
  %v4225 = vld [vmem:[#allocation2 + $0x7a0] sm:$0xff]
  %v4226 = vld [vmem:[#allocation2 + $0x7a8] sm:$0xff]
  %v4227 = vld [vmem:[#allocation2 + $0x7b0] sm:$0xff]
  %v4228 = vld [vmem:[#allocation2 + $0x7b8] sm:$0xff]
  %v4229 = vld [vmem:[#allocation2 + $0x7c0] sm:$0xff]
  %v4230 = vld [vmem:[#allocation2 + $0x7c8] sm:$0xff]
  %v4231 = vld [vmem:[#allocation2 + $0x7d0] sm:$0xff]
  %v4232 = vld [vmem:[#allocation2 + $0x7d8] sm:$0xff]
  %v4233 = vld [vmem:[#allocation2 + $0x7e0] sm:$0xff]
  %v4234 = vld [vmem:[#allocation2 + $0x7e8] sm:$0xff]
  %v4235 = vld [vmem:[#allocation2 + $0x7f0] sm:$0xff]
  %v4236 = vld [vmem:[#allocation2 + $0x7f8] sm:$0xff]
  %v4237 = vld [vmem:[#allocation2 + $0x800] sm:$0xff]
  %v4238 = vld [vmem:[#allocation2 + $0x808] sm:$0xff]
  %v4239 = vld [vmem:[#allocation2 + $0x810] sm:$0xff]
  %v4240 = vld [vmem:[#allocation2 + $0x818] sm:$0xff]
  %v4241 = vld [vmem:[#allocation2 + $0x820] sm:$0xff]
  %v4242 = vld [vmem:[#allocation2 + $0x828] sm:$0xff]
  %v4243 = vld [vmem:[#allocation2 + $0x830] sm:$0xff]
  %v4244 = vld [vmem:[#allocation2 + $0x838] sm:$0xff]
  %v4245 = vld [vmem:[#allocation2 + $0x840] sm:$0xff]
  %v4246 = vld [vmem:[#allocation2 + $0x848] sm:$0xff]
  %v4247 = vld [vmem:[#allocation2 + $0x850] sm:$0xff]
  %v4248 = vld [vmem:[#allocation2 + $0x858] sm:$0xff]
  %v4249 = vld [vmem:[#allocation2 + $0x860] sm:$0xff]
  %v4250 = vld [vmem:[#allocation2 + $0x868] sm:$0xff]
  %v4251 = vld [vmem:[#allocation2 + $0x870] sm:$0xff]
  %v4252 = vld [vmem:[#allocation2 + $0x878] sm:$0xff]
  %v4253 = vld [vmem:[#allocation2 + $0x880] sm:$0xff]
  %v4254 = vld [vmem:[#allocation2 + $0x888] sm:$0xff]
  %v4255 = vld [vmem:[#allocation2 + $0x890] sm:$0xff]
  %v4256 = vld [vmem:[#allocation2 + $0x898] sm:$0xff]
  %v4257 = vld [vmem:[#allocation2 + $0x8a0] sm:$0xff]
  %v4258 = vld [vmem:[#allocation2 + $0x8a8] sm:$0xff]
  %v4259 = vld [vmem:[#allocation2 + $0x8b0] sm:$0xff]
  %v4260 = vld [vmem:[#allocation2 + $0x8b8] sm:$0xff]
  %v4261 = vld [vmem:[#allocation2 + $0x8c0] sm:$0xff]
  %v4262 = vld [vmem:[#allocation2 + $0x8c8] sm:$0xff]
  %v4263 = vld [vmem:[#allocation2 + $0x8d0] sm:$0xff]
  %v4264 = vld [vmem:[#allocation2 + $0x8d8] sm:$0xff]
  %v4265 = vld [vmem:[#allocation2 + $0x8e0] sm:$0xff]
  %v4266 = vld [vmem:[#allocation2 + $0x8e8] sm:$0xff]
  %v4267 = vld [vmem:[#allocation2 + $0x8f0] sm:$0xff]
  %v4268 = vld [vmem:[#allocation2 + $0x8f8] sm:$0xff]
  %v4269 = vld [vmem:[#allocation2 + $0x900] sm:$0xff]
  %v4270 = vld [vmem:[#allocation2 + $0x908] sm:$0xff]
  %v4271 = vld [vmem:[%s3] sm:$0xff]
  %v4272 = vld [vmem:[%s3 + $0x8] sm:$0xff]
  %v4273 = vld [vmem:[%s3 + $0x10] sm:$0xff]
  %v4274 = vld [vmem:[%s3 + $0x18] sm:$0xff]
  %v4275 = vld [vmem:[%s3 + $0x20] sm:$0xff]
  %v4276 = vld [vmem:[%s3 + $0x28] sm:$0xff]
  %v4277 = vld [vmem:[%s3 + $0x30] sm:$0xff]
  %v4278 = vld [vmem:[%s3 + $0x38] sm:$0xff]
  %v4279 = vld [vmem:[%s3 + $0x40] sm:$0xff]
  %v4280 = vld [vmem:[%s3 + $0x48] sm:$0xff]
  %v4281 = vld [vmem:[%s3 + $0x50] sm:$0xff]
  %v4282 = vld [vmem:[%s3 + $0x58] sm:$0xff]
  %v4283 = vld [vmem:[%s3 + $0x60] sm:$0xff]
  %v4284 = vld [vmem:[%s3 + $0x68] sm:$0xff]
  %v4285 = vld [vmem:[%s3 + $0x70] sm:$0xff]
  %v4286 = vld [vmem:[%s3 + $0x78] sm:$0xff]
  %v4287 = vld [vmem:[%s3 + $0x80] sm:$0xff]
  %v4288 = vld [vmem:[%s3 + $0x88] sm:$0xff]
  %v4289 = vld [vmem:[%s3 + $0x90] sm:$0xff]
  %v4290 = vld [vmem:[%s3 + $0x98] sm:$0xff]
  %v4291 = vld [vmem:[%s3 + $0xa0] sm:$0xff]
  %v4292 = vld [vmem:[%s3 + $0xa8] sm:$0xff]
  %v4293 = vld [vmem:[%s3 + $0xb0] sm:$0xff]
  %v4294 = vld [vmem:[%s3 + $0xb8] sm:$0xff]
  %v4295 = vld [vmem:[#allocation2 + $0x910] sm:$0xff]
  %v4296 = vld [vmem:[#allocation2 + $0x918] sm:$0xff]
  %v4297 = vld [vmem:[#allocation2 + $0x920] sm:$0xff]
  %v4298 = vld [vmem:[#allocation2 + $0x928] sm:$0xff]
  %s4299 = scalar_lea.vmem %s3, 192
  %v4300 = vld [vmem:[%s4299] sm:$0xff]
  %v4301 = vld [vmem:[%s4299 + $0x8] sm:$0xff]
  %v4302 = vld [vmem:[%s4299 + $0x10] sm:$0xff]
  %v4303 = vld [vmem:[%s4299 + $0x18] sm:$0xff]
  %v4304 = vld [vmem:[%s4299 + $0x20] sm:$0xff]
  %v4305 = vld [vmem:[%s4299 + $0x28] sm:$0xff]
  %v4306 = vld [vmem:[%s4299 + $0x30] sm:$0xff]
  %v4307 = vld [vmem:[%s4299 + $0x38] sm:$0xff]
  %v4308 = vld [vmem:[%s4299 + $0x40] sm:$0xff]
  %v4309 = vld [vmem:[%s4299 + $0x48] sm:$0xff]
  %v4310 = vld [vmem:[%s4299 + $0x50] sm:$0xff]
  %v4311 = vld [vmem:[%s4299 + $0x58] sm:$0xff]
  %v4312 = vld [vmem:[%s4299 + $0x60] sm:$0xff]
  %v4313 = vld [vmem:[%s4299 + $0x68] sm:$0xff]
  %v4314 = vld [vmem:[%s4299 + $0x70] sm:$0xff]
  %v4315 = vld [vmem:[%s4299 + $0x78] sm:$0xff]
  %v4316 = vld [vmem:[%s4299 + $0x80] sm:$0xff]
  %v4317 = vld [vmem:[%s4299 + $0x88] sm:$0xff]
  %v4318 = vld [vmem:[%s4299 + $0x90] sm:$0xff]
  %v4319 = vld [vmem:[%s4299 + $0x98] sm:$0xff]
  %v4320 = vld [vmem:[%s4299 + $0xa0] sm:$0xff]
  %v4321 = vld [vmem:[%s4299 + $0xa8] sm:$0xff]
  %v4322 = vld [vmem:[%s4299 + $0xb0] sm:$0xff]
  %v4323 = vld [vmem:[%s4299 + $0xb8] sm:$0xff]
  %v4325 = vsel %vm2848, %v3988, 0
  %v4328 = vsel %vm2848, %v3990, 0
  %v4331 = vsel %vm2848, %v3992, 0
  %v4334 = vsel %vm2848, %v3994, 0
  %v4337 = vsel %vm2848, %v3996, 0
  %v4340 = vsel %vm2848, %v3998, 0
  %v4343 = vsel %vm2848, %v4000, 0
  %v4346 = vsel %vm2848, %v4002, 0
  %v4349 = vsel %vm2848, %v4004, 0
  %v4352 = vsel %vm2848, %v4006, 0
  %v4355 = vsel %vm2848, %v4008, 0
  %v4358 = vsel %vm2848, %v4010, 0
  %v4361 = vsel %vm2848, %v4012, 0
  %v4364 = vsel %vm2848, %v4014, 0
  %v4367 = vsel %vm2848, %v4016, 0
  %v4370 = vsel %vm2848, %v4018, 0
  %v4373 = vsel %vm2848, %v4020, 0
  %v4376 = vsel %vm2848, %v4022, 0
  %v4379 = vsel %vm2848, %v4024, 0
  %v4382 = vsel %vm2848, %v4026, 0
  %v4385 = vsel %vm2848, %v4028, 0
  %v4388 = vsel %vm2848, %v4030, 0
  %v4391 = vsel %vm2848, %v4032, 0
  %v4394 = vsel %vm2848, %v4034, 0
  %v4397 = vsel %vm2848, %v4036, 0
  %v4400 = vsel %vm2848, %v4038, 0
  %v4403 = vsel %vm2848, %v4040, 0
  %v4406 = vsel %vm2848, %v4042, 0
  %v4409 = vsel %vm2848, %v4044, 0
  %v4412 = vsel %vm2848, %v4046, 0
  %v4415 = vsel %vm2848, %v4048, 0
  %v4418 = vsel %vm2848, %v4050, 0
  %v4421 = vsel %vm2848, %v4052, 0
  %v4424 = vsel %vm2848, %v4054, 0
  %v4427 = vsel %vm2848, %v4056, 0
  %v4430 = vsel %vm2848, %v4058, 0
  %v4433 = vsel %vm2848, %v4060, 0
  %v4436 = vsel %vm2848, %v4062, 0
  %v4439 = vsel %vm2848, %v4064, 0
  %v4442 = vsel %vm2848, %v4066, 0
  %v4445 = vsel %vm2848, %v4068, 0
  %v4448 = vsel %vm2848, %v4070, 0
  %v4451 = vsel %vm2848, %v4072, 0
  %v4454 = vsel %vm2848, %v4074, 0
  %v4457 = vsel %vm2848, %v4076, 0
  %v4460 = vsel %vm2848, %v4078, 0
  %v4463 = vsel %vm2848, %v4080, 0
  %v4466 = vsel %vm2848, %v4082, 0
  %v4469 = vsel %vm2848, %v4084, 0
  %v4472 = vsel %vm2848, %v4086, 0
  %v4475 = vsel %vm2848, %v4088, 0
  %v4478 = vsel %vm2848, %v4090, 0
  %v4481 = vsel %vm2848, %v4092, 0
  %v4484 = vsel %vm2848, %v4094, 0
  %v4487 = vsel %vm2848, %v4096, 0
  %v4490 = vsel %vm2848, %v4098, 0
  %v4493 = vsel %vm2848, %v4100, 0
  %v4496 = vsel %vm2848, %v4102, 0
  %v4499 = vsel %vm2848, %v4104, 0
  %v4502 = vsel %vm2848, %v4106, 0
  %v4505 = vsel %vm2848, %v4108, 0
  %v4508 = vsel %vm2848, %v4110, 0
  %v4511 = vsel %vm2848, %v4112, 0
  %v4514 = vsel %vm2848, %v4114, 0
  %v4517 = vsel %vm2848, %v4116, 0
  %v4520 = vsel %vm2848, %v4118, 0
  %v4523 = vsel %vm2848, %v4120, 0
  %v4526 = vsel %vm2848, %v4122, 0
  %v4529 = vsel %vm2848, %v4124, 0
  %v4532 = vsel %vm2848, %v4126, 0
  %v4535 = vsel %vm2848, %v4128, 0
  %v4538 = vsel %vm2848, %v4130, 0
  %v4541 = vsel %vm2848, %v4132, 0
  %v4544 = vsel %vm2848, %v4134, 0
  %v4547 = vsel %vm2848, %v4136, 0
  %v4550 = vsel %vm2848, %v4138, 0
  %v4553 = vsel %vm2848, %v4140, 0
  %v4556 = vsel %vm2848, %v4142, 0
  %v4559 = vsel %vm2848, %v4144, 0
  %v4562 = vsel %vm2848, %v4146, 0
  %v4565 = vsel %vm2848, %v4148, 0
  %v4568 = vsel %vm2848, %v4150, 0
  %v4571 = vsel %vm2848, %v4152, 0
  %v4574 = vsel %vm2848, %v4154, 0
  %v4577 = vsel %vm2848, %v4156, 0
  %v4580 = vsel %vm2848, %v4158, 0
  %v4583 = vsel %vm2848, %v4160, 0
  %v4586 = vsel %vm2848, %v4162, 0
  %v4589 = vsel %vm2848, %v4164, 0
  %v4592 = vsel %vm2848, %v4166, 0
  %v4595 = vsel %vm2848, %v4168, 0
  %v4598 = vsel %vm2848, %v4170, 0
  %v4601 = vsel %vm2848, %v4172, 0
  %v4604 = vsel %vm2848, %v4174, 0
  %v4607 = vsel %vm2848, %v4176, 0
  %v4610 = vsel %vm2848, %v4178, 0
  %v4613 = vsel %vm2848, %v4180, 0
  %v4616 = vsel %vm2848, %v4182, 0
  %v4619 = vsel %vm2848, %v4184, 0
  %v4622 = vsel %vm2848, %v4186, 0
  %v4625 = vsel %vm2848, %v4188, 0
  %v4628 = vsel %vm2848, %v4190, 0
  %v4631 = vsel %vm2848, %v4192, 0
  %v4634 = vsel %vm2848, %v4194, 0
  %v4637 = vsel %vm2848, %v4196, 0
  %v4640 = vsel %vm2848, %v4198, 0
  %v4643 = vsel %vm2848, %v4200, 0
  %v4646 = vsel %vm2848, %v4202, 0
  %v4649 = vsel %vm2848, %v4204, 0
  %v4652 = vsel %vm2848, %v4206, 0
  %v4655 = vsel %vm2848, %v4208, 0
  %v4658 = vsel %vm2848, %v4210, 0
  %v4661 = vsel %vm2848, %v4212, 0
  %v4664 = vsel %vm2848, %v4214, 0
  %v4667 = vsel %vm2848, %v4216, 0
  %v4670 = vsel %vm2848, %v4218, 0
  %v4673 = vsel %vm2848, %v4220, 0
  %v4676 = vsel %vm2848, %v4222, 0
  %v4679 = vsel %vm2848, %v4224, 0
  %v4682 = vsel %vm2848, %v4226, 0
  %v4685 = vsel %vm2848, %v4228, 0
  %v4688 = vsel %vm2848, %v4230, 0
  %v4691 = vsel %vm2848, %v4232, 0
  %v4694 = vsel %vm2848, %v4234, 0
  %v4697 = vsel %vm2848, %v4236, 0
  %v4700 = vsel %vm2848, %v4238, 0
  %v4703 = vsel %vm2848, %v4240, 0
  %v4706 = vsel %vm2848, %v4242, 0
  %v4709 = vsel %vm2848, %v4244, 0
  %v4712 = vsel %vm2848, %v4246, 0
  %v4715 = vsel %vm2848, %v4248, 0
  %v4718 = vsel %vm2848, %v4250, 0
  %v4721 = vsel %vm2848, %v4252, 0
  %v4724 = vsel %vm2848, %v4254, 0
  %v4727 = vsel %vm2848, %v4256, 0
  %v4730 = vsel %vm2848, %v4258, 0
  %v4733 = vsel %vm2848, %v4260, 0
  %v4736 = vsel %vm2848, %v4262, 0
  %v4739 = vsel %vm2848, %v4264, 0
  %v4742 = vsel %vm2848, %v4266, 0
  %v4745 = vsel %vm2848, %v4268, 0
  %v4748 = vsel %vm2848, %v4270, 0
  %v4751 = vsel %vm2848, %v4296, 0
  %v4754 = vsel %vm2848, %v4298, 0
  %4756 = vmatprep.subr.mxu0 0.0
  %4757 = vmatpush1.msra.mxu0 %v4315
  %4758 = vmatprep.subr.mxu0 0.0
  %4759 = vmatpush1.msra.mxu0 %v4314
  %4760 = vmatprep.subr.mxu0 0.0
  %4761 = vmatpush1.msra.mxu0 %v4313
  %4762 = vmatprep.subr.mxu0 0.0
  %4763 = vmatpush1.msra.mxu0 %v4312
  %4764 = vmatprep.subr.mxu0 0.0
  %4765 = vmatpush1.msra.mxu0 %v4311
  %4766 = vmatprep.subr.mxu0 0.0
  %4767 = vmatpush1.msra.mxu0 %v4310
  %4768 = vmatprep.subr.mxu0 0.0
  %4769 = vmatpush1.msra.mxu0 %v4309
  %4770 = vmatprep.subr.mxu0 0.0
  %4771 = vmatpush1.msra.mxu0 %v4308
  %4772 = vmatprep.subr.mxu0 0.0
  %4773 = vmatpush1.msra.mxu0 %v4307
  %4774 = vmatprep.subr.mxu0 0.0
  %4775 = vmatpush1.msra.mxu0 %v4306
  %4776 = vmatprep.subr.mxu0 0.0
  %4777 = vmatpush1.msra.mxu0 %v4305
  %4778 = vmatprep.subr.mxu0 0.0
  %4779 = vmatpush1.msra.mxu0 %v4304
  %4780 = vmatprep.subr.mxu0 0.0
  %4781 = vmatpush1.msra.mxu0 %v4303
  %4782 = vmatprep.subr.mxu0 0.0
  %4783 = vmatpush1.msra.mxu0 %v4302
  %4784 = vmatprep.subr.mxu0 0.0
  %4785 = vmatpush1.msra.mxu0 %v4301
  %4786 = vmatprep.subr.mxu0 0.0
  %4787 = vmatpush1.msra.mxu0 %v4300
  %4788 = vmatprep.subr.mxu0 0.0
  %4789 = vmatpush2.msra.mxu0 0.0
  %4790 = vmatprep.subr.mxu0 0.0
  %4791 = vmatpush2.msra.mxu0 0.0
  %4792 = vmatprep.subr.mxu0 0.0
  %4793 = vmatpush2.msra.mxu0 0.0
  %4794 = vmatprep.subr.mxu0 0.0
  %4795 = vmatpush2.msra.mxu0 0.0
  %4796 = vmatprep.subr.mxu0 0.0
  %4797 = vmatpush2.msra.mxu0 0.0
  %4798 = vmatprep.subr.mxu0 0.0
  %4799 = vmatpush2.msra.mxu0 0.0
  %4800 = vmatprep.subr.mxu0 0.0
  %4801 = vmatpush2.msra.mxu0 0.0
  %4802 = vmatprep.subr.mxu0 0.0
  %4803 = vmatpush2.msra.mxu0 0.0
  %4804 = vmatprep.subr.mxu0 0.0
  %4805 = vmatpush2.msra.mxu0 %v4323
  %4806 = vmatprep.subr.mxu0 0.0
  %4807 = vmatpush2.msra.mxu0 %v4322
  %4808 = vmatprep.subr.mxu0 0.0
  %4809 = vmatpush2.msra.mxu0 %v4321
  %4810 = vmatprep.subr.mxu0 0.0
  %4811 = vmatpush2.msra.mxu0 %v4320
  %4812 = vmatprep.subr.mxu0 0.0
  %4813 = vmatpush2.msra.mxu0 %v4319
  %4814 = vmatprep.subr.mxu0 0.0
  %4815 = vmatpush2.msra.mxu0 %v4318
  %4816 = vmatprep.subr.mxu0 0.0
  %4817 = vmatpush2.msra.mxu0 %v4317
  %4818 = vmatprep.subr.mxu0 0.0
  %4819 = vmatpush2.msra.mxu0 %v4316
  %4820 = vmatprep.mubr.f32.mxu0 %v4325
  %4821 = vmatmul.mubr.f32.gmra.mxu0 %v3987
  %v4822 = vpop.f32.mrf.mxu0
  %v4823 = vadd.f32 0.0, %v4822
  %v4824 = vpop.f32.mrf.mxu0
  %4825 = vmatprep.mubr.f32.mxu0 %v4328
  %4826 = vmatmul.mubr.f32.gmra.mxu0 %v3989
  %v4827 = vpop.f32.mrf.mxu0
  %v4828 = vpop.f32.mrf.mxu0
  %4829 = vmatprep.mubr.f32.mxu0 %v4331
  %4830 = vmatmul.mubr.f32.gmra.mxu0 %v3991
  %v4831 = vpop.f32.mrf.mxu0
  %v4832 = vadd.f32 0.0, %v4831
  %v4833 = vpop.f32.mrf.mxu0
  %4834 = vmatprep.mubr.f32.mxu0 %v4334
  %4835 = vmatmul.mubr.f32.gmra.mxu0 %v3993
  %v4836 = vpop.f32.mrf.mxu0
  %v4837 = vpop.f32.mrf.mxu0
  %4838 = vmatprep.mubr.f32.mxu0 %v4337
  %4839 = vmatmul.mubr.f32.gmra.mxu0 %v3995
  %v4840 = vpop.f32.mrf.mxu0
  %v4841 = vadd.f32 0.0, %v4840
  %v4842 = vpop.f32.mrf.mxu0
  %4843 = vmatprep.mubr.f32.mxu0 %v4340
  %4844 = vmatmul.mubr.f32.gmra.mxu0 %v3997
  %v4845 = vpop.f32.mrf.mxu0
  %v4846 = vpop.f32.mrf.mxu0
  %4847 = vmatprep.mubr.f32.mxu0 %v4343
  %4848 = vmatmul.mubr.f32.gmra.mxu0 %v3999
  %v4849 = vpop.f32.mrf.mxu0
  %v4850 = vadd.f32 0.0, %v4849
  %v4851 = vpop.f32.mrf.mxu0
  %4852 = vmatprep.mubr.f32.mxu0 %v4346
  %4853 = vmatmul.mubr.f32.gmra.mxu0 %v4001
  %v4854 = vpop.f32.mrf.mxu0
  %v4855 = vpop.f32.mrf.mxu0
  %4856 = vmatprep.mubr.f32.mxu0 %v4349
  %4857 = vmatmul.mubr.f32.gmra.mxu0 %v4003
  %v4858 = vpop.f32.mrf.mxu0
  %v4859 = vadd.f32 0.0, %v4858
  %v4860 = vpop.f32.mrf.mxu0
  %4861 = vmatprep.mubr.f32.mxu0 %v4352
  %4862 = vmatmul.mubr.f32.gmra.mxu0 %v4005
  %v4863 = vpop.f32.mrf.mxu0
  %v4864 = vpop.f32.mrf.mxu0
  %4865 = vmatprep.mubr.f32.mxu0 %v4355
  %4866 = vmatmul.mubr.f32.gmra.mxu0 %v4007
  %v4867 = vpop.f32.mrf.mxu0
  %v4868 = vadd.f32 0.0, %v4867
  %v4869 = vpop.f32.mrf.mxu0
  %4870 = vmatprep.mubr.f32.mxu0 %v4358
  %4871 = vmatmul.mubr.f32.gmra.mxu0 %v4009
  %v4872 = vpop.f32.mrf.mxu0
  %v4873 = vpop.f32.mrf.mxu0
  %4874 = vmatprep.mubr.f32.mxu0 %v4361
  %4875 = vmatmul.mubr.f32.gmra.mxu0 %v4011
  %v4876 = vpop.f32.mrf.mxu0
  %v4877 = vadd.f32 0.0, %v4876
  %v4878 = vpop.f32.mrf.mxu0
  %4879 = vmatprep.mubr.f32.mxu0 %v4364
  %4880 = vmatmul.mubr.f32.gmra.mxu0 %v4013
  %v4881 = vpop.f32.mrf.mxu0
  %v4882 = vpop.f32.mrf.mxu0
  %4883 = vmatprep.mubr.f32.mxu0 %v4367
  %4884 = vmatmul.mubr.f32.gmra.mxu0 %v4015
  %v4885 = vpop.f32.mrf.mxu0
  %v4886 = vadd.f32 0.0, %v4885
  %v4887 = vpop.f32.mrf.mxu0
  %4888 = vmatprep.mubr.f32.mxu0 %v4370
  %4889 = vmatmul.mubr.f32.gmra.mxu0 %v4017
  %v4890 = vpop.f32.mrf.mxu0
  %v4891 = vpop.f32.mrf.mxu0
  %4892 = vmatprep.mubr.f32.mxu0 %v4373
  %4893 = vmatmul.mubr.f32.gmra.mxu0 %v4019
  %v4894 = vpop.f32.mrf.mxu0
  %v4895 = vpop.f32.mrf.mxu0
  %4896 = vmatprep.mubr.f32.mxu0 %v4376
  %4897 = vmatmul.mubr.f32.gmra.mxu0 %v4021
  %v4898 = vpop.f32.mrf.mxu0
  %v4899 = vpop.f32.mrf.mxu0
  %4900 = vmatprep.mubr.f32.mxu0 %v4379
  %4901 = vmatmul.mubr.f32.gmra.mxu0 %v4023
  %v4902 = vpop.f32.mrf.mxu0
  %v4903 = vadd.f32 0.0, %v4902
  %v4904 = vpop.f32.mrf.mxu0
  %4905 = vmatprep.mubr.f32.mxu0 %v4382
  %4906 = vmatmul.mubr.f32.gmra.mxu0 %v4025
  %v4907 = vpop.f32.mrf.mxu0
  %v4908 = vpop.f32.mrf.mxu0
  %4909 = vmatprep.mubr.f32.mxu0 %v4385
  %4910 = vmatmul.mubr.f32.gmra.mxu0 %v4027
  %v4911 = vpop.f32.mrf.mxu0
  %v4912 = vadd.f32 0.0, %v4911
  %v4913 = vpop.f32.mrf.mxu0
  %4914 = vmatprep.mubr.f32.mxu0 %v4388
  %4915 = vmatmul.mubr.f32.gmra.mxu0 %v4029
  %v4916 = vpop.f32.mrf.mxu0
  %v4917 = vpop.f32.mrf.mxu0
  %4918 = vmatprep.mubr.f32.mxu0 %v4391
  %4919 = vmatmul.mubr.f32.gmra.mxu0 %v4031
  %v4920 = vpop.f32.mrf.mxu0
  %v4921 = vadd.f32 0.0, %v4920
  %v4922 = vpop.f32.mrf.mxu0
  %4923 = vmatprep.mubr.f32.mxu0 %v4394
  %4924 = vmatmul.mubr.f32.gmra.mxu0 %v4033
  %v4925 = vpop.f32.mrf.mxu0
  %v4926 = vpop.f32.mrf.mxu0
  %4927 = vmatprep.mubr.f32.mxu0 %v4397
  %4928 = vmatmul.mubr.f32.gmra.mxu0 %v4035
  %v4929 = vpop.f32.mrf.mxu0
  %v4930 = vadd.f32 0.0, %v4929
  %v4931 = vpop.f32.mrf.mxu0
  %4932 = vmatprep.mubr.f32.mxu0 %v4400
  %4933 = vmatmul.mubr.f32.gmra.mxu0 %v4037
  %v4934 = vpop.f32.mrf.mxu0
  %v4935 = vpop.f32.mrf.mxu0
  %4936 = vmatprep.mubr.f32.mxu0 %v4403
  %4937 = vmatmul.mubr.f32.gmra.mxu0 %v4039
  %v4938 = vpop.f32.mrf.mxu0
  %v4939 = vadd.f32 0.0, %v4938
  %v4940 = vpop.f32.mrf.mxu0
  %4941 = vmatprep.mubr.f32.mxu0 %v4406
  %4942 = vmatmul.mubr.f32.gmra.mxu0 %v4041
  %v4943 = vpop.f32.mrf.mxu0
  %v4944 = vpop.f32.mrf.mxu0
  %4945 = vmatprep.mubr.f32.mxu0 %v4409
  %4946 = vmatmul.mubr.f32.gmra.mxu0 %v4043
  %v4947 = vpop.f32.mrf.mxu0
  %v4948 = vadd.f32 0.0, %v4947
  %v4949 = vpop.f32.mrf.mxu0
  %4950 = vmatprep.mubr.f32.mxu0 %v4412
  %4951 = vmatmul.mubr.f32.gmra.mxu0 %v4045
  %v4952 = vpop.f32.mrf.mxu0
  %v4953 = vpop.f32.mrf.mxu0
  %4954 = vmatprep.mubr.f32.mxu0 %v4415
  %4955 = vmatmul.mubr.f32.gmra.mxu0 %v4047
  %v4956 = vpop.f32.mrf.mxu0
  %v4957 = vadd.f32 0.0, %v4956
  %v4958 = vpop.f32.mrf.mxu0
  %4959 = vmatprep.mubr.f32.mxu0 %v4418
  %4960 = vmatmul.mubr.f32.gmra.mxu0 %v4049
  %v4961 = vpop.f32.mrf.mxu0
  %v4962 = vpop.f32.mrf.mxu0
  %4963 = vmatprep.mubr.f32.mxu0 %v4421
  %4964 = vmatmul.mubr.f32.gmra.mxu0 %v4051
  %v4965 = vpop.f32.mrf.mxu0
  %v4966 = vadd.f32 0.0, %v4965
  %v4967 = vpop.f32.mrf.mxu0
  %4968 = vmatprep.mubr.f32.mxu0 %v4424
  %4969 = vmatmul.mubr.f32.gmra.mxu0 %v4053
  %v4970 = vpop.f32.mrf.mxu0
  %v4971 = vpop.f32.mrf.mxu0
  %4972 = vmatprep.mubr.f32.mxu0 %v4427
  %4973 = vmatmul.mubr.f32.gmra.mxu0 %v4055
  %v4974 = vpop.f32.mrf.mxu0
  %v4975 = vpop.f32.mrf.mxu0
  %4976 = vmatprep.mubr.f32.mxu0 %v4430
  %4977 = vmatmul.mubr.f32.gmra.mxu0 %v4057
  %v4978 = vpop.f32.mrf.mxu0
  %v4979 = vpop.f32.mrf.mxu0
  %4980 = vmatprep.mubr.f32.mxu0 %v4433
  %4981 = vmatmul.mubr.f32.gmra.mxu0 %v4059
  %v4982 = vpop.f32.mrf.mxu0
  %v4983 = vadd.f32 0.0, %v4982
  %v4984 = vpop.f32.mrf.mxu0
  %4985 = vmatprep.mubr.f32.mxu0 %v4436
  %4986 = vmatmul.mubr.f32.gmra.mxu0 %v4061
  %v4987 = vpop.f32.mrf.mxu0
  %v4988 = vpop.f32.mrf.mxu0
  %4989 = vmatprep.mubr.f32.mxu0 %v4439
  %4990 = vmatmul.mubr.f32.gmra.mxu0 %v4063
  %v4991 = vpop.f32.mrf.mxu0
  %v4992 = vadd.f32 0.0, %v4991
  %v4993 = vpop.f32.mrf.mxu0
  %4994 = vmatprep.mubr.f32.mxu0 %v4442
  %4995 = vmatmul.mubr.f32.gmra.mxu0 %v4065
  %v4996 = vpop.f32.mrf.mxu0
  %v4997 = vpop.f32.mrf.mxu0
  %4998 = vmatprep.mubr.f32.mxu0 %v4445
  %4999 = vmatmul.mubr.f32.gmra.mxu0 %v4067
  %v5000 = vpop.f32.mrf.mxu0
  %v5001 = vadd.f32 0.0, %v5000
  %v5002 = vpop.f32.mrf.mxu0
  %5003 = vmatprep.mubr.f32.mxu0 %v4448
  %5004 = vmatmul.mubr.f32.gmra.mxu0 %v4069
  %v5005 = vpop.f32.mrf.mxu0
  %v5006 = vpop.f32.mrf.mxu0
  %5007 = vmatprep.mubr.f32.mxu0 %v4451
  %5008 = vmatmul.mubr.f32.gmra.mxu0 %v4071
  %v5009 = vpop.f32.mrf.mxu0
  %v5010 = vadd.f32 0.0, %v5009
  %v5011 = vpop.f32.mrf.mxu0
  %5012 = vmatprep.mubr.f32.mxu0 %v4454
  %5013 = vmatmul.mubr.f32.gmra.mxu0 %v4073
  %v5014 = vpop.f32.mrf.mxu0
  %v5015 = vpop.f32.mrf.mxu0
  %5016 = vmatprep.mubr.f32.mxu0 %v4457
  %5017 = vmatmul.mubr.f32.gmra.mxu0 %v4075
  %v5018 = vpop.f32.mrf.mxu0
  %v5019 = vadd.f32 0.0, %v5018
  %v5020 = vpop.f32.mrf.mxu0
  %5021 = vmatprep.mubr.f32.mxu0 %v4460
  %5022 = vmatmul.mubr.f32.gmra.mxu0 %v4077
  %v5023 = vpop.f32.mrf.mxu0
  %v5024 = vpop.f32.mrf.mxu0
  %5025 = vmatprep.mubr.f32.mxu0 %v4463
  %5026 = vmatmul.mubr.f32.gmra.mxu0 %v4079
  %v5027 = vpop.f32.mrf.mxu0
  %v5028 = vadd.f32 0.0, %v5027
  %v5029 = vpop.f32.mrf.mxu0
  %5030 = vmatprep.mubr.f32.mxu0 %v4466
  %5031 = vmatmul.mubr.f32.gmra.mxu0 %v4081
  %v5032 = vpop.f32.mrf.mxu0
  %v5033 = vpop.f32.mrf.mxu0
  %5034 = vmatprep.mubr.f32.mxu0 %v4469
  %5035 = vmatmul.mubr.f32.gmra.mxu0 %v4083
  %v5036 = vpop.f32.mrf.mxu0
  %v5037 = vadd.f32 0.0, %v5036
  %v5038 = vpop.f32.mrf.mxu0
  %5039 = vmatprep.mubr.f32.mxu0 %v4472
  %5040 = vmatmul.mubr.f32.gmra.mxu0 %v4085
  %v5041 = vpop.f32.mrf.mxu0
  %v5042 = vpop.f32.mrf.mxu0
  %5043 = vmatprep.mubr.f32.mxu0 %v4475
  %5044 = vmatmul.mubr.f32.gmra.mxu0 %v4087
  %v5045 = vpop.f32.mrf.mxu0
  %v5046 = vadd.f32 0.0, %v5045
  %v5047 = vpop.f32.mrf.mxu0
  %5048 = vmatprep.mubr.f32.mxu0 %v4478
  %5049 = vmatmul.mubr.f32.gmra.mxu0 %v4089
  %v5050 = vpop.f32.mrf.mxu0
  %v5051 = vpop.f32.mrf.mxu0
  %5052 = vmatprep.mubr.f32.mxu0 %v4481
  %5053 = vmatmul.mubr.f32.gmra.mxu0 %v4091
  %v5054 = vpop.f32.mrf.mxu0
  %v5055 = vpop.f32.mrf.mxu0
  %5056 = vmatprep.mubr.f32.mxu0 %v4484
  %5057 = vmatmul.mubr.f32.gmra.mxu0 %v4093
  %v5058 = vpop.f32.mrf.mxu0
  %v5059 = vpop.f32.mrf.mxu0
  %5060 = vmatprep.mubr.f32.mxu0 %v4487
  %5061 = vmatmul.mubr.f32.gmra.mxu0 %v4095
  %v5062 = vpop.f32.mrf.mxu0
  %v5063 = vadd.f32 0.0, %v5062
  %v5064 = vpop.f32.mrf.mxu0
  %5065 = vmatprep.mubr.f32.mxu0 %v4490
  %5066 = vmatmul.mubr.f32.gmra.mxu0 %v4097
  %v5067 = vpop.f32.mrf.mxu0
  %v5068 = vpop.f32.mrf.mxu0
  %5069 = vmatprep.mubr.f32.mxu0 %v4493
  %5070 = vmatmul.mubr.f32.gmra.mxu0 %v4099
  %v5071 = vpop.f32.mrf.mxu0
  %v5072 = vadd.f32 0.0, %v5071
  %v5073 = vpop.f32.mrf.mxu0
  %5074 = vmatprep.mubr.f32.mxu0 %v4496
  %5075 = vmatmul.mubr.f32.gmra.mxu0 %v4101
  %v5076 = vpop.f32.mrf.mxu0
  %v5077 = vpop.f32.mrf.mxu0
  %5078 = vmatprep.mubr.f32.mxu0 %v4499
  %5079 = vmatmul.mubr.f32.gmra.mxu0 %v4103
  %v5080 = vpop.f32.mrf.mxu0
  %v5081 = vadd.f32 0.0, %v5080
  %v5082 = vpop.f32.mrf.mxu0
  %5083 = vmatprep.mubr.f32.mxu0 %v4502
  %5084 = vmatmul.mubr.f32.gmra.mxu0 %v4105
  %v5085 = vpop.f32.mrf.mxu0
  %v5086 = vpop.f32.mrf.mxu0
  %5087 = vmatprep.mubr.f32.mxu0 %v4505
  %5088 = vmatmul.mubr.f32.gmra.mxu0 %v4107
  %v5089 = vpop.f32.mrf.mxu0
  %v5090 = vadd.f32 0.0, %v5089
  %v5091 = vpop.f32.mrf.mxu0
  %5092 = vmatprep.mubr.f32.mxu0 %v4508
  %5093 = vmatmul.mubr.f32.gmra.mxu0 %v4109
  %v5094 = vpop.f32.mrf.mxu0
  %v5095 = vpop.f32.mrf.mxu0
  %5096 = vmatprep.mubr.f32.mxu0 %v4511
  %5097 = vmatmul.mubr.f32.gmra.mxu0 %v4111
  %v5098 = vpop.f32.mrf.mxu0
  %v5099 = vadd.f32 0.0, %v5098
  %v5100 = vpop.f32.mrf.mxu0
  %5101 = vmatprep.mubr.f32.mxu0 %v4514
  %5102 = vmatmul.mubr.f32.gmra.mxu0 %v4113
  %v5103 = vpop.f32.mrf.mxu0
  %v5104 = vpop.f32.mrf.mxu0
  %5105 = vmatprep.mubr.f32.mxu0 %v4517
  %5106 = vmatmul.mubr.f32.gmra.mxu0 %v4115
  %v5107 = vpop.f32.mrf.mxu0
  %v5108 = vadd.f32 0.0, %v5107
  %v5109 = vpop.f32.mrf.mxu0
  %5110 = vmatprep.mubr.f32.mxu0 %v4520
  %5111 = vmatmul.mubr.f32.gmra.mxu0 %v4117
  %v5112 = vpop.f32.mrf.mxu0
  %v5113 = vpop.f32.mrf.mxu0
  %5114 = vmatprep.mubr.f32.mxu0 %v4523
  %5115 = vmatmul.mubr.f32.gmra.mxu0 %v4119
  %v5116 = vpop.f32.mrf.mxu0
  %v5117 = vadd.f32 0.0, %v5116
  %v5118 = vpop.f32.mrf.mxu0
  %5119 = vmatprep.mubr.f32.mxu0 %v4526
  %5120 = vmatmul.mubr.f32.gmra.mxu0 %v4121
  %v5121 = vpop.f32.mrf.mxu0
  %v5122 = vpop.f32.mrf.mxu0
  %5123 = vmatprep.mubr.f32.mxu0 %v4529
  %5124 = vmatmul.mubr.f32.gmra.mxu0 %v4123
  %v5125 = vpop.f32.mrf.mxu0
  %v5126 = vadd.f32 0.0, %v5125
  %v5127 = vpop.f32.mrf.mxu0
  %5128 = vmatprep.mubr.f32.mxu0 %v4532
  %5129 = vmatmul.mubr.f32.gmra.mxu0 %v4125
  %v5130 = vpop.f32.mrf.mxu0
  %v5131 = vpop.f32.mrf.mxu0
  %5132 = vmatprep.mubr.f32.mxu0 %v4535
  %5133 = vmatmul.mubr.f32.gmra.mxu0 %v4127
  %v5134 = vpop.f32.mrf.mxu0
  %v5135 = vpop.f32.mrf.mxu0
  %5136 = vmatprep.mubr.f32.mxu0 %v4538
  %5137 = vmatmul.mubr.f32.gmra.mxu0 %v4129
  %v5138 = vpop.f32.mrf.mxu0
  %v5139 = vpop.f32.mrf.mxu0
  %5140 = vmatprep.mubr.f32.mxu0 %v4541
  %5141 = vmatmul.mubr.f32.gmra.mxu0 %v4131
  %v5142 = vpop.f32.mrf.mxu0
  %v5143 = vadd.f32 0.0, %v5142
  %v5144 = vpop.f32.mrf.mxu0
  %5145 = vmatprep.mubr.f32.mxu0 %v4544
  %5146 = vmatmul.mubr.f32.gmra.mxu0 %v4133
  %v5147 = vpop.f32.mrf.mxu0
  %v5148 = vpop.f32.mrf.mxu0
  %5149 = vmatprep.mubr.f32.mxu0 %v4547
  %5150 = vmatmul.mubr.f32.gmra.mxu0 %v4135
  %v5151 = vpop.f32.mrf.mxu0
  %v5152 = vadd.f32 0.0, %v5151
  %v5153 = vpop.f32.mrf.mxu0
  %5154 = vmatprep.mubr.f32.mxu0 %v4550
  %5155 = vmatmul.mubr.f32.gmra.mxu0 %v4137
  %v5156 = vpop.f32.mrf.mxu0
  %v5157 = vpop.f32.mrf.mxu0
  %5158 = vmatprep.mubr.f32.mxu0 %v4553
  %5159 = vmatmul.mubr.f32.gmra.mxu0 %v4139
  %v5160 = vpop.f32.mrf.mxu0
  %v5161 = vadd.f32 0.0, %v5160
  %v5162 = vpop.f32.mrf.mxu0
  %5163 = vmatprep.mubr.f32.mxu0 %v4556
  %5164 = vmatmul.mubr.f32.gmra.mxu0 %v4141
  %v5165 = vpop.f32.mrf.mxu0
  %v5166 = vpop.f32.mrf.mxu0
  %5167 = vmatprep.mubr.f32.mxu0 %v4559
  %5168 = vmatmul.mubr.f32.gmra.mxu0 %v4143
  %v5169 = vpop.f32.mrf.mxu0
  %v5170 = vadd.f32 0.0, %v5169
  %v5171 = vpop.f32.mrf.mxu0
  %5172 = vmatprep.mubr.f32.mxu0 %v4562
  %5173 = vmatmul.mubr.f32.gmra.mxu0 %v4145
  %v5174 = vpop.f32.mrf.mxu0
  %v5175 = vpop.f32.mrf.mxu0
  %5176 = vmatprep.mubr.f32.mxu0 %v4565
  %5177 = vmatmul.mubr.f32.gmra.mxu0 %v4147
  %v5178 = vpop.f32.mrf.mxu0
  %v5179 = vadd.f32 0.0, %v5178
  %v5180 = vpop.f32.mrf.mxu0
  %5181 = vmatprep.mubr.f32.mxu0 %v4568
  %5182 = vmatmul.mubr.f32.gmra.mxu0 %v4149
  %v5183 = vpop.f32.mrf.mxu0
  %v5184 = vpop.f32.mrf.mxu0
  %5185 = vmatprep.mubr.f32.mxu0 %v4571
  %5186 = vmatmul.mubr.f32.gmra.mxu0 %v4151
  %v5187 = vpop.f32.mrf.mxu0
  %v5188 = vadd.f32 0.0, %v5187
  %v5189 = vpop.f32.mrf.mxu0
  %5190 = vmatprep.mubr.f32.mxu0 %v4574
  %5191 = vmatmul.mubr.f32.gmra.mxu0 %v4153
  %v5192 = vpop.f32.mrf.mxu0
  %v5193 = vpop.f32.mrf.mxu0
  %5194 = vmatprep.mubr.f32.mxu0 %v4577
  %5195 = vmatmul.mubr.f32.gmra.mxu0 %v4155
  %v5196 = vpop.f32.mrf.mxu0
  %v5197 = vadd.f32 0.0, %v5196
  %v5198 = vpop.f32.mrf.mxu0
  %5199 = vmatprep.mubr.f32.mxu0 %v4580
  %5200 = vmatmul.mubr.f32.gmra.mxu0 %v4157
  %v5201 = vpop.f32.mrf.mxu0
  %v5202 = vpop.f32.mrf.mxu0
  %5203 = vmatprep.mubr.f32.mxu0 %v4583
  %5204 = vmatmul.mubr.f32.gmra.mxu0 %v4159
  %v5205 = vpop.f32.mrf.mxu0
  %v5206 = vadd.f32 0.0, %v5205
  %v5207 = vpop.f32.mrf.mxu0
  %5208 = vmatprep.mubr.f32.mxu0 %v4586
  %5209 = vmatmul.mubr.f32.gmra.mxu0 %v4161
  %v5210 = vpop.f32.mrf.mxu0
  %v5211 = vpop.f32.mrf.mxu0
  %5212 = vmatprep.mubr.f32.mxu0 %v4589
  %5213 = vmatmul.mubr.f32.gmra.mxu0 %v4163
  %v5214 = vpop.f32.mrf.mxu0
  %v5215 = vpop.f32.mrf.mxu0
  %5216 = vmatprep.mubr.f32.mxu0 %v4592
  %5217 = vmatmul.mubr.f32.gmra.mxu0 %v4165
  %v5218 = vpop.f32.mrf.mxu0
  %v5219 = vpop.f32.mrf.mxu0
  %5220 = vmatprep.mubr.f32.mxu0 %v4595
  %5221 = vmatmul.mubr.f32.gmra.mxu0 %v4167
  %v5222 = vpop.f32.mrf.mxu0
  %v5223 = vadd.f32 0.0, %v5222
  %v5224 = vpop.f32.mrf.mxu0
  %5225 = vmatprep.mubr.f32.mxu0 %v4598
  %5226 = vmatmul.mubr.f32.gmra.mxu0 %v4169
  %v5227 = vpop.f32.mrf.mxu0
  %v5228 = vpop.f32.mrf.mxu0
  %5229 = vmatprep.mubr.f32.mxu0 %v4601
  %5230 = vmatmul.mubr.f32.gmra.mxu0 %v4171
  %v5231 = vpop.f32.mrf.mxu0
  %v5232 = vadd.f32 0.0, %v5231
  %v5233 = vpop.f32.mrf.mxu0
  %5234 = vmatprep.mubr.f32.mxu0 %v4604
  %5235 = vmatmul.mubr.f32.gmra.mxu0 %v4173
  %v5236 = vpop.f32.mrf.mxu0
  %v5237 = vpop.f32.mrf.mxu0
  %5238 = vmatprep.mubr.f32.mxu0 %v4607
  %5239 = vmatmul.mubr.f32.gmra.mxu0 %v4175
  %v5240 = vpop.f32.mrf.mxu0
  %v5241 = vadd.f32 0.0, %v5240
  %v5242 = vpop.f32.mrf.mxu0
  %5243 = vmatprep.mubr.f32.mxu0 %v4610
  %5244 = vmatmul.mubr.f32.gmra.mxu0 %v4177
  %v5245 = vpop.f32.mrf.mxu0
  %v5246 = vpop.f32.mrf.mxu0
  %5247 = vmatprep.mubr.f32.mxu0 %v4613
  %5248 = vmatmul.mubr.f32.gmra.mxu0 %v4179
  %v5249 = vpop.f32.mrf.mxu0
  %v5250 = vadd.f32 0.0, %v5249
  %v5251 = vpop.f32.mrf.mxu0
  %5252 = vmatprep.mubr.f32.mxu0 %v4616
  %5253 = vmatmul.mubr.f32.gmra.mxu0 %v4181
  %v5254 = vpop.f32.mrf.mxu0
  %v5255 = vpop.f32.mrf.mxu0
  %5256 = vmatprep.mubr.f32.mxu0 %v4619
  %5257 = vmatmul.mubr.f32.gmra.mxu0 %v4183
  %v5258 = vpop.f32.mrf.mxu0
  %v5259 = vadd.f32 0.0, %v5258
  %v5260 = vpop.f32.mrf.mxu0
  %5261 = vmatprep.mubr.f32.mxu0 %v4622
  %5262 = vmatmul.mubr.f32.gmra.mxu0 %v4185
  %v5263 = vpop.f32.mrf.mxu0
  %v5264 = vpop.f32.mrf.mxu0
  %5265 = vmatprep.mubr.f32.mxu0 %v4625
  %5266 = vmatmul.mubr.f32.gmra.mxu0 %v4187
  %v5267 = vpop.f32.mrf.mxu0
  %v5268 = vadd.f32 0.0, %v5267
  %v5269 = vpop.f32.mrf.mxu0
  %5270 = vmatprep.mubr.f32.mxu0 %v4628
  %5271 = vmatmul.mubr.f32.gmra.mxu0 %v4189
  %v5272 = vpop.f32.mrf.mxu0
  %v5273 = vpop.f32.mrf.mxu0
  %5274 = vmatprep.mubr.f32.mxu0 %v4631
  %5275 = vmatmul.mubr.f32.gmra.mxu0 %v4191
  %v5276 = vpop.f32.mrf.mxu0
  %v5277 = vadd.f32 0.0, %v5276
  %v5278 = vpop.f32.mrf.mxu0
  %5279 = vmatprep.mubr.f32.mxu0 %v4634
  %5280 = vmatmul.mubr.f32.gmra.mxu0 %v4193
  %v5281 = vpop.f32.mrf.mxu0
  %v5282 = vpop.f32.mrf.mxu0
  %5283 = vmatprep.mubr.f32.mxu0 %v4637
  %5284 = vmatmul.mubr.f32.gmra.mxu0 %v4195
  %v5285 = vpop.f32.mrf.mxu0
  %v5286 = vadd.f32 0.0, %v5285
  %v5287 = vpop.f32.mrf.mxu0
  %5288 = vmatprep.mubr.f32.mxu0 %v4640
  %5289 = vmatmul.mubr.f32.gmra.mxu0 %v4197
  %v5290 = vpop.f32.mrf.mxu0
  %v5291 = vpop.f32.mrf.mxu0
  %5292 = vmatprep.mubr.f32.mxu0 %v4643
  %5293 = vmatmul.mubr.f32.gmra.mxu0 %v4199
  %v5294 = vpop.f32.mrf.mxu0
  %v5295 = vpop.f32.mrf.mxu0
  %5296 = vmatprep.mubr.f32.mxu0 %v4646
  %5297 = vmatmul.mubr.f32.gmra.mxu0 %v4201
  %v5298 = vpop.f32.mrf.mxu0
  %v5299 = vpop.f32.mrf.mxu0
  %5300 = vmatprep.mubr.f32.mxu0 %v4649
  %5301 = vmatmul.mubr.f32.gmra.mxu0 %v4203
  %v5302 = vpop.f32.mrf.mxu0
  %v5303 = vadd.f32 0.0, %v5302
  %v5304 = vpop.f32.mrf.mxu0
  %5305 = vmatprep.mubr.f32.mxu0 %v4652
  %5306 = vmatmul.mubr.f32.gmra.mxu0 %v4205
  %v5307 = vpop.f32.mrf.mxu0
  %v5308 = vpop.f32.mrf.mxu0
  %5309 = vmatprep.mubr.f32.mxu0 %v4655
  %5310 = vmatmul.mubr.f32.gmra.mxu0 %v4207
  %v5311 = vpop.f32.mrf.mxu0
  %v5312 = vadd.f32 0.0, %v5311
  %v5313 = vpop.f32.mrf.mxu0
  %5314 = vmatprep.mubr.f32.mxu0 %v4658
  %5315 = vmatmul.mubr.f32.gmra.mxu0 %v4209
  %v5316 = vpop.f32.mrf.mxu0
  %v5317 = vpop.f32.mrf.mxu0
  %5318 = vmatprep.mubr.f32.mxu0 %v4661
  %5319 = vmatmul.mubr.f32.gmra.mxu0 %v4211
  %v5320 = vpop.f32.mrf.mxu0
  %v5321 = vadd.f32 0.0, %v5320
  %v5322 = vpop.f32.mrf.mxu0
  %5323 = vmatprep.mubr.f32.mxu0 %v4664
  %5324 = vmatmul.mubr.f32.gmra.mxu0 %v4213
  %v5325 = vpop.f32.mrf.mxu0
  %v5326 = vpop.f32.mrf.mxu0
  %5327 = vmatprep.mubr.f32.mxu0 %v4667
  %5328 = vmatmul.mubr.f32.gmra.mxu0 %v4215
  %v5329 = vpop.f32.mrf.mxu0
  %v5330 = vadd.f32 0.0, %v5329
  %v5331 = vpop.f32.mrf.mxu0
  %5332 = vmatprep.mubr.f32.mxu0 %v4670
  %5333 = vmatmul.mubr.f32.gmra.mxu0 %v4217
  %v5334 = vpop.f32.mrf.mxu0
  %v5335 = vpop.f32.mrf.mxu0
  %5336 = vmatprep.mubr.f32.mxu0 %v4673
  %5337 = vmatmul.mubr.f32.gmra.mxu0 %v4219
  %v5338 = vpop.f32.mrf.mxu0
  %v5339 = vadd.f32 0.0, %v5338
  %v5340 = vpop.f32.mrf.mxu0
  %5341 = vmatprep.mubr.f32.mxu0 %v4676
  %5342 = vmatmul.mubr.f32.gmra.mxu0 %v4221
  %v5343 = vpop.f32.mrf.mxu0
  %v5344 = vpop.f32.mrf.mxu0
  %5345 = vmatprep.mubr.f32.mxu0 %v4679
  %5346 = vmatmul.mubr.f32.gmra.mxu0 %v4223
  %v5347 = vpop.f32.mrf.mxu0
  %v5348 = vadd.f32 0.0, %v5347
  %v5349 = vpop.f32.mrf.mxu0
  %5350 = vmatprep.mubr.f32.mxu0 %v4682
  %5351 = vmatmul.mubr.f32.gmra.mxu0 %v4225
  %v5352 = vpop.f32.mrf.mxu0
  %v5353 = vpop.f32.mrf.mxu0
  %5354 = vmatprep.mubr.f32.mxu0 %v4685
  %5355 = vmatmul.mubr.f32.gmra.mxu0 %v4227
  %v5356 = vpop.f32.mrf.mxu0
  %v5357 = vadd.f32 0.0, %v5356
  %v5358 = vpop.f32.mrf.mxu0
  %5359 = vmatprep.mubr.f32.mxu0 %v4688
  %5360 = vmatmul.mubr.f32.gmra.mxu0 %v4229
  %v5361 = vpop.f32.mrf.mxu0
  %v5362 = vpop.f32.mrf.mxu0
  %5363 = vmatprep.mubr.f32.mxu0 %v4691
  %5364 = vmatmul.mubr.f32.gmra.mxu0 %v4231
  %v5365 = vpop.f32.mrf.mxu0
  %v5366 = vadd.f32 0.0, %v5365
  %v5367 = vpop.f32.mrf.mxu0
  %5368 = vmatprep.mubr.f32.mxu0 %v4694
  %5369 = vmatmul.mubr.f32.gmra.mxu0 %v4233
  %v5370 = vpop.f32.mrf.mxu0
  %v5371 = vpop.f32.mrf.mxu0
  %5372 = vmatprep.mubr.f32.mxu0 %v4697
  %5373 = vmatmul.mubr.f32.gmra.mxu0 %v4235
  %v5374 = vpop.f32.mrf.mxu0
  %v5375 = vpop.f32.mrf.mxu0
  %5376 = vmatprep.mubr.f32.mxu0 %v4700
  %5377 = vmatmul.mubr.f32.gmra.mxu0 %v4237
  %v5378 = vpop.f32.mrf.mxu0
  %v5379 = vpop.f32.mrf.mxu0
  %5380 = vmatprep.mubr.f32.mxu0 %v4703
  %5381 = vmatmul.mubr.f32.gmra.mxu0 %v4239
  %v5382 = vpop.f32.mrf.mxu0
  %v5383 = vadd.f32 0.0, %v5382
  %v5384 = vpop.f32.mrf.mxu0
  %5385 = vmatprep.mubr.f32.mxu0 %v4706
  %5386 = vmatmul.mubr.f32.gmra.mxu0 %v4241
  %v5387 = vpop.f32.mrf.mxu0
  %v5388 = vpop.f32.mrf.mxu0
  %5389 = vmatprep.mubr.f32.mxu0 %v4709
  %5390 = vmatmul.mubr.f32.gmra.mxu0 %v4243
  %v5391 = vpop.f32.mrf.mxu0
  %v5392 = vadd.f32 0.0, %v5391
  %v5393 = vpop.f32.mrf.mxu0
  %5394 = vmatprep.mubr.f32.mxu0 %v4712
  %5395 = vmatmul.mubr.f32.gmra.mxu0 %v4245
  %v5396 = vpop.f32.mrf.mxu0
  %v5397 = vpop.f32.mrf.mxu0
  %5398 = vmatprep.mubr.f32.mxu0 %v4715
  %5399 = vmatmul.mubr.f32.gmra.mxu0 %v4247
  %v5400 = vpop.f32.mrf.mxu0
  %v5401 = vadd.f32 0.0, %v5400
  %v5402 = vpop.f32.mrf.mxu0
  %5403 = vmatprep.mubr.f32.mxu0 %v4718
  %5404 = vmatmul.mubr.f32.gmra.mxu0 %v4249
  %v5405 = vpop.f32.mrf.mxu0
  %v5406 = vpop.f32.mrf.mxu0
  %5407 = vmatprep.mubr.f32.mxu0 %v4721
  %5408 = vmatmul.mubr.f32.gmra.mxu0 %v4251
  %v5409 = vpop.f32.mrf.mxu0
  %v5410 = vadd.f32 0.0, %v5409
  %v5411 = vpop.f32.mrf.mxu0
  %5412 = vmatprep.mubr.f32.mxu0 %v4724
  %5413 = vmatmul.mubr.f32.gmra.mxu0 %v4253
  %v5414 = vpop.f32.mrf.mxu0
  %v5415 = vpop.f32.mrf.mxu0
  %5416 = vmatprep.mubr.f32.mxu0 %v4727
  %5417 = vmatmul.mubr.f32.gmra.mxu0 %v4255
  %v5418 = vpop.f32.mrf.mxu0
  %v5419 = vadd.f32 0.0, %v5418
  %v5420 = vpop.f32.mrf.mxu0
  %5421 = vmatprep.mubr.f32.mxu0 %v4730
  %5422 = vmatmul.mubr.f32.gmra.mxu0 %v4257
  %v5423 = vpop.f32.mrf.mxu0
  %v5424 = vpop.f32.mrf.mxu0
  %5425 = vmatprep.mubr.f32.mxu0 %v4733
  %5426 = vmatmul.mubr.f32.gmra.mxu0 %v4259
  %v5427 = vpop.f32.mrf.mxu0
  %v5428 = vadd.f32 0.0, %v5427
  %v5429 = vpop.f32.mrf.mxu0
  %5430 = vmatprep.mubr.f32.mxu0 %v4736
  %5431 = vmatmul.mubr.f32.gmra.mxu0 %v4261
  %v5432 = vpop.f32.mrf.mxu0
  %v5433 = vpop.f32.mrf.mxu0
  %5434 = vmatprep.mubr.f32.mxu0 %v4739
  %5435 = vmatmul.mubr.f32.gmra.mxu0 %v4263
  %v5436 = vpop.f32.mrf.mxu0
  %v5437 = vadd.f32 0.0, %v5436
  %v5438 = vpop.f32.mrf.mxu0
  %5439 = vmatprep.mubr.f32.mxu0 %v4742
  %5440 = vmatmul.mubr.f32.gmra.mxu0 %v4265
  %v5441 = vpop.f32.mrf.mxu0
  %v5442 = vpop.f32.mrf.mxu0
  %5443 = vmatprep.mubr.f32.mxu0 %v4745
  %5444 = vmatmul.mubr.f32.gmra.mxu0 %v4267
  %v5445 = vpop.f32.mrf.mxu0
  %v5446 = vadd.f32 0.0, %v5445
  %v5447 = vpop.f32.mrf.mxu0
  %5448 = vmatprep.mubr.f32.mxu0 %v4748
  %5449 = vmatmul.mubr.f32.gmra.mxu0 %v4269
  %v5450 = vpop.f32.mrf.mxu0
  %v5451 = vpop.f32.mrf.mxu0
  %5452 = vmatprep.mubr.f32.mxu0 %v4751
  %5453 = vmatmul.mubr.f32.gmra.mxu0 %v4295
  %v5454 = vpop.f32.mrf.mxu0
  %v5455 = vpop.f32.mrf.mxu0
  %5456 = vmatprep.mubr.f32.mxu0 %v4754
  %5457 = vmatmul.mubr.f32.gmra.mxu0 %v4297
  %v5458 = vpop.f32.mrf.mxu0
  %v5459 = vpop.f32.mrf.mxu0
  %5460 = vdwg.mxu0
  %v5462 = vsel %vm2848, %v3984, 0
  %v5465 = vsel %vm2848, %v3986, 0
  %5467 = vmatprep.subr.mxu0 0.0
  %5468 = vmatpush1.msra.mxu0 %v4286
  %5469 = vmatprep.subr.mxu0 0.0
  %5470 = vmatpush1.msra.mxu0 %v4285
  %5471 = vmatprep.subr.mxu0 0.0
  %5472 = vmatpush1.msra.mxu0 %v4284
  %5473 = vmatprep.subr.mxu0 0.0
  %5474 = vmatpush1.msra.mxu0 %v4283
  %5475 = vmatprep.subr.mxu0 0.0
  %5476 = vmatpush1.msra.mxu0 %v4282
  %5477 = vmatprep.subr.mxu0 0.0
  %5478 = vmatpush1.msra.mxu0 %v4281
  %5479 = vmatprep.subr.mxu0 0.0
  %5480 = vmatpush1.msra.mxu0 %v4280
  %5481 = vmatprep.subr.mxu0 0.0
  %5482 = vmatpush1.msra.mxu0 %v4279
  %5483 = vmatprep.subr.mxu0 0.0
  %5484 = vmatpush1.msra.mxu0 %v4278
  %5485 = vmatprep.subr.mxu0 0.0
  %5486 = vmatpush1.msra.mxu0 %v4277
  %5487 = vmatprep.subr.mxu0 0.0
  %5488 = vmatpush1.msra.mxu0 %v4276
  %5489 = vmatprep.subr.mxu0 0.0
  %5490 = vmatpush1.msra.mxu0 %v4275
  %5491 = vmatprep.subr.mxu0 0.0
  %5492 = vmatpush1.msra.mxu0 %v4274
  %5493 = vmatprep.subr.mxu0 0.0
  %5494 = vmatpush1.msra.mxu0 %v4273
  %5495 = vmatprep.subr.mxu0 0.0
  %5496 = vmatpush1.msra.mxu0 %v4272
  %5497 = vmatprep.subr.mxu0 0.0
  %5498 = vmatpush1.msra.mxu0 %v4271
  %5499 = vmatprep.subr.mxu0 0.0
  %5500 = vmatpush2.msra.mxu0 0.0
  %5501 = vmatprep.subr.mxu0 0.0
  %5502 = vmatpush2.msra.mxu0 0.0
  %5503 = vmatprep.subr.mxu0 0.0
  %5504 = vmatpush2.msra.mxu0 0.0
  %5505 = vmatprep.subr.mxu0 0.0
  %5506 = vmatpush2.msra.mxu0 0.0
  %5507 = vmatprep.subr.mxu0 0.0
  %5508 = vmatpush2.msra.mxu0 0.0
  %5509 = vmatprep.subr.mxu0 0.0
  %5510 = vmatpush2.msra.mxu0 0.0
  %5511 = vmatprep.subr.mxu0 0.0
  %5512 = vmatpush2.msra.mxu0 0.0
  %5513 = vmatprep.subr.mxu0 0.0
  %5514 = vmatpush2.msra.mxu0 0.0
  %5515 = vmatprep.subr.mxu0 0.0
  %5516 = vmatpush2.msra.mxu0 %v4294
  %5517 = vmatprep.subr.mxu0 0.0
  %5518 = vmatpush2.msra.mxu0 %v4293
  %5519 = vmatprep.subr.mxu0 0.0
  %5520 = vmatpush2.msra.mxu0 %v4292
  %5521 = vmatprep.subr.mxu0 0.0
  %5522 = vmatpush2.msra.mxu0 %v4291
  %5523 = vmatprep.subr.mxu0 0.0
  %5524 = vmatpush2.msra.mxu0 %v4290
  %5525 = vmatprep.subr.mxu0 0.0
  %5526 = vmatpush2.msra.mxu0 %v4289
  %5527 = vmatprep.subr.mxu0 0.0
  %5528 = vmatpush2.msra.mxu0 %v4288
  %5529 = vmatprep.subr.mxu0 0.0
  %5530 = vmatpush2.msra.mxu0 %v4287
  %5531 = vmatprep.mubr.f32.mxu0 %v5462
  %5532 = vmatmul.mubr.f32.gmra.mxu0 %v3983
  %v5533 = vpop.f32.mrf.mxu0
  %v5534 = vadd.f32 %v4823, %v5533
  %v5535 = vpop.f32.mrf.mxu0
  %5536 = vmatprep.mubr.f32.mxu0 %v5465
  %5537 = vmatmul.mubr.f32.gmra.mxu0 %v3985
  %v5538 = vpop.f32.mrf.mxu0
  %v5539 = vpop.f32.mrf.mxu0
  %5540 = vmatprep.mubr.f32.mxu0 %v4325
  %5541 = vmatmul.mubr.f32.gmra.mxu0 %v3987
  %v5542 = vpop.f32.mrf.mxu0
  %v5543 = vadd.f32 %v4832, %v5542
  %v5544 = vpop.f32.mrf.mxu0
  %5545 = vmatprep.mubr.f32.mxu0 %v4328
  %5546 = vmatmul.mubr.f32.gmra.mxu0 %v3989
  %v5547 = vpop.f32.mrf.mxu0
  %v5548 = vpop.f32.mrf.mxu0
  %5549 = vmatprep.mubr.f32.mxu0 %v4331
  %5550 = vmatmul.mubr.f32.gmra.mxu0 %v3991
  %v5551 = vpop.f32.mrf.mxu0
  %v5552 = vadd.f32 %v4841, %v5551
  %v5553 = vpop.f32.mrf.mxu0
  %5554 = vmatprep.mubr.f32.mxu0 %v4334
  %5555 = vmatmul.mubr.f32.gmra.mxu0 %v3993
  %v5556 = vpop.f32.mrf.mxu0
  %v5557 = vpop.f32.mrf.mxu0
  %5558 = vmatprep.mubr.f32.mxu0 %v4337
  %5559 = vmatmul.mubr.f32.gmra.mxu0 %v3995
  %v5560 = vpop.f32.mrf.mxu0
  %v5561 = vadd.f32 %v4850, %v5560
  %v5562 = vpop.f32.mrf.mxu0
  %5563 = vmatprep.mubr.f32.mxu0 %v4340
  %5564 = vmatmul.mubr.f32.gmra.mxu0 %v3997
  %v5565 = vpop.f32.mrf.mxu0
  %v5566 = vpop.f32.mrf.mxu0
  %5567 = vmatprep.mubr.f32.mxu0 %v4343
  %5568 = vmatmul.mubr.f32.gmra.mxu0 %v3999
  %v5569 = vpop.f32.mrf.mxu0
  %v5570 = vadd.f32 %v4859, %v5569
  %v5571 = vpop.f32.mrf.mxu0
  %5572 = vmatprep.mubr.f32.mxu0 %v4346
  %5573 = vmatmul.mubr.f32.gmra.mxu0 %v4001
  %v5574 = vpop.f32.mrf.mxu0
  %v5575 = vpop.f32.mrf.mxu0
  %5576 = vmatprep.mubr.f32.mxu0 %v4349
  %5577 = vmatmul.mubr.f32.gmra.mxu0 %v4003
  %v5578 = vpop.f32.mrf.mxu0
  %v5579 = vadd.f32 %v4868, %v5578
  %v5580 = vpop.f32.mrf.mxu0
  %5581 = vmatprep.mubr.f32.mxu0 %v4352
  %5582 = vmatmul.mubr.f32.gmra.mxu0 %v4005
  %v5583 = vpop.f32.mrf.mxu0
  %v5584 = vpop.f32.mrf.mxu0
  %5585 = vmatprep.mubr.f32.mxu0 %v4355
  %5586 = vmatmul.mubr.f32.gmra.mxu0 %v4007
  %v5587 = vpop.f32.mrf.mxu0
  %v5588 = vadd.f32 %v4877, %v5587
  %v5589 = vpop.f32.mrf.mxu0
  %5590 = vmatprep.mubr.f32.mxu0 %v4358
  %5591 = vmatmul.mubr.f32.gmra.mxu0 %v4009
  %v5592 = vpop.f32.mrf.mxu0
  %v5593 = vpop.f32.mrf.mxu0
  %5594 = vmatprep.mubr.f32.mxu0 %v4361
  %5595 = vmatmul.mubr.f32.gmra.mxu0 %v4011
  %v5596 = vpop.f32.mrf.mxu0
  %v5597 = vadd.f32 %v4886, %v5596
  %v5598 = vpop.f32.mrf.mxu0
  %5599 = vmatprep.mubr.f32.mxu0 %v4364
  %5600 = vmatmul.mubr.f32.gmra.mxu0 %v4013
  %v5601 = vpop.f32.mrf.mxu0
  %v5602 = vpop.f32.mrf.mxu0
  %5603 = vmatprep.mubr.f32.mxu0 %v4367
  %5604 = vmatmul.mubr.f32.gmra.mxu0 %v4015
  %v5605 = vpop.f32.mrf.mxu0
  %v5606 = vpop.f32.mrf.mxu0
  %5607 = vmatprep.mubr.f32.mxu0 %v4370
  %5608 = vmatmul.mubr.f32.gmra.mxu0 %v4017
  %v5609 = vpop.f32.mrf.mxu0
  %v5610 = vpop.f32.mrf.mxu0
  %5611 = vmatprep.mubr.f32.mxu0 %v4373
  %5612 = vmatmul.mubr.f32.gmra.mxu0 %v4019
  %v5613 = vpop.f32.mrf.mxu0
  %v5614 = vadd.f32 %v4903, %v5613
  %v5615 = vpop.f32.mrf.mxu0
  %5616 = vmatprep.mubr.f32.mxu0 %v4376
  %5617 = vmatmul.mubr.f32.gmra.mxu0 %v4021
  %v5618 = vpop.f32.mrf.mxu0
  %v5619 = vpop.f32.mrf.mxu0
  %5620 = vmatprep.mubr.f32.mxu0 %v4379
  %5621 = vmatmul.mubr.f32.gmra.mxu0 %v4023
  %v5622 = vpop.f32.mrf.mxu0
  %v5623 = vadd.f32 %v4912, %v5622
  %v5624 = vpop.f32.mrf.mxu0
  %5625 = vmatprep.mubr.f32.mxu0 %v4382
  %5626 = vmatmul.mubr.f32.gmra.mxu0 %v4025
  %v5627 = vpop.f32.mrf.mxu0
  %v5628 = vpop.f32.mrf.mxu0
  %5629 = vmatprep.mubr.f32.mxu0 %v4385
  %5630 = vmatmul.mubr.f32.gmra.mxu0 %v4027
  %v5631 = vpop.f32.mrf.mxu0
  %v5632 = vadd.f32 %v4921, %v5631
  %v5633 = vpop.f32.mrf.mxu0
  %5634 = vmatprep.mubr.f32.mxu0 %v4388
  %5635 = vmatmul.mubr.f32.gmra.mxu0 %v4029
  %v5636 = vpop.f32.mrf.mxu0
  %v5637 = vpop.f32.mrf.mxu0
  %5638 = vmatprep.mubr.f32.mxu0 %v4391
  %5639 = vmatmul.mubr.f32.gmra.mxu0 %v4031
  %v5640 = vpop.f32.mrf.mxu0
  %v5641 = vadd.f32 %v4930, %v5640
  %v5642 = vpop.f32.mrf.mxu0
  %5643 = vmatprep.mubr.f32.mxu0 %v4394
  %5644 = vmatmul.mubr.f32.gmra.mxu0 %v4033
  %v5645 = vpop.f32.mrf.mxu0
  %v5646 = vpop.f32.mrf.mxu0
  %5647 = vmatprep.mubr.f32.mxu0 %v4397
  %5648 = vmatmul.mubr.f32.gmra.mxu0 %v4035
  %v5649 = vpop.f32.mrf.mxu0
  %v5650 = vadd.f32 %v4939, %v5649
  %v5651 = vpop.f32.mrf.mxu0
  %5652 = vmatprep.mubr.f32.mxu0 %v4400
  %5653 = vmatmul.mubr.f32.gmra.mxu0 %v4037
  %v5654 = vpop.f32.mrf.mxu0
  %v5655 = vpop.f32.mrf.mxu0
  %5656 = vmatprep.mubr.f32.mxu0 %v4403
  %5657 = vmatmul.mubr.f32.gmra.mxu0 %v4039
  %v5658 = vpop.f32.mrf.mxu0
  %v5659 = vadd.f32 %v4948, %v5658
  %v5660 = vpop.f32.mrf.mxu0
  %5661 = vmatprep.mubr.f32.mxu0 %v4406
  %5662 = vmatmul.mubr.f32.gmra.mxu0 %v4041
  %v5663 = vpop.f32.mrf.mxu0
  %v5664 = vpop.f32.mrf.mxu0
  %5665 = vmatprep.mubr.f32.mxu0 %v4409
  %5666 = vmatmul.mubr.f32.gmra.mxu0 %v4043
  %v5667 = vpop.f32.mrf.mxu0
  %v5668 = vadd.f32 %v4957, %v5667
  %v5669 = vpop.f32.mrf.mxu0
  %5670 = vmatprep.mubr.f32.mxu0 %v4412
  %5671 = vmatmul.mubr.f32.gmra.mxu0 %v4045
  %v5672 = vpop.f32.mrf.mxu0
  %v5673 = vpop.f32.mrf.mxu0
  %5674 = vmatprep.mubr.f32.mxu0 %v4415
  %5675 = vmatmul.mubr.f32.gmra.mxu0 %v4047
  %v5676 = vpop.f32.mrf.mxu0
  %v5677 = vadd.f32 %v4966, %v5676
  %v5678 = vpop.f32.mrf.mxu0
  %5679 = vmatprep.mubr.f32.mxu0 %v4418
  %5680 = vmatmul.mubr.f32.gmra.mxu0 %v4049
  %v5681 = vpop.f32.mrf.mxu0
  %v5682 = vpop.f32.mrf.mxu0
  %5683 = vmatprep.mubr.f32.mxu0 %v4421
  %5684 = vmatmul.mubr.f32.gmra.mxu0 %v4051
  %v5685 = vpop.f32.mrf.mxu0
  %v5686 = vpop.f32.mrf.mxu0
  %5687 = vmatprep.mubr.f32.mxu0 %v4424
  %5688 = vmatmul.mubr.f32.gmra.mxu0 %v4053
  %v5689 = vpop.f32.mrf.mxu0
  %v5690 = vpop.f32.mrf.mxu0
  %5691 = vmatprep.mubr.f32.mxu0 %v4427
  %5692 = vmatmul.mubr.f32.gmra.mxu0 %v4055
  %v5693 = vpop.f32.mrf.mxu0
  %v5694 = vadd.f32 %v4983, %v5693
  %v5695 = vpop.f32.mrf.mxu0
  %5696 = vmatprep.mubr.f32.mxu0 %v4430
  %5697 = vmatmul.mubr.f32.gmra.mxu0 %v4057
  %v5698 = vpop.f32.mrf.mxu0
  %v5699 = vpop.f32.mrf.mxu0
  %5700 = vmatprep.mubr.f32.mxu0 %v4433
  %5701 = vmatmul.mubr.f32.gmra.mxu0 %v4059
  %v5702 = vpop.f32.mrf.mxu0
  %v5703 = vadd.f32 %v4992, %v5702
  %v5704 = vpop.f32.mrf.mxu0
  %5705 = vmatprep.mubr.f32.mxu0 %v4436
  %5706 = vmatmul.mubr.f32.gmra.mxu0 %v4061
  %v5707 = vpop.f32.mrf.mxu0
  %v5708 = vpop.f32.mrf.mxu0
  %5709 = vmatprep.mubr.f32.mxu0 %v4439
  %5710 = vmatmul.mubr.f32.gmra.mxu0 %v4063
  %v5711 = vpop.f32.mrf.mxu0
  %v5712 = vadd.f32 %v5001, %v5711
  %v5713 = vpop.f32.mrf.mxu0
  %5714 = vmatprep.mubr.f32.mxu0 %v4442
  %5715 = vmatmul.mubr.f32.gmra.mxu0 %v4065
  %v5716 = vpop.f32.mrf.mxu0
  %v5717 = vpop.f32.mrf.mxu0
  %5718 = vmatprep.mubr.f32.mxu0 %v4445
  %5719 = vmatmul.mubr.f32.gmra.mxu0 %v4067
  %v5720 = vpop.f32.mrf.mxu0
  %v5721 = vadd.f32 %v5010, %v5720
  %v5722 = vpop.f32.mrf.mxu0
  %5723 = vmatprep.mubr.f32.mxu0 %v4448
  %5724 = vmatmul.mubr.f32.gmra.mxu0 %v4069
  %v5725 = vpop.f32.mrf.mxu0
  %v5726 = vpop.f32.mrf.mxu0
  %5727 = vmatprep.mubr.f32.mxu0 %v4451
  %5728 = vmatmul.mubr.f32.gmra.mxu0 %v4071
  %v5729 = vpop.f32.mrf.mxu0
  %v5730 = vadd.f32 %v5019, %v5729
  %v5731 = vpop.f32.mrf.mxu0
  %5732 = vmatprep.mubr.f32.mxu0 %v4454
  %5733 = vmatmul.mubr.f32.gmra.mxu0 %v4073
  %v5734 = vpop.f32.mrf.mxu0
  %v5735 = vpop.f32.mrf.mxu0
  %5736 = vmatprep.mubr.f32.mxu0 %v4457
  %5737 = vmatmul.mubr.f32.gmra.mxu0 %v4075
  %v5738 = vpop.f32.mrf.mxu0
  %v5739 = vadd.f32 %v5028, %v5738
  %v5740 = vpop.f32.mrf.mxu0
  %5741 = vmatprep.mubr.f32.mxu0 %v4460
  %5742 = vmatmul.mubr.f32.gmra.mxu0 %v4077
  %v5743 = vpop.f32.mrf.mxu0
  %v5744 = vpop.f32.mrf.mxu0
  %5745 = vmatprep.mubr.f32.mxu0 %v4463
  %5746 = vmatmul.mubr.f32.gmra.mxu0 %v4079
  %v5747 = vpop.f32.mrf.mxu0
  %v5748 = vadd.f32 %v5037, %v5747
  %v5749 = vpop.f32.mrf.mxu0
  %5750 = vmatprep.mubr.f32.mxu0 %v4466
  %5751 = vmatmul.mubr.f32.gmra.mxu0 %v4081
  %v5752 = vpop.f32.mrf.mxu0
  %v5753 = vpop.f32.mrf.mxu0
  %5754 = vmatprep.mubr.f32.mxu0 %v4469
  %5755 = vmatmul.mubr.f32.gmra.mxu0 %v4083
  %v5756 = vpop.f32.mrf.mxu0
  %v5757 = vadd.f32 %v5046, %v5756
  %v5758 = vpop.f32.mrf.mxu0
  %5759 = vmatprep.mubr.f32.mxu0 %v4472
  %5760 = vmatmul.mubr.f32.gmra.mxu0 %v4085
  %v5761 = vpop.f32.mrf.mxu0
  %v5762 = vpop.f32.mrf.mxu0
  %5763 = vmatprep.mubr.f32.mxu0 %v4475
  %5764 = vmatmul.mubr.f32.gmra.mxu0 %v4087
  %v5765 = vpop.f32.mrf.mxu0
  %v5766 = vpop.f32.mrf.mxu0
  %5767 = vmatprep.mubr.f32.mxu0 %v4478
  %5768 = vmatmul.mubr.f32.gmra.mxu0 %v4089
  %v5769 = vpop.f32.mrf.mxu0
  %v5770 = vpop.f32.mrf.mxu0
  %5771 = vmatprep.mubr.f32.mxu0 %v4481
  %5772 = vmatmul.mubr.f32.gmra.mxu0 %v4091
  %v5773 = vpop.f32.mrf.mxu0
  %v5774 = vadd.f32 %v5063, %v5773
  %v5775 = vpop.f32.mrf.mxu0
  %5776 = vmatprep.mubr.f32.mxu0 %v4484
  %5777 = vmatmul.mubr.f32.gmra.mxu0 %v4093
  %v5778 = vpop.f32.mrf.mxu0
  %v5779 = vpop.f32.mrf.mxu0
  %5780 = vmatprep.mubr.f32.mxu0 %v4487
  %5781 = vmatmul.mubr.f32.gmra.mxu0 %v4095
  %v5782 = vpop.f32.mrf.mxu0
  %v5783 = vadd.f32 %v5072, %v5782
  %v5784 = vpop.f32.mrf.mxu0
  %5785 = vmatprep.mubr.f32.mxu0 %v4490
  %5786 = vmatmul.mubr.f32.gmra.mxu0 %v4097
  %v5787 = vpop.f32.mrf.mxu0
  %v5788 = vpop.f32.mrf.mxu0
  %5789 = vmatprep.mubr.f32.mxu0 %v4493
  %5790 = vmatmul.mubr.f32.gmra.mxu0 %v4099
  %v5791 = vpop.f32.mrf.mxu0
  %v5792 = vadd.f32 %v5081, %v5791
  %v5793 = vpop.f32.mrf.mxu0
  %5794 = vmatprep.mubr.f32.mxu0 %v4496
  %5795 = vmatmul.mubr.f32.gmra.mxu0 %v4101
  %v5796 = vpop.f32.mrf.mxu0
  %v5797 = vpop.f32.mrf.mxu0
  %5798 = vmatprep.mubr.f32.mxu0 %v4499
  %5799 = vmatmul.mubr.f32.gmra.mxu0 %v4103
  %v5800 = vpop.f32.mrf.mxu0
  %v5801 = vadd.f32 %v5090, %v5800
  %v5802 = vpop.f32.mrf.mxu0
  %5803 = vmatprep.mubr.f32.mxu0 %v4502
  %5804 = vmatmul.mubr.f32.gmra.mxu0 %v4105
  %v5805 = vpop.f32.mrf.mxu0
  %v5806 = vpop.f32.mrf.mxu0
  %5807 = vmatprep.mubr.f32.mxu0 %v4505
  %5808 = vmatmul.mubr.f32.gmra.mxu0 %v4107
  %v5809 = vpop.f32.mrf.mxu0
  %v5810 = vadd.f32 %v5099, %v5809
  %v5811 = vpop.f32.mrf.mxu0
  %5812 = vmatprep.mubr.f32.mxu0 %v4508
  %5813 = vmatmul.mubr.f32.gmra.mxu0 %v4109
  %v5814 = vpop.f32.mrf.mxu0
  %v5815 = vpop.f32.mrf.mxu0
  %5816 = vmatprep.mubr.f32.mxu0 %v4511
  %5817 = vmatmul.mubr.f32.gmra.mxu0 %v4111
  %v5818 = vpop.f32.mrf.mxu0
  %v5819 = vadd.f32 %v5108, %v5818
  %v5820 = vpop.f32.mrf.mxu0
  %5821 = vmatprep.mubr.f32.mxu0 %v4514
  %5822 = vmatmul.mubr.f32.gmra.mxu0 %v4113
  %v5823 = vpop.f32.mrf.mxu0
  %v5824 = vpop.f32.mrf.mxu0
  %5825 = vmatprep.mubr.f32.mxu0 %v4517
  %5826 = vmatmul.mubr.f32.gmra.mxu0 %v4115
  %v5827 = vpop.f32.mrf.mxu0
  %v5828 = vadd.f32 %v5117, %v5827
  %v5829 = vpop.f32.mrf.mxu0
  %5830 = vmatprep.mubr.f32.mxu0 %v4520
  %5831 = vmatmul.mubr.f32.gmra.mxu0 %v4117
  %v5832 = vpop.f32.mrf.mxu0
  %v5833 = vpop.f32.mrf.mxu0
  %5834 = vmatprep.mubr.f32.mxu0 %v4523
  %5835 = vmatmul.mubr.f32.gmra.mxu0 %v4119
  %v5836 = vpop.f32.mrf.mxu0
  %v5837 = vadd.f32 %v5126, %v5836
  %v5838 = vpop.f32.mrf.mxu0
  %5839 = vmatprep.mubr.f32.mxu0 %v4526
  %5840 = vmatmul.mubr.f32.gmra.mxu0 %v4121
  %v5841 = vpop.f32.mrf.mxu0
  %v5842 = vpop.f32.mrf.mxu0
  %5843 = vmatprep.mubr.f32.mxu0 %v4529
  %5844 = vmatmul.mubr.f32.gmra.mxu0 %v4123
  %v5845 = vpop.f32.mrf.mxu0
  %v5846 = vpop.f32.mrf.mxu0
  %5847 = vmatprep.mubr.f32.mxu0 %v4532
  %5848 = vmatmul.mubr.f32.gmra.mxu0 %v4125
  %v5849 = vpop.f32.mrf.mxu0
  %v5850 = vpop.f32.mrf.mxu0
  %5851 = vmatprep.mubr.f32.mxu0 %v4535
  %5852 = vmatmul.mubr.f32.gmra.mxu0 %v4127
  %v5853 = vpop.f32.mrf.mxu0
  %v5854 = vadd.f32 %v5143, %v5853
  %v5855 = vpop.f32.mrf.mxu0
  %5856 = vmatprep.mubr.f32.mxu0 %v4538
  %5857 = vmatmul.mubr.f32.gmra.mxu0 %v4129
  %v5858 = vpop.f32.mrf.mxu0
  %v5859 = vpop.f32.mrf.mxu0
  %5860 = vmatprep.mubr.f32.mxu0 %v4541
  %5861 = vmatmul.mubr.f32.gmra.mxu0 %v4131
  %v5862 = vpop.f32.mrf.mxu0
  %v5863 = vadd.f32 %v5152, %v5862
  %v5864 = vpop.f32.mrf.mxu0
  %5865 = vmatprep.mubr.f32.mxu0 %v4544
  %5866 = vmatmul.mubr.f32.gmra.mxu0 %v4133
  %v5867 = vpop.f32.mrf.mxu0
  %v5868 = vpop.f32.mrf.mxu0
  %5869 = vmatprep.mubr.f32.mxu0 %v4547
  %5870 = vmatmul.mubr.f32.gmra.mxu0 %v4135
  %v5871 = vpop.f32.mrf.mxu0
  %v5872 = vadd.f32 %v5161, %v5871
  %v5873 = vpop.f32.mrf.mxu0
  %5874 = vmatprep.mubr.f32.mxu0 %v4550
  %5875 = vmatmul.mubr.f32.gmra.mxu0 %v4137
  %v5876 = vpop.f32.mrf.mxu0
  %v5877 = vpop.f32.mrf.mxu0
  %5878 = vmatprep.mubr.f32.mxu0 %v4553
  %5879 = vmatmul.mubr.f32.gmra.mxu0 %v4139
  %v5880 = vpop.f32.mrf.mxu0
  %v5881 = vadd.f32 %v5170, %v5880
  %v5882 = vpop.f32.mrf.mxu0
  %5883 = vmatprep.mubr.f32.mxu0 %v4556
  %5884 = vmatmul.mubr.f32.gmra.mxu0 %v4141
  %v5885 = vpop.f32.mrf.mxu0
  %v5886 = vpop.f32.mrf.mxu0
  %5887 = vmatprep.mubr.f32.mxu0 %v4559
  %5888 = vmatmul.mubr.f32.gmra.mxu0 %v4143
  %v5889 = vpop.f32.mrf.mxu0
  %v5890 = vadd.f32 %v5179, %v5889
  %v5891 = vpop.f32.mrf.mxu0
  %5892 = vmatprep.mubr.f32.mxu0 %v4562
  %5893 = vmatmul.mubr.f32.gmra.mxu0 %v4145
  %v5894 = vpop.f32.mrf.mxu0
  %v5895 = vpop.f32.mrf.mxu0
  %5896 = vmatprep.mubr.f32.mxu0 %v4565
  %5897 = vmatmul.mubr.f32.gmra.mxu0 %v4147
  %v5898 = vpop.f32.mrf.mxu0
  %v5899 = vadd.f32 %v5188, %v5898
  %v5900 = vpop.f32.mrf.mxu0
  %5901 = vmatprep.mubr.f32.mxu0 %v4568
  %5902 = vmatmul.mubr.f32.gmra.mxu0 %v4149
  %v5903 = vpop.f32.mrf.mxu0
  %v5904 = vpop.f32.mrf.mxu0
  %5905 = vmatprep.mubr.f32.mxu0 %v4571
  %5906 = vmatmul.mubr.f32.gmra.mxu0 %v4151
  %v5907 = vpop.f32.mrf.mxu0
  %v5908 = vadd.f32 %v5197, %v5907
  %v5909 = vpop.f32.mrf.mxu0
  %5910 = vmatprep.mubr.f32.mxu0 %v4574
  %5911 = vmatmul.mubr.f32.gmra.mxu0 %v4153
  %v5912 = vpop.f32.mrf.mxu0
  %v5913 = vpop.f32.mrf.mxu0
  %5914 = vmatprep.mubr.f32.mxu0 %v4577
  %5915 = vmatmul.mubr.f32.gmra.mxu0 %v4155
  %v5916 = vpop.f32.mrf.mxu0
  %v5917 = vadd.f32 %v5206, %v5916
  %v5918 = vpop.f32.mrf.mxu0
  %5919 = vmatprep.mubr.f32.mxu0 %v4580
  %5920 = vmatmul.mubr.f32.gmra.mxu0 %v4157
  %v5921 = vpop.f32.mrf.mxu0
  %v5922 = vpop.f32.mrf.mxu0
  %5923 = vmatprep.mubr.f32.mxu0 %v4583
  %5924 = vmatmul.mubr.f32.gmra.mxu0 %v4159
  %v5925 = vpop.f32.mrf.mxu0
  %v5926 = vpop.f32.mrf.mxu0
  %5927 = vmatprep.mubr.f32.mxu0 %v4586
  %5928 = vmatmul.mubr.f32.gmra.mxu0 %v4161
  %v5929 = vpop.f32.mrf.mxu0
  %v5930 = vpop.f32.mrf.mxu0
  %5931 = vmatprep.mubr.f32.mxu0 %v4589
  %5932 = vmatmul.mubr.f32.gmra.mxu0 %v4163
  %v5933 = vpop.f32.mrf.mxu0
  %v5934 = vadd.f32 %v5223, %v5933
  %v5935 = vpop.f32.mrf.mxu0
  %5936 = vmatprep.mubr.f32.mxu0 %v4592
  %5937 = vmatmul.mubr.f32.gmra.mxu0 %v4165
  %v5938 = vpop.f32.mrf.mxu0
  %v5939 = vpop.f32.mrf.mxu0
  %5940 = vmatprep.mubr.f32.mxu0 %v4595
  %5941 = vmatmul.mubr.f32.gmra.mxu0 %v4167
  %v5942 = vpop.f32.mrf.mxu0
  %v5943 = vadd.f32 %v5232, %v5942
  %v5944 = vpop.f32.mrf.mxu0
  %5945 = vmatprep.mubr.f32.mxu0 %v4598
  %5946 = vmatmul.mubr.f32.gmra.mxu0 %v4169
  %v5947 = vpop.f32.mrf.mxu0
  %v5948 = vpop.f32.mrf.mxu0
  %5949 = vmatprep.mubr.f32.mxu0 %v4601
  %5950 = vmatmul.mubr.f32.gmra.mxu0 %v4171
  %v5951 = vpop.f32.mrf.mxu0
  %v5952 = vadd.f32 %v5241, %v5951
  %v5953 = vpop.f32.mrf.mxu0
  %5954 = vmatprep.mubr.f32.mxu0 %v4604
  %5955 = vmatmul.mubr.f32.gmra.mxu0 %v4173
  %v5956 = vpop.f32.mrf.mxu0
  %v5957 = vpop.f32.mrf.mxu0
  %5958 = vmatprep.mubr.f32.mxu0 %v4607
  %5959 = vmatmul.mubr.f32.gmra.mxu0 %v4175
  %v5960 = vpop.f32.mrf.mxu0
  %v5961 = vadd.f32 %v5250, %v5960
  %v5962 = vpop.f32.mrf.mxu0
  %5963 = vmatprep.mubr.f32.mxu0 %v4610
  %5964 = vmatmul.mubr.f32.gmra.mxu0 %v4177
  %v5965 = vpop.f32.mrf.mxu0
  %v5966 = vpop.f32.mrf.mxu0
  %5967 = vmatprep.mubr.f32.mxu0 %v4613
  %5968 = vmatmul.mubr.f32.gmra.mxu0 %v4179
  %v5969 = vpop.f32.mrf.mxu0
  %v5970 = vadd.f32 %v5259, %v5969
  %v5971 = vpop.f32.mrf.mxu0
  %5972 = vmatprep.mubr.f32.mxu0 %v4616
  %5973 = vmatmul.mubr.f32.gmra.mxu0 %v4181
  %v5974 = vpop.f32.mrf.mxu0
  %v5975 = vpop.f32.mrf.mxu0
  %5976 = vmatprep.mubr.f32.mxu0 %v4619
  %5977 = vmatmul.mubr.f32.gmra.mxu0 %v4183
  %v5978 = vpop.f32.mrf.mxu0
  %v5979 = vadd.f32 %v5268, %v5978
  %v5980 = vpop.f32.mrf.mxu0
  %5981 = vmatprep.mubr.f32.mxu0 %v4622
  %5982 = vmatmul.mubr.f32.gmra.mxu0 %v4185
  %v5983 = vpop.f32.mrf.mxu0
  %v5984 = vpop.f32.mrf.mxu0
  %5985 = vmatprep.mubr.f32.mxu0 %v4625
  %5986 = vmatmul.mubr.f32.gmra.mxu0 %v4187
  %v5987 = vpop.f32.mrf.mxu0
  %v5988 = vadd.f32 %v5277, %v5987
  %v5989 = vpop.f32.mrf.mxu0
  %5990 = vmatprep.mubr.f32.mxu0 %v4628
  %5991 = vmatmul.mubr.f32.gmra.mxu0 %v4189
  %v5992 = vpop.f32.mrf.mxu0
  %v5993 = vpop.f32.mrf.mxu0
  %5994 = vmatprep.mubr.f32.mxu0 %v4631
  %5995 = vmatmul.mubr.f32.gmra.mxu0 %v4191
  %v5996 = vpop.f32.mrf.mxu0
  %v5997 = vadd.f32 %v5286, %v5996
  %v5998 = vpop.f32.mrf.mxu0
  %5999 = vmatprep.mubr.f32.mxu0 %v4634
  %6000 = vmatmul.mubr.f32.gmra.mxu0 %v4193
  %v6001 = vpop.f32.mrf.mxu0
  %v6002 = vpop.f32.mrf.mxu0
  %6003 = vmatprep.mubr.f32.mxu0 %v4637
  %6004 = vmatmul.mubr.f32.gmra.mxu0 %v4195
  %v6005 = vpop.f32.mrf.mxu0
  %v6006 = vpop.f32.mrf.mxu0
  %6007 = vmatprep.mubr.f32.mxu0 %v4640
  %6008 = vmatmul.mubr.f32.gmra.mxu0 %v4197
  %v6009 = vpop.f32.mrf.mxu0
  %v6010 = vpop.f32.mrf.mxu0
  %6011 = vmatprep.mubr.f32.mxu0 %v4643
  %6012 = vmatmul.mubr.f32.gmra.mxu0 %v4199
  %v6013 = vpop.f32.mrf.mxu0
  %v6014 = vadd.f32 %v5303, %v6013
  %v6015 = vpop.f32.mrf.mxu0
  %6016 = vmatprep.mubr.f32.mxu0 %v4646
  %6017 = vmatmul.mubr.f32.gmra.mxu0 %v4201
  %v6018 = vpop.f32.mrf.mxu0
  %v6019 = vpop.f32.mrf.mxu0
  %6020 = vmatprep.mubr.f32.mxu0 %v4649
  %6021 = vmatmul.mubr.f32.gmra.mxu0 %v4203
  %v6022 = vpop.f32.mrf.mxu0
  %v6023 = vadd.f32 %v5312, %v6022
  %v6024 = vpop.f32.mrf.mxu0
  %6025 = vmatprep.mubr.f32.mxu0 %v4652
  %6026 = vmatmul.mubr.f32.gmra.mxu0 %v4205
  %v6027 = vpop.f32.mrf.mxu0
  %v6028 = vpop.f32.mrf.mxu0
  %6029 = vmatprep.mubr.f32.mxu0 %v4655
  %6030 = vmatmul.mubr.f32.gmra.mxu0 %v4207
  %v6031 = vpop.f32.mrf.mxu0
  %v6032 = vadd.f32 %v5321, %v6031
  %v6033 = vpop.f32.mrf.mxu0
  %6034 = vmatprep.mubr.f32.mxu0 %v4658
  %6035 = vmatmul.mubr.f32.gmra.mxu0 %v4209
  %v6036 = vpop.f32.mrf.mxu0
  %v6037 = vpop.f32.mrf.mxu0
  %6038 = vmatprep.mubr.f32.mxu0 %v4661
  %6039 = vmatmul.mubr.f32.gmra.mxu0 %v4211
  %v6040 = vpop.f32.mrf.mxu0
  %v6041 = vadd.f32 %v5330, %v6040
  %v6042 = vpop.f32.mrf.mxu0
  %6043 = vmatprep.mubr.f32.mxu0 %v4664
  %6044 = vmatmul.mubr.f32.gmra.mxu0 %v4213
  %v6045 = vpop.f32.mrf.mxu0
  %v6046 = vpop.f32.mrf.mxu0
  %6047 = vmatprep.mubr.f32.mxu0 %v4667
  %6048 = vmatmul.mubr.f32.gmra.mxu0 %v4215
  %v6049 = vpop.f32.mrf.mxu0
  %v6050 = vadd.f32 %v5339, %v6049
  %v6051 = vpop.f32.mrf.mxu0
  %6052 = vmatprep.mubr.f32.mxu0 %v4670
  %6053 = vmatmul.mubr.f32.gmra.mxu0 %v4217
  %v6054 = vpop.f32.mrf.mxu0
  %v6055 = vpop.f32.mrf.mxu0
  %6056 = vmatprep.mubr.f32.mxu0 %v4673
  %6057 = vmatmul.mubr.f32.gmra.mxu0 %v4219
  %v6058 = vpop.f32.mrf.mxu0
  %v6059 = vadd.f32 %v5348, %v6058
  %v6060 = vpop.f32.mrf.mxu0
  %6061 = vmatprep.mubr.f32.mxu0 %v4676
  %6062 = vmatmul.mubr.f32.gmra.mxu0 %v4221
  %v6063 = vpop.f32.mrf.mxu0
  %v6064 = vpop.f32.mrf.mxu0
  %6065 = vmatprep.mubr.f32.mxu0 %v4679
  %6066 = vmatmul.mubr.f32.gmra.mxu0 %v4223
  %v6067 = vpop.f32.mrf.mxu0
  %v6068 = vadd.f32 %v5357, %v6067
  %v6069 = vpop.f32.mrf.mxu0
  %6070 = vmatprep.mubr.f32.mxu0 %v4682
  %6071 = vmatmul.mubr.f32.gmra.mxu0 %v4225
  %v6072 = vpop.f32.mrf.mxu0
  %v6073 = vpop.f32.mrf.mxu0
  %6074 = vmatprep.mubr.f32.mxu0 %v4685
  %6075 = vmatmul.mubr.f32.gmra.mxu0 %v4227
  %v6076 = vpop.f32.mrf.mxu0
  %v6077 = vadd.f32 %v5366, %v6076
  %v6078 = vpop.f32.mrf.mxu0
  %6079 = vmatprep.mubr.f32.mxu0 %v4688
  %6080 = vmatmul.mubr.f32.gmra.mxu0 %v4229
  %v6081 = vpop.f32.mrf.mxu0
  %v6082 = vpop.f32.mrf.mxu0
  %6083 = vmatprep.mubr.f32.mxu0 %v4691
  %6084 = vmatmul.mubr.f32.gmra.mxu0 %v4231
  %v6085 = vpop.f32.mrf.mxu0
  %v6086 = vpop.f32.mrf.mxu0
  %6087 = vmatprep.mubr.f32.mxu0 %v4694
  %6088 = vmatmul.mubr.f32.gmra.mxu0 %v4233
  %v6089 = vpop.f32.mrf.mxu0
  %v6090 = vpop.f32.mrf.mxu0
  %6091 = vmatprep.mubr.f32.mxu0 %v4697
  %6092 = vmatmul.mubr.f32.gmra.mxu0 %v4235
  %v6093 = vpop.f32.mrf.mxu0
  %v6094 = vadd.f32 %v5383, %v6093
  %v6095 = vpop.f32.mrf.mxu0
  %6096 = vmatprep.mubr.f32.mxu0 %v4700
  %6097 = vmatmul.mubr.f32.gmra.mxu0 %v4237
  %v6098 = vpop.f32.mrf.mxu0
  %v6099 = vpop.f32.mrf.mxu0
  %6100 = vmatprep.mubr.f32.mxu0 %v4703
  %6101 = vmatmul.mubr.f32.gmra.mxu0 %v4239
  %v6102 = vpop.f32.mrf.mxu0
  %v6103 = vadd.f32 %v5392, %v6102
  %v6104 = vpop.f32.mrf.mxu0
  %6105 = vmatprep.mubr.f32.mxu0 %v4706
  %6106 = vmatmul.mubr.f32.gmra.mxu0 %v4241
  %v6107 = vpop.f32.mrf.mxu0
  %v6108 = vpop.f32.mrf.mxu0
  %6109 = vmatprep.mubr.f32.mxu0 %v4709
  %6110 = vmatmul.mubr.f32.gmra.mxu0 %v4243
  %v6111 = vpop.f32.mrf.mxu0
  %v6112 = vadd.f32 %v5401, %v6111
  %v6113 = vpop.f32.mrf.mxu0
  %6114 = vmatprep.mubr.f32.mxu0 %v4712
  %6115 = vmatmul.mubr.f32.gmra.mxu0 %v4245
  %v6116 = vpop.f32.mrf.mxu0
  %v6117 = vpop.f32.mrf.mxu0
  %6118 = vmatprep.mubr.f32.mxu0 %v4715
  %6119 = vmatmul.mubr.f32.gmra.mxu0 %v4247
  %v6120 = vpop.f32.mrf.mxu0
  %v6121 = vadd.f32 %v5410, %v6120
  %v6122 = vpop.f32.mrf.mxu0
  %6123 = vmatprep.mubr.f32.mxu0 %v4718
  %6124 = vmatmul.mubr.f32.gmra.mxu0 %v4249
  %v6125 = vpop.f32.mrf.mxu0
  %v6126 = vpop.f32.mrf.mxu0
  %6127 = vmatprep.mubr.f32.mxu0 %v4721
  %6128 = vmatmul.mubr.f32.gmra.mxu0 %v4251
  %v6129 = vpop.f32.mrf.mxu0
  %v6130 = vadd.f32 %v5419, %v6129
  %v6131 = vpop.f32.mrf.mxu0
  %6132 = vmatprep.mubr.f32.mxu0 %v4724
  %6133 = vmatmul.mubr.f32.gmra.mxu0 %v4253
  %v6134 = vpop.f32.mrf.mxu0
  %v6135 = vpop.f32.mrf.mxu0
  %6136 = vmatprep.mubr.f32.mxu0 %v4727
  %6137 = vmatmul.mubr.f32.gmra.mxu0 %v4255
  %v6138 = vpop.f32.mrf.mxu0
  %v6139 = vadd.f32 %v5428, %v6138
  %v6140 = vpop.f32.mrf.mxu0
  %6141 = vmatprep.mubr.f32.mxu0 %v4730
  %6142 = vmatmul.mubr.f32.gmra.mxu0 %v4257
  %v6143 = vpop.f32.mrf.mxu0
  %v6144 = vpop.f32.mrf.mxu0
  %6145 = vmatprep.mubr.f32.mxu0 %v4733
  %6146 = vmatmul.mubr.f32.gmra.mxu0 %v4259
  %v6147 = vpop.f32.mrf.mxu0
  %v6148 = vadd.f32 %v5437, %v6147
  %v6149 = vpop.f32.mrf.mxu0
  %6150 = vmatprep.mubr.f32.mxu0 %v4736
  %6151 = vmatmul.mubr.f32.gmra.mxu0 %v4261
  %v6152 = vpop.f32.mrf.mxu0
  %v6153 = vpop.f32.mrf.mxu0
  %6154 = vmatprep.mubr.f32.mxu0 %v4739
  %6155 = vmatmul.mubr.f32.gmra.mxu0 %v4263
  %v6156 = vpop.f32.mrf.mxu0
  %v6157 = vadd.f32 %v5446, %v6156
  %v6158 = vpop.f32.mrf.mxu0
  %6159 = vmatprep.mubr.f32.mxu0 %v4742
  %6160 = vmatmul.mubr.f32.gmra.mxu0 %v4265
  %v6161 = vpop.f32.mrf.mxu0
  %v6162 = vpop.f32.mrf.mxu0
  %6163 = vmatprep.mubr.f32.mxu0 %v4745
  %6164 = vmatmul.mubr.f32.gmra.mxu0 %v4267
  %v6165 = vpop.f32.mrf.mxu0
  %v6166 = vpop.f32.mrf.mxu0
  %6167 = vmatprep.mubr.f32.mxu0 %v4748
  %6168 = vmatmul.mubr.f32.gmra.mxu0 %v4269
  %v6169 = vpop.f32.mrf.mxu0
  %v6170 = vpop.f32.mrf.mxu0
  %6171 = vdwg.mxu0
  %v6172 = vld [vmem:[#allocation2 + $0x50] sm:$0xff]
  %v6173 = vld [vmem:[#allocation2 + $0x58] sm:$0xff]
  %v6174 = vld [vmem:[#allocation2 + $0x60] sm:$0xff]
  %v6175 = vld [vmem:[#allocation2 + $0x68] sm:$0xff]
  %v6176 = vld [vmem:[#allocation2 + $0x70] sm:$0xff]
  %v6177 = vld [vmem:[#allocation2 + $0x78] sm:$0xff]
  %v6178 = vld [vmem:[#allocation2 + $0x80] sm:$0xff]
  %v6179 = vld [vmem:[#allocation2 + $0x88] sm:$0xff]
  %v6180 = vld [vmem:[#allocation2 + $0x90] sm:$0xff]
  %v6181 = vld [vmem:[#allocation2 + $0x98] sm:$0xff]
  %v6182 = vld [vmem:[#allocation2 + $0xa0] sm:$0xff]
  %v6183 = vld [vmem:[#allocation2 + $0xa8] sm:$0xff]
  %v6184 = vld [vmem:[#allocation2 + $0xb0] sm:$0xff]
  %v6185 = vld [vmem:[#allocation2 + $0xb8] sm:$0xff]
  %v6186 = vld [vmem:[#allocation2 + $0xc0] sm:$0xff]
  %v6187 = vld [vmem:[#allocation2 + $0xc8] sm:$0xff]
  %v6188 = vld [vmem:[#allocation2 + $0xd0] sm:$0xff]
  %v6189 = vld [vmem:[#allocation2 + $0xd8] sm:$0xff]
  %v6190 = vld [vmem:[#allocation2 + $0xe0] sm:$0xff]
  %v6191 = vld [vmem:[#allocation2 + $0xe8] sm:$0xff]
  %v6192 = vld [vmem:[#allocation2 + $0xf0] sm:$0xff]
  %v6193 = vld [vmem:[#allocation2 + $0xf8] sm:$0xff]
  %v6194 = vld [vmem:[#allocation2 + $0x100] sm:$0xff]
  %v6195 = vld [vmem:[#allocation2 + $0x108] sm:$0xff]
  %v6196 = vld [vmem:[#allocation2 + $0x110] sm:$0xff]
  %v6197 = vld [vmem:[#allocation2 + $0x118] sm:$0xff]
  %v6198 = vld [vmem:[#allocation2 + $0x120] sm:$0xff]
  %v6199 = vld [vmem:[#allocation2 + $0x128] sm:$0xff]
  %v6200 = vld [vmem:[#allocation2 + $0x130] sm:$0xff]
  %v6201 = vld [vmem:[#allocation2 + $0x138] sm:$0xff]
  %v6202 = vld [vmem:[#allocation2 + $0x140] sm:$0xff]
  %v6203 = vld [vmem:[#allocation2 + $0x148] sm:$0xff]
  %v6204 = vld [vmem:[#allocation2 + $0x150] sm:$0xff]
  %v6205 = vld [vmem:[#allocation2 + $0x158] sm:$0xff]
  %v6206 = vld [vmem:[#allocation2 + $0x160] sm:$0xff]
  %v6207 = vld [vmem:[#allocation2 + $0x168] sm:$0xff]
  %v6208 = vld [vmem:[#allocation2 + $0x170] sm:$0xff]
  %v6209 = vld [vmem:[#allocation2 + $0x178] sm:$0xff]
  %v6210 = vld [vmem:[#allocation2 + $0x180] sm:$0xff]
  %v6211 = vld [vmem:[#allocation2 + $0x188] sm:$0xff]
  %v6212 = vld [vmem:[#allocation2 + $0x190] sm:$0xff]
  %v6213 = vld [vmem:[#allocation2 + $0x198] sm:$0xff]
  %v6214 = vld [vmem:[#allocation2 + $0x1a0] sm:$0xff]
  %v6215 = vld [vmem:[#allocation2 + $0x1a8] sm:$0xff]
  %v6216 = vld [vmem:[#allocation2 + $0x1b0] sm:$0xff]
  %v6217 = vld [vmem:[#allocation2 + $0x1b8] sm:$0xff]
  %v6218 = vld [vmem:[#allocation2 + $0x1c0] sm:$0xff]
  %v6219 = vld [vmem:[#allocation2 + $0x1c8] sm:$0xff]
  %v6220 = vld [vmem:[#allocation2 + $0x1d0] sm:$0xff]
  %v6221 = vld [vmem:[#allocation2 + $0x1d8] sm:$0xff]
  %v6222 = vld [vmem:[#allocation2 + $0x1e0] sm:$0xff]
  %v6223 = vld [vmem:[#allocation2 + $0x1e8] sm:$0xff]
  %v6224 = vld [vmem:[#allocation2 + $0x1f0] sm:$0xff]
  %v6225 = vld [vmem:[#allocation2 + $0x1f8] sm:$0xff]
  %v6226 = vld [vmem:[#allocation2 + $0x200] sm:$0xff]
  %v6227 = vld [vmem:[#allocation2 + $0x208] sm:$0xff]
  %v6228 = vld [vmem:[#allocation2 + $0x210] sm:$0xff]
  %v6229 = vld [vmem:[#allocation2 + $0x218] sm:$0xff]
  %v6230 = vld [vmem:[#allocation2 + $0x220] sm:$0xff]
  %v6231 = vld [vmem:[#allocation2 + $0x228] sm:$0xff]
  %v6232 = vld [vmem:[#allocation2 + $0x230] sm:$0xff]
  %v6233 = vld [vmem:[#allocation2 + $0x238] sm:$0xff]
  %v6234 = vld [vmem:[#allocation2 + $0x240] sm:$0xff]
  %v6235 = vld [vmem:[#allocation2 + $0x248] sm:$0xff]
  %v6236 = vld [vmem:[#allocation2 + $0x250] sm:$0xff]
  %v6237 = vld [vmem:[#allocation2 + $0x258] sm:$0xff]
  %v6238 = vld [vmem:[#allocation2 + $0x260] sm:$0xff]
  %v6239 = vld [vmem:[#allocation2 + $0x268] sm:$0xff]
  %v6240 = vld [vmem:[#allocation2 + $0x270] sm:$0xff]
  %v6241 = vld [vmem:[#allocation2 + $0x278] sm:$0xff]
  %v6242 = vld [vmem:[#allocation2 + $0x280] sm:$0xff]
  %v6243 = vld [vmem:[#allocation2 + $0x288] sm:$0xff]
  %v6244 = vld [vmem:[#allocation2 + $0x290] sm:$0xff]
  %v6245 = vld [vmem:[#allocation2 + $0x298] sm:$0xff]
  %v6246 = vld [vmem:[#allocation2 + $0x2a0] sm:$0xff]
  %v6247 = vld [vmem:[#allocation2 + $0x2a8] sm:$0xff]
  %v6248 = vld [vmem:[#allocation2 + $0x2b0] sm:$0xff]
  %v6249 = vld [vmem:[#allocation2 + $0x2b8] sm:$0xff]
  %v6250 = vld [vmem:[#allocation2 + $0x2c0] sm:$0xff]
  %v6251 = vld [vmem:[#allocation2 + $0x2c8] sm:$0xff]
  %v6252 = vld [vmem:[#allocation2 + $0x2d0] sm:$0xff]
  %v6253 = vld [vmem:[#allocation2 + $0x2d8] sm:$0xff]
  %v6254 = vld [vmem:[#allocation2 + $0x2e0] sm:$0xff]
  %v6255 = vld [vmem:[#allocation2 + $0x2e8] sm:$0xff]
  %v6256 = vld [vmem:[#allocation2 + $0x2f0] sm:$0xff]
  %v6257 = vld [vmem:[#allocation2 + $0x2f8] sm:$0xff]
  %v6258 = vld [vmem:[#allocation2 + $0x300] sm:$0xff]
  %v6259 = vld [vmem:[#allocation2 + $0x308] sm:$0xff]
  %v6260 = vld [vmem:[#allocation2 + $0x310] sm:$0xff]
  %v6261 = vld [vmem:[#allocation2 + $0x318] sm:$0xff]
  %v6262 = vld [vmem:[#allocation2 + $0x320] sm:$0xff]
  %v6263 = vld [vmem:[#allocation2 + $0x328] sm:$0xff]
  %v6264 = vld [vmem:[#allocation2 + $0x330] sm:$0xff]
  %v6265 = vld [vmem:[#allocation2 + $0x338] sm:$0xff]
  %v6266 = vld [vmem:[#allocation2 + $0x340] sm:$0xff]
  %v6267 = vld [vmem:[#allocation2 + $0x348] sm:$0xff]
  %v6268 = vld [vmem:[#allocation2 + $0x350] sm:$0xff]
  %v6269 = vld [vmem:[#allocation2 + $0x358] sm:$0xff]
  %v6270 = vld [vmem:[#allocation2 + $0x360] sm:$0xff]
  %v6271 = vld [vmem:[#allocation2 + $0x368] sm:$0xff]
  %v6272 = vld [vmem:[#allocation2 + $0x370] sm:$0xff]
  %v6273 = vld [vmem:[#allocation2 + $0x378] sm:$0xff]
  %v6274 = vld [vmem:[#allocation2 + $0x380] sm:$0xff]
  %v6275 = vld [vmem:[#allocation2 + $0x388] sm:$0xff]
  %v6276 = vld [vmem:[#allocation2 + $0x390] sm:$0xff]
  %v6277 = vld [vmem:[#allocation2 + $0x398] sm:$0xff]
  %v6278 = vld [vmem:[#allocation2 + $0x3a0] sm:$0xff]
  %v6279 = vld [vmem:[#allocation2 + $0x3a8] sm:$0xff]
  %v6280 = vld [vmem:[#allocation2 + $0x3b0] sm:$0xff]
  %v6281 = vld [vmem:[#allocation2 + $0x3b8] sm:$0xff]
  %v6282 = vld [vmem:[#allocation2 + $0x3c0] sm:$0xff]
  %v6283 = vld [vmem:[#allocation2 + $0x3c8] sm:$0xff]
  %v6284 = vld [vmem:[#allocation2 + $0x3d0] sm:$0xff]
  %v6285 = vld [vmem:[#allocation2 + $0x3d8] sm:$0xff]
  %v6286 = vld [vmem:[#allocation2 + $0x3e0] sm:$0xff]
  %v6287 = vld [vmem:[#allocation2 + $0x3e8] sm:$0xff]
  %v6288 = vld [vmem:[#allocation2 + $0x3f0] sm:$0xff]
  %v6289 = vld [vmem:[#allocation2 + $0x3f8] sm:$0xff]
  %v6290 = vld [vmem:[#allocation2 + $0x400] sm:$0xff]
  %v6291 = vld [vmem:[#allocation2 + $0x408] sm:$0xff]
  %v6292 = vld [vmem:[#allocation2 + $0x410] sm:$0xff]
  %v6293 = vld [vmem:[#allocation2 + $0x418] sm:$0xff]
  %v6294 = vld [vmem:[#allocation2 + $0x420] sm:$0xff]
  %v6295 = vld [vmem:[#allocation2 + $0x428] sm:$0xff]
  %v6296 = vld [vmem:[#allocation2 + $0x430] sm:$0xff]
  %v6297 = vld [vmem:[#allocation2 + $0x438] sm:$0xff]
  %v6298 = vld [vmem:[#allocation2 + $0x440] sm:$0xff]
  %v6299 = vld [vmem:[#allocation2 + $0x448] sm:$0xff]
  %v6300 = vld [vmem:[#allocation2 + $0x450] sm:$0xff]
  %v6301 = vld [vmem:[#allocation2 + $0x458] sm:$0xff]
  %v6302 = vld [vmem:[#allocation2 + $0x460] sm:$0xff]
  %v6303 = vld [vmem:[#allocation2 + $0x468] sm:$0xff]
  %v6304 = vld [vmem:[#allocation2 + $0x470] sm:$0xff]
  %v6305 = vld [vmem:[#allocation2 + $0x478] sm:$0xff]
  %v6306 = vld [vmem:[#allocation2 + $0x480] sm:$0xff]
  %v6307 = vld [vmem:[#allocation2 + $0x488] sm:$0xff]
  %v6308 = vld [vmem:[#allocation2 + $0x490] sm:$0xff]
  %v6309 = vld [vmem:[#allocation2 + $0x498] sm:$0xff]
  %v6310 = vld [vmem:[#allocation2 + $0x4a0] sm:$0xff]
  %v6311 = vld [vmem:[#allocation2 + $0x4a8] sm:$0xff]
  %v6312 = vld [vmem:[#allocation2 + $0x4b0] sm:$0xff]
  %v6313 = vld [vmem:[#allocation2 + $0x4b8] sm:$0xff]
  %v6314 = vld [vmem:[#allocation2 + $0x4c0] sm:$0xff]
  %v6315 = vld [vmem:[#allocation2 + $0x4c8] sm:$0xff]
  %v6316 = vld [vmem:[#allocation2 + $0x4d0] sm:$0xff]
  %v6317 = vld [vmem:[#allocation2 + $0x4d8] sm:$0xff]
  %v6318 = vld [vmem:[#allocation2 + $0x4e0] sm:$0xff]
  %v6319 = vld [vmem:[#allocation2 + $0x4e8] sm:$0xff]
  %v6320 = vld [vmem:[#allocation2 + $0x4f0] sm:$0xff]
  %v6321 = vld [vmem:[#allocation2 + $0x4f8] sm:$0xff]
  %v6322 = vld [vmem:[#allocation2 + $0x500] sm:$0xff]
  %v6323 = vld [vmem:[#allocation2 + $0x508] sm:$0xff]
  %v6324 = vld [vmem:[#allocation2 + $0x510] sm:$0xff]
  %v6325 = vld [vmem:[#allocation2 + $0x518] sm:$0xff]
  %v6326 = vld [vmem:[#allocation2 + $0x520] sm:$0xff]
  %v6327 = vld [vmem:[#allocation2 + $0x528] sm:$0xff]
  %v6328 = vld [vmem:[#allocation2 + $0x530] sm:$0xff]
  %v6329 = vld [vmem:[#allocation2 + $0x538] sm:$0xff]
  %v6330 = vld [vmem:[#allocation2 + $0x540] sm:$0xff]
  %v6331 = vld [vmem:[#allocation2 + $0x548] sm:$0xff]
  %v6332 = vld [vmem:[#allocation2 + $0x550] sm:$0xff]
  %v6333 = vld [vmem:[#allocation2 + $0x558] sm:$0xff]
  %v6334 = vld [vmem:[#allocation2 + $0x560] sm:$0xff]
  %v6335 = vld [vmem:[#allocation2 + $0x568] sm:$0xff]
  %v6336 = vld [vmem:[#allocation2 + $0x570] sm:$0xff]
  %v6337 = vld [vmem:[#allocation2 + $0x578] sm:$0xff]
  %v6338 = vld [vmem:[#allocation2 + $0x580] sm:$0xff]
  %v6339 = vld [vmem:[#allocation2 + $0x588] sm:$0xff]
  %v6340 = vld [vmem:[#allocation2 + $0x590] sm:$0xff]
  %v6341 = vld [vmem:[#allocation2 + $0x598] sm:$0xff]
  %v6342 = vld [vmem:[#allocation2 + $0x5a0] sm:$0xff]
  %v6343 = vld [vmem:[#allocation2 + $0x5a8] sm:$0xff]
  %v6344 = vld [vmem:[#allocation2 + $0x5b0] sm:$0xff]
  %v6345 = vld [vmem:[#allocation2 + $0x5b8] sm:$0xff]
  %v6346 = vld [vmem:[#allocation2 + $0x5c0] sm:$0xff]
  %v6347 = vld [vmem:[#allocation2 + $0x5c8] sm:$0xff]
  %v6348 = vld [vmem:[#allocation2 + $0x5d0] sm:$0xff]
  %v6349 = vld [vmem:[#allocation2 + $0x5d8] sm:$0xff]
  %v6350 = vld [vmem:[#allocation2 + $0x5e0] sm:$0xff]
  %v6351 = vld [vmem:[#allocation2 + $0x5e8] sm:$0xff]
  %v6352 = vld [vmem:[#allocation2 + $0x5f0] sm:$0xff]
  %v6353 = vld [vmem:[#allocation2 + $0x5f8] sm:$0xff]
  %v6354 = vld [vmem:[#allocation2 + $0x600] sm:$0xff]
  %v6355 = vld [vmem:[#allocation2 + $0x608] sm:$0xff]
  %v6356 = vld [vmem:[#allocation2 + $0x610] sm:$0xff]
  %v6357 = vld [vmem:[#allocation2 + $0x618] sm:$0xff]
  %v6358 = vld [vmem:[#allocation2 + $0x620] sm:$0xff]
  %v6359 = vld [vmem:[#allocation2 + $0x628] sm:$0xff]
  %v6360 = vld [vmem:[#allocation2 + $0x630] sm:$0xff]
  %v6361 = vld [vmem:[#allocation2 + $0x638] sm:$0xff]
  %v6362 = vld [vmem:[#allocation2 + $0x640] sm:$0xff]
  %v6363 = vld [vmem:[#allocation2 + $0x648] sm:$0xff]
  %v6364 = vld [vmem:[#allocation2 + $0x650] sm:$0xff]
  %v6365 = vld [vmem:[#allocation2 + $0x658] sm:$0xff]
  %v6366 = vld [vmem:[#allocation2 + $0x660] sm:$0xff]
  %v6367 = vld [vmem:[#allocation2 + $0x668] sm:$0xff]
  %v6368 = vld [vmem:[#allocation2 + $0x670] sm:$0xff]
  %v6369 = vld [vmem:[#allocation2 + $0x678] sm:$0xff]
  %v6370 = vld [vmem:[#allocation2 + $0x680] sm:$0xff]
  %v6371 = vld [vmem:[#allocation2 + $0x688] sm:$0xff]
  %v6372 = vld [vmem:[#allocation2 + $0x690] sm:$0xff]
  %v6373 = vld [vmem:[#allocation2 + $0x698] sm:$0xff]
  %v6374 = vld [vmem:[#allocation2 + $0x6a0] sm:$0xff]
  %v6375 = vld [vmem:[#allocation2 + $0x6a8] sm:$0xff]
  %v6376 = vld [vmem:[#allocation2 + $0x6b0] sm:$0xff]
  %v6377 = vld [vmem:[#allocation2 + $0x6b8] sm:$0xff]
  %v6378 = vld [vmem:[#allocation2 + $0x6c0] sm:$0xff]
  %v6379 = vld [vmem:[#allocation2 + $0x6c8] sm:$0xff]
  %v6380 = vld [vmem:[#allocation2 + $0x6d0] sm:$0xff]
  %v6381 = vld [vmem:[#allocation2 + $0x6d8] sm:$0xff]
  %v6382 = vld [vmem:[#allocation2 + $0x6e0] sm:$0xff]
  %v6383 = vld [vmem:[#allocation2 + $0x6e8] sm:$0xff]
  %v6384 = vld [vmem:[#allocation2 + $0x6f0] sm:$0xff]
  %v6385 = vld [vmem:[#allocation2 + $0x6f8] sm:$0xff]
  %v6386 = vld [vmem:[#allocation2 + $0x700] sm:$0xff]
  %v6387 = vld [vmem:[#allocation2 + $0x708] sm:$0xff]
  %v6388 = vld [vmem:[#allocation2 + $0x710] sm:$0xff]
  %v6389 = vld [vmem:[#allocation2 + $0x718] sm:$0xff]
  %v6390 = vld [vmem:[#allocation2 + $0x720] sm:$0xff]
  %v6391 = vld [vmem:[#allocation2 + $0x728] sm:$0xff]
  %v6392 = vld [vmem:[#allocation2 + $0x730] sm:$0xff]
  %v6393 = vld [vmem:[#allocation2 + $0x738] sm:$0xff]
  %v6394 = vld [vmem:[#allocation2 + $0x740] sm:$0xff]
  %v6395 = vld [vmem:[#allocation2 + $0x748] sm:$0xff]
  %v6396 = vld [vmem:[#allocation2 + $0x750] sm:$0xff]
  %v6397 = vld [vmem:[#allocation2 + $0x758] sm:$0xff]
  %v6398 = vld [vmem:[#allocation2 + $0x760] sm:$0xff]
  %v6399 = vld [vmem:[#allocation2 + $0x768] sm:$0xff]
  %v6400 = vld [vmem:[#allocation2 + $0x770] sm:$0xff]
  %v6401 = vld [vmem:[#allocation2 + $0x778] sm:$0xff]
  %v6402 = vld [vmem:[#allocation2 + $0x780] sm:$0xff]
  %v6403 = vld [vmem:[#allocation2 + $0x788] sm:$0xff]
  %v6404 = vld [vmem:[#allocation2 + $0x790] sm:$0xff]
  %v6405 = vld [vmem:[#allocation2 + $0x798] sm:$0xff]
  %v6406 = vld [vmem:[#allocation2 + $0x7a0] sm:$0xff]
  %v6407 = vld [vmem:[#allocation2 + $0x7a8] sm:$0xff]
  %v6408 = vld [vmem:[#allocation2 + $0x7b0] sm:$0xff]
  %v6409 = vld [vmem:[#allocation2 + $0x7b8] sm:$0xff]
  %v6410 = vld [vmem:[#allocation2 + $0x7c0] sm:$0xff]
  %v6411 = vld [vmem:[#allocation2 + $0x7c8] sm:$0xff]
  %v6412 = vld [vmem:[#allocation2 + $0x7d0] sm:$0xff]
  %v6413 = vld [vmem:[#allocation2 + $0x7d8] sm:$0xff]
  %v6414 = vld [vmem:[#allocation2 + $0x7e0] sm:$0xff]
  %v6415 = vld [vmem:[#allocation2 + $0x7e8] sm:$0xff]
  %v6416 = vld [vmem:[#allocation2 + $0x7f0] sm:$0xff]
  %v6417 = vld [vmem:[#allocation2 + $0x7f8] sm:$0xff]
  %v6418 = vld [vmem:[#allocation2 + $0x800] sm:$0xff]
  %v6419 = vld [vmem:[#allocation2 + $0x808] sm:$0xff]
  %v6420 = vld [vmem:[#allocation2 + $0x810] sm:$0xff]
  %v6421 = vld [vmem:[#allocation2 + $0x818] sm:$0xff]
  %v6422 = vld [vmem:[#allocation2 + $0x820] sm:$0xff]
  %v6423 = vld [vmem:[#allocation2 + $0x828] sm:$0xff]
  %v6424 = vld [vmem:[#allocation2 + $0x830] sm:$0xff]
  %v6425 = vld [vmem:[#allocation2 + $0x838] sm:$0xff]
  %v6426 = vld [vmem:[#allocation2 + $0x840] sm:$0xff]
  %v6427 = vld [vmem:[#allocation2 + $0x848] sm:$0xff]
  %v6428 = vld [vmem:[#allocation2 + $0x850] sm:$0xff]
  %v6429 = vld [vmem:[#allocation2 + $0x858] sm:$0xff]
  %v6430 = vld [vmem:[#allocation2 + $0x860] sm:$0xff]
  %v6431 = vld [vmem:[#allocation2 + $0x868] sm:$0xff]
  %v6432 = vld [vmem:[#allocation2 + $0x870] sm:$0xff]
  %v6433 = vld [vmem:[#allocation2 + $0x878] sm:$0xff]
  %v6434 = vld [vmem:[#allocation2 + $0x880] sm:$0xff]
  %v6435 = vld [vmem:[#allocation2 + $0x888] sm:$0xff]
  %v6436 = vld [vmem:[#allocation2 + $0x890] sm:$0xff]
  %v6437 = vld [vmem:[#allocation2 + $0x898] sm:$0xff]
  %v6438 = vld [vmem:[#allocation2 + $0x8a0] sm:$0xff]
  %v6439 = vld [vmem:[#allocation2 + $0x8a8] sm:$0xff]
  %v6440 = vld [vmem:[#allocation2 + $0x8b0] sm:$0xff]
  %v6441 = vld [vmem:[#allocation2 + $0x8b8] sm:$0xff]
  %v6442 = vld [vmem:[#allocation2 + $0x8c0] sm:$0xff]
  %v6443 = vld [vmem:[#allocation2 + $0x8c8] sm:$0xff]
  %v6444 = vld [vmem:[#allocation2 + $0x8d0] sm:$0xff]
  %v6445 = vld [vmem:[#allocation2 + $0x8d8] sm:$0xff]
  %v6446 = vld [vmem:[#allocation2 + $0x8e0] sm:$0xff]
  %v6447 = vld [vmem:[#allocation2 + $0x8e8] sm:$0xff]
  %v6448 = vld [vmem:[#allocation2 + $0x8f0] sm:$0xff]
  %v6449 = vld [vmem:[#allocation2 + $0x8f8] sm:$0xff]
  %v6450 = vld [vmem:[#allocation2 + $0x900] sm:$0xff]
  %v6451 = vld [vmem:[#allocation2 + $0x908] sm:$0xff]
  %v6452 = vld [vmem:[#allocation2 + $0x910] sm:$0xff]
  %v6453 = vld [vmem:[#allocation2 + $0x918] sm:$0xff]
  %v6454 = vld [vmem:[#allocation2 + $0x920] sm:$0xff]
  %v6455 = vld [vmem:[#allocation2 + $0x928] sm:$0xff]
  %v6456 = vld [vmem:[#allocation2 + $0x930] sm:$0xff]
  %v6457 = vld [vmem:[#allocation2 + $0x938] sm:$0xff]
  %v6458 = vld [vmem:[#allocation2 + $0x940] sm:$0xff]
  %v6459 = vld [vmem:[#allocation2 + $0x948] sm:$0xff]
  %s6460 = scalar_lea.vmem %s3, 384
  %v6461 = vld [vmem:[%s6460] sm:$0xff]
  %v6462 = vld [vmem:[%s6460 + $0x8] sm:$0xff]
  %v6463 = vld [vmem:[%s6460 + $0x10] sm:$0xff]
  %v6464 = vld [vmem:[%s6460 + $0x18] sm:$0xff]
  %v6465 = vld [vmem:[%s6460 + $0x20] sm:$0xff]
  %v6466 = vld [vmem:[%s6460 + $0x28] sm:$0xff]
  %v6467 = vld [vmem:[%s6460 + $0x30] sm:$0xff]
  %v6468 = vld [vmem:[%s6460 + $0x38] sm:$0xff]
  %v6469 = vld [vmem:[%s6460 + $0x40] sm:$0xff]
  %v6470 = vld [vmem:[%s6460 + $0x48] sm:$0xff]
  %v6471 = vld [vmem:[%s6460 + $0x50] sm:$0xff]
  %v6472 = vld [vmem:[%s6460 + $0x58] sm:$0xff]
  %v6473 = vld [vmem:[%s6460 + $0x60] sm:$0xff]
  %v6474 = vld [vmem:[%s6460 + $0x68] sm:$0xff]
  %v6475 = vld [vmem:[%s6460 + $0x70] sm:$0xff]
  %v6476 = vld [vmem:[%s6460 + $0x78] sm:$0xff]
  %v6477 = vld [vmem:[%s6460 + $0x80] sm:$0xff]
  %v6478 = vld [vmem:[%s6460 + $0x88] sm:$0xff]
  %v6479 = vld [vmem:[%s6460 + $0x90] sm:$0xff]
  %v6480 = vld [vmem:[%s6460 + $0x98] sm:$0xff]
  %v6481 = vld [vmem:[%s6460 + $0xa0] sm:$0xff]
  %v6482 = vld [vmem:[%s6460 + $0xa8] sm:$0xff]
  %v6483 = vld [vmem:[%s6460 + $0xb0] sm:$0xff]
  %v6484 = vld [vmem:[%s6460 + $0xb8] sm:$0xff]
  %v6486 = vsel %vm2848, %v6173, 0
  %v6489 = vsel %vm2848, %v6175, 0
  %v6492 = vsel %vm2848, %v6177, 0
  %v6495 = vsel %vm2848, %v6179, 0
  %v6498 = vsel %vm2848, %v6181, 0
  %v6501 = vsel %vm2848, %v6183, 0
  %v6504 = vsel %vm2848, %v6185, 0
  %v6507 = vsel %vm2848, %v6187, 0
  %v6510 = vsel %vm2848, %v6189, 0
  %v6513 = vsel %vm2848, %v6191, 0
  %v6516 = vsel %vm2848, %v6193, 0
  %v6519 = vsel %vm2848, %v6195, 0
  %v6522 = vsel %vm2848, %v6197, 0
  %v6525 = vsel %vm2848, %v6199, 0
  %v6528 = vsel %vm2848, %v6201, 0
  %v6531 = vsel %vm2848, %v6203, 0
  %v6534 = vsel %vm2848, %v6205, 0
  %v6537 = vsel %vm2848, %v6207, 0
  %v6540 = vsel %vm2848, %v6209, 0
  %v6543 = vsel %vm2848, %v6211, 0
  %v6546 = vsel %vm2848, %v6213, 0
  %v6549 = vsel %vm2848, %v6215, 0
  %v6552 = vsel %vm2848, %v6217, 0
  %v6555 = vsel %vm2848, %v6219, 0
  %v6558 = vsel %vm2848, %v6221, 0
  %v6561 = vsel %vm2848, %v6223, 0
  %v6564 = vsel %vm2848, %v6225, 0
  %v6567 = vsel %vm2848, %v6227, 0
  %v6570 = vsel %vm2848, %v6229, 0
  %v6573 = vsel %vm2848, %v6231, 0
  %v6576 = vsel %vm2848, %v6233, 0
  %v6579 = vsel %vm2848, %v6235, 0
  %v6582 = vsel %vm2848, %v6237, 0
  %v6585 = vsel %vm2848, %v6239, 0
  %v6588 = vsel %vm2848, %v6241, 0
  %v6591 = vsel %vm2848, %v6243, 0
  %v6594 = vsel %vm2848, %v6245, 0
  %v6597 = vsel %vm2848, %v6247, 0
  %v6600 = vsel %vm2848, %v6249, 0
  %v6603 = vsel %vm2848, %v6251, 0
  %v6606 = vsel %vm2848, %v6253, 0
  %v6609 = vsel %vm2848, %v6255, 0
  %v6612 = vsel %vm2848, %v6257, 0
  %v6615 = vsel %vm2848, %v6259, 0
  %v6618 = vsel %vm2848, %v6261, 0
  %v6621 = vsel %vm2848, %v6263, 0
  %v6624 = vsel %vm2848, %v6265, 0
  %v6627 = vsel %vm2848, %v6267, 0
  %v6630 = vsel %vm2848, %v6269, 0
  %v6633 = vsel %vm2848, %v6271, 0
  %v6636 = vsel %vm2848, %v6273, 0
  %v6639 = vsel %vm2848, %v6275, 0
  %v6642 = vsel %vm2848, %v6277, 0
  %v6645 = vsel %vm2848, %v6279, 0
  %v6648 = vsel %vm2848, %v6281, 0
  %v6651 = vsel %vm2848, %v6283, 0
  %v6654 = vsel %vm2848, %v6285, 0
  %v6657 = vsel %vm2848, %v6287, 0
  %v6660 = vsel %vm2848, %v6289, 0
  %v6663 = vsel %vm2848, %v6291, 0
  %v6666 = vsel %vm2848, %v6293, 0
  %v6669 = vsel %vm2848, %v6295, 0
  %v6672 = vsel %vm2848, %v6297, 0
  %v6675 = vsel %vm2848, %v6299, 0
  %v6678 = vsel %vm2848, %v6301, 0
  %v6681 = vsel %vm2848, %v6303, 0
  %v6684 = vsel %vm2848, %v6305, 0
  %v6687 = vsel %vm2848, %v6307, 0
  %v6690 = vsel %vm2848, %v6309, 0
  %v6693 = vsel %vm2848, %v6311, 0
  %v6696 = vsel %vm2848, %v6313, 0
  %v6699 = vsel %vm2848, %v6315, 0
  %v6702 = vsel %vm2848, %v6317, 0
  %v6705 = vsel %vm2848, %v6319, 0
  %v6708 = vsel %vm2848, %v6321, 0
  %v6711 = vsel %vm2848, %v6323, 0
  %v6714 = vsel %vm2848, %v6325, 0
  %v6717 = vsel %vm2848, %v6327, 0
  %v6720 = vsel %vm2848, %v6329, 0
  %v6723 = vsel %vm2848, %v6331, 0
  %v6726 = vsel %vm2848, %v6333, 0
  %v6729 = vsel %vm2848, %v6335, 0
  %v6732 = vsel %vm2848, %v6337, 0
  %v6735 = vsel %vm2848, %v6339, 0
  %v6738 = vsel %vm2848, %v6341, 0
  %v6741 = vsel %vm2848, %v6343, 0
  %v6744 = vsel %vm2848, %v6345, 0
  %v6747 = vsel %vm2848, %v6347, 0
  %v6750 = vsel %vm2848, %v6349, 0
  %v6753 = vsel %vm2848, %v6351, 0
  %v6756 = vsel %vm2848, %v6353, 0
  %v6759 = vsel %vm2848, %v6355, 0
  %v6762 = vsel %vm2848, %v6357, 0
  %v6765 = vsel %vm2848, %v6359, 0
  %v6768 = vsel %vm2848, %v6361, 0
  %v6771 = vsel %vm2848, %v6363, 0
  %v6774 = vsel %vm2848, %v6365, 0
  %v6777 = vsel %vm2848, %v6367, 0
  %v6780 = vsel %vm2848, %v6369, 0
  %v6783 = vsel %vm2848, %v6371, 0
  %v6786 = vsel %vm2848, %v6373, 0
  %v6789 = vsel %vm2848, %v6375, 0
  %v6792 = vsel %vm2848, %v6377, 0
  %v6795 = vsel %vm2848, %v6379, 0
  %v6798 = vsel %vm2848, %v6381, 0
  %v6801 = vsel %vm2848, %v6383, 0
  %v6804 = vsel %vm2848, %v6385, 0
  %v6807 = vsel %vm2848, %v6387, 0
  %v6810 = vsel %vm2848, %v6389, 0
  %v6813 = vsel %vm2848, %v6391, 0
  %v6816 = vsel %vm2848, %v6393, 0
  %v6819 = vsel %vm2848, %v6395, 0
  %v6822 = vsel %vm2848, %v6397, 0
  %v6825 = vsel %vm2848, %v6399, 0
  %v6828 = vsel %vm2848, %v6401, 0
  %v6831 = vsel %vm2848, %v6403, 0
  %v6834 = vsel %vm2848, %v6405, 0
  %v6837 = vsel %vm2848, %v6407, 0
  %v6840 = vsel %vm2848, %v6409, 0
  %v6843 = vsel %vm2848, %v6411, 0
  %v6846 = vsel %vm2848, %v6413, 0
  %v6849 = vsel %vm2848, %v6415, 0
  %v6852 = vsel %vm2848, %v6417, 0
  %v6855 = vsel %vm2848, %v6419, 0
  %v6858 = vsel %vm2848, %v6421, 0
  %v6861 = vsel %vm2848, %v6423, 0
  %v6864 = vsel %vm2848, %v6425, 0
  %v6867 = vsel %vm2848, %v6427, 0
  %v6870 = vsel %vm2848, %v6429, 0
  %v6873 = vsel %vm2848, %v6431, 0
  %v6876 = vsel %vm2848, %v6433, 0
  %v6879 = vsel %vm2848, %v6435, 0
  %v6882 = vsel %vm2848, %v6437, 0
  %v6885 = vsel %vm2848, %v6439, 0
  %v6888 = vsel %vm2848, %v6441, 0
  %v6891 = vsel %vm2848, %v6443, 0
  %v6894 = vsel %vm2848, %v6445, 0
  %v6897 = vsel %vm2848, %v6447, 0
  %v6900 = vsel %vm2848, %v6449, 0
  %v6903 = vsel %vm2848, %v6451, 0
  %v6906 = vsel %vm2848, %v6453, 0
  %v6909 = vsel %vm2848, %v6455, 0
  %v6912 = vsel %vm2848, %v6457, 0
  %v6915 = vsel %vm2848, %v6459, 0
  %6917 = vmatprep.subr.mxu0 0.0
  %6918 = vmatpush1.msra.mxu0 %v6476
  %6919 = vmatprep.subr.mxu0 0.0
  %6920 = vmatpush1.msra.mxu0 %v6475
  %6921 = vmatprep.subr.mxu0 0.0
  %6922 = vmatpush1.msra.mxu0 %v6474
  %6923 = vmatprep.subr.mxu0 0.0
  %6924 = vmatpush1.msra.mxu0 %v6473
  %6925 = vmatprep.subr.mxu0 0.0
  %6926 = vmatpush1.msra.mxu0 %v6472
  %6927 = vmatprep.subr.mxu0 0.0
  %6928 = vmatpush1.msra.mxu0 %v6471
  %6929 = vmatprep.subr.mxu0 0.0
  %6930 = vmatpush1.msra.mxu0 %v6470
  %6931 = vmatprep.subr.mxu0 0.0
  %6932 = vmatpush1.msra.mxu0 %v6469
  %6933 = vmatprep.subr.mxu0 0.0
  %6934 = vmatpush1.msra.mxu0 %v6468
  %6935 = vmatprep.subr.mxu0 0.0
  %6936 = vmatpush1.msra.mxu0 %v6467
  %6937 = vmatprep.subr.mxu0 0.0
  %6938 = vmatpush1.msra.mxu0 %v6466
  %6939 = vmatprep.subr.mxu0 0.0
  %6940 = vmatpush1.msra.mxu0 %v6465
  %6941 = vmatprep.subr.mxu0 0.0
  %6942 = vmatpush1.msra.mxu0 %v6464
  %6943 = vmatprep.subr.mxu0 0.0
  %6944 = vmatpush1.msra.mxu0 %v6463
  %6945 = vmatprep.subr.mxu0 0.0
  %6946 = vmatpush1.msra.mxu0 %v6462
  %6947 = vmatprep.subr.mxu0 0.0
  %6948 = vmatpush1.msra.mxu0 %v6461
  %6949 = vmatprep.subr.mxu0 0.0
  %6950 = vmatpush2.msra.mxu0 0.0
  %6951 = vmatprep.subr.mxu0 0.0
  %6952 = vmatpush2.msra.mxu0 0.0
  %6953 = vmatprep.subr.mxu0 0.0
  %6954 = vmatpush2.msra.mxu0 0.0
  %6955 = vmatprep.subr.mxu0 0.0
  %6956 = vmatpush2.msra.mxu0 0.0
  %6957 = vmatprep.subr.mxu0 0.0
  %6958 = vmatpush2.msra.mxu0 0.0
  %6959 = vmatprep.subr.mxu0 0.0
  %6960 = vmatpush2.msra.mxu0 0.0
  %6961 = vmatprep.subr.mxu0 0.0
  %6962 = vmatpush2.msra.mxu0 0.0
  %6963 = vmatprep.subr.mxu0 0.0
  %6964 = vmatpush2.msra.mxu0 0.0
  %6965 = vmatprep.subr.mxu0 0.0
  %6966 = vmatpush2.msra.mxu0 %v6484
  %6967 = vmatprep.subr.mxu0 0.0
  %6968 = vmatpush2.msra.mxu0 %v6483
  %6969 = vmatprep.subr.mxu0 0.0
  %6970 = vmatpush2.msra.mxu0 %v6482
  %6971 = vmatprep.subr.mxu0 0.0
  %6972 = vmatpush2.msra.mxu0 %v6481
  %6973 = vmatprep.subr.mxu0 0.0
  %6974 = vmatpush2.msra.mxu0 %v6480
  %6975 = vmatprep.subr.mxu0 0.0
  %6976 = vmatpush2.msra.mxu0 %v6479
  %6977 = vmatprep.subr.mxu0 0.0
  %6978 = vmatpush2.msra.mxu0 %v6478
  %6979 = vmatprep.subr.mxu0 0.0
  %6980 = vmatpush2.msra.mxu0 %v6477
  %6981 = vmatprep.mubr.f32.mxu0 %v6486
  %6982 = vmatmul.mubr.f32.gmra.mxu0 %v6172
  %v6983 = vpop.f32.mrf.mxu0
  %v6984 = vadd.f32 0.0, %v6983
  %v6985 = vpop.f32.mrf.mxu0
  %6986 = vmatprep.mubr.f32.mxu0 %v6489
  %6987 = vmatmul.mubr.f32.gmra.mxu0 %v6174
  %v6988 = vpop.f32.mrf.mxu0
  %v6989 = vpop.f32.mrf.mxu0
  %6990 = vmatprep.mubr.f32.mxu0 %v6492
  %6991 = vmatmul.mubr.f32.gmra.mxu0 %v6176
  %v6992 = vpop.f32.mrf.mxu0
  %v6993 = vadd.f32 0.0, %v6992
  %v6994 = vpop.f32.mrf.mxu0
  %6995 = vmatprep.mubr.f32.mxu0 %v6495
  %6996 = vmatmul.mubr.f32.gmra.mxu0 %v6178
  %v6997 = vpop.f32.mrf.mxu0
  %v6998 = vpop.f32.mrf.mxu0
  %6999 = vmatprep.mubr.f32.mxu0 %v6498
  %7000 = vmatmul.mubr.f32.gmra.mxu0 %v6180
  %v7001 = vpop.f32.mrf.mxu0
  %v7002 = vadd.f32 0.0, %v7001
  %v7003 = vpop.f32.mrf.mxu0
  %7004 = vmatprep.mubr.f32.mxu0 %v6501
  %7005 = vmatmul.mubr.f32.gmra.mxu0 %v6182
  %v7006 = vpop.f32.mrf.mxu0
  %v7007 = vpop.f32.mrf.mxu0
  %7008 = vmatprep.mubr.f32.mxu0 %v6504
  %7009 = vmatmul.mubr.f32.gmra.mxu0 %v6184
  %v7010 = vpop.f32.mrf.mxu0
  %v7011 = vadd.f32 0.0, %v7010
  %v7012 = vpop.f32.mrf.mxu0
  %7013 = vmatprep.mubr.f32.mxu0 %v6507
  %7014 = vmatmul.mubr.f32.gmra.mxu0 %v6186
  %v7015 = vpop.f32.mrf.mxu0
  %v7016 = vpop.f32.mrf.mxu0
  %7017 = vmatprep.mubr.f32.mxu0 %v6510
  %7018 = vmatmul.mubr.f32.gmra.mxu0 %v6188
  %v7019 = vpop.f32.mrf.mxu0
  %v7020 = vadd.f32 0.0, %v7019
  %v7021 = vpop.f32.mrf.mxu0
  %7022 = vmatprep.mubr.f32.mxu0 %v6513
  %7023 = vmatmul.mubr.f32.gmra.mxu0 %v6190
  %v7024 = vpop.f32.mrf.mxu0
  %v7025 = vpop.f32.mrf.mxu0
  %7026 = vmatprep.mubr.f32.mxu0 %v6516
  %7027 = vmatmul.mubr.f32.gmra.mxu0 %v6192
  %v7028 = vpop.f32.mrf.mxu0
  %v7029 = vadd.f32 0.0, %v7028
  %v7030 = vpop.f32.mrf.mxu0
  %7031 = vmatprep.mubr.f32.mxu0 %v6519
  %7032 = vmatmul.mubr.f32.gmra.mxu0 %v6194
  %v7033 = vpop.f32.mrf.mxu0
  %v7034 = vpop.f32.mrf.mxu0
  %7035 = vmatprep.mubr.f32.mxu0 %v6522
  %7036 = vmatmul.mubr.f32.gmra.mxu0 %v6196
  %v7037 = vpop.f32.mrf.mxu0
  %v7038 = vadd.f32 0.0, %v7037
  %v7039 = vpop.f32.mrf.mxu0
  %7040 = vmatprep.mubr.f32.mxu0 %v6525
  %7041 = vmatmul.mubr.f32.gmra.mxu0 %v6198
  %v7042 = vpop.f32.mrf.mxu0
  %v7043 = vpop.f32.mrf.mxu0
  %7044 = vmatprep.mubr.f32.mxu0 %v6528
  %7045 = vmatmul.mubr.f32.gmra.mxu0 %v6200
  %v7046 = vpop.f32.mrf.mxu0
  %v7047 = vadd.f32 0.0, %v7046
  %v7048 = vpop.f32.mrf.mxu0
  %7049 = vmatprep.mubr.f32.mxu0 %v6531
  %7050 = vmatmul.mubr.f32.gmra.mxu0 %v6202
  %v7051 = vpop.f32.mrf.mxu0
  %v7052 = vpop.f32.mrf.mxu0
  %7053 = vmatprep.mubr.f32.mxu0 %v6534
  %7054 = vmatmul.mubr.f32.gmra.mxu0 %v6204
  %v7055 = vpop.f32.mrf.mxu0
  %v7056 = vpop.f32.mrf.mxu0
  %7057 = vmatprep.mubr.f32.mxu0 %v6537
  %7058 = vmatmul.mubr.f32.gmra.mxu0 %v6206
  %v7059 = vpop.f32.mrf.mxu0
  %v7060 = vpop.f32.mrf.mxu0
  %7061 = vmatprep.mubr.f32.mxu0 %v6540
  %7062 = vmatmul.mubr.f32.gmra.mxu0 %v6208
  %v7063 = vpop.f32.mrf.mxu0
  %v7064 = vadd.f32 0.0, %v7063
  %v7065 = vpop.f32.mrf.mxu0
  %7066 = vmatprep.mubr.f32.mxu0 %v6543
  %7067 = vmatmul.mubr.f32.gmra.mxu0 %v6210
  %v7068 = vpop.f32.mrf.mxu0
  %v7069 = vpop.f32.mrf.mxu0
  %7070 = vmatprep.mubr.f32.mxu0 %v6546
  %7071 = vmatmul.mubr.f32.gmra.mxu0 %v6212
  %v7072 = vpop.f32.mrf.mxu0
  %v7073 = vadd.f32 0.0, %v7072
  %v7074 = vpop.f32.mrf.mxu0
  %7075 = vmatprep.mubr.f32.mxu0 %v6549
  %7076 = vmatmul.mubr.f32.gmra.mxu0 %v6214
  %v7077 = vpop.f32.mrf.mxu0
  %v7078 = vpop.f32.mrf.mxu0
  %7079 = vmatprep.mubr.f32.mxu0 %v6552
  %7080 = vmatmul.mubr.f32.gmra.mxu0 %v6216
  %v7081 = vpop.f32.mrf.mxu0
  %v7082 = vadd.f32 0.0, %v7081
  %v7083 = vpop.f32.mrf.mxu0
  %7084 = vmatprep.mubr.f32.mxu0 %v6555
  %7085 = vmatmul.mubr.f32.gmra.mxu0 %v6218
  %v7086 = vpop.f32.mrf.mxu0
  %v7087 = vpop.f32.mrf.mxu0
  %7088 = vmatprep.mubr.f32.mxu0 %v6558
  %7089 = vmatmul.mubr.f32.gmra.mxu0 %v6220
  %v7090 = vpop.f32.mrf.mxu0
  %v7091 = vadd.f32 0.0, %v7090
  %v7092 = vpop.f32.mrf.mxu0
  %7093 = vmatprep.mubr.f32.mxu0 %v6561
  %7094 = vmatmul.mubr.f32.gmra.mxu0 %v6222
  %v7095 = vpop.f32.mrf.mxu0
  %v7096 = vpop.f32.mrf.mxu0
  %7097 = vmatprep.mubr.f32.mxu0 %v6564
  %7098 = vmatmul.mubr.f32.gmra.mxu0 %v6224
  %v7099 = vpop.f32.mrf.mxu0
  %v7100 = vadd.f32 0.0, %v7099
  %v7101 = vpop.f32.mrf.mxu0
  %7102 = vmatprep.mubr.f32.mxu0 %v6567
  %7103 = vmatmul.mubr.f32.gmra.mxu0 %v6226
  %v7104 = vpop.f32.mrf.mxu0
  %v7105 = vpop.f32.mrf.mxu0
  %7106 = vmatprep.mubr.f32.mxu0 %v6570
  %7107 = vmatmul.mubr.f32.gmra.mxu0 %v6228
  %v7108 = vpop.f32.mrf.mxu0
  %v7109 = vadd.f32 0.0, %v7108
  %v7110 = vpop.f32.mrf.mxu0
  %7111 = vmatprep.mubr.f32.mxu0 %v6573
  %7112 = vmatmul.mubr.f32.gmra.mxu0 %v6230
  %v7113 = vpop.f32.mrf.mxu0
  %v7114 = vpop.f32.mrf.mxu0
  %7115 = vmatprep.mubr.f32.mxu0 %v6576
  %7116 = vmatmul.mubr.f32.gmra.mxu0 %v6232
  %v7117 = vpop.f32.mrf.mxu0
  %v7118 = vadd.f32 0.0, %v7117
  %v7119 = vpop.f32.mrf.mxu0
  %7120 = vmatprep.mubr.f32.mxu0 %v6579
  %7121 = vmatmul.mubr.f32.gmra.mxu0 %v6234
  %v7122 = vpop.f32.mrf.mxu0
  %v7123 = vpop.f32.mrf.mxu0
  %7124 = vmatprep.mubr.f32.mxu0 %v6582
  %7125 = vmatmul.mubr.f32.gmra.mxu0 %v6236
  %v7126 = vpop.f32.mrf.mxu0
  %v7127 = vadd.f32 0.0, %v7126
  %v7128 = vpop.f32.mrf.mxu0
  %7129 = vmatprep.mubr.f32.mxu0 %v6585
  %7130 = vmatmul.mubr.f32.gmra.mxu0 %v6238
  %v7131 = vpop.f32.mrf.mxu0
  %v7132 = vpop.f32.mrf.mxu0
  %7133 = vmatprep.mubr.f32.mxu0 %v6588
  %7134 = vmatmul.mubr.f32.gmra.mxu0 %v6240
  %v7135 = vpop.f32.mrf.mxu0
  %v7136 = vpop.f32.mrf.mxu0
  %7137 = vmatprep.mubr.f32.mxu0 %v6591
  %7138 = vmatmul.mubr.f32.gmra.mxu0 %v6242
  %v7139 = vpop.f32.mrf.mxu0
  %v7140 = vpop.f32.mrf.mxu0
  %7141 = vmatprep.mubr.f32.mxu0 %v6594
  %7142 = vmatmul.mubr.f32.gmra.mxu0 %v6244
  %v7143 = vpop.f32.mrf.mxu0
  %v7144 = vadd.f32 0.0, %v7143
  %v7145 = vpop.f32.mrf.mxu0
  %7146 = vmatprep.mubr.f32.mxu0 %v6597
  %7147 = vmatmul.mubr.f32.gmra.mxu0 %v6246
  %v7148 = vpop.f32.mrf.mxu0
  %v7149 = vpop.f32.mrf.mxu0
  %7150 = vmatprep.mubr.f32.mxu0 %v6600
  %7151 = vmatmul.mubr.f32.gmra.mxu0 %v6248
  %v7152 = vpop.f32.mrf.mxu0
  %v7153 = vadd.f32 0.0, %v7152
  %v7154 = vpop.f32.mrf.mxu0
  %7155 = vmatprep.mubr.f32.mxu0 %v6603
  %7156 = vmatmul.mubr.f32.gmra.mxu0 %v6250
  %v7157 = vpop.f32.mrf.mxu0
  %v7158 = vpop.f32.mrf.mxu0
  %7159 = vmatprep.mubr.f32.mxu0 %v6606
  %7160 = vmatmul.mubr.f32.gmra.mxu0 %v6252
  %v7161 = vpop.f32.mrf.mxu0
  %v7162 = vadd.f32 0.0, %v7161
  %v7163 = vpop.f32.mrf.mxu0
  %7164 = vmatprep.mubr.f32.mxu0 %v6609
  %7165 = vmatmul.mubr.f32.gmra.mxu0 %v6254
  %v7166 = vpop.f32.mrf.mxu0
  %v7167 = vpop.f32.mrf.mxu0
  %7168 = vmatprep.mubr.f32.mxu0 %v6612
  %7169 = vmatmul.mubr.f32.gmra.mxu0 %v6256
  %v7170 = vpop.f32.mrf.mxu0
  %v7171 = vadd.f32 0.0, %v7170
  %v7172 = vpop.f32.mrf.mxu0
  %7173 = vmatprep.mubr.f32.mxu0 %v6615
  %7174 = vmatmul.mubr.f32.gmra.mxu0 %v6258
  %v7175 = vpop.f32.mrf.mxu0
  %v7176 = vpop.f32.mrf.mxu0
  %7177 = vmatprep.mubr.f32.mxu0 %v6618
  %7178 = vmatmul.mubr.f32.gmra.mxu0 %v6260
  %v7179 = vpop.f32.mrf.mxu0
  %v7180 = vadd.f32 0.0, %v7179
  %v7181 = vpop.f32.mrf.mxu0
  %7182 = vmatprep.mubr.f32.mxu0 %v6621
  %7183 = vmatmul.mubr.f32.gmra.mxu0 %v6262
  %v7184 = vpop.f32.mrf.mxu0
  %v7185 = vpop.f32.mrf.mxu0
  %7186 = vmatprep.mubr.f32.mxu0 %v6624
  %7187 = vmatmul.mubr.f32.gmra.mxu0 %v6264
  %v7188 = vpop.f32.mrf.mxu0
  %v7189 = vadd.f32 0.0, %v7188
  %v7190 = vpop.f32.mrf.mxu0
  %7191 = vmatprep.mubr.f32.mxu0 %v6627
  %7192 = vmatmul.mubr.f32.gmra.mxu0 %v6266
  %v7193 = vpop.f32.mrf.mxu0
  %v7194 = vpop.f32.mrf.mxu0
  %7195 = vmatprep.mubr.f32.mxu0 %v6630
  %7196 = vmatmul.mubr.f32.gmra.mxu0 %v6268
  %v7197 = vpop.f32.mrf.mxu0
  %v7198 = vadd.f32 0.0, %v7197
  %v7199 = vpop.f32.mrf.mxu0
  %7200 = vmatprep.mubr.f32.mxu0 %v6633
  %7201 = vmatmul.mubr.f32.gmra.mxu0 %v6270
  %v7202 = vpop.f32.mrf.mxu0
  %v7203 = vpop.f32.mrf.mxu0
  %7204 = vmatprep.mubr.f32.mxu0 %v6636
  %7205 = vmatmul.mubr.f32.gmra.mxu0 %v6272
  %v7206 = vpop.f32.mrf.mxu0
  %v7207 = vadd.f32 0.0, %v7206
  %v7208 = vpop.f32.mrf.mxu0
  %7209 = vmatprep.mubr.f32.mxu0 %v6639
  %7210 = vmatmul.mubr.f32.gmra.mxu0 %v6274
  %v7211 = vpop.f32.mrf.mxu0
  %v7212 = vpop.f32.mrf.mxu0
  %7213 = vmatprep.mubr.f32.mxu0 %v6642
  %7214 = vmatmul.mubr.f32.gmra.mxu0 %v6276
  %v7215 = vpop.f32.mrf.mxu0
  %v7216 = vpop.f32.mrf.mxu0
  %7217 = vmatprep.mubr.f32.mxu0 %v6645
  %7218 = vmatmul.mubr.f32.gmra.mxu0 %v6278
  %v7219 = vpop.f32.mrf.mxu0
  %v7220 = vpop.f32.mrf.mxu0
  %7221 = vmatprep.mubr.f32.mxu0 %v6648
  %7222 = vmatmul.mubr.f32.gmra.mxu0 %v6280
  %v7223 = vpop.f32.mrf.mxu0
  %v7224 = vadd.f32 0.0, %v7223
  %v7225 = vpop.f32.mrf.mxu0
  %7226 = vmatprep.mubr.f32.mxu0 %v6651
  %7227 = vmatmul.mubr.f32.gmra.mxu0 %v6282
  %v7228 = vpop.f32.mrf.mxu0
  %v7229 = vpop.f32.mrf.mxu0
  %7230 = vmatprep.mubr.f32.mxu0 %v6654
  %7231 = vmatmul.mubr.f32.gmra.mxu0 %v6284
  %v7232 = vpop.f32.mrf.mxu0
  %v7233 = vadd.f32 0.0, %v7232
  %v7234 = vpop.f32.mrf.mxu0
  %7235 = vmatprep.mubr.f32.mxu0 %v6657
  %7236 = vmatmul.mubr.f32.gmra.mxu0 %v6286
  %v7237 = vpop.f32.mrf.mxu0
  %v7238 = vpop.f32.mrf.mxu0
  %7239 = vmatprep.mubr.f32.mxu0 %v6660
  %7240 = vmatmul.mubr.f32.gmra.mxu0 %v6288
  %v7241 = vpop.f32.mrf.mxu0
  %v7242 = vadd.f32 0.0, %v7241
  %v7243 = vpop.f32.mrf.mxu0
  %7244 = vmatprep.mubr.f32.mxu0 %v6663
  %7245 = vmatmul.mubr.f32.gmra.mxu0 %v6290
  %v7246 = vpop.f32.mrf.mxu0
  %v7247 = vpop.f32.mrf.mxu0
  %7248 = vmatprep.mubr.f32.mxu0 %v6666
  %7249 = vmatmul.mubr.f32.gmra.mxu0 %v6292
  %v7250 = vpop.f32.mrf.mxu0
  %v7251 = vadd.f32 0.0, %v7250
  %v7252 = vpop.f32.mrf.mxu0
  %7253 = vmatprep.mubr.f32.mxu0 %v6669
  %7254 = vmatmul.mubr.f32.gmra.mxu0 %v6294
  %v7255 = vpop.f32.mrf.mxu0
  %v7256 = vpop.f32.mrf.mxu0
  %7257 = vmatprep.mubr.f32.mxu0 %v6672
  %7258 = vmatmul.mubr.f32.gmra.mxu0 %v6296
  %v7259 = vpop.f32.mrf.mxu0
  %v7260 = vadd.f32 0.0, %v7259
  %v7261 = vpop.f32.mrf.mxu0
  %7262 = vmatprep.mubr.f32.mxu0 %v6675
  %7263 = vmatmul.mubr.f32.gmra.mxu0 %v6298
  %v7264 = vpop.f32.mrf.mxu0
  %v7265 = vpop.f32.mrf.mxu0
  %7266 = vmatprep.mubr.f32.mxu0 %v6678
  %7267 = vmatmul.mubr.f32.gmra.mxu0 %v6300
  %v7268 = vpop.f32.mrf.mxu0
  %v7269 = vadd.f32 0.0, %v7268
  %v7270 = vpop.f32.mrf.mxu0
  %7271 = vmatprep.mubr.f32.mxu0 %v6681
  %7272 = vmatmul.mubr.f32.gmra.mxu0 %v6302
  %v7273 = vpop.f32.mrf.mxu0
  %v7274 = vpop.f32.mrf.mxu0
  %7275 = vmatprep.mubr.f32.mxu0 %v6684
  %7276 = vmatmul.mubr.f32.gmra.mxu0 %v6304
  %v7277 = vpop.f32.mrf.mxu0
  %v7278 = vadd.f32 0.0, %v7277
  %v7279 = vpop.f32.mrf.mxu0
  %7280 = vmatprep.mubr.f32.mxu0 %v6687
  %7281 = vmatmul.mubr.f32.gmra.mxu0 %v6306
  %v7282 = vpop.f32.mrf.mxu0
  %v7283 = vpop.f32.mrf.mxu0
  %7284 = vmatprep.mubr.f32.mxu0 %v6690
  %7285 = vmatmul.mubr.f32.gmra.mxu0 %v6308
  %v7286 = vpop.f32.mrf.mxu0
  %v7287 = vadd.f32 0.0, %v7286
  %v7288 = vpop.f32.mrf.mxu0
  %7289 = vmatprep.mubr.f32.mxu0 %v6693
  %7290 = vmatmul.mubr.f32.gmra.mxu0 %v6310
  %v7291 = vpop.f32.mrf.mxu0
  %v7292 = vpop.f32.mrf.mxu0
  %7293 = vmatprep.mubr.f32.mxu0 %v6696
  %7294 = vmatmul.mubr.f32.gmra.mxu0 %v6312
  %v7295 = vpop.f32.mrf.mxu0
  %v7296 = vpop.f32.mrf.mxu0
  %7297 = vmatprep.mubr.f32.mxu0 %v6699
  %7298 = vmatmul.mubr.f32.gmra.mxu0 %v6314
  %v7299 = vpop.f32.mrf.mxu0
  %v7300 = vpop.f32.mrf.mxu0
  %7301 = vmatprep.mubr.f32.mxu0 %v6702
  %7302 = vmatmul.mubr.f32.gmra.mxu0 %v6316
  %v7303 = vpop.f32.mrf.mxu0
  %v7304 = vadd.f32 0.0, %v7303
  %v7305 = vpop.f32.mrf.mxu0
  %7306 = vmatprep.mubr.f32.mxu0 %v6705
  %7307 = vmatmul.mubr.f32.gmra.mxu0 %v6318
  %v7308 = vpop.f32.mrf.mxu0
  %v7309 = vpop.f32.mrf.mxu0
  %7310 = vmatprep.mubr.f32.mxu0 %v6708
  %7311 = vmatmul.mubr.f32.gmra.mxu0 %v6320
  %v7312 = vpop.f32.mrf.mxu0
  %v7313 = vadd.f32 0.0, %v7312
  %v7314 = vpop.f32.mrf.mxu0
  %7315 = vmatprep.mubr.f32.mxu0 %v6711
  %7316 = vmatmul.mubr.f32.gmra.mxu0 %v6322
  %v7317 = vpop.f32.mrf.mxu0
  %v7318 = vpop.f32.mrf.mxu0
  %7319 = vmatprep.mubr.f32.mxu0 %v6714
  %7320 = vmatmul.mubr.f32.gmra.mxu0 %v6324
  %v7321 = vpop.f32.mrf.mxu0
  %v7322 = vadd.f32 0.0, %v7321
  %v7323 = vpop.f32.mrf.mxu0
  %7324 = vmatprep.mubr.f32.mxu0 %v6717
  %7325 = vmatmul.mubr.f32.gmra.mxu0 %v6326
  %v7326 = vpop.f32.mrf.mxu0
  %v7327 = vpop.f32.mrf.mxu0
  %7328 = vmatprep.mubr.f32.mxu0 %v6720
  %7329 = vmatmul.mubr.f32.gmra.mxu0 %v6328
  %v7330 = vpop.f32.mrf.mxu0
  %v7331 = vadd.f32 0.0, %v7330
  %v7332 = vpop.f32.mrf.mxu0
  %7333 = vmatprep.mubr.f32.mxu0 %v6723
  %7334 = vmatmul.mubr.f32.gmra.mxu0 %v6330
  %v7335 = vpop.f32.mrf.mxu0
  %v7336 = vpop.f32.mrf.mxu0
  %7337 = vmatprep.mubr.f32.mxu0 %v6726
  %7338 = vmatmul.mubr.f32.gmra.mxu0 %v6332
  %v7339 = vpop.f32.mrf.mxu0
  %v7340 = vadd.f32 0.0, %v7339
  %v7341 = vpop.f32.mrf.mxu0
  %7342 = vmatprep.mubr.f32.mxu0 %v6729
  %7343 = vmatmul.mubr.f32.gmra.mxu0 %v6334
  %v7344 = vpop.f32.mrf.mxu0
  %v7345 = vpop.f32.mrf.mxu0
  %7346 = vmatprep.mubr.f32.mxu0 %v6732
  %7347 = vmatmul.mubr.f32.gmra.mxu0 %v6336
  %v7348 = vpop.f32.mrf.mxu0
  %v7349 = vadd.f32 0.0, %v7348
  %v7350 = vpop.f32.mrf.mxu0
  %7351 = vmatprep.mubr.f32.mxu0 %v6735
  %7352 = vmatmul.mubr.f32.gmra.mxu0 %v6338
  %v7353 = vpop.f32.mrf.mxu0
  %v7354 = vpop.f32.mrf.mxu0
  %7355 = vmatprep.mubr.f32.mxu0 %v6738
  %7356 = vmatmul.mubr.f32.gmra.mxu0 %v6340
  %v7357 = vpop.f32.mrf.mxu0
  %v7358 = vadd.f32 0.0, %v7357
  %v7359 = vpop.f32.mrf.mxu0
  %7360 = vmatprep.mubr.f32.mxu0 %v6741
  %7361 = vmatmul.mubr.f32.gmra.mxu0 %v6342
  %v7362 = vpop.f32.mrf.mxu0
  %v7363 = vpop.f32.mrf.mxu0
  %7364 = vmatprep.mubr.f32.mxu0 %v6744
  %7365 = vmatmul.mubr.f32.gmra.mxu0 %v6344
  %v7366 = vpop.f32.mrf.mxu0
  %v7367 = vadd.f32 0.0, %v7366
  %v7368 = vpop.f32.mrf.mxu0
  %7369 = vmatprep.mubr.f32.mxu0 %v6747
  %7370 = vmatmul.mubr.f32.gmra.mxu0 %v6346
  %v7371 = vpop.f32.mrf.mxu0
  %v7372 = vpop.f32.mrf.mxu0
  %7373 = vmatprep.mubr.f32.mxu0 %v6750
  %7374 = vmatmul.mubr.f32.gmra.mxu0 %v6348
  %v7375 = vpop.f32.mrf.mxu0
  %v7376 = vpop.f32.mrf.mxu0
  %7377 = vmatprep.mubr.f32.mxu0 %v6753
  %7378 = vmatmul.mubr.f32.gmra.mxu0 %v6350
  %v7379 = vpop.f32.mrf.mxu0
  %v7380 = vpop.f32.mrf.mxu0
  %7381 = vmatprep.mubr.f32.mxu0 %v6756
  %7382 = vmatmul.mubr.f32.gmra.mxu0 %v6352
  %v7383 = vpop.f32.mrf.mxu0
  %v7384 = vadd.f32 0.0, %v7383
  %v7385 = vpop.f32.mrf.mxu0
  %7386 = vmatprep.mubr.f32.mxu0 %v6759
  %7387 = vmatmul.mubr.f32.gmra.mxu0 %v6354
  %v7388 = vpop.f32.mrf.mxu0
  %v7389 = vpop.f32.mrf.mxu0
  %7390 = vmatprep.mubr.f32.mxu0 %v6762
  %7391 = vmatmul.mubr.f32.gmra.mxu0 %v6356
  %v7392 = vpop.f32.mrf.mxu0
  %v7393 = vadd.f32 0.0, %v7392
  %v7394 = vpop.f32.mrf.mxu0
  %7395 = vmatprep.mubr.f32.mxu0 %v6765
  %7396 = vmatmul.mubr.f32.gmra.mxu0 %v6358
  %v7397 = vpop.f32.mrf.mxu0
  %v7398 = vpop.f32.mrf.mxu0
  %7399 = vmatprep.mubr.f32.mxu0 %v6768
  %7400 = vmatmul.mubr.f32.gmra.mxu0 %v6360
  %v7401 = vpop.f32.mrf.mxu0
  %v7402 = vadd.f32 0.0, %v7401
  %v7403 = vpop.f32.mrf.mxu0
  %7404 = vmatprep.mubr.f32.mxu0 %v6771
  %7405 = vmatmul.mubr.f32.gmra.mxu0 %v6362
  %v7406 = vpop.f32.mrf.mxu0
  %v7407 = vpop.f32.mrf.mxu0
  %7408 = vmatprep.mubr.f32.mxu0 %v6774
  %7409 = vmatmul.mubr.f32.gmra.mxu0 %v6364
  %v7410 = vpop.f32.mrf.mxu0
  %v7411 = vadd.f32 0.0, %v7410
  %v7412 = vpop.f32.mrf.mxu0
  %7413 = vmatprep.mubr.f32.mxu0 %v6777
  %7414 = vmatmul.mubr.f32.gmra.mxu0 %v6366
  %v7415 = vpop.f32.mrf.mxu0
  %v7416 = vpop.f32.mrf.mxu0
  %7417 = vmatprep.mubr.f32.mxu0 %v6780
  %7418 = vmatmul.mubr.f32.gmra.mxu0 %v6368
  %v7419 = vpop.f32.mrf.mxu0
  %v7420 = vadd.f32 0.0, %v7419
  %v7421 = vpop.f32.mrf.mxu0
  %7422 = vmatprep.mubr.f32.mxu0 %v6783
  %7423 = vmatmul.mubr.f32.gmra.mxu0 %v6370
  %v7424 = vpop.f32.mrf.mxu0
  %v7425 = vpop.f32.mrf.mxu0
  %7426 = vmatprep.mubr.f32.mxu0 %v6786
  %7427 = vmatmul.mubr.f32.gmra.mxu0 %v6372
  %v7428 = vpop.f32.mrf.mxu0
  %v7429 = vadd.f32 0.0, %v7428
  %v7430 = vpop.f32.mrf.mxu0
  %7431 = vmatprep.mubr.f32.mxu0 %v6789
  %7432 = vmatmul.mubr.f32.gmra.mxu0 %v6374
  %v7433 = vpop.f32.mrf.mxu0
  %v7434 = vpop.f32.mrf.mxu0
  %7435 = vmatprep.mubr.f32.mxu0 %v6792
  %7436 = vmatmul.mubr.f32.gmra.mxu0 %v6376
  %v7437 = vpop.f32.mrf.mxu0
  %v7438 = vadd.f32 0.0, %v7437
  %v7439 = vpop.f32.mrf.mxu0
  %7440 = vmatprep.mubr.f32.mxu0 %v6795
  %7441 = vmatmul.mubr.f32.gmra.mxu0 %v6378
  %v7442 = vpop.f32.mrf.mxu0
  %v7443 = vpop.f32.mrf.mxu0
  %7444 = vmatprep.mubr.f32.mxu0 %v6798
  %7445 = vmatmul.mubr.f32.gmra.mxu0 %v6380
  %v7446 = vpop.f32.mrf.mxu0
  %v7447 = vadd.f32 0.0, %v7446
  %v7448 = vpop.f32.mrf.mxu0
  %7449 = vmatprep.mubr.f32.mxu0 %v6801
  %7450 = vmatmul.mubr.f32.gmra.mxu0 %v6382
  %v7451 = vpop.f32.mrf.mxu0
  %v7452 = vpop.f32.mrf.mxu0
  %7453 = vmatprep.mubr.f32.mxu0 %v6804
  %7454 = vmatmul.mubr.f32.gmra.mxu0 %v6384
  %v7455 = vpop.f32.mrf.mxu0
  %v7456 = vpop.f32.mrf.mxu0
  %7457 = vmatprep.mubr.f32.mxu0 %v6807
  %7458 = vmatmul.mubr.f32.gmra.mxu0 %v6386
  %v7459 = vpop.f32.mrf.mxu0
  %v7460 = vpop.f32.mrf.mxu0
  %7461 = vmatprep.mubr.f32.mxu0 %v6810
  %7462 = vmatmul.mubr.f32.gmra.mxu0 %v6388
  %v7463 = vpop.f32.mrf.mxu0
  %v7464 = vadd.f32 0.0, %v7463
  %v7465 = vpop.f32.mrf.mxu0
  %7466 = vmatprep.mubr.f32.mxu0 %v6813
  %7467 = vmatmul.mubr.f32.gmra.mxu0 %v6390
  %v7468 = vpop.f32.mrf.mxu0
  %v7469 = vpop.f32.mrf.mxu0
  %7470 = vmatprep.mubr.f32.mxu0 %v6816
  %7471 = vmatmul.mubr.f32.gmra.mxu0 %v6392
  %v7472 = vpop.f32.mrf.mxu0
  %v7473 = vadd.f32 0.0, %v7472
  %v7474 = vpop.f32.mrf.mxu0
  %7475 = vmatprep.mubr.f32.mxu0 %v6819
  %7476 = vmatmul.mubr.f32.gmra.mxu0 %v6394
  %v7477 = vpop.f32.mrf.mxu0
  %v7478 = vpop.f32.mrf.mxu0
  %7479 = vmatprep.mubr.f32.mxu0 %v6822
  %7480 = vmatmul.mubr.f32.gmra.mxu0 %v6396
  %v7481 = vpop.f32.mrf.mxu0
  %v7482 = vadd.f32 0.0, %v7481
  %v7483 = vpop.f32.mrf.mxu0
  %7484 = vmatprep.mubr.f32.mxu0 %v6825
  %7485 = vmatmul.mubr.f32.gmra.mxu0 %v6398
  %v7486 = vpop.f32.mrf.mxu0
  %v7487 = vpop.f32.mrf.mxu0
  %7488 = vmatprep.mubr.f32.mxu0 %v6828
  %7489 = vmatmul.mubr.f32.gmra.mxu0 %v6400
  %v7490 = vpop.f32.mrf.mxu0
  %v7491 = vadd.f32 0.0, %v7490
  %v7492 = vpop.f32.mrf.mxu0
  %7493 = vmatprep.mubr.f32.mxu0 %v6831
  %7494 = vmatmul.mubr.f32.gmra.mxu0 %v6402
  %v7495 = vpop.f32.mrf.mxu0
  %v7496 = vpop.f32.mrf.mxu0
  %7497 = vmatprep.mubr.f32.mxu0 %v6834
  %7498 = vmatmul.mubr.f32.gmra.mxu0 %v6404
  %v7499 = vpop.f32.mrf.mxu0
  %v7500 = vadd.f32 0.0, %v7499
  %v7501 = vpop.f32.mrf.mxu0
  %7502 = vmatprep.mubr.f32.mxu0 %v6837
  %7503 = vmatmul.mubr.f32.gmra.mxu0 %v6406
  %v7504 = vpop.f32.mrf.mxu0
  %v7505 = vpop.f32.mrf.mxu0
  %7506 = vmatprep.mubr.f32.mxu0 %v6840
  %7507 = vmatmul.mubr.f32.gmra.mxu0 %v6408
  %v7508 = vpop.f32.mrf.mxu0
  %v7509 = vadd.f32 0.0, %v7508
  %v7510 = vpop.f32.mrf.mxu0
  %7511 = vmatprep.mubr.f32.mxu0 %v6843
  %7512 = vmatmul.mubr.f32.gmra.mxu0 %v6410
  %v7513 = vpop.f32.mrf.mxu0
  %v7514 = vpop.f32.mrf.mxu0
  %7515 = vmatprep.mubr.f32.mxu0 %v6846
  %7516 = vmatmul.mubr.f32.gmra.mxu0 %v6412
  %v7517 = vpop.f32.mrf.mxu0
  %v7518 = vadd.f32 0.0, %v7517
  %v7519 = vpop.f32.mrf.mxu0
  %7520 = vmatprep.mubr.f32.mxu0 %v6849
  %7521 = vmatmul.mubr.f32.gmra.mxu0 %v6414
  %v7522 = vpop.f32.mrf.mxu0
  %v7523 = vpop.f32.mrf.mxu0
  %7524 = vmatprep.mubr.f32.mxu0 %v6852
  %7525 = vmatmul.mubr.f32.gmra.mxu0 %v6416
  %v7526 = vpop.f32.mrf.mxu0
  %v7527 = vadd.f32 0.0, %v7526
  %v7528 = vpop.f32.mrf.mxu0
  %7529 = vmatprep.mubr.f32.mxu0 %v6855
  %7530 = vmatmul.mubr.f32.gmra.mxu0 %v6418
  %v7531 = vpop.f32.mrf.mxu0
  %v7532 = vpop.f32.mrf.mxu0
  %7533 = vmatprep.mubr.f32.mxu0 %v6858
  %7534 = vmatmul.mubr.f32.gmra.mxu0 %v6420
  %v7535 = vpop.f32.mrf.mxu0
  %v7536 = vpop.f32.mrf.mxu0
  %7537 = vmatprep.mubr.f32.mxu0 %v6861
  %7538 = vmatmul.mubr.f32.gmra.mxu0 %v6422
  %v7539 = vpop.f32.mrf.mxu0
  %v7540 = vpop.f32.mrf.mxu0
  %7541 = vmatprep.mubr.f32.mxu0 %v6864
  %7542 = vmatmul.mubr.f32.gmra.mxu0 %v6424
  %v7543 = vpop.f32.mrf.mxu0
  %v7544 = vadd.f32 0.0, %v7543
  %v7545 = vpop.f32.mrf.mxu0
  %7546 = vmatprep.mubr.f32.mxu0 %v6867
  %7547 = vmatmul.mubr.f32.gmra.mxu0 %v6426
  %v7548 = vpop.f32.mrf.mxu0
  %v7549 = vpop.f32.mrf.mxu0
  %7550 = vmatprep.mubr.f32.mxu0 %v6870
  %7551 = vmatmul.mubr.f32.gmra.mxu0 %v6428
  %v7552 = vpop.f32.mrf.mxu0
  %v7553 = vadd.f32 0.0, %v7552
  %v7554 = vpop.f32.mrf.mxu0
  %7555 = vmatprep.mubr.f32.mxu0 %v6873
  %7556 = vmatmul.mubr.f32.gmra.mxu0 %v6430
  %v7557 = vpop.f32.mrf.mxu0
  %v7558 = vpop.f32.mrf.mxu0
  %7559 = vmatprep.mubr.f32.mxu0 %v6876
  %7560 = vmatmul.mubr.f32.gmra.mxu0 %v6432
  %v7561 = vpop.f32.mrf.mxu0
  %v7562 = vadd.f32 0.0, %v7561
  %v7563 = vpop.f32.mrf.mxu0
  %7564 = vmatprep.mubr.f32.mxu0 %v6879
  %7565 = vmatmul.mubr.f32.gmra.mxu0 %v6434
  %v7566 = vpop.f32.mrf.mxu0
  %v7567 = vpop.f32.mrf.mxu0
  %7568 = vmatprep.mubr.f32.mxu0 %v6882
  %7569 = vmatmul.mubr.f32.gmra.mxu0 %v6436
  %v7570 = vpop.f32.mrf.mxu0
  %v7571 = vadd.f32 0.0, %v7570
  %v7572 = vpop.f32.mrf.mxu0
  %7573 = vmatprep.mubr.f32.mxu0 %v6885
  %7574 = vmatmul.mubr.f32.gmra.mxu0 %v6438
  %v7575 = vpop.f32.mrf.mxu0
  %v7576 = vpop.f32.mrf.mxu0
  %7577 = vmatprep.mubr.f32.mxu0 %v6888
  %7578 = vmatmul.mubr.f32.gmra.mxu0 %v6440
  %v7579 = vpop.f32.mrf.mxu0
  %v7580 = vadd.f32 0.0, %v7579
  %v7581 = vpop.f32.mrf.mxu0
  %7582 = vmatprep.mubr.f32.mxu0 %v6891
  %7583 = vmatmul.mubr.f32.gmra.mxu0 %v6442
  %v7584 = vpop.f32.mrf.mxu0
  %v7585 = vpop.f32.mrf.mxu0
  %7586 = vmatprep.mubr.f32.mxu0 %v6894
  %7587 = vmatmul.mubr.f32.gmra.mxu0 %v6444
  %v7588 = vpop.f32.mrf.mxu0
  %v7589 = vadd.f32 0.0, %v7588
  %v7590 = vpop.f32.mrf.mxu0
  %7591 = vmatprep.mubr.f32.mxu0 %v6897
  %7592 = vmatmul.mubr.f32.gmra.mxu0 %v6446
  %v7593 = vpop.f32.mrf.mxu0
  %v7594 = vpop.f32.mrf.mxu0
  %7595 = vmatprep.mubr.f32.mxu0 %v6900
  %7596 = vmatmul.mubr.f32.gmra.mxu0 %v6448
  %v7597 = vpop.f32.mrf.mxu0
  %v7598 = vadd.f32 0.0, %v7597
  %v7599 = vpop.f32.mrf.mxu0
  %7600 = vmatprep.mubr.f32.mxu0 %v6903
  %7601 = vmatmul.mubr.f32.gmra.mxu0 %v6450
  %v7602 = vpop.f32.mrf.mxu0
  %v7603 = vpop.f32.mrf.mxu0
  %7604 = vmatprep.mubr.f32.mxu0 %v6906
  %7605 = vmatmul.mubr.f32.gmra.mxu0 %v6452
  %v7606 = vpop.f32.mrf.mxu0
  %v7607 = vadd.f32 0.0, %v7606
  %v7608 = vpop.f32.mrf.mxu0
  %7609 = vmatprep.mubr.f32.mxu0 %v6909
  %7610 = vmatmul.mubr.f32.gmra.mxu0 %v6454
  %v7611 = vpop.f32.mrf.mxu0
  %v7612 = vpop.f32.mrf.mxu0
  %7613 = vmatprep.mubr.f32.mxu0 %v6912
  %7614 = vmatmul.mubr.f32.gmra.mxu0 %v6456
  %v7615 = vpop.f32.mrf.mxu0
  %v7616 = vpop.f32.mrf.mxu0
  %7617 = vmatprep.mubr.f32.mxu0 %v6915
  %7618 = vmatmul.mubr.f32.gmra.mxu0 %v6458
  %v7619 = vpop.f32.mrf.mxu0
  %v7620 = vpop.f32.mrf.mxu0
  %7621 = vdwg.mxu0
  %v7622 = vadd.f32 %v5534, %v6984
  %v7623 = vadd.f32 %v5543, %v6993
  %v7624 = vadd.f32 %v5552, %v7002
  %v7625 = vadd.f32 %v5561, %v7011
  %v7626 = vadd.f32 %v5570, %v7020
  %v7627 = vadd.f32 %v5579, %v7029
  %v7628 = vadd.f32 %v5588, %v7038
  %v7629 = vadd.f32 %v5597, %v7047
  %v7630 = vadd.f32 %v5614, %v7064
  %v7631 = vadd.f32 %v5623, %v7073
  %v7632 = vadd.f32 %v5632, %v7082
  %v7633 = vadd.f32 %v5641, %v7091
  %v7634 = vadd.f32 %v5650, %v7100
  %v7635 = vadd.f32 %v5659, %v7109
  %v7636 = vadd.f32 %v5668, %v7118
  %v7637 = vadd.f32 %v5677, %v7127
  %v7638 = vadd.f32 %v5694, %v7144
  %v7639 = vadd.f32 %v5703, %v7153
  %v7640 = vadd.f32 %v5712, %v7162
  %v7641 = vadd.f32 %v5721, %v7171
  %v7642 = vadd.f32 %v5730, %v7180
  %v7643 = vadd.f32 %v5739, %v7189
  %v7644 = vadd.f32 %v5748, %v7198
  %v7645 = vadd.f32 %v5757, %v7207
  %v7646 = vadd.f32 %v5774, %v7224
  %v7647 = vadd.f32 %v5783, %v7233
  %v7648 = vadd.f32 %v5792, %v7242
  %v7649 = vadd.f32 %v5801, %v7251
  %v7650 = vadd.f32 %v5810, %v7260
  %v7651 = vadd.f32 %v5819, %v7269
  %v7652 = vadd.f32 %v5828, %v7278
  %v7653 = vadd.f32 %v5837, %v7287
  %v7654 = vadd.f32 %v5854, %v7304
  %v7655 = vadd.f32 %v5863, %v7313
  %v7656 = vadd.f32 %v5872, %v7322
  %v7657 = vadd.f32 %v5881, %v7331
  %v7658 = vadd.f32 %v5890, %v7340
  %v7659 = vadd.f32 %v5899, %v7349
  %v7660 = vadd.f32 %v5908, %v7358
  %v7661 = vadd.f32 %v5917, %v7367
  %v7662 = vadd.f32 %v5934, %v7384
  %v7663 = vadd.f32 %v5943, %v7393
  %v7664 = vadd.f32 %v5952, %v7402
  %v7665 = vadd.f32 %v5961, %v7411
  %v7666 = vadd.f32 %v5970, %v7420
  %v7667 = vadd.f32 %v5979, %v7429
  %v7668 = vadd.f32 %v5988, %v7438
  %v7669 = vadd.f32 %v5997, %v7447
  %v7670 = vadd.f32 %v6014, %v7464
  %v7671 = vadd.f32 %v6023, %v7473
  %v7672 = vadd.f32 %v6032, %v7482
  %v7673 = vadd.f32 %v6041, %v7491
  %v7674 = vadd.f32 %v6050, %v7500
  %v7675 = vadd.f32 %v6059, %v7509
  %v7676 = vadd.f32 %v6068, %v7518
  %v7677 = vadd.f32 %v6077, %v7527
  %v7678 = vadd.f32 %v6094, %v7544
  %v7679 = vadd.f32 %v6103, %v7553
  %v7680 = vadd.f32 %v6112, %v7562
  %v7681 = vadd.f32 %v6121, %v7571
  %v7682 = vadd.f32 %v6130, %v7580
  %v7683 = vadd.f32 %v6139, %v7589
  %v7684 = vadd.f32 %v6148, %v7598
  %v7685 = vadd.f32 %v6157, %v7607
  %v7686 = vld [vmem:[%s4] sm:$0x1]
  %v7688 = vlaneseq
  %v7689 = vshrl.u32 %v7688, 7
  %v7690 = vsub.s32 0, %v7689
  %v7691 = vrot.slane %v7686, %v7690
  %v7693 = vadd.f32 %v7622, %v7691
  %v7694 = vadd.f32 %v7623, %v7691
  %v7695 = vadd.f32 %v7624, %v7691
  %v7696 = vadd.f32 %v7625, %v7691
  %v7697 = vadd.f32 %v7626, %v7691
  %v7698 = vadd.f32 %v7627, %v7691
  %v7699 = vadd.f32 %v7628, %v7691
  %v7700 = vadd.f32 %v7629, %v7691
  %v7701 = vadd.f32 %v7630, %v7691
  %v7702 = vadd.f32 %v7631, %v7691
  %v7703 = vadd.f32 %v7632, %v7691
  %v7704 = vadd.f32 %v7633, %v7691
  %v7705 = vadd.f32 %v7634, %v7691
  %v7706 = vadd.f32 %v7635, %v7691
  %v7707 = vadd.f32 %v7636, %v7691
  %v7708 = vadd.f32 %v7637, %v7691
  %v7709 = vadd.f32 %v7638, %v7691
  %v7710 = vadd.f32 %v7639, %v7691
  %v7711 = vadd.f32 %v7640, %v7691
  %v7712 = vadd.f32 %v7641, %v7691
  %v7713 = vadd.f32 %v7642, %v7691
  %v7714 = vadd.f32 %v7643, %v7691
  %v7715 = vadd.f32 %v7644, %v7691
  %v7716 = vadd.f32 %v7645, %v7691
  %v7717 = vadd.f32 %v7646, %v7691
  %v7718 = vadd.f32 %v7647, %v7691
  %v7719 = vadd.f32 %v7648, %v7691
  %v7720 = vadd.f32 %v7649, %v7691
  %v7721 = vadd.f32 %v7650, %v7691
  %v7722 = vadd.f32 %v7651, %v7691
  %v7723 = vadd.f32 %v7652, %v7691
  %v7724 = vadd.f32 %v7653, %v7691
  %v7725 = vadd.f32 %v7654, %v7691
  %v7726 = vadd.f32 %v7655, %v7691
  %v7727 = vadd.f32 %v7656, %v7691
  %v7728 = vadd.f32 %v7657, %v7691
  %v7729 = vadd.f32 %v7658, %v7691
  %v7730 = vadd.f32 %v7659, %v7691
  %v7731 = vadd.f32 %v7660, %v7691
  %v7732 = vadd.f32 %v7661, %v7691
  %v7733 = vadd.f32 %v7662, %v7691
  %v7734 = vadd.f32 %v7663, %v7691
  %v7735 = vadd.f32 %v7664, %v7691
  %v7736 = vadd.f32 %v7665, %v7691
  %v7737 = vadd.f32 %v7666, %v7691
  %v7738 = vadd.f32 %v7667, %v7691
  %v7739 = vadd.f32 %v7668, %v7691
  %v7740 = vadd.f32 %v7669, %v7691
  %v7741 = vadd.f32 %v7670, %v7691
  %v7742 = vadd.f32 %v7671, %v7691
  %v7743 = vadd.f32 %v7672, %v7691
  %v7744 = vadd.f32 %v7673, %v7691
  %v7745 = vadd.f32 %v7674, %v7691
  %v7746 = vadd.f32 %v7675, %v7691
  %v7747 = vadd.f32 %v7676, %v7691
  %v7748 = vadd.f32 %v7677, %v7691
  %v7749 = vadd.f32 %v7678, %v7691
  %v7750 = vadd.f32 %v7679, %v7691
  %v7751 = vadd.f32 %v7680, %v7691
  %v7752 = vadd.f32 %v7681, %v7691
  %v7753 = vadd.f32 %v7682, %v7691
  %v7754 = vadd.f32 %v7683, %v7691
  %v7755 = vadd.f32 %v7684, %v7691
  %v7756 = vadd.f32 %v7685, %v7691
  %v7757 = vmax.f32 %v7693, 0.0
  %v7758 = vmax.f32 %v7694, 0.0
  %v7759 = vmax.f32 %v7695, 0.0
  %v7760 = vmax.f32 %v7696, 0.0
  %v7761 = vmax.f32 %v7697, 0.0
  %v7762 = vmax.f32 %v7698, 0.0
  %v7763 = vmax.f32 %v7699, 0.0
  %v7764 = vmax.f32 %v7700, 0.0
  %v7765 = vmax.f32 %v7701, 0.0
  %v7766 = vmax.f32 %v7702, 0.0
  %v7767 = vmax.f32 %v7703, 0.0
  %v7768 = vmax.f32 %v7704, 0.0
  %v7769 = vmax.f32 %v7705, 0.0
  %v7770 = vmax.f32 %v7706, 0.0
  %v7771 = vmax.f32 %v7707, 0.0
  %v7772 = vmax.f32 %v7708, 0.0
  %v7773 = vmax.f32 %v7709, 0.0
  %v7774 = vmax.f32 %v7710, 0.0
  %v7775 = vmax.f32 %v7711, 0.0
  %v7776 = vmax.f32 %v7712, 0.0
  %v7777 = vmax.f32 %v7713, 0.0
  %v7778 = vmax.f32 %v7714, 0.0
  %v7779 = vmax.f32 %v7715, 0.0
  %v7780 = vmax.f32 %v7716, 0.0
  %v7781 = vmax.f32 %v7717, 0.0
  %v7782 = vmax.f32 %v7718, 0.0
  %v7783 = vmax.f32 %v7719, 0.0
  %v7784 = vmax.f32 %v7720, 0.0
  %v7785 = vmax.f32 %v7721, 0.0
  %v7786 = vmax.f32 %v7722, 0.0
  %v7787 = vmax.f32 %v7723, 0.0
  %v7788 = vmax.f32 %v7724, 0.0
  %v7789 = vmax.f32 %v7725, 0.0
  %v7790 = vmax.f32 %v7726, 0.0
  %v7791 = vmax.f32 %v7727, 0.0
  %v7792 = vmax.f32 %v7728, 0.0
  %v7793 = vmax.f32 %v7729, 0.0
  %v7794 = vmax.f32 %v7730, 0.0
  %v7795 = vmax.f32 %v7731, 0.0
  %v7796 = vmax.f32 %v7732, 0.0
  %v7797 = vmax.f32 %v7733, 0.0
  %v7798 = vmax.f32 %v7734, 0.0
  %v7799 = vmax.f32 %v7735, 0.0
  %v7800 = vmax.f32 %v7736, 0.0
  %v7801 = vmax.f32 %v7737, 0.0
  %v7802 = vmax.f32 %v7738, 0.0
  %v7803 = vmax.f32 %v7739, 0.0
  %v7804 = vmax.f32 %v7740, 0.0
  %v7805 = vmax.f32 %v7741, 0.0
  %v7806 = vmax.f32 %v7742, 0.0
  %v7807 = vmax.f32 %v7743, 0.0
  %v7808 = vmax.f32 %v7744, 0.0
  %v7809 = vmax.f32 %v7745, 0.0
  %v7810 = vmax.f32 %v7746, 0.0
  %v7811 = vmax.f32 %v7747, 0.0
  %v7812 = vmax.f32 %v7748, 0.0
  %v7813 = vmax.f32 %v7749, 0.0
  %v7814 = vmax.f32 %v7750, 0.0
  %v7815 = vmax.f32 %v7751, 0.0
  %v7816 = vmax.f32 %v7752, 0.0
  %v7817 = vmax.f32 %v7753, 0.0
  %v7818 = vmax.f32 %v7754, 0.0
  %v7819 = vmax.f32 %v7755, 0.0
  %v7820 = vmax.f32 %v7756, 0.0
  %v7821 = vmax.f32 %v7757, %v7758
  %v7822 = vmax.f32 %v7759, %v7760
  %v7823 = vmax.f32 %v7761, %v7762
  %v7824 = vmax.f32 %v7763, %v7764
  %v7825 = vmax.f32 %v7765, %v7766
  %v7826 = vmax.f32 %v7767, %v7768
  %v7827 = vmax.f32 %v7769, %v7770
  %v7828 = vmax.f32 %v7771, %v7772
  %v7829 = vmax.f32 %v7773, %v7774
  %v7830 = vmax.f32 %v7775, %v7776
  %v7831 = vmax.f32 %v7777, %v7778
  %v7832 = vmax.f32 %v7779, %v7780
  %v7833 = vmax.f32 %v7781, %v7782
  %v7834 = vmax.f32 %v7783, %v7784
  %v7835 = vmax.f32 %v7785, %v7786
  %v7836 = vmax.f32 %v7787, %v7788
  %v7837 = vmax.f32 %v7789, %v7790
  %v7838 = vmax.f32 %v7791, %v7792
  %v7839 = vmax.f32 %v7793, %v7794
  %v7840 = vmax.f32 %v7795, %v7796
  %v7841 = vmax.f32 %v7797, %v7798
  %v7842 = vmax.f32 %v7799, %v7800
  %v7843 = vmax.f32 %v7801, %v7802
  %v7844 = vmax.f32 %v7803, %v7804
  %v7845 = vmax.f32 %v7805, %v7806
  %v7846 = vmax.f32 %v7807, %v7808
  %v7847 = vmax.f32 %v7809, %v7810
  %v7848 = vmax.f32 %v7811, %v7812
  %v7849 = vmax.f32 %v7813, %v7814
  %v7850 = vmax.f32 %v7815, %v7816
  %v7851 = vmax.f32 %v7817, %v7818
  %v7852 = vmax.f32 %v7819, %v7820
  %v7885 = vrot.slane %v7821, 1
  %v7886 = vrot.slane %v7822, 1
  %v7887 = vrot.slane %v7823, 1
  %v7888 = vrot.slane %v7824, 1
  %v7889 = vrot.slane %v7825, 1
  %v7890 = vrot.slane %v7826, 1
  %v7891 = vrot.slane %v7827, 1
  %v7892 = vrot.slane %v7828, 1
  %v7893 = vrot.slane %v7829, 1
  %v7894 = vrot.slane %v7830, 1
  %v7895 = vrot.slane %v7831, 1
  %v7896 = vrot.slane %v7832, 1
  %v7897 = vrot.slane %v7833, 1
  %v7898 = vrot.slane %v7834, 1
  %v7899 = vrot.slane %v7835, 1
  %v7900 = vrot.slane %v7836, 1
  %v7901 = vrot.slane %v7837, 1
  %v7902 = vrot.slane %v7838, 1
  %v7903 = vrot.slane %v7839, 1
  %v7904 = vrot.slane %v7840, 1
  %v7905 = vrot.slane %v7841, 1
  %v7906 = vrot.slane %v7842, 1
  %v7907 = vrot.slane %v7843, 1
  %v7908 = vrot.slane %v7844, 1
  %v7909 = vrot.slane %v7845, 1
  %v7910 = vrot.slane %v7846, 1
  %v7911 = vrot.slane %v7847, 1
  %v7912 = vrot.slane %v7848, 1
  %v7913 = vrot.slane %v7849, 1
  %v7914 = vrot.slane %v7850, 1
  %v7915 = vrot.slane %v7851, 1
  %v7916 = vrot.slane %v7852, 1
  %v7949 = vmax.f32 %v7821, %v7885
  %v7950 = vmax.f32 %v7822, %v7886
  %v7951 = vmax.f32 %v7823, %v7887
  %v7952 = vmax.f32 %v7824, %v7888
  %v7953 = vmax.f32 %v7825, %v7889
  %v7954 = vmax.f32 %v7826, %v7890
  %v7955 = vmax.f32 %v7827, %v7891
  %v7956 = vmax.f32 %v7828, %v7892
  %v7957 = vmax.f32 %v7829, %v7893
  %v7958 = vmax.f32 %v7830, %v7894
  %v7959 = vmax.f32 %v7831, %v7895
  %v7960 = vmax.f32 %v7832, %v7896
  %v7961 = vmax.f32 %v7833, %v7897
  %v7962 = vmax.f32 %v7834, %v7898
  %v7963 = vmax.f32 %v7835, %v7899
  %v7964 = vmax.f32 %v7836, %v7900
  %v7965 = vmax.f32 %v7837, %v7901
  %v7966 = vmax.f32 %v7838, %v7902
  %v7967 = vmax.f32 %v7839, %v7903
  %v7968 = vmax.f32 %v7840, %v7904
  %v7969 = vmax.f32 %v7841, %v7905
  %v7970 = vmax.f32 %v7842, %v7906
  %v7971 = vmax.f32 %v7843, %v7907
  %v7972 = vmax.f32 %v7844, %v7908
  %v7973 = vmax.f32 %v7845, %v7909
  %v7974 = vmax.f32 %v7846, %v7910
  %v7975 = vmax.f32 %v7847, %v7911
  %v7976 = vmax.f32 %v7848, %v7912
  %v7977 = vmax.f32 %v7849, %v7913
  %v7978 = vmax.f32 %v7850, %v7914
  %v7979 = vmax.f32 %v7851, %v7915
  %v7980 = vmax.f32 %v7852, %v7916
  %v8013 = vrot.slane %v7949, 2
  %v8014 = vrot.slane %v7950, 2
  %v8015 = vrot.slane %v7951, 2
  %v8016 = vrot.slane %v7952, 2
  %v8017 = vrot.slane %v7953, 2
  %v8018 = vrot.slane %v7954, 2
  %v8019 = vrot.slane %v7955, 2
  %v8020 = vrot.slane %v7956, 2
  %v8021 = vrot.slane %v7957, 2
  %v8022 = vrot.slane %v7958, 2
  %v8023 = vrot.slane %v7959, 2
  %v8024 = vrot.slane %v7960, 2
  %v8025 = vrot.slane %v7961, 2
  %v8026 = vrot.slane %v7962, 2
  %v8027 = vrot.slane %v7963, 2
  %v8028 = vrot.slane %v7964, 2
  %v8029 = vrot.slane %v7965, 2
  %v8030 = vrot.slane %v7966, 2
  %v8031 = vrot.slane %v7967, 2
  %v8032 = vrot.slane %v7968, 2
  %v8033 = vrot.slane %v7969, 2
  %v8034 = vrot.slane %v7970, 2
  %v8035 = vrot.slane %v7971, 2
  %v8036 = vrot.slane %v7972, 2
  %v8037 = vrot.slane %v7973, 2
  %v8038 = vrot.slane %v7974, 2
  %v8039 = vrot.slane %v7975, 2
  %v8040 = vrot.slane %v7976, 2
  %v8041 = vrot.slane %v7977, 2
  %v8042 = vrot.slane %v7978, 2
  %v8043 = vrot.slane %v7979, 2
  %v8044 = vrot.slane %v7980, 2
  %v8077 = vadd.f32 %v7949, %v8013
  %v8078 = vadd.f32 %v7950, %v8014
  %v8079 = vadd.f32 %v7951, %v8015
  %v8080 = vadd.f32 %v7952, %v8016
  %v8081 = vadd.f32 %v7953, %v8017
  %v8082 = vadd.f32 %v7954, %v8018
  %v8083 = vadd.f32 %v7955, %v8019
  %v8084 = vadd.f32 %v7956, %v8020
  %v8085 = vadd.f32 %v7957, %v8021
  %v8086 = vadd.f32 %v7958, %v8022
  %v8087 = vadd.f32 %v7959, %v8023
  %v8088 = vadd.f32 %v7960, %v8024
  %v8089 = vadd.f32 %v7961, %v8025
  %v8090 = vadd.f32 %v7962, %v8026
  %v8091 = vadd.f32 %v7963, %v8027
  %v8092 = vadd.f32 %v7964, %v8028
  %v8093 = vadd.f32 %v7965, %v8029
  %v8094 = vadd.f32 %v7966, %v8030
  %v8095 = vadd.f32 %v7967, %v8031
  %v8096 = vadd.f32 %v7968, %v8032
  %v8097 = vadd.f32 %v7969, %v8033
  %v8098 = vadd.f32 %v7970, %v8034
  %v8099 = vadd.f32 %v7971, %v8035
  %v8100 = vadd.f32 %v7972, %v8036
  %v8101 = vadd.f32 %v7973, %v8037
  %v8102 = vadd.f32 %v7974, %v8038
  %v8103 = vadd.f32 %v7975, %v8039
  %v8104 = vadd.f32 %v7976, %v8040
  %v8105 = vadd.f32 %v7977, %v8041
  %v8106 = vadd.f32 %v7978, %v8042
  %v8107 = vadd.f32 %v7979, %v8043
  %v8108 = vadd.f32 %v7980, %v8044
  %v8109 = vrot.slane %v7949, 4
  %v8110 = vrot.slane %v7950, 4
  %v8111 = vrot.slane %v7951, 4
  %v8112 = vrot.slane %v7952, 4
  %v8113 = vrot.slane %v7953, 4
  %v8114 = vrot.slane %v7954, 4
  %v8115 = vrot.slane %v7955, 4
  %v8116 = vrot.slane %v7956, 4
  %v8117 = vrot.slane %v7957, 4
  %v8118 = vrot.slane %v7958, 4
  %v8119 = vrot.slane %v7959, 4
  %v8120 = vrot.slane %v7960, 4
  %v8121 = vrot.slane %v7961, 4
  %v8122 = vrot.slane %v7962, 4
  %v8123 = vrot.slane %v7963, 4
  %v8124 = vrot.slane %v7964, 4
  %v8125 = vrot.slane %v7965, 4
  %v8126 = vrot.slane %v7966, 4
  %v8127 = vrot.slane %v7967, 4
  %v8128 = vrot.slane %v7968, 4
  %v8129 = vrot.slane %v7969, 4
  %v8130 = vrot.slane %v7970, 4
  %v8131 = vrot.slane %v7971, 4
  %v8132 = vrot.slane %v7972, 4
  %v8133 = vrot.slane %v7973, 4
  %v8134 = vrot.slane %v7974, 4
  %v8135 = vrot.slane %v7975, 4
  %v8136 = vrot.slane %v7976, 4
  %v8137 = vrot.slane %v7977, 4
  %v8138 = vrot.slane %v7978, 4
  %v8139 = vrot.slane %v7979, 4
  %v8140 = vrot.slane %v7980, 4
  %v8173 = vadd.f32 %v8077, %v8109
  %v8174 = vadd.f32 %v8078, %v8110
  %v8175 = vadd.f32 %v8079, %v8111
  %v8176 = vadd.f32 %v8080, %v8112
  %v8177 = vadd.f32 %v8081, %v8113
  %v8178 = vadd.f32 %v8082, %v8114
  %v8179 = vadd.f32 %v8083, %v8115
  %v8180 = vadd.f32 %v8084, %v8116
  %v8181 = vadd.f32 %v8085, %v8117
  %v8182 = vadd.f32 %v8086, %v8118
  %v8183 = vadd.f32 %v8087, %v8119
  %v8184 = vadd.f32 %v8088, %v8120
  %v8185 = vadd.f32 %v8089, %v8121
  %v8186 = vadd.f32 %v8090, %v8122
  %v8187 = vadd.f32 %v8091, %v8123
  %v8188 = vadd.f32 %v8092, %v8124
  %v8189 = vadd.f32 %v8093, %v8125
  %v8190 = vadd.f32 %v8094, %v8126
  %v8191 = vadd.f32 %v8095, %v8127
  %v8192 = vadd.f32 %v8096, %v8128
  %v8193 = vadd.f32 %v8097, %v8129
  %v8194 = vadd.f32 %v8098, %v8130
  %v8195 = vadd.f32 %v8099, %v8131
  %v8196 = vadd.f32 %v8100, %v8132
  %v8197 = vadd.f32 %v8101, %v8133
  %v8198 = vadd.f32 %v8102, %v8134
  %v8199 = vadd.f32 %v8103, %v8135
  %v8200 = vadd.f32 %v8104, %v8136
  %v8201 = vadd.f32 %v8105, %v8137
  %v8202 = vadd.f32 %v8106, %v8138
  %v8203 = vadd.f32 %v8107, %v8139
  %v8204 = vadd.f32 %v8108, %v8140
  %v8205 = vrot.slane %v7949, 6
  %v8206 = vrot.slane %v7950, 6
  %v8207 = vrot.slane %v7951, 6
  %v8208 = vrot.slane %v7952, 6
  %v8209 = vrot.slane %v7953, 6
  %v8210 = vrot.slane %v7954, 6
  %v8211 = vrot.slane %v7955, 6
  %v8212 = vrot.slane %v7956, 6
  %v8213 = vrot.slane %v7957, 6
  %v8214 = vrot.slane %v7958, 6
  %v8215 = vrot.slane %v7959, 6
  %v8216 = vrot.slane %v7960, 6
  %v8217 = vrot.slane %v7961, 6
  %v8218 = vrot.slane %v7962, 6
  %v8219 = vrot.slane %v7963, 6
  %v8220 = vrot.slane %v7964, 6
  %v8221 = vrot.slane %v7965, 6
  %v8222 = vrot.slane %v7966, 6
  %v8223 = vrot.slane %v7967, 6
  %v8224 = vrot.slane %v7968, 6
  %v8225 = vrot.slane %v7969, 6
  %v8226 = vrot.slane %v7970, 6
  %v8227 = vrot.slane %v7971, 6
  %v8228 = vrot.slane %v7972, 6
  %v8229 = vrot.slane %v7973, 6
  %v8230 = vrot.slane %v7974, 6
  %v8231 = vrot.slane %v7975, 6
  %v8232 = vrot.slane %v7976, 6
  %v8233 = vrot.slane %v7977, 6
  %v8234 = vrot.slane %v7978, 6
  %v8235 = vrot.slane %v7979, 6
  %v8236 = vrot.slane %v7980, 6
  %v8269 = vadd.f32 %v8173, %v8205
  %v8270 = vadd.f32 %v8174, %v8206
  %v8271 = vadd.f32 %v8175, %v8207
  %v8272 = vadd.f32 %v8176, %v8208
  %v8273 = vadd.f32 %v8177, %v8209
  %v8274 = vadd.f32 %v8178, %v8210
  %v8275 = vadd.f32 %v8179, %v8211
  %v8276 = vadd.f32 %v8180, %v8212
  %v8277 = vadd.f32 %v8181, %v8213
  %v8278 = vadd.f32 %v8182, %v8214
  %v8279 = vadd.f32 %v8183, %v8215
  %v8280 = vadd.f32 %v8184, %v8216
  %v8281 = vadd.f32 %v8185, %v8217
  %v8282 = vadd.f32 %v8186, %v8218
  %v8283 = vadd.f32 %v8187, %v8219
  %v8284 = vadd.f32 %v8188, %v8220
  %v8285 = vadd.f32 %v8189, %v8221
  %v8286 = vadd.f32 %v8190, %v8222
  %v8287 = vadd.f32 %v8191, %v8223
  %v8288 = vadd.f32 %v8192, %v8224
  %v8289 = vadd.f32 %v8193, %v8225
  %v8290 = vadd.f32 %v8194, %v8226
  %v8291 = vadd.f32 %v8195, %v8227
  %v8292 = vadd.f32 %v8196, %v8228
  %v8293 = vadd.f32 %v8197, %v8229
  %v8294 = vadd.f32 %v8198, %v8230
  %v8295 = vadd.f32 %v8199, %v8231
  %v8296 = vadd.f32 %v8200, %v8232
  %v8297 = vadd.f32 %v8201, %v8233
  %v8298 = vadd.f32 %v8202, %v8234
  %v8299 = vadd.f32 %v8203, %v8235
  %v8300 = vadd.f32 %v8204, %v8236
  %v8333 = vrot.slane %v8270, 7
  %vm8334 = vcmask 1041409
  %v8335 = vsel %vm8334, %v8333, %v8269
  %v8336 = vrot.slane %v8271, 6
  %vm8337 = vcmask 1042434
  %v8338 = vsel %vm8337, %v8336, %v8335
  %v8339 = vrot.slane %v8272, 5
  %vm8340 = vcmask 1043459
  %v8341 = vsel %vm8340, %v8339, %v8338
  %v8342 = vrot.slane %v8274, 7
  %v8343 = vsel %vm8334, %v8342, %v8273
  %v8344 = vrot.slane %v8275, 6
  %v8345 = vsel %vm8337, %v8344, %v8343
  %v8346 = vrot.slane %v8276, 5
  %v8347 = vsel %vm8340, %v8346, %v8345
  %v8348 = vrot.slane %v8278, 7
  %v8349 = vsel %vm8334, %v8348, %v8277
  %v8350 = vrot.slane %v8279, 6
  %v8351 = vsel %vm8337, %v8350, %v8349
  %v8352 = vrot.slane %v8280, 5
  %v8353 = vsel %vm8340, %v8352, %v8351
  %v8354 = vrot.slane %v8282, 7
  %v8355 = vsel %vm8334, %v8354, %v8281
  %v8356 = vrot.slane %v8283, 6
  %v8357 = vsel %vm8337, %v8356, %v8355
  %v8358 = vrot.slane %v8284, 5
  %v8359 = vsel %vm8340, %v8358, %v8357
  %v8360 = vrot.slane %v8286, 7
  %v8361 = vsel %vm8334, %v8360, %v8285
  %v8362 = vrot.slane %v8287, 6
  %v8363 = vsel %vm8337, %v8362, %v8361
  %v8364 = vrot.slane %v8288, 5
  %v8365 = vsel %vm8340, %v8364, %v8363
  %v8366 = vrot.slane %v8290, 7
  %v8367 = vsel %vm8334, %v8366, %v8289
  %v8368 = vrot.slane %v8291, 6
  %v8369 = vsel %vm8337, %v8368, %v8367
  %v8370 = vrot.slane %v8292, 5
  %v8371 = vsel %vm8340, %v8370, %v8369
  %v8372 = vrot.slane %v8294, 7
  %v8373 = vsel %vm8334, %v8372, %v8293
  %v8374 = vrot.slane %v8295, 6
  %v8375 = vsel %vm8337, %v8374, %v8373
  %v8376 = vrot.slane %v8296, 5
  %v8377 = vsel %vm8340, %v8376, %v8375
  %v8378 = vrot.slane %v8298, 7
  %v8379 = vsel %vm8334, %v8378, %v8297
  %v8380 = vrot.slane %v8299, 6
  %v8381 = vsel %vm8337, %v8380, %v8379
  %v8382 = vrot.slane %v8300, 5
  %v8383 = vsel %vm8340, %v8382, %v8381
  %vm8392 = vcmask 1043456
  %v8393 = vsel %vm8392, %v8341, 0.0
  %v8394 = vrot.slane %v8393, 4
  %v8395 = vadd.f32 %v8393, %v8394
  %v8396 = vrot.slane %v8395, 2
  %v8397 = vadd.f32 %v8395, %v8396
  %v8398 = vrot.slane %v8397, 1
  %v8399 = vadd.f32 %v8397, %v8398
  %v8400 = vsel %vm8392, %v8347, 0.0
  %v8401 = vrot.slane %v8400, 4
  %v8402 = vadd.f32 %v8400, %v8401
  %v8403 = vrot.slane %v8402, 2
  %v8404 = vadd.f32 %v8402, %v8403
  %v8405 = vrot.slane %v8404, 1
  %v8406 = vadd.f32 %v8404, %v8405
  %v8407 = vsel %vm8392, %v8353, 0.0
  %v8408 = vrot.slane %v8407, 4
  %v8409 = vadd.f32 %v8407, %v8408
  %v8410 = vrot.slane %v8409, 2
  %v8411 = vadd.f32 %v8409, %v8410
  %v8412 = vrot.slane %v8411, 1
  %v8413 = vadd.f32 %v8411, %v8412
  %v8414 = vsel %vm8392, %v8359, 0.0
  %v8415 = vrot.slane %v8414, 4
  %v8416 = vadd.f32 %v8414, %v8415
  %v8417 = vrot.slane %v8416, 2
  %v8418 = vadd.f32 %v8416, %v8417
  %v8419 = vrot.slane %v8418, 1
  %v8420 = vadd.f32 %v8418, %v8419
  %v8421 = vsel %vm8392, %v8365, 0.0
  %v8422 = vrot.slane %v8421, 4
  %v8423 = vadd.f32 %v8421, %v8422
  %v8424 = vrot.slane %v8423, 2
  %v8425 = vadd.f32 %v8423, %v8424
  %v8426 = vrot.slane %v8425, 1
  %v8427 = vadd.f32 %v8425, %v8426
  %v8428 = vsel %vm8392, %v8371, 0.0
  %v8429 = vrot.slane %v8428, 4
  %v8430 = vadd.f32 %v8428, %v8429
  %v8431 = vrot.slane %v8430, 2
  %v8432 = vadd.f32 %v8430, %v8431
  %v8433 = vrot.slane %v8432, 1
  %v8434 = vadd.f32 %v8432, %v8433
  %v8435 = vsel %vm8392, %v8377, 0.0
  %v8436 = vrot.slane %v8435, 4
  %v8437 = vadd.f32 %v8435, %v8436
  %v8438 = vrot.slane %v8437, 2
  %v8439 = vadd.f32 %v8437, %v8438
  %v8440 = vrot.slane %v8439, 1
  %v8441 = vadd.f32 %v8439, %v8440
  %v8442 = vsel %vm8392, %v8383, 0.0
  %v8443 = vrot.slane %v8442, 4
  %v8444 = vadd.f32 %v8442, %v8443
  %v8445 = vrot.slane %v8444, 2
  %v8446 = vadd.f32 %v8444, %v8445
  %v8447 = vrot.slane %v8446, 1
  %v8448 = vadd.f32 %v8446, %v8447
  %v8449 = vmul.f32 %v8399, 0.0625
  %v8450 = vmul.f32 %v8406, 0.0625
  %v8451 = vmul.f32 %v8413, 0.0625
  %v8452 = vmul.f32 %v8420, 0.0625
  %v8453 = vmul.f32 %v8427, 0.0625
  %v8454 = vmul.f32 %v8434, 0.0625
  %v8455 = vmul.f32 %v8441, 0.0625
  %v8456 = vmul.f32 %v8448, 0.0625
  %v8465 = vrot.slane %v8450, 7
  %v8466 = vsel %vm8334, %v8465, %v8449
  %v8467 = vrot.slane %v8451, 6
  %v8468 = vsel %vm8337, %v8467, %v8466
  %v8469 = vrot.slane %v8452, 5
  %v8470 = vsel %vm8340, %v8469, %v8468
  %v8471 = vrot.slane %v8453, 4
  %vm8472 = vcmask 1044484
  %v8473 = vsel %vm8472, %v8471, %v8470
  %v8474 = vrot.slane %v8454, 3
  %vm8475 = vcmask 1045509
  %v8476 = vsel %vm8475, %v8474, %v8473
  %v8477 = vrot.slane %v8455, 2
  %vm8478 = vcmask 1046534
  %v8479 = vsel %vm8478, %v8477, %v8476
  %v8480 = vrot.slane %v8456, 1
  %vm8481 = vcmask 1047559
  %v8482 = vsel %vm8481, %v8480, %v8479
  %8484 = vst [vmem:[%s5] sm:$0xff] %v8482
  // Predicated region
  $region22: #{baby_conv_net.1} parent=0 // pred_check
    _
  $region23: #{baby_conv_net.1} parent=0 // pred_check_branch
    %8486 = sbr.rel (0) target = $region25
  $region24: #{baby_conv_net.1} parent=0 // pred_region
    _
  $region25: #{baby_conv_net.1} parent=0 // pred_fallthru
    _
  // Predicated region
  $region26: #{baby_conv_net.1} parent=0 // pred_check
    _
  $region27: #{baby_conv_net.1} parent=0 // pred_check_branch
    %8488 = sbr.rel (0) target = $region29
  $region28: #{baby_conv_net.1} parent=0 // pred_region
    _
  $region29: #{baby_conv_net.1} parent=0 // pred_fallthru
    _

</llo_original>
